<compile_context>
chip_gen: v7x
topology: tpu7x:2x2x1
jax: 0.10.0
libtpu: 0.0.40
codegen_flags: <defaults>
</compile_context>

<pallas_src>
import jax
import jax.numpy as jnp
from jax.experimental import pallas as pl
from jax.experimental.pallas import tpu as pltpu

SEQ = 8      # sequence length
BATCH = 2    # batch size
EMB = 32     # emb_dim
HID = 32     # hidden_dim
VOCAB = 50   # vocab size for the synthetic embedding matrix

BP = 8        # batch rows padded to one full f32 sublane group
GATE = 128    # padded fused gate width: [fwd H | bwd H | zero pad] -> lane aligned


# -----------------------------------------------------------------------------
# Pallas kernel: fused bidirectional GRU recurrence + MLP head, all in VMEM.
# -----------------------------------------------------------------------------
def discriminator_kernel(embfr_ref, h0_ref, bias_ref, whead_ref, hvec_ref, wbig_hbm,
                         out_ref, wA, wB, wC, gi0_ref, gi1a_ref, gi1b_ref, sem):
    TB, E2 = embfr_ref.shape            # (T*BP, 2E)
    _, BPk, G = h0_ref.shape            # (2, BP, G)
    T = TB // BPk
    G3 = 3 * G
    H2 = whead_ref.shape[0] // 2        # fused hidden width = 2 * hidden_dim
    B = out_ref.shape[0]

    # ---- kick off weight streaming from HBM; layer-0 block lands first ----
    cpA = pltpu.make_async_copy(wbig_hbm.at[0:E2 + H2, :], wA, sem.at[0])
    cpB = pltpu.make_async_copy(wbig_hbm.at[E2 + H2:E2 + 3 * H2, :], wB, sem.at[1])
    cpC = pltpu.make_async_copy(wbig_hbm.at[E2 + 3 * H2:E2 + 4 * H2, :], wC, sem.at[2])
    cpA.start()
    cpB.start()
    cpC.start()

    def gru_step(gi, gh, bn, h):
        # gate blocks r/z/n live at lane offsets 0 / G / 2G -> whole-vreg slices.
        # b_hh for r/z is already folded into gi; only the n-gate b_hh stays in-loop.
        r = jax.nn.sigmoid(gi[:, 0:G] + gh[:, 0:G])
        z = jax.nn.sigmoid(gi[:, G:2 * G] + gh[:, G:2 * G])
        n = jnp.tanh(gi[:, 2 * G:G3] + r * (gh[:, 2 * G:G3] + bn))
        return n + z * (h - n)

    # ---- layer 0 input projection: ONE slab matmul over [emb[s] | emb[T-1-s]] rows ----
    cpA.wait()
    gi0_ref[...] = (jnp.dot(embfr_ref[...], wA[0:E2, :],
                            preferred_element_type=jnp.float32)
                    + bias_ref[0:1, :])

    whh0 = wA[E2:E2 + H2, :]                                  # (2H, 3G) block-diag
    bn0 = jnp.broadcast_to(bias_ref[2:3, 0:G], (BPk, G))      # layer-0 n-gate b_hh
    b_gi1 = jnp.broadcast_to(bias_ref[1:2, :], (BPk, G3))     # layer-1 gi bias (folded)

    def project_l1(h64, s):
        # layer-1 input projection of layer-0 state q_s, done in the MXU shadow
        gi1a_ref[s * BPk:(s + 1) * BPk, :] = (
            jnp.dot(h64, wB[0:H2, :], preferred_element_type=jnp.float32) + b_gi1)
        gi1b_ref[s * BPk:(s + 1) * BPk, :] = jnp.dot(
            h64, wB[H2:2 * H2, :], preferred_element_type=jnp.float32)

    # ---- layer 0 recurrence (fwd & bwd fused); layer-1 projections ride 1 step behind ----
    h = h0_ref[0]
    waited_b = False
    for s in range(T):
        h64 = h[:, 0:H2]
        gh = jnp.dot(h64, whh0, preferred_element_type=jnp.float32)
        if s >= 1:
            if not waited_b:
                cpB.wait()
                waited_b = True
            project_l1(h64, s - 1)          # h64 here is q_{s-1}
        h = gru_step(gi0_ref[s * BPk:(s + 1) * BPk, :], gh, bn0, h)
    if not waited_b:
        cpB.wait()
    project_l1(h[:, 0:H2], T - 1)
    s0_final = h

    # ---- layer 1 recurrence ----
    cpC.wait()
    whh1 = wC[0:H2, :]
    bn1 = jnp.broadcast_to(bias_ref[3:4, 0:G], (BPk, G))
    h = h0_ref[1]
    for s in range(T):
        gi = (gi1a_ref[s * BPk:(s + 1) * BPk, :]
              + gi1b_ref[(T - 1 - s) * BPk:(T - s) * BPk, :])
        gh = jnp.dot(h[:, 0:H2], whh1, preferred_element_type=jnp.float32)
        h = gru_step(gi, gh, bn1, h)
    s1_final = h

    # ---- MLP head: gru2hidden (concat folded into two matmuls) + tanh + hidden2out ----
    z1 = jnp.tanh(jnp.dot(s0_final[:, 0:H2], whead_ref[0:H2, :],
                          preferred_element_type=jnp.float32)
                  + jnp.dot(s1_final[:, 0:H2], whead_ref[H2:2 * H2, :],
                            preferred_element_type=jnp.float32)
                  + hvec_ref[0:1, :])
    # hidden2out has out_features=1 -> VPU mul + lane reduce instead of an MXU push
    logits = jnp.sum(z1 * hvec_ref[1:2, :], axis=-1, keepdims=True) + hvec_ref[2:3, 0:1]
    out_ref[...] = jax.nn.sigmoid(logits[0:B, :])


# -----------------------------------------------------------------------------
# Wrapper-side fused weight assembly (layout plumbing only, all zero-free blocks).
# -----------------------------------------------------------------------------
def _fuse_in0(wih_f, wih_b, H, G, E):
    """(3H, E) fwd/bwd W_ih -> (2E, 3G): rows 0:E feed fwd gate cols, E:2E feed bwd cols."""
    w = jnp.zeros((2 * E, 3 * G), jnp.float32)
    for gt in range(3):
        w = w.at[0:E, gt * G:gt * G + H].set(wih_f[gt * H:(gt + 1) * H, :].T)
        w = w.at[E:2 * E, gt * G + H:gt * G + 2 * H].set(wih_b[gt * H:(gt + 1) * H, :].T)
    return w


def _fuse_hidden(whh_f, whh_b, H, G):
    """(3H, H) -> block-diagonal (2H, 3G): rows 0:H -> fwd gate cols, H:2H -> bwd cols."""
    w = jnp.zeros((2 * H, 3 * G), jnp.float32)
    for gt in range(3):
        w = w.at[0:H, gt * G:gt * G + H].set(whh_f[gt * H:(gt + 1) * H, :].T)
        w = w.at[H:2 * H, gt * G + H:gt * G + 2 * H].set(whh_b[gt * H:(gt + 1) * H, :].T)
    return w


def _fuse_layer1_input(wih_f, wih_b, H, G):
    """(3H, 2H) layer-1 W_ih -> A1, A2 (2H, 3G) with
       gi1[s] = q_s @ A1 + q_{T-1-s} @ A2 (+ bias), q_s = fused layer-0 state after step s."""
    wfT = wih_f.T      # (2H, 3H)
    wbT = wih_b.T
    a1 = jnp.zeros((2 * H, 3 * G), jnp.float32)
    a2 = jnp.zeros((2 * H, 3 * G), jnp.float32)
    for gt in range(3):
        # f0[s]        -> fwd gate cols     ;  b0[T-1-s]    -> bwd gate cols
        a1 = a1.at[0:H, gt * G:gt * G + H].set(wfT[0:H, gt * H:(gt + 1) * H])
        a1 = a1.at[H:2 * H, gt * G + H:gt * G + 2 * H].set(wbT[H:2 * H, gt * H:(gt + 1) * H])
        # f0[T-1-s]    -> bwd gate cols     ;  b0[s]        -> fwd gate cols
        a2 = a2.at[0:H, gt * G + H:gt * G + 2 * H].set(wbT[0:H, gt * H:(gt + 1) * H])
        a2 = a2.at[H:2 * H, gt * G:gt * G + H].set(wfT[H:2 * H, gt * H:(gt + 1) * H])
    return a1, a2


def _fuse_gi_bias(bih_f, bih_b, bhh_f, bhh_b, H, G):
    """b_ih (+ b_hh for r/z gates, which sit outside the r-multiply) fused fwd|bwd."""
    v = jnp.zeros((1, 3 * G), jnp.float32)
    for gt in range(3):
        bf = bih_f[gt * H:(gt + 1) * H]
        bb = bih_b[gt * H:(gt + 1) * H]
        if gt < 2:   # r and z: fold b_hh here; n-gate b_hh must stay inside r * (...)
            bf = bf + bhh_f[gt * H:(gt + 1) * H]
            bb = bb + bhh_b[gt * H:(gt + 1) * H]
        v = v.at[0, gt * G:gt * G + H].set(bf)
        v = v.at[0, gt * G + H:gt * G + 2 * H].set(bb)
    return v


def _fuse_n_bias(bhh_f, bhh_b, H, G):
    """n-gate b_hh, fused fwd|bwd, padded to a 3G row (only first G lanes used)."""
    v = jnp.zeros((1, 3 * G), jnp.float32)
    v = v.at[0, 0:H].set(bhh_f[2 * H:3 * H])
    v = v.at[0, H:2 * H].set(bhh_b[2 * H:3 * H])
    return v


# -----------------------------------------------------------------------------
# Parameter init (deterministic, PyTorch-like shapes).
# -----------------------------------------------------------------------------
def init_params(key):
    keys = jax.random.split(key, 24)
    it = iter(keys)

    def u(k, shape, scale):
        return jax.random.uniform(k, shape, jnp.float32, -scale, scale)

    params = {"embedding": jax.random.normal(next(it), (VOCAB, EMB), jnp.float32) * 0.1}

    s = 1.0 / float(jnp.sqrt(jnp.float32(HID)))
    gru = {}
    for layer in range(2):
        in_dim = EMB if layer == 0 else 2 * HID
        for tag in ("f", "b"):
            gru[f"wih{layer}{tag}"] = u(next(it), (3 * HID, in_dim), s)
            gru[f"whh{layer}{tag}"] = u(next(it), (3 * HID, HID), s)
            gru[f"bih{layer}{tag}"] = u(next(it), (3 * HID,), s)
            gru[f"bhh{layer}{tag}"] = u(next(it), (3 * HID,), s)
    params["gru"] = gru

    s1 = 1.0 / float(jnp.sqrt(jnp.float32(4 * HID)))
    params["w1"] = u(next(it), (HID, 4 * HID), s1)   # gru2hidden: Linear(4H, H)
    params["b1"] = u(next(it), (HID,), s1)
    s2 = 1.0 / float(jnp.sqrt(jnp.float32(HID)))
    params["w2"] = u(next(it), (1, HID), s2)         # hidden2out: Linear(H, 1)
    params["b2"] = u(next(it), (1,), s2)
    return params


# -----------------------------------------------------------------------------
# Wrapper: embedding gather (glue), fused weight assembly, pallas_call.
# -----------------------------------------------------------------------------
def discriminator_forward(params, tokens, h0):
    # tokens: (T, B) int32 ; h0: (4, B, H) float32
    T, B = tokens.shape
    H, G = HID, GATE
    E = params["embedding"].shape[1]
    gp = params["gru"]

    emb = jnp.take(params["embedding"], tokens, axis=0).astype(jnp.float32)  # (T, B, E)
    emb_p = jnp.zeros((T, BP, E), jnp.float32).at[:, :B, :].set(emb)
    embf = emb_p.reshape(T * BP, E)                  # step-ordered slab
    embr = emb_p[::-1].reshape(T * BP, E)            # time-reversed slab (bwd direction)
    embfr = jnp.concatenate([embf, embr], axis=1)    # (T*BP, 2E): one operand, one matmul

    # fused initial hidden [h_fwd | h_bwd | 0pad] per layer, padded to BP rows
    h0 = h0.astype(jnp.float32)
    h0f = jnp.zeros((2, BP, G), jnp.float32)
    h0f = h0f.at[0, :B, 0:H].set(h0[0]).at[0, :B, H:2 * H].set(h0[1])
    h0f = h0f.at[1, :B, 0:H].set(h0[2]).at[1, :B, H:2 * H].set(h0[3])

    # packed weight slab (zero rows removed): streamed HBM->VMEM inside the kernel
    w_i0 = _fuse_in0(gp["wih0f"], gp["wih0b"], H, G, E)        # (2E, 3G)
    whh0 = _fuse_hidden(gp["whh0f"], gp["whh0b"], H, G)        # (2H, 3G)
    a1, a2 = _fuse_layer1_input(gp["wih1f"], gp["wih1b"], H, G)
    whh1 = _fuse_hidden(gp["whh1f"], gp["whh1b"], H, G)
    wbig = jnp.concatenate([w_i0, whh0, a1, a2, whh1], axis=0)  # (2E+8H, 3G) = (320, 384)

    bias = jnp.concatenate([
        _fuse_gi_bias(gp["bih0f"], gp["bih0b"], gp["bhh0f"], gp["bhh0b"], H, G),
        _fuse_gi_bias(gp["bih1f"], gp["bih1b"], gp["bhh1f"], gp["bhh1b"], H, G),
        _fuse_n_bias(gp["bhh0f"], gp["bhh0b"], H, G),
        _fuse_n_bias(gp["bhh1f"], gp["bhh1b"], H, G),
    ], axis=0)                                                  # (4, 3G)

    # head: hid = [s0_final[:, :2H] | s1_final[:, :2H]] -> concat folded into 2 matmuls
    whead = params["w1"].T                                      # (4H, H)
    hvec = jnp.zeros((3, H), jnp.float32)
    hvec = hvec.at[0].set(params["b1"]).at[1].set(params["w2"][0]).at[2, 0].set(params["b2"][0])

    args = (embfr, h0f, bias, whead, hvec, wbig)
    out = pl.pallas_call(
        discriminator_kernel,
        out_shape=jax.ShapeDtypeStruct((B, 1), jnp.float32),
        in_specs=[pl.BlockSpec(memory_space=pltpu.MemorySpace.VMEM)] * 5
                 + [pl.BlockSpec(memory_space=pl.ANY)],
        out_specs=pl.BlockSpec(memory_space=pltpu.MemorySpace.VMEM),
        scratch_shapes=[
            pltpu.VMEM((2 * E + 2 * H, 3 * G), jnp.float32),   # wA: w_i0 + whh0
            pltpu.VMEM((4 * H, 3 * G), jnp.float32),           # wB: A1 + A2
            pltpu.VMEM((2 * H, 3 * G), jnp.float32),           # wC: whh1
            pltpu.VMEM((T * BP, 3 * G), jnp.float32),          # gi0 slab
            pltpu.VMEM((T * BP, 3 * G), jnp.float32),          # gi1a slab
            pltpu.VMEM((T * BP, 3 * G), jnp.float32),          # gi1b slab
            pltpu.SemaphoreType.DMA((3,)),
        ],
    )(*args)
    return out


# -----------------------------------------------------------------------------
# Pure-JAX reference for validation.
# -----------------------------------------------------------------------------
def reference_forward(params, tokens, h0):
    emb = jnp.take(params["embedding"], tokens, axis=0).astype(jnp.float32)
    gp = params["gru"]
    H = HID

    def cell(x, h, wih, whh, bih, bhh):
        gi = x @ wih.T + bih
        gh = h @ whh.T + bhh
        r = jax.nn.sigmoid(gi[:, :H] + gh[:, :H])
        z = jax.nn.sigmoid(gi[:, H:2 * H] + gh[:, H:2 * H])
        n = jnp.tanh(gi[:, 2 * H:] + r * gh[:, 2 * H:])
        return (1.0 - z) * n + z * h

    def run(inputs, h, layer, tag, reverse):
        wih, whh = gp[f"wih{layer}{tag}"], gp[f"whh{layer}{tag}"]
        bih, bhh = gp[f"bih{layer}{tag}"], gp[f"bhh{layer}{tag}"]
        T = inputs.shape[0]
        order = range(T - 1, -1, -1) if reverse else range(T)
        outs = [None] * T
        for t in order:
            h = cell(inputs[t], h, wih, whh, bih, bhh)
            outs[t] = h
        return jnp.stack(outs), h

    f0, hf0 = run(emb, h0[0], 0, "f", False)
    b0, hb0 = run(emb, h0[1], 0, "b", True)
    ys = jnp.concatenate([f0, b0], axis=-1)
    _, hf1 = run(ys, h0[2], 1, "f", False)
    _, hb1 = run(ys, h0[3], 1, "b", True)
    hid = jnp.concatenate([hf0, hb0, hf1, hb1], axis=-1)
    z1 = jnp.tanh(hid @ params["w1"].T + params["b1"])
    return jax.nn.sigmoid(z1 @ params["w2"].T + params["b2"])


if __name__ == "__main__":
    key = jax.random.PRNGKey(0)
    pkey, tkey = jax.random.split(key)
    params = init_params(pkey)

    # batchClassify semantics: tokens arrive as (seq_len, batch), hidden is zeros.
    tokens = jax.random.randint(tkey, (SEQ, BATCH), 0, VOCAB, dtype=jnp.int32)
    h0 = jnp.zeros((2 * 2 * 1, BATCH, HID), jnp.float32)

    fwd = jax.jit(discriminator_forward)
    out = fwd(params, tokens, h0)
    out = jax.block_until_ready(out)

    ref = reference_forward(params, tokens, h0)
    assert out.shape == (BATCH, 1), out.shape
    assert bool(jnp.all(jnp.isfinite(out)))
    assert bool(jnp.allclose(out, ref, atol=1e-3, rtol=1e-3)), (out, ref)
    print("KERNEL_OK")
</pallas_src>

<mosaic_0001>
module attributes {stable_mosaic.version = 11 : i64} {
  func.func @discriminator_kernel(%arg0: memref<64x64xf32, #tpu.memory_space<vmem>>, %arg1: memref<2x8x128xf32, #tpu.memory_space<vmem>>, %arg2: memref<4x384xf32, #tpu.memory_space<vmem>>, %arg3: memref<128x32xf32, #tpu.memory_space<vmem>>, %arg4: memref<3x32xf32, #tpu.memory_space<vmem>>, %arg5: memref<320x384xf32, #tpu.memory_space<any>>, %arg6: memref<2x1xf32, #tpu.memory_space<vmem>>, %arg7: memref<128x384xf32, #tpu.memory_space<vmem>>, %arg8: memref<128x384xf32, #tpu.memory_space<vmem>>, %arg9: memref<64x384xf32, #tpu.memory_space<vmem>>, %arg10: memref<64x384xf32, #tpu.memory_space<vmem>>, %arg11: memref<64x384xf32, #tpu.memory_space<vmem>>, %arg12: memref<64x384xf32, #tpu.memory_space<vmem>>, %arg13: memref<3x!tpu.dma_semaphore, #tpu.memory_space<semaphore_mem>>) attributes {dimension_semantics = [], scalar_prefetch = 0 : i64, scratch_operands = 7 : i64, tpu.core_type = #tpu.core_type<tc>} {
    %c0_i32 = arith.constant 0 : i32
    %c0_i32_0 = arith.constant 0 : i32
    %c0_i32_1 = arith.constant 0 : i32
    %0 = tpu.memref_slice %arg5[%c0_i32_0, %c0_i32_1] : memref<320x384xf32, #tpu.memory_space<any>> -> memref<128x384xf32, #tpu.memory_space<any>>
    %1 = tpu.memref_slice %arg13[%c0_i32] : memref<3x!tpu.dma_semaphore, #tpu.memory_space<semaphore_mem>> -> memref<1x!tpu.dma_semaphore, #tpu.memory_space<semaphore_mem>>
    %2 = tpu.memref_squeeze %1 : memref<1x!tpu.dma_semaphore, #tpu.memory_space<semaphore_mem>> -> memref<!tpu.dma_semaphore, #tpu.memory_space<semaphore_mem>>
    tpu.enqueue_dma source(%0 : memref<128x384xf32, #tpu.memory_space<any>>) target(%arg7 : memref<128x384xf32, #tpu.memory_space<vmem>>) target_semaphore(%2 : memref<!tpu.dma_semaphore, #tpu.memory_space<semaphore_mem>>)
    %c1_i32 = arith.constant 1 : i32
    %c128_i32 = arith.constant 128 : i32
    %c0_i32_2 = arith.constant 0 : i32
    %3 = tpu.memref_slice %arg5[%c128_i32, %c0_i32_2] : memref<320x384xf32, #tpu.memory_space<any>> -> memref<128x384xf32, #tpu.memory_space<any>>
    %4 = tpu.memref_slice %arg13[%c1_i32] : memref<3x!tpu.dma_semaphore, #tpu.memory_space<semaphore_mem>> -> memref<1x!tpu.dma_semaphore, #tpu.memory_space<semaphore_mem>>
    %5 = tpu.memref_squeeze %4 : memref<1x!tpu.dma_semaphore, #tpu.memory_space<semaphore_mem>> -> memref<!tpu.dma_semaphore, #tpu.memory_space<semaphore_mem>>
    tpu.enqueue_dma source(%3 : memref<128x384xf32, #tpu.memory_space<any>>) target(%arg8 : memref<128x384xf32, #tpu.memory_space<vmem>>) target_semaphore(%5 : memref<!tpu.dma_semaphore, #tpu.memory_space<semaphore_mem>>)
    %c2_i32 = arith.constant 2 : i32
    %c256_i32 = arith.constant 256 : i32
    %c0_i32_3 = arith.constant 0 : i32
    %6 = tpu.memref_slice %arg5[%c256_i32, %c0_i32_3] : memref<320x384xf32, #tpu.memory_space<any>> -> memref<64x384xf32, #tpu.memory_space<any>>
    %7 = tpu.memref_slice %arg13[%c2_i32] : memref<3x!tpu.dma_semaphore, #tpu.memory_space<semaphore_mem>> -> memref<1x!tpu.dma_semaphore, #tpu.memory_space<semaphore_mem>>
    %8 = tpu.memref_squeeze %7 : memref<1x!tpu.dma_semaphore, #tpu.memory_space<semaphore_mem>> -> memref<!tpu.dma_semaphore, #tpu.memory_space<semaphore_mem>>
    tpu.enqueue_dma source(%6 : memref<64x384xf32, #tpu.memory_space<any>>) target(%arg9 : memref<64x384xf32, #tpu.memory_space<vmem>>) target_semaphore(%8 : memref<!tpu.dma_semaphore, #tpu.memory_space<semaphore_mem>>)
    %c0_i32_4 = arith.constant 0 : i32
    %c0_i32_5 = arith.constant 0 : i32
    %c0_i32_6 = arith.constant 0 : i32
    %9 = tpu.memref_slice %arg5[%c0_i32_5, %c0_i32_6] : memref<320x384xf32, #tpu.memory_space<any>> -> memref<128x384xf32, #tpu.memory_space<any>>
    %10 = tpu.memref_slice %arg13[%c0_i32_4] : memref<3x!tpu.dma_semaphore, #tpu.memory_space<semaphore_mem>> -> memref<1x!tpu.dma_semaphore, #tpu.memory_space<semaphore_mem>>
    %11 = tpu.memref_squeeze %10 : memref<1x!tpu.dma_semaphore, #tpu.memory_space<semaphore_mem>> -> memref<!tpu.dma_semaphore, #tpu.memory_space<semaphore_mem>>
    tpu.wait_dma2 semaphore(%11 : memref<!tpu.dma_semaphore, #tpu.memory_space<semaphore_mem>>) src(%9 : memref<128x384xf32, #tpu.memory_space<any>>) dst(%arg7 : memref<128x384xf32, #tpu.memory_space<vmem>>)
    %c0 = arith.constant 0 : index
    %c0_7 = arith.constant 0 : index
    %12 = vector.load %arg0[%c0, %c0_7] : memref<64x64xf32, #tpu.memory_space<vmem>>, vector<64x64xf32>
    %c0_8 = arith.constant 0 : index
    %c0_9 = arith.constant 0 : index
    %13 = vector.load %arg7[%c0_8, %c0_9] : memref<128x384xf32, #tpu.memory_space<vmem>>, vector<64x384xf32>
    %cst = arith.constant dense<0.000000e+00> : vector<64x384xf32>
    %14 = tpu.matmul %12, %13, %cst {dimension_numbers = #tpu.dot_dimension_numbers<[1], [0], [0], [1], [0, 0, 1, 1], [], []>} : vector<64x64xf32>, vector<64x384xf32>, vector<64x384xf32> -> vector<64x384xf32>
    %c0_10 = arith.constant 0 : index
    %c0_11 = arith.constant 0 : index
    %15 = vector.load %arg2[%c0_10, %c0_11] : memref<4x384xf32, #tpu.memory_space<vmem>>, vector<1x384xf32>
    %16 = vector.broadcast %15 : vector<1x384xf32> to vector<64x384xf32>
    %17 = arith.addf %14, %16 : vector<64x384xf32>
    %c0_12 = arith.constant 0 : index
    %c0_13 = arith.constant 0 : index
    %18 = vector.load %arg10[%c0_12, %c0_13] : memref<64x384xf32, #tpu.memory_space<vmem>>, vector<64x384xf32>
    tpu.vector_store %arg10[%c0_12, %c0_13], %17 {strides = array<i32>} : memref<64x384xf32, #tpu.memory_space<vmem>>, vector<64x384xf32>,
    %c64 = arith.constant 64 : index
    %c0_14 = arith.constant 0 : index
    %19 = vector.load %arg7[%c64, %c0_14] : memref<128x384xf32, #tpu.memory_space<vmem>>, vector<64x384xf32>
    %c2 = arith.constant 2 : index
    %c0_15 = arith.constant 0 : index
    %20 = vector.load %arg2[%c2, %c0_15] : memref<4x384xf32, #tpu.memory_space<vmem>>, vector<1x128xf32>
    %21 = vector.shape_cast %20 : vector<1x128xf32> to vector<1x128xf32>
    %22 = vector.broadcast %21 : vector<1x128xf32> to vector<8x128xf32>
    %c1 = arith.constant 1 : index
    %c0_16 = arith.constant 0 : index
    %23 = vector.load %arg2[%c1, %c0_16] : memref<4x384xf32, #tpu.memory_space<vmem>>, vector<1x384xf32>
    %24 = vector.shape_cast %23 : vector<1x384xf32> to vector<1x384xf32>
    %25 = vector.broadcast %24 : vector<1x384xf32> to vector<8x384xf32>
    %c0_17 = arith.constant 0 : index
    %c0_18 = arith.constant 0 : index
    %c0_19 = arith.constant 0 : index
    %26 = vector.load %arg1[%c0_17, %c0_18, %c0_19] : memref<2x8x128xf32, #tpu.memory_space<vmem>>, vector<1x8x128xf32>
    %27 = vector.shape_cast %26 : vector<1x8x128xf32> to vector<8x128xf32>
    %28 = vector.extract_strided_slice %27 {offsets = [0, 0], sizes = [8, 64], strides = [1, 1]} : vector<8x128xf32> to vector<8x64xf32>
    %cst_20 = arith.constant dense<0.000000e+00> : vector<8x384xf32>
    %29 = tpu.matmul %28, %19, %cst_20 {dimension_numbers = #tpu.dot_dimension_numbers<[1], [0], [0], [1], [0, 0, 1, 1], [], []>} : vector<8x64xf32>, vector<64x384xf32>, vector<8x384xf32> -> vector<8x384xf32>
    %c0_21 = arith.constant 0 : index
    %c0_22 = arith.constant 0 : index
    %30 = vector.load %arg10[%c0_21, %c0_22] : memref<64x384xf32, #tpu.memory_space<vmem>>, vector<8x384xf32>
    %31 = vector.extract_strided_slice %30 {offsets = [0, 0], sizes = [8, 128], strides = [1, 1]} : vector<8x384xf32> to vector<8x128xf32>
    %32 = vector.extract_strided_slice %29 {offsets = [0, 0], sizes = [8, 128], strides = [1, 1]} : vector<8x384xf32> to vector<8x128xf32>
    %33 = arith.addf %31, %32 : vector<8x128xf32>
    %34 = arith.negf %33 : vector<8x128xf32>
    %35 = math.exp %34 : vector<8x128xf32>
    %cst_23 = arith.constant 1.000000e+00 : f32
    %36 = vector.broadcast %cst_23 : f32 to vector<8x128xf32>
    %37 = arith.addf %36, %35 : vector<8x128xf32>
    %38 = arith.divf %36, %37 : vector<8x128xf32>
    %39 = vector.extract_strided_slice %30 {offsets = [0, 128], sizes = [8, 128], strides = [1, 1]} : vector<8x384xf32> to vector<8x128xf32>
    %40 = vector.extract_strided_slice %29 {offsets = [0, 128], sizes = [8, 128], strides = [1, 1]} : vector<8x384xf32> to vector<8x128xf32>
    %41 = arith.addf %39, %40 : vector<8x128xf32>
    %42 = arith.negf %41 : vector<8x128xf32>
    %43 = math.exp %42 : vector<8x128xf32>
    %cst_24 = arith.constant 1.000000e+00 : f32
    %44 = vector.broadcast %cst_24 : f32 to vector<8x128xf32>
    %45 = arith.addf %44, %43 : vector<8x128xf32>
    %46 = arith.divf %44, %45 : vector<8x128xf32>
    %47 = vector.extract_strided_slice %30 {offsets = [0, 256], sizes = [8, 128], strides = [1, 1]} : vector<8x384xf32> to vector<8x128xf32>
    %48 = vector.extract_strided_slice %29 {offsets = [0, 256], sizes = [8, 128], strides = [1, 1]} : vector<8x384xf32> to vector<8x128xf32>
    %49 = arith.addf %48, %22 : vector<8x128xf32>
    %50 = arith.mulf %38, %49 : vector<8x128xf32>
    %51 = arith.addf %47, %50 : vector<8x128xf32>
    %52 = math.tanh %51 : vector<8x128xf32>
    %53 = arith.subf %27, %52 : vector<8x128xf32>
    %54 = arith.mulf %46, %53 : vector<8x128xf32>
    %55 = arith.addf %52, %54 : vector<8x128xf32>
    %56 = vector.extract_strided_slice %55 {offsets = [0, 0], sizes = [8, 64], strides = [1, 1]} : vector<8x128xf32> to vector<8x64xf32>
    %cst_25 = arith.constant dense<0.000000e+00> : vector<8x384xf32>
    %57 = tpu.matmul %56, %19, %cst_25 {dimension_numbers = #tpu.dot_dimension_numbers<[1], [0], [0], [1], [0, 0, 1, 1], [], []>} : vector<8x64xf32>, vector<64x384xf32>, vector<8x384xf32> -> vector<8x384xf32>
    %c1_i32_26 = arith.constant 1 : i32
    %c128_i32_27 = arith.constant 128 : i32
    %c0_i32_28 = arith.constant 0 : i32
    %58 = tpu.memref_slice %arg5[%c128_i32_27, %c0_i32_28] : memref<320x384xf32, #tpu.memory_space<any>> -> memref<128x384xf32, #tpu.memory_space<any>>
    %59 = tpu.memref_slice %arg13[%c1_i32_26] : memref<3x!tpu.dma_semaphore, #tpu.memory_space<semaphore_mem>> -> memref<1x!tpu.dma_semaphore, #tpu.memory_space<semaphore_mem>>
    %60 = tpu.memref_squeeze %59 : memref<1x!tpu.dma_semaphore, #tpu.memory_space<semaphore_mem>> -> memref<!tpu.dma_semaphore, #tpu.memory_space<semaphore_mem>>
    tpu.wait_dma2 semaphore(%60 : memref<!tpu.dma_semaphore, #tpu.memory_space<semaphore_mem>>) src(%58 : memref<128x384xf32, #tpu.memory_space<any>>) dst(%arg8 : memref<128x384xf32, #tpu.memory_space<vmem>>)
    %c0_29 = arith.constant 0 : index
    %c0_30 = arith.constant 0 : index
    %61 = vector.load %arg8[%c0_29, %c0_30] : memref<128x384xf32, #tpu.memory_space<vmem>>, vector<64x384xf32>
    %cst_31 = arith.constant dense<0.000000e+00> : vector<8x384xf32>
    %62 = tpu.matmul %56, %61, %cst_31 {dimension_numbers = #tpu.dot_dimension_numbers<[1], [0], [0], [1], [0, 0, 1, 1], [], []>} : vector<8x64xf32>, vector<64x384xf32>, vector<8x384xf32> -> vector<8x384xf32>
    %63 = arith.addf %62, %25 : vector<8x384xf32>
    %c0_32 = arith.constant 0 : index
    %c0_33 = arith.constant 0 : index
    %64 = vector.load %arg11[%c0_32, %c0_33] : memref<64x384xf32, #tpu.memory_space<vmem>>, vector<8x384xf32>
    tpu.vector_store %arg11[%c0_32, %c0_33], %63 {strides = array<i32>} : memref<64x384xf32, #tpu.memory_space<vmem>>, vector<8x384xf32>,
    %c64_34 = arith.constant 64 : index
    %c0_35 = arith.constant 0 : index
    %65 = vector.load %arg8[%c64_34, %c0_35] : memref<128x384xf32, #tpu.memory_space<vmem>>, vector<64x384xf32>
    %cst_36 = arith.constant dense<0.000000e+00> : vector<8x384xf32>
    %66 = tpu.matmul %56, %65, %cst_36 {dimension_numbers = #tpu.dot_dimension_numbers<[1], [0], [0], [1], [0, 0, 1, 1], [], []>} : vector<8x64xf32>, vector<64x384xf32>, vector<8x384xf32> -> vector<8x384xf32>
    %c0_37 = arith.constant 0 : index
    %c0_38 = arith.constant 0 : index
    %67 = vector.load %arg12[%c0_37, %c0_38] : memref<64x384xf32, #tpu.memory_space<vmem>>, vector<8x384xf32>
    tpu.vector_store %arg12[%c0_37, %c0_38], %66 {strides = array<i32>} : memref<64x384xf32, #tpu.memory_space<vmem>>, vector<8x384xf32>,
    %c8 = arith.constant 8 : index
    %c0_39 = arith.constant 0 : index
    %68 = vector.load %arg10[%c8, %c0_39] : memref<64x384xf32, #tpu.memory_space<vmem>>, vector<8x384xf32>
    %69 = vector.extract_strided_slice %68 {offsets = [0, 0], sizes = [8, 128], strides = [1, 1]} : vector<8x384xf32> to vector<8x128xf32>
    %70 = vector.extract_strided_slice %57 {offsets = [0, 0], sizes = [8, 128], strides = [1, 1]} : vector<8x384xf32> to vector<8x128xf32>
    %71 = arith.addf %69, %70 : vector<8x128xf32>
    %72 = arith.negf %71 : vector<8x128xf32>
    %73 = math.exp %72 : vector<8x128xf32>
    %cst_40 = arith.constant 1.000000e+00 : f32
    %74 = vector.broadcast %cst_40 : f32 to vector<8x128xf32>
    %75 = arith.addf %74, %73 : vector<8x128xf32>
    %76 = arith.divf %74, %75 : vector<8x128xf32>
    %77 = vector.extract_strided_slice %68 {offsets = [0, 128], sizes = [8, 128], strides = [1, 1]} : vector<8x384xf32> to vector<8x128xf32>
    %78 = vector.extract_strided_slice %57 {offsets = [0, 128], sizes = [8, 128], strides = [1, 1]} : vector<8x384xf32> to vector<8x128xf32>
    %79 = arith.addf %77, %78 : vector<8x128xf32>
    %80 = arith.negf %79 : vector<8x128xf32>
    %81 = math.exp %80 : vector<8x128xf32>
    %cst_41 = arith.constant 1.000000e+00 : f32
    %82 = vector.broadcast %cst_41 : f32 to vector<8x128xf32>
    %83 = arith.addf %82, %81 : vector<8x128xf32>
    %84 = arith.divf %82, %83 : vector<8x128xf32>
    %85 = vector.extract_strided_slice %68 {offsets = [0, 256], sizes = [8, 128], strides = [1, 1]} : vector<8x384xf32> to vector<8x128xf32>
    %86 = vector.extract_strided_slice %57 {offsets = [0, 256], sizes = [8, 128], strides = [1, 1]} : vector<8x384xf32> to vector<8x128xf32>
    %87 = arith.addf %86, %22 : vector<8x128xf32>
    %88 = arith.mulf %76, %87 : vector<8x128xf32>
    %89 = arith.addf %85, %88 : vector<8x128xf32>
    %90 = math.tanh %89 : vector<8x128xf32>
    %91 = arith.subf %55, %90 : vector<8x128xf32>
    %92 = arith.mulf %84, %91 : vector<8x128xf32>
    %93 = arith.addf %90, %92 : vector<8x128xf32>
    %94 = vector.extract_strided_slice %93 {offsets = [0, 0], sizes = [8, 64], strides = [1, 1]} : vector<8x128xf32> to vector<8x64xf32>
    %cst_42 = arith.constant dense<0.000000e+00> : vector<8x384xf32>
    %95 = tpu.matmul %94, %19, %cst_42 {dimension_numbers = #tpu.dot_dimension_numbers<[1], [0], [0], [1], [0, 0, 1, 1], [], []>} : vector<8x64xf32>, vector<64x384xf32>, vector<8x384xf32> -> vector<8x384xf32>
    %c0_43 = arith.constant 0 : index
    %c0_44 = arith.constant 0 : index
    %96 = vector.load %arg8[%c0_43, %c0_44] : memref<128x384xf32, #tpu.memory_space<vmem>>, vector<64x384xf32>
    %cst_45 = arith.constant dense<0.000000e+00> : vector<8x384xf32>
    %97 = tpu.matmul %94, %96, %cst_45 {dimension_numbers = #tpu.dot_dimension_numbers<[1], [0], [0], [1], [0, 0, 1, 1], [], []>} : vector<8x64xf32>, vector<64x384xf32>, vector<8x384xf32> -> vector<8x384xf32>
    %98 = arith.addf %97, %25 : vector<8x384xf32>
    %c8_46 = arith.constant 8 : index
    %c0_47 = arith.constant 0 : index
    %99 = vector.load %arg11[%c8_46, %c0_47] : memref<64x384xf32, #tpu.memory_space<vmem>>, vector<8x384xf32>
    tpu.vector_store %arg11[%c8_46, %c0_47], %98 {strides = array<i32>} : memref<64x384xf32, #tpu.memory_space<vmem>>, vector<8x384xf32>,
    %c64_48 = arith.constant 64 : index
    %c0_49 = arith.constant 0 : index
    %100 = vector.load %arg8[%c64_48, %c0_49] : memref<128x384xf32, #tpu.memory_space<vmem>>, vector<64x384xf32>
    %cst_50 = arith.constant dense<0.000000e+00> : vector<8x384xf32>
    %101 = tpu.matmul %94, %100, %cst_50 {dimension_numbers = #tpu.dot_dimension_numbers<[1], [0], [0], [1], [0, 0, 1, 1], [], []>} : vector<8x64xf32>, vector<64x384xf32>, vector<8x384xf32> -> vector<8x384xf32>
    %c8_51 = arith.constant 8 : index
    %c0_52 = arith.constant 0 : index
    %102 = vector.load %arg12[%c8_51, %c0_52] : memref<64x384xf32, #tpu.memory_space<vmem>>, vector<8x384xf32>
    tpu.vector_store %arg12[%c8_51, %c0_52], %101 {strides = array<i32>} : memref<64x384xf32, #tpu.memory_space<vmem>>, vector<8x384xf32>,
    %c16 = arith.constant 16 : index
    %c0_53 = arith.constant 0 : index
    %103 = vector.load %arg10[%c16, %c0_53] : memref<64x384xf32, #tpu.memory_space<vmem>>, vector<8x384xf32>
    %104 = vector.extract_strided_slice %103 {offsets = [0, 0], sizes = [8, 128], strides = [1, 1]} : vector<8x384xf32> to vector<8x128xf32>
    %105 = vector.extract_strided_slice %95 {offsets = [0, 0], sizes = [8, 128], strides = [1, 1]} : vector<8x384xf32> to vector<8x128xf32>
    %106 = arith.addf %104, %105 : vector<8x128xf32>
    %107 = arith.negf %106 : vector<8x128xf32>
    %108 = math.exp %107 : vector<8x128xf32>
    %cst_54 = arith.constant 1.000000e+00 : f32
    %109 = vector.broadcast %cst_54 : f32 to vector<8x128xf32>
    %110 = arith.addf %109, %108 : vector<8x128xf32>
    %111 = arith.divf %109, %110 : vector<8x128xf32>
    %112 = vector.extract_strided_slice %103 {offsets = [0, 128], sizes = [8, 128], strides = [1, 1]} : vector<8x384xf32> to vector<8x128xf32>
    %113 = vector.extract_strided_slice %95 {offsets = [0, 128], sizes = [8, 128], strides = [1, 1]} : vector<8x384xf32> to vector<8x128xf32>
    %114 = arith.addf %112, %113 : vector<8x128xf32>
    %115 = arith.negf %114 : vector<8x128xf32>
    %116 = math.exp %115 : vector<8x128xf32>
    %cst_55 = arith.constant 1.000000e+00 : f32
    %117 = vector.broadcast %cst_55 : f32 to vector<8x128xf32>
    %118 = arith.addf %117, %116 : vector<8x128xf32>
    %119 = arith.divf %117, %118 : vector<8x128xf32>
    %120 = vector.extract_strided_slice %103 {offsets = [0, 256], sizes = [8, 128], strides = [1, 1]} : vector<8x384xf32> to vector<8x128xf32>
    %121 = vector.extract_strided_slice %95 {offsets = [0, 256], sizes = [8, 128], strides = [1, 1]} : vector<8x384xf32> to vector<8x128xf32>
    %122 = arith.addf %121, %22 : vector<8x128xf32>
    %123 = arith.mulf %111, %122 : vector<8x128xf32>
    %124 = arith.addf %120, %123 : vector<8x128xf32>
    %125 = math.tanh %124 : vector<8x128xf32>
    %126 = arith.subf %93, %125 : vector<8x128xf32>
    %127 = arith.mulf %119, %126 : vector<8x128xf32>
    %128 = arith.addf %125, %127 : vector<8x128xf32>
    %129 = vector.extract_strided_slice %128 {offsets = [0, 0], sizes = [8, 64], strides = [1, 1]} : vector<8x128xf32> to vector<8x64xf32>
    %cst_56 = arith.constant dense<0.000000e+00> : vector<8x384xf32>
    %130 = tpu.matmul %129, %19, %cst_56 {dimension_numbers = #tpu.dot_dimension_numbers<[1], [0], [0], [1], [0, 0, 1, 1], [], []>} : vector<8x64xf32>, vector<64x384xf32>, vector<8x384xf32> -> vector<8x384xf32>
    %c0_57 = arith.constant 0 : index
    %c0_58 = arith.constant 0 : index
    %131 = vector.load %arg8[%c0_57, %c0_58] : memref<128x384xf32, #tpu.memory_space<vmem>>, vector<64x384xf32>
    %cst_59 = arith.constant dense<0.000000e+00> : vector<8x384xf32>
    %132 = tpu.matmul %129, %131, %cst_59 {dimension_numbers = #tpu.dot_dimension_numbers<[1], [0], [0], [1], [0, 0, 1, 1], [], []>} : vector<8x64xf32>, vector<64x384xf32>, vector<8x384xf32> -> vector<8x384xf32>
    %133 = arith.addf %132, %25 : vector<8x384xf32>
    %c16_60 = arith.constant 16 : index
    %c0_61 = arith.constant 0 : index
    %134 = vector.load %arg11[%c16_60, %c0_61] : memref<64x384xf32, #tpu.memory_space<vmem>>, vector<8x384xf32>
    tpu.vector_store %arg11[%c16_60, %c0_61], %133 {strides = array<i32>} : memref<64x384xf32, #tpu.memory_space<vmem>>, vector<8x384xf32>,
    %c64_62 = arith.constant 64 : index
    %c0_63 = arith.constant 0 : index
    %135 = vector.load %arg8[%c64_62, %c0_63] : memref<128x384xf32, #tpu.memory_space<vmem>>, vector<64x384xf32>
    %cst_64 = arith.constant dense<0.000000e+00> : vector<8x384xf32>
    %136 = tpu.matmul %129, %135, %cst_64 {dimension_numbers = #tpu.dot_dimension_numbers<[1], [0], [0], [1], [0, 0, 1, 1], [], []>} : vector<8x64xf32>, vector<64x384xf32>, vector<8x384xf32> -> vector<8x384xf32>
    %c16_65 = arith.constant 16 : index
    %c0_66 = arith.constant 0 : index
    %137 = vector.load %arg12[%c16_65, %c0_66] : memref<64x384xf32, #tpu.memory_space<vmem>>, vector<8x384xf32>
    tpu.vector_store %arg12[%c16_65, %c0_66], %136 {strides = array<i32>} : memref<64x384xf32, #tpu.memory_space<vmem>>, vector<8x384xf32>,
    %c24 = arith.constant 24 : index
    %c0_67 = arith.constant 0 : index
    %138 = vector.load %arg10[%c24, %c0_67] : memref<64x384xf32, #tpu.memory_space<vmem>>, vector<8x384xf32>
    %139 = vector.extract_strided_slice %138 {offsets = [0, 0], sizes = [8, 128], strides = [1, 1]} : vector<8x384xf32> to vector<8x128xf32>
    %140 = vector.extract_strided_slice %130 {offsets = [0, 0], sizes = [8, 128], strides = [1, 1]} : vector<8x384xf32> to vector<8x128xf32>
    %141 = arith.addf %139, %140 : vector<8x128xf32>
    %142 = arith.negf %141 : vector<8x128xf32>
    %143 = math.exp %142 : vector<8x128xf32>
    %cst_68 = arith.constant 1.000000e+00 : f32
    %144 = vector.broadcast %cst_68 : f32 to vector<8x128xf32>
    %145 = arith.addf %144, %143 : vector<8x128xf32>
    %146 = arith.divf %144, %145 : vector<8x128xf32>
    %147 = vector.extract_strided_slice %138 {offsets = [0, 128], sizes = [8, 128], strides = [1, 1]} : vector<8x384xf32> to vector<8x128xf32>
    %148 = vector.extract_strided_slice %130 {offsets = [0, 128], sizes = [8, 128], strides = [1, 1]} : vector<8x384xf32> to vector<8x128xf32>
    %149 = arith.addf %147, %148 : vector<8x128xf32>
    %150 = arith.negf %149 : vector<8x128xf32>
    %151 = math.exp %150 : vector<8x128xf32>
    %cst_69 = arith.constant 1.000000e+00 : f32
    %152 = vector.broadcast %cst_69 : f32 to vector<8x128xf32>
    %153 = arith.addf %152, %151 : vector<8x128xf32>
    %154 = arith.divf %152, %153 : vector<8x128xf32>
    %155 = vector.extract_strided_slice %138 {offsets = [0, 256], sizes = [8, 128], strides = [1, 1]} : vector<8x384xf32> to vector<8x128xf32>
    %156 = vector.extract_strided_slice %130 {offsets = [0, 256], sizes = [8, 128], strides = [1, 1]} : vector<8x384xf32> to vector<8x128xf32>
    %157 = arith.addf %156, %22 : vector<8x128xf32>
    %158 = arith.mulf %146, %157 : vector<8x128xf32>
    %159 = arith.addf %155, %158 : vector<8x128xf32>
    %160 = math.tanh %159 : vector<8x128xf32>
    %161 = arith.subf %128, %160 : vector<8x128xf32>
    %162 = arith.mulf %154, %161 : vector<8x128xf32>
    %163 = arith.addf %160, %162 : vector<8x128xf32>
    %164 = vector.extract_strided_slice %163 {offsets = [0, 0], sizes = [8, 64], strides = [1, 1]} : vector<8x128xf32> to vector<8x64xf32>
    %cst_70 = arith.constant dense<0.000000e+00> : vector<8x384xf32>
    %165 = tpu.matmul %164, %19, %cst_70 {dimension_numbers = #tpu.dot_dimension_numbers<[1], [0], [0], [1], [0, 0, 1, 1], [], []>} : vector<8x64xf32>, vector<64x384xf32>, vector<8x384xf32> -> vector<8x384xf32>
    %c0_71 = arith.constant 0 : index
    %c0_72 = arith.constant 0 : index
    %166 = vector.load %arg8[%c0_71, %c0_72] : memref<128x384xf32, #tpu.memory_space<vmem>>, vector<64x384xf32>
    %cst_73 = arith.constant dense<0.000000e+00> : vector<8x384xf32>
    %167 = tpu.matmul %164, %166, %cst_73 {dimension_numbers = #tpu.dot_dimension_numbers<[1], [0], [0], [1], [0, 0, 1, 1], [], []>} : vector<8x64xf32>, vector<64x384xf32>, vector<8x384xf32> -> vector<8x384xf32>
    %168 = arith.addf %167, %25 : vector<8x384xf32>
    %c24_74 = arith.constant 24 : index
    %c0_75 = arith.constant 0 : index
    %169 = vector.load %arg11[%c24_74, %c0_75] : memref<64x384xf32, #tpu.memory_space<vmem>>, vector<8x384xf32>
    tpu.vector_store %arg11[%c24_74, %c0_75], %168 {strides = array<i32>} : memref<64x384xf32, #tpu.memory_space<vmem>>, vector<8x384xf32>,
    %c64_76 = arith.constant 64 : index
    %c0_77 = arith.constant 0 : index
    %170 = vector.load %arg8[%c64_76, %c0_77] : memref<128x384xf32, #tpu.memory_space<vmem>>, vector<64x384xf32>
    %cst_78 = arith.constant dense<0.000000e+00> : vector<8x384xf32>
    %171 = tpu.matmul %164, %170, %cst_78 {dimension_numbers = #tpu.dot_dimension_numbers<[1], [0], [0], [1], [0, 0, 1, 1], [], []>} : vector<8x64xf32>, vector<64x384xf32>, vector<8x384xf32> -> vector<8x384xf32>
    %c24_79 = arith.constant 24 : index
    %c0_80 = arith.constant 0 : index
    %172 = vector.load %arg12[%c24_79, %c0_80] : memref<64x384xf32, #tpu.memory_space<vmem>>, vector<8x384xf32>
    tpu.vector_store %arg12[%c24_79, %c0_80], %171 {strides = array<i32>} : memref<64x384xf32, #tpu.memory_space<vmem>>, vector<8x384xf32>,
    %c32 = arith.constant 32 : index
    %c0_81 = arith.constant 0 : index
    %173 = vector.load %arg10[%c32, %c0_81] : memref<64x384xf32, #tpu.memory_space<vmem>>, vector<8x384xf32>
    %174 = vector.extract_strided_slice %173 {offsets = [0, 0], sizes = [8, 128], strides = [1, 1]} : vector<8x384xf32> to vector<8x128xf32>
    %175 = vector.extract_strided_slice %165 {offsets = [0, 0], sizes = [8, 128], strides = [1, 1]} : vector<8x384xf32> to vector<8x128xf32>
    %176 = arith.addf %174, %175 : vector<8x128xf32>
    %177 = arith.negf %176 : vector<8x128xf32>
    %178 = math.exp %177 : vector<8x128xf32>
    %cst_82 = arith.constant 1.000000e+00 : f32
    %179 = vector.broadcast %cst_82 : f32 to vector<8x128xf32>
    %180 = arith.addf %179, %178 : vector<8x128xf32>
    %181 = arith.divf %179, %180 : vector<8x128xf32>
    %182 = vector.extract_strided_slice %173 {offsets = [0, 128], sizes = [8, 128], strides = [1, 1]} : vector<8x384xf32> to vector<8x128xf32>
    %183 = vector.extract_strided_slice %165 {offsets = [0, 128], sizes = [8, 128], strides = [1, 1]} : vector<8x384xf32> to vector<8x128xf32>
    %184 = arith.addf %182, %183 : vector<8x128xf32>
    %185 = arith.negf %184 : vector<8x128xf32>
    %186 = math.exp %185 : vector<8x128xf32>
    %cst_83 = arith.constant 1.000000e+00 : f32
    %187 = vector.broadcast %cst_83 : f32 to vector<8x128xf32>
    %188 = arith.addf %187, %186 : vector<8x128xf32>
    %189 = arith.divf %187, %188 : vector<8x128xf32>
    %190 = vector.extract_strided_slice %173 {offsets = [0, 256], sizes = [8, 128], strides = [1, 1]} : vector<8x384xf32> to vector<8x128xf32>
    %191 = vector.extract_strided_slice %165 {offsets = [0, 256], sizes = [8, 128], strides = [1, 1]} : vector<8x384xf32> to vector<8x128xf32>
    %192 = arith.addf %191, %22 : vector<8x128xf32>
    %193 = arith.mulf %181, %192 : vector<8x128xf32>
    %194 = arith.addf %190, %193 : vector<8x128xf32>
    %195 = math.tanh %194 : vector<8x128xf32>
    %196 = arith.subf %163, %195 : vector<8x128xf32>
    %197 = arith.mulf %189, %196 : vector<8x128xf32>
    %198 = arith.addf %195, %197 : vector<8x128xf32>
    %199 = vector.extract_strided_slice %198 {offsets = [0, 0], sizes = [8, 64], strides = [1, 1]} : vector<8x128xf32> to vector<8x64xf32>
    %cst_84 = arith.constant dense<0.000000e+00> : vector<8x384xf32>
    %200 = tpu.matmul %199, %19, %cst_84 {dimension_numbers = #tpu.dot_dimension_numbers<[1], [0], [0], [1], [0, 0, 1, 1], [], []>} : vector<8x64xf32>, vector<64x384xf32>, vector<8x384xf32> -> vector<8x384xf32>
    %c0_85 = arith.constant 0 : index
    %c0_86 = arith.constant 0 : index
    %201 = vector.load %arg8[%c0_85, %c0_86] : memref<128x384xf32, #tpu.memory_space<vmem>>, vector<64x384xf32>
    %cst_87 = arith.constant dense<0.000000e+00> : vector<8x384xf32>
    %202 = tpu.matmul %199, %201, %cst_87 {dimension_numbers = #tpu.dot_dimension_numbers<[1], [0], [0], [1], [0, 0, 1, 1], [], []>} : vector<8x64xf32>, vector<64x384xf32>, vector<8x384xf32> -> vector<8x384xf32>
    %203 = arith.addf %202, %25 : vector<8x384xf32>
    %c32_88 = arith.constant 32 : index
    %c0_89 = arith.constant 0 : index
    %204 = vector.load %arg11[%c32_88, %c0_89] : memref<64x384xf32, #tpu.memory_space<vmem>>, vector<8x384xf32>
    tpu.vector_store %arg11[%c32_88, %c0_89], %203 {strides = array<i32>} : memref<64x384xf32, #tpu.memory_space<vmem>>, vector<8x384xf32>,
    %c64_90 = arith.constant 64 : index
    %c0_91 = arith.constant 0 : index
    %205 = vector.load %arg8[%c64_90, %c0_91] : memref<128x384xf32, #tpu.memory_space<vmem>>, vector<64x384xf32>
    %cst_92 = arith.constant dense<0.000000e+00> : vector<8x384xf32>
    %206 = tpu.matmul %199, %205, %cst_92 {dimension_numbers = #tpu.dot_dimension_numbers<[1], [0], [0], [1], [0, 0, 1, 1], [], []>} : vector<8x64xf32>, vector<64x384xf32>, vector<8x384xf32> -> vector<8x384xf32>
    %c32_93 = arith.constant 32 : index
    %c0_94 = arith.constant 0 : index
    %207 = vector.load %arg12[%c32_93, %c0_94] : memref<64x384xf32, #tpu.memory_space<vmem>>, vector<8x384xf32>
    tpu.vector_store %arg12[%c32_93, %c0_94], %206 {strides = array<i32>} : memref<64x384xf32, #tpu.memory_space<vmem>>, vector<8x384xf32>,
    %c40 = arith.constant 40 : index
    %c0_95 = arith.constant 0 : index
    %208 = vector.load %arg10[%c40, %c0_95] : memref<64x384xf32, #tpu.memory_space<vmem>>, vector<8x384xf32>
    %209 = vector.extract_strided_slice %208 {offsets = [0, 0], sizes = [8, 128], strides = [1, 1]} : vector<8x384xf32> to vector<8x128xf32>
    %210 = vector.extract_strided_slice %200 {offsets = [0, 0], sizes = [8, 128], strides = [1, 1]} : vector<8x384xf32> to vector<8x128xf32>
    %211 = arith.addf %209, %210 : vector<8x128xf32>
    %212 = arith.negf %211 : vector<8x128xf32>
    %213 = math.exp %212 : vector<8x128xf32>
    %cst_96 = arith.constant 1.000000e+00 : f32
    %214 = vector.broadcast %cst_96 : f32 to vector<8x128xf32>
    %215 = arith.addf %214, %213 : vector<8x128xf32>
    %216 = arith.divf %214, %215 : vector<8x128xf32>
    %217 = vector.extract_strided_slice %208 {offsets = [0, 128], sizes = [8, 128], strides = [1, 1]} : vector<8x384xf32> to vector<8x128xf32>
    %218 = vector.extract_strided_slice %200 {offsets = [0, 128], sizes = [8, 128], strides = [1, 1]} : vector<8x384xf32> to vector<8x128xf32>
    %219 = arith.addf %217, %218 : vector<8x128xf32>
    %220 = arith.negf %219 : vector<8x128xf32>
    %221 = math.exp %220 : vector<8x128xf32>
    %cst_97 = arith.constant 1.000000e+00 : f32
    %222 = vector.broadcast %cst_97 : f32 to vector<8x128xf32>
    %223 = arith.addf %222, %221 : vector<8x128xf32>
    %224 = arith.divf %222, %223 : vector<8x128xf32>
    %225 = vector.extract_strided_slice %208 {offsets = [0, 256], sizes = [8, 128], strides = [1, 1]} : vector<8x384xf32> to vector<8x128xf32>
    %226 = vector.extract_strided_slice %200 {offsets = [0, 256], sizes = [8, 128], strides = [1, 1]} : vector<8x384xf32> to vector<8x128xf32>
    %227 = arith.addf %226, %22 : vector<8x128xf32>
    %228 = arith.mulf %216, %227 : vector<8x128xf32>
    %229 = arith.addf %225, %228 : vector<8x128xf32>
    %230 = math.tanh %229 : vector<8x128xf32>
    %231 = arith.subf %198, %230 : vector<8x128xf32>
    %232 = arith.mulf %224, %231 : vector<8x128xf32>
    %233 = arith.addf %230, %232 : vector<8x128xf32>
    %234 = vector.extract_strided_slice %233 {offsets = [0, 0], sizes = [8, 64], strides = [1, 1]} : vector<8x128xf32> to vector<8x64xf32>
    %cst_98 = arith.constant dense<0.000000e+00> : vector<8x384xf32>
    %235 = tpu.matmul %234, %19, %cst_98 {dimension_numbers = #tpu.dot_dimension_numbers<[1], [0], [0], [1], [0, 0, 1, 1], [], []>} : vector<8x64xf32>, vector<64x384xf32>, vector<8x384xf32> -> vector<8x384xf32>
    %c0_99 = arith.constant 0 : index
    %c0_100 = arith.constant 0 : index
    %236 = vector.load %arg8[%c0_99, %c0_100] : memref<128x384xf32, #tpu.memory_space<vmem>>, vector<64x384xf32>
    %cst_101 = arith.constant dense<0.000000e+00> : vector<8x384xf32>
    %237 = tpu.matmul %234, %236, %cst_101 {dimension_numbers = #tpu.dot_dimension_numbers<[1], [0], [0], [1], [0, 0, 1, 1], [], []>} : vector<8x64xf32>, vector<64x384xf32>, vector<8x384xf32> -> vector<8x384xf32>
    %238 = arith.addf %237, %25 : vector<8x384xf32>
    %c40_102 = arith.constant 40 : index
    %c0_103 = arith.constant 0 : index
    %239 = vector.load %arg11[%c40_102, %c0_103] : memref<64x384xf32, #tpu.memory_space<vmem>>, vector<8x384xf32>
    tpu.vector_store %arg11[%c40_102, %c0_103], %238 {strides = array<i32>} : memref<64x384xf32, #tpu.memory_space<vmem>>, vector<8x384xf32>,
    %c64_104 = arith.constant 64 : index
    %c0_105 = arith.constant 0 : index
    %240 = vector.load %arg8[%c64_104, %c0_105] : memref<128x384xf32, #tpu.memory_space<vmem>>, vector<64x384xf32>
    %cst_106 = arith.constant dense<0.000000e+00> : vector<8x384xf32>
    %241 = tpu.matmul %234, %240, %cst_106 {dimension_numbers = #tpu.dot_dimension_numbers<[1], [0], [0], [1], [0, 0, 1, 1], [], []>} : vector<8x64xf32>, vector<64x384xf32>, vector<8x384xf32> -> vector<8x384xf32>
    %c40_107 = arith.constant 40 : index
    %c0_108 = arith.constant 0 : index
    %242 = vector.load %arg12[%c40_107, %c0_108] : memref<64x384xf32, #tpu.memory_space<vmem>>, vector<8x384xf32>
    tpu.vector_store %arg12[%c40_107, %c0_108], %241 {strides = array<i32>} : memref<64x384xf32, #tpu.memory_space<vmem>>, vector<8x384xf32>,
    %c48 = arith.constant 48 : index
    %c0_109 = arith.constant 0 : index
    %243 = vector.load %arg10[%c48, %c0_109] : memref<64x384xf32, #tpu.memory_space<vmem>>, vector<8x384xf32>
    %244 = vector.extract_strided_slice %243 {offsets = [0, 0], sizes = [8, 128], strides = [1, 1]} : vector<8x384xf32> to vector<8x128xf32>
    %245 = vector.extract_strided_slice %235 {offsets = [0, 0], sizes = [8, 128], strides = [1, 1]} : vector<8x384xf32> to vector<8x128xf32>
    %246 = arith.addf %244, %245 : vector<8x128xf32>
    %247 = arith.negf %246 : vector<8x128xf32>
    %248 = math.exp %247 : vector<8x128xf32>
    %cst_110 = arith.constant 1.000000e+00 : f32
    %249 = vector.broadcast %cst_110 : f32 to vector<8x128xf32>
    %250 = arith.addf %249, %248 : vector<8x128xf32>
    %251 = arith.divf %249, %250 : vector<8x128xf32>
    %252 = vector.extract_strided_slice %243 {offsets = [0, 128], sizes = [8, 128], strides = [1, 1]} : vector<8x384xf32> to vector<8x128xf32>
    %253 = vector.extract_strided_slice %235 {offsets = [0, 128], sizes = [8, 128], strides = [1, 1]} : vector<8x384xf32> to vector<8x128xf32>
    %254 = arith.addf %252, %253 : vector<8x128xf32>
    %255 = arith.negf %254 : vector<8x128xf32>
    %256 = math.exp %255 : vector<8x128xf32>
    %cst_111 = arith.constant 1.000000e+00 : f32
    %257 = vector.broadcast %cst_111 : f32 to vector<8x128xf32>
    %258 = arith.addf %257, %256 : vector<8x128xf32>
    %259 = arith.divf %257, %258 : vector<8x128xf32>
    %260 = vector.extract_strided_slice %243 {offsets = [0, 256], sizes = [8, 128], strides = [1, 1]} : vector<8x384xf32> to vector<8x128xf32>
    %261 = vector.extract_strided_slice %235 {offsets = [0, 256], sizes = [8, 128], strides = [1, 1]} : vector<8x384xf32> to vector<8x128xf32>
    %262 = arith.addf %261, %22 : vector<8x128xf32>
    %263 = arith.mulf %251, %262 : vector<8x128xf32>
    %264 = arith.addf %260, %263 : vector<8x128xf32>
    %265 = math.tanh %264 : vector<8x128xf32>
    %266 = arith.subf %233, %265 : vector<8x128xf32>
    %267 = arith.mulf %259, %266 : vector<8x128xf32>
    %268 = arith.addf %265, %267 : vector<8x128xf32>
    %269 = vector.extract_strided_slice %268 {offsets = [0, 0], sizes = [8, 64], strides = [1, 1]} : vector<8x128xf32> to vector<8x64xf32>
    %cst_112 = arith.constant dense<0.000000e+00> : vector<8x384xf32>
    %270 = tpu.matmul %269, %19, %cst_112 {dimension_numbers = #tpu.dot_dimension_numbers<[1], [0], [0], [1], [0, 0, 1, 1], [], []>} : vector<8x64xf32>, vector<64x384xf32>, vector<8x384xf32> -> vector<8x384xf32>
    %c0_113 = arith.constant 0 : index
    %c0_114 = arith.constant 0 : index
    %271 = vector.load %arg8[%c0_113, %c0_114] : memref<128x384xf32, #tpu.memory_space<vmem>>, vector<64x384xf32>
    %cst_115 = arith.constant dense<0.000000e+00> : vector<8x384xf32>
    %272 = tpu.matmul %269, %271, %cst_115 {dimension_numbers = #tpu.dot_dimension_numbers<[1], [0], [0], [1], [0, 0, 1, 1], [], []>} : vector<8x64xf32>, vector<64x384xf32>, vector<8x384xf32> -> vector<8x384xf32>
    %273 = arith.addf %272, %25 : vector<8x384xf32>
    %c48_116 = arith.constant 48 : index
    %c0_117 = arith.constant 0 : index
    %274 = vector.load %arg11[%c48_116, %c0_117] : memref<64x384xf32, #tpu.memory_space<vmem>>, vector<8x384xf32>
    tpu.vector_store %arg11[%c48_116, %c0_117], %273 {strides = array<i32>} : memref<64x384xf32, #tpu.memory_space<vmem>>, vector<8x384xf32>,
    %c64_118 = arith.constant 64 : index
    %c0_119 = arith.constant 0 : index
    %275 = vector.load %arg8[%c64_118, %c0_119] : memref<128x384xf32, #tpu.memory_space<vmem>>, vector<64x384xf32>
    %cst_120 = arith.constant dense<0.000000e+00> : vector<8x384xf32>
    %276 = tpu.matmul %269, %275, %cst_120 {dimension_numbers = #tpu.dot_dimension_numbers<[1], [0], [0], [1], [0, 0, 1, 1], [], []>} : vector<8x64xf32>, vector<64x384xf32>, vector<8x384xf32> -> vector<8x384xf32>
    %c48_121 = arith.constant 48 : index
    %c0_122 = arith.constant 0 : index
    %277 = vector.load %arg12[%c48_121, %c0_122] : memref<64x384xf32, #tpu.memory_space<vmem>>, vector<8x384xf32>
    tpu.vector_store %arg12[%c48_121, %c0_122], %276 {strides = array<i32>} : memref<64x384xf32, #tpu.memory_space<vmem>>, vector<8x384xf32>,
    %c56 = arith.constant 56 : index
    %c0_123 = arith.constant 0 : index
    %278 = vector.load %arg10[%c56, %c0_123] : memref<64x384xf32, #tpu.memory_space<vmem>>, vector<8x384xf32>
    %279 = vector.extract_strided_slice %278 {offsets = [0, 0], sizes = [8, 128], strides = [1, 1]} : vector<8x384xf32> to vector<8x128xf32>
    %280 = vector.extract_strided_slice %270 {offsets = [0, 0], sizes = [8, 128], strides = [1, 1]} : vector<8x384xf32> to vector<8x128xf32>
    %281 = arith.addf %279, %280 : vector<8x128xf32>
    %282 = arith.negf %281 : vector<8x128xf32>
    %283 = math.exp %282 : vector<8x128xf32>
    %cst_124 = arith.constant 1.000000e+00 : f32
    %284 = vector.broadcast %cst_124 : f32 to vector<8x128xf32>
    %285 = arith.addf %284, %283 : vector<8x128xf32>
    %286 = arith.divf %284, %285 : vector<8x128xf32>
    %287 = vector.extract_strided_slice %278 {offsets = [0, 128], sizes = [8, 128], strides = [1, 1]} : vector<8x384xf32> to vector<8x128xf32>
    %288 = vector.extract_strided_slice %270 {offsets = [0, 128], sizes = [8, 128], strides = [1, 1]} : vector<8x384xf32> to vector<8x128xf32>
    %289 = arith.addf %287, %288 : vector<8x128xf32>
    %290 = arith.negf %289 : vector<8x128xf32>
    %291 = math.exp %290 : vector<8x128xf32>
    %cst_125 = arith.constant 1.000000e+00 : f32
    %292 = vector.broadcast %cst_125 : f32 to vector<8x128xf32>
    %293 = arith.addf %292, %291 : vector<8x128xf32>
    %294 = arith.divf %292, %293 : vector<8x128xf32>
    %295 = vector.extract_strided_slice %278 {offsets = [0, 256], sizes = [8, 128], strides = [1, 1]} : vector<8x384xf32> to vector<8x128xf32>
    %296 = vector.extract_strided_slice %270 {offsets = [0, 256], sizes = [8, 128], strides = [1, 1]} : vector<8x384xf32> to vector<8x128xf32>
    %297 = arith.addf %296, %22 : vector<8x128xf32>
    %298 = arith.mulf %286, %297 : vector<8x128xf32>
    %299 = arith.addf %295, %298 : vector<8x128xf32>
    %300 = math.tanh %299 : vector<8x128xf32>
    %301 = arith.subf %268, %300 : vector<8x128xf32>
    %302 = arith.mulf %294, %301 : vector<8x128xf32>
    %303 = arith.addf %300, %302 : vector<8x128xf32>
    %304 = vector.extract_strided_slice %303 {offsets = [0, 0], sizes = [8, 64], strides = [1, 1]} : vector<8x128xf32> to vector<8x64xf32>
    %c0_126 = arith.constant 0 : index
    %c0_127 = arith.constant 0 : index
    %305 = vector.load %arg8[%c0_126, %c0_127] : memref<128x384xf32, #tpu.memory_space<vmem>>, vector<64x384xf32>
    %cst_128 = arith.constant dense<0.000000e+00> : vector<8x384xf32>
    %306 = tpu.matmul %304, %305, %cst_128 {dimension_numbers = #tpu.dot_dimension_numbers<[1], [0], [0], [1], [0, 0, 1, 1], [], []>} : vector<8x64xf32>, vector<64x384xf32>, vector<8x384xf32> -> vector<8x384xf32>
    %307 = arith.addf %306, %25 : vector<8x384xf32>
    %c56_129 = arith.constant 56 : index
    %c0_130 = arith.constant 0 : index
    %308 = vector.load %arg11[%c56_129, %c0_130] : memref<64x384xf32, #tpu.memory_space<vmem>>, vector<8x384xf32>
    tpu.vector_store %arg11[%c56_129, %c0_130], %307 {strides = array<i32>} : memref<64x384xf32, #tpu.memory_space<vmem>>, vector<8x384xf32>,
    %c64_131 = arith.constant 64 : index
    %c0_132 = arith.constant 0 : index
    %309 = vector.load %arg8[%c64_131, %c0_132] : memref<128x384xf32, #tpu.memory_space<vmem>>, vector<64x384xf32>
    %cst_133 = arith.constant dense<0.000000e+00> : vector<8x384xf32>
    %310 = tpu.matmul %304, %309, %cst_133 {dimension_numbers = #tpu.dot_dimension_numbers<[1], [0], [0], [1], [0, 0, 1, 1], [], []>} : vector<8x64xf32>, vector<64x384xf32>, vector<8x384xf32> -> vector<8x384xf32>
    %c56_134 = arith.constant 56 : index
    %c0_135 = arith.constant 0 : index
    %311 = vector.load %arg12[%c56_134, %c0_135] : memref<64x384xf32, #tpu.memory_space<vmem>>, vector<8x384xf32>
    tpu.vector_store %arg12[%c56_134, %c0_135], %310 {strides = array<i32>} : memref<64x384xf32, #tpu.memory_space<vmem>>, vector<8x384xf32>,
    %c2_i32_136 = arith.constant 2 : i32
    %c256_i32_137 = arith.constant 256 : i32
    %c0_i32_138 = arith.constant 0 : i32
    %312 = tpu.memref_slice %arg5[%c256_i32_137, %c0_i32_138] : memref<320x384xf32, #tpu.memory_space<any>> -> memref<64x384xf32, #tpu.memory_space<any>>
    %313 = tpu.memref_slice %arg13[%c2_i32_136] : memref<3x!tpu.dma_semaphore, #tpu.memory_space<semaphore_mem>> -> memref<1x!tpu.dma_semaphore, #tpu.memory_space<semaphore_mem>>
    %314 = tpu.memref_squeeze %313 : memref<1x!tpu.dma_semaphore, #tpu.memory_space<semaphore_mem>> -> memref<!tpu.dma_semaphore, #tpu.memory_space<semaphore_mem>>
    tpu.wait_dma2 semaphore(%314 : memref<!tpu.dma_semaphore, #tpu.memory_space<semaphore_mem>>) src(%312 : memref<64x384xf32, #tpu.memory_space<any>>) dst(%arg9 : memref<64x384xf32, #tpu.memory_space<vmem>>)
    %c0_139 = arith.constant 0 : index
    %c0_140 = arith.constant 0 : index
    %315 = vector.load %arg9[%c0_139, %c0_140] : memref<64x384xf32, #tpu.memory_space<vmem>>, vector<64x384xf32>
    %c3 = arith.constant 3 : index
    %c0_141 = arith.constant 0 : index
    %316 = vector.load %arg2[%c3, %c0_141] : memref<4x384xf32, #tpu.memory_space<vmem>>, vector<1x128xf32>
    %317 = vector.shape_cast %316 : vector<1x128xf32> to vector<1x128xf32>
    %318 = vector.broadcast %317 : vector<1x128xf32> to vector<8x128xf32>
    %c1_142 = arith.constant 1 : index
    %c0_143 = arith.constant 0 : index
    %c0_144 = arith.constant 0 : index
    %319 = vector.load %arg1[%c1_142, %c0_143, %c0_144] : memref<2x8x128xf32, #tpu.memory_space<vmem>>, vector<1x8x128xf32>
    %320 = vector.shape_cast %319 : vector<1x8x128xf32> to vector<8x128xf32>
    %c0_145 = arith.constant 0 : index
    %c0_146 = arith.constant 0 : index
    %321 = vector.load %arg11[%c0_145, %c0_146] : memref<64x384xf32, #tpu.memory_space<vmem>>, vector<8x384xf32>
    %c56_147 = arith.constant 56 : index
    %c0_148 = arith.constant 0 : index
    %322 = vector.load %arg12[%c56_147, %c0_148] : memref<64x384xf32, #tpu.memory_space<vmem>>, vector<8x384xf32>
    %323 = arith.addf %321, %322 : vector<8x384xf32>
    %324 = vector.extract_strided_slice %320 {offsets = [0, 0], sizes = [8, 64], strides = [1, 1]} : vector<8x128xf32> to vector<8x64xf32>
    %cst_149 = arith.constant dense<0.000000e+00> : vector<8x384xf32>
    %325 = tpu.matmul %324, %315, %cst_149 {dimension_numbers = #tpu.dot_dimension_numbers<[1], [0], [0], [1], [0, 0, 1, 1], [], []>} : vector<8x64xf32>, vector<64x384xf32>, vector<8x384xf32> -> vector<8x384xf32>
    %326 = vector.extract_strided_slice %323 {offsets = [0, 0], sizes = [8, 128], strides = [1, 1]} : vector<8x384xf32> to vector<8x128xf32>
    %327 = vector.extract_strided_slice %325 {offsets = [0, 0], sizes = [8, 128], strides = [1, 1]} : vector<8x384xf32> to vector<8x128xf32>
    %328 = arith.addf %326, %327 : vector<8x128xf32>
    %329 = arith.negf %328 : vector<8x128xf32>
    %330 = math.exp %329 : vector<8x128xf32>
    %cst_150 = arith.constant 1.000000e+00 : f32
    %331 = vector.broadcast %cst_150 : f32 to vector<8x128xf32>
    %332 = arith.addf %331, %330 : vector<8x128xf32>
    %333 = arith.divf %331, %332 : vector<8x128xf32>
    %334 = vector.extract_strided_slice %323 {offsets = [0, 128], sizes = [8, 128], strides = [1, 1]} : vector<8x384xf32> to vector<8x128xf32>
    %335 = vector.extract_strided_slice %325 {offsets = [0, 128], sizes = [8, 128], strides = [1, 1]} : vector<8x384xf32> to vector<8x128xf32>
    %336 = arith.addf %334, %335 : vector<8x128xf32>
    %337 = arith.negf %336 : vector<8x128xf32>
    %338 = math.exp %337 : vector<8x128xf32>
    %cst_151 = arith.constant 1.000000e+00 : f32
    %339 = vector.broadcast %cst_151 : f32 to vector<8x128xf32>
    %340 = arith.addf %339, %338 : vector<8x128xf32>
    %341 = arith.divf %339, %340 : vector<8x128xf32>
    %342 = vector.extract_strided_slice %323 {offsets = [0, 256], sizes = [8, 128], strides = [1, 1]} : vector<8x384xf32> to vector<8x128xf32>
    %343 = vector.extract_strided_slice %325 {offsets = [0, 256], sizes = [8, 128], strides = [1, 1]} : vector<8x384xf32> to vector<8x128xf32>
    %344 = arith.addf %343, %318 : vector<8x128xf32>
    %345 = arith.mulf %333, %344 : vector<8x128xf32>
    %346 = arith.addf %342, %345 : vector<8x128xf32>
    %347 = math.tanh %346 : vector<8x128xf32>
    %348 = arith.subf %320, %347 : vector<8x128xf32>
    %349 = arith.mulf %341, %348 : vector<8x128xf32>
    %350 = arith.addf %347, %349 : vector<8x128xf32>
    %c8_152 = arith.constant 8 : index
    %c0_153 = arith.constant 0 : index
    %351 = vector.load %arg11[%c8_152, %c0_153] : memref<64x384xf32, #tpu.memory_space<vmem>>, vector<8x384xf32>
    %c48_154 = arith.constant 48 : index
    %c0_155 = arith.constant 0 : index
    %352 = vector.load %arg12[%c48_154, %c0_155] : memref<64x384xf32, #tpu.memory_space<vmem>>, vector<8x384xf32>
    %353 = arith.addf %351, %352 : vector<8x384xf32>
    %354 = vector.extract_strided_slice %350 {offsets = [0, 0], sizes = [8, 64], strides = [1, 1]} : vector<8x128xf32> to vector<8x64xf32>
    %cst_156 = arith.constant dense<0.000000e+00> : vector<8x384xf32>
    %355 = tpu.matmul %354, %315, %cst_156 {dimension_numbers = #tpu.dot_dimension_numbers<[1], [0], [0], [1], [0, 0, 1, 1], [], []>} : vector<8x64xf32>, vector<64x384xf32>, vector<8x384xf32> -> vector<8x384xf32>
    %356 = vector.extract_strided_slice %353 {offsets = [0, 0], sizes = [8, 128], strides = [1, 1]} : vector<8x384xf32> to vector<8x128xf32>
    %357 = vector.extract_strided_slice %355 {offsets = [0, 0], sizes = [8, 128], strides = [1, 1]} : vector<8x384xf32> to vector<8x128xf32>
    %358 = arith.addf %356, %357 : vector<8x128xf32>
    %359 = arith.negf %358 : vector<8x128xf32>
    %360 = math.exp %359 : vector<8x128xf32>
    %cst_157 = arith.constant 1.000000e+00 : f32
    %361 = vector.broadcast %cst_157 : f32 to vector<8x128xf32>
    %362 = arith.addf %361, %360 : vector<8x128xf32>
    %363 = arith.divf %361, %362 : vector<8x128xf32>
    %364 = vector.extract_strided_slice %353 {offsets = [0, 128], sizes = [8, 128], strides = [1, 1]} : vector<8x384xf32> to vector<8x128xf32>
    %365 = vector.extract_strided_slice %355 {offsets = [0, 128], sizes = [8, 128], strides = [1, 1]} : vector<8x384xf32> to vector<8x128xf32>
    %366 = arith.addf %364, %365 : vector<8x128xf32>
    %367 = arith.negf %366 : vector<8x128xf32>
    %368 = math.exp %367 : vector<8x128xf32>
    %cst_158 = arith.constant 1.000000e+00 : f32
    %369 = vector.broadcast %cst_158 : f32 to vector<8x128xf32>
    %370 = arith.addf %369, %368 : vector<8x128xf32>
    %371 = arith.divf %369, %370 : vector<8x128xf32>
    %372 = vector.extract_strided_slice %353 {offsets = [0, 256], sizes = [8, 128], strides = [1, 1]} : vector<8x384xf32> to vector<8x128xf32>
    %373 = vector.extract_strided_slice %355 {offsets = [0, 256], sizes = [8, 128], strides = [1, 1]} : vector<8x384xf32> to vector<8x128xf32>
    %374 = arith.addf %373, %318 : vector<8x128xf32>
    %375 = arith.mulf %363, %374 : vector<8x128xf32>
    %376 = arith.addf %372, %375 : vector<8x128xf32>
    %377 = math.tanh %376 : vector<8x128xf32>
    %378 = arith.subf %350, %377 : vector<8x128xf32>
    %379 = arith.mulf %371, %378 : vector<8x128xf32>
    %380 = arith.addf %377, %379 : vector<8x128xf32>
    %c16_159 = arith.constant 16 : index
    %c0_160 = arith.constant 0 : index
    %381 = vector.load %arg11[%c16_159, %c0_160] : memref<64x384xf32, #tpu.memory_space<vmem>>, vector<8x384xf32>
    %c40_161 = arith.constant 40 : index
    %c0_162 = arith.constant 0 : index
    %382 = vector.load %arg12[%c40_161, %c0_162] : memref<64x384xf32, #tpu.memory_space<vmem>>, vector<8x384xf32>
    %383 = arith.addf %381, %382 : vector<8x384xf32>
    %384 = vector.extract_strided_slice %380 {offsets = [0, 0], sizes = [8, 64], strides = [1, 1]} : vector<8x128xf32> to vector<8x64xf32>
    %cst_163 = arith.constant dense<0.000000e+00> : vector<8x384xf32>
    %385 = tpu.matmul %384, %315, %cst_163 {dimension_numbers = #tpu.dot_dimension_numbers<[1], [0], [0], [1], [0, 0, 1, 1], [], []>} : vector<8x64xf32>, vector<64x384xf32>, vector<8x384xf32> -> vector<8x384xf32>
    %386 = vector.extract_strided_slice %383 {offsets = [0, 0], sizes = [8, 128], strides = [1, 1]} : vector<8x384xf32> to vector<8x128xf32>
    %387 = vector.extract_strided_slice %385 {offsets = [0, 0], sizes = [8, 128], strides = [1, 1]} : vector<8x384xf32> to vector<8x128xf32>
    %388 = arith.addf %386, %387 : vector<8x128xf32>
    %389 = arith.negf %388 : vector<8x128xf32>
    %390 = math.exp %389 : vector<8x128xf32>
    %cst_164 = arith.constant 1.000000e+00 : f32
    %391 = vector.broadcast %cst_164 : f32 to vector<8x128xf32>
    %392 = arith.addf %391, %390 : vector<8x128xf32>
    %393 = arith.divf %391, %392 : vector<8x128xf32>
    %394 = vector.extract_strided_slice %383 {offsets = [0, 128], sizes = [8, 128], strides = [1, 1]} : vector<8x384xf32> to vector<8x128xf32>
    %395 = vector.extract_strided_slice %385 {offsets = [0, 128], sizes = [8, 128], strides = [1, 1]} : vector<8x384xf32> to vector<8x128xf32>
    %396 = arith.addf %394, %395 : vector<8x128xf32>
    %397 = arith.negf %396 : vector<8x128xf32>
    %398 = math.exp %397 : vector<8x128xf32>
    %cst_165 = arith.constant 1.000000e+00 : f32
    %399 = vector.broadcast %cst_165 : f32 to vector<8x128xf32>
    %400 = arith.addf %399, %398 : vector<8x128xf32>
    %401 = arith.divf %399, %400 : vector<8x128xf32>
    %402 = vector.extract_strided_slice %383 {offsets = [0, 256], sizes = [8, 128], strides = [1, 1]} : vector<8x384xf32> to vector<8x128xf32>
    %403 = vector.extract_strided_slice %385 {offsets = [0, 256], sizes = [8, 128], strides = [1, 1]} : vector<8x384xf32> to vector<8x128xf32>
    %404 = arith.addf %403, %318 : vector<8x128xf32>
    %405 = arith.mulf %393, %404 : vector<8x128xf32>
    %406 = arith.addf %402, %405 : vector<8x128xf32>
    %407 = math.tanh %406 : vector<8x128xf32>
    %408 = arith.subf %380, %407 : vector<8x128xf32>
    %409 = arith.mulf %401, %408 : vector<8x128xf32>
    %410 = arith.addf %407, %409 : vector<8x128xf32>
    %c24_166 = arith.constant 24 : index
    %c0_167 = arith.constant 0 : index
    %411 = vector.load %arg11[%c24_166, %c0_167] : memref<64x384xf32, #tpu.memory_space<vmem>>, vector<8x384xf32>
    %c32_168 = arith.constant 32 : index
    %c0_169 = arith.constant 0 : index
    %412 = vector.load %arg12[%c32_168, %c0_169] : memref<64x384xf32, #tpu.memory_space<vmem>>, vector<8x384xf32>
    %413 = arith.addf %411, %412 : vector<8x384xf32>
    %414 = vector.extract_strided_slice %410 {offsets = [0, 0], sizes = [8, 64], strides = [1, 1]} : vector<8x128xf32> to vector<8x64xf32>
    %cst_170 = arith.constant dense<0.000000e+00> : vector<8x384xf32>
    %415 = tpu.matmul %414, %315, %cst_170 {dimension_numbers = #tpu.dot_dimension_numbers<[1], [0], [0], [1], [0, 0, 1, 1], [], []>} : vector<8x64xf32>, vector<64x384xf32>, vector<8x384xf32> -> vector<8x384xf32>
    %416 = vector.extract_strided_slice %413 {offsets = [0, 0], sizes = [8, 128], strides = [1, 1]} : vector<8x384xf32> to vector<8x128xf32>
    %417 = vector.extract_strided_slice %415 {offsets = [0, 0], sizes = [8, 128], strides = [1, 1]} : vector<8x384xf32> to vector<8x128xf32>
    %418 = arith.addf %416, %417 : vector<8x128xf32>
    %419 = arith.negf %418 : vector<8x128xf32>
    %420 = math.exp %419 : vector<8x128xf32>
    %cst_171 = arith.constant 1.000000e+00 : f32
    %421 = vector.broadcast %cst_171 : f32 to vector<8x128xf32>
    %422 = arith.addf %421, %420 : vector<8x128xf32>
    %423 = arith.divf %421, %422 : vector<8x128xf32>
    %424 = vector.extract_strided_slice %413 {offsets = [0, 128], sizes = [8, 128], strides = [1, 1]} : vector<8x384xf32> to vector<8x128xf32>
    %425 = vector.extract_strided_slice %415 {offsets = [0, 128], sizes = [8, 128], strides = [1, 1]} : vector<8x384xf32> to vector<8x128xf32>
    %426 = arith.addf %424, %425 : vector<8x128xf32>
    %427 = arith.negf %426 : vector<8x128xf32>
    %428 = math.exp %427 : vector<8x128xf32>
    %cst_172 = arith.constant 1.000000e+00 : f32
    %429 = vector.broadcast %cst_172 : f32 to vector<8x128xf32>
    %430 = arith.addf %429, %428 : vector<8x128xf32>
    %431 = arith.divf %429, %430 : vector<8x128xf32>
    %432 = vector.extract_strided_slice %413 {offsets = [0, 256], sizes = [8, 128], strides = [1, 1]} : vector<8x384xf32> to vector<8x128xf32>
    %433 = vector.extract_strided_slice %415 {offsets = [0, 256], sizes = [8, 128], strides = [1, 1]} : vector<8x384xf32> to vector<8x128xf32>
    %434 = arith.addf %433, %318 : vector<8x128xf32>
    %435 = arith.mulf %423, %434 : vector<8x128xf32>
    %436 = arith.addf %432, %435 : vector<8x128xf32>
    %437 = math.tanh %436 : vector<8x128xf32>
    %438 = arith.subf %410, %437 : vector<8x128xf32>
    %439 = arith.mulf %431, %438 : vector<8x128xf32>
    %440 = arith.addf %437, %439 : vector<8x128xf32>
    %c32_173 = arith.constant 32 : index
    %c0_174 = arith.constant 0 : index
    %441 = vector.load %arg11[%c32_173, %c0_174] : memref<64x384xf32, #tpu.memory_space<vmem>>, vector<8x384xf32>
    %c24_175 = arith.constant 24 : index
    %c0_176 = arith.constant 0 : index
    %442 = vector.load %arg12[%c24_175, %c0_176] : memref<64x384xf32, #tpu.memory_space<vmem>>, vector<8x384xf32>
    %443 = arith.addf %441, %442 : vector<8x384xf32>
    %444 = vector.extract_strided_slice %440 {offsets = [0, 0], sizes = [8, 64], strides = [1, 1]} : vector<8x128xf32> to vector<8x64xf32>
    %cst_177 = arith.constant dense<0.000000e+00> : vector<8x384xf32>
    %445 = tpu.matmul %444, %315, %cst_177 {dimension_numbers = #tpu.dot_dimension_numbers<[1], [0], [0], [1], [0, 0, 1, 1], [], []>} : vector<8x64xf32>, vector<64x384xf32>, vector<8x384xf32> -> vector<8x384xf32>
    %446 = vector.extract_strided_slice %443 {offsets = [0, 0], sizes = [8, 128], strides = [1, 1]} : vector<8x384xf32> to vector<8x128xf32>
    %447 = vector.extract_strided_slice %445 {offsets = [0, 0], sizes = [8, 128], strides = [1, 1]} : vector<8x384xf32> to vector<8x128xf32>
    %448 = arith.addf %446, %447 : vector<8x128xf32>
    %449 = arith.negf %448 : vector<8x128xf32>
    %450 = math.exp %449 : vector<8x128xf32>
    %cst_178 = arith.constant 1.000000e+00 : f32
    %451 = vector.broadcast %cst_178 : f32 to vector<8x128xf32>
    %452 = arith.addf %451, %450 : vector<8x128xf32>
    %453 = arith.divf %451, %452 : vector<8x128xf32>
    %454 = vector.extract_strided_slice %443 {offsets = [0, 128], sizes = [8, 128], strides = [1, 1]} : vector<8x384xf32> to vector<8x128xf32>
    %455 = vector.extract_strided_slice %445 {offsets = [0, 128], sizes = [8, 128], strides = [1, 1]} : vector<8x384xf32> to vector<8x128xf32>
    %456 = arith.addf %454, %455 : vector<8x128xf32>
    %457 = arith.negf %456 : vector<8x128xf32>
    %458 = math.exp %457 : vector<8x128xf32>
    %cst_179 = arith.constant 1.000000e+00 : f32
    %459 = vector.broadcast %cst_179 : f32 to vector<8x128xf32>
    %460 = arith.addf %459, %458 : vector<8x128xf32>
    %461 = arith.divf %459, %460 : vector<8x128xf32>
    %462 = vector.extract_strided_slice %443 {offsets = [0, 256], sizes = [8, 128], strides = [1, 1]} : vector<8x384xf32> to vector<8x128xf32>
    %463 = vector.extract_strided_slice %445 {offsets = [0, 256], sizes = [8, 128], strides = [1, 1]} : vector<8x384xf32> to vector<8x128xf32>
    %464 = arith.addf %463, %318 : vector<8x128xf32>
    %465 = arith.mulf %453, %464 : vector<8x128xf32>
    %466 = arith.addf %462, %465 : vector<8x128xf32>
    %467 = math.tanh %466 : vector<8x128xf32>
    %468 = arith.subf %440, %467 : vector<8x128xf32>
    %469 = arith.mulf %461, %468 : vector<8x128xf32>
    %470 = arith.addf %467, %469 : vector<8x128xf32>
    %c40_180 = arith.constant 40 : index
    %c0_181 = arith.constant 0 : index
    %471 = vector.load %arg11[%c40_180, %c0_181] : memref<64x384xf32, #tpu.memory_space<vmem>>, vector<8x384xf32>
    %c16_182 = arith.constant 16 : index
    %c0_183 = arith.constant 0 : index
    %472 = vector.load %arg12[%c16_182, %c0_183] : memref<64x384xf32, #tpu.memory_space<vmem>>, vector<8x384xf32>
    %473 = arith.addf %471, %472 : vector<8x384xf32>
    %474 = vector.extract_strided_slice %470 {offsets = [0, 0], sizes = [8, 64], strides = [1, 1]} : vector<8x128xf32> to vector<8x64xf32>
    %cst_184 = arith.constant dense<0.000000e+00> : vector<8x384xf32>
    %475 = tpu.matmul %474, %315, %cst_184 {dimension_numbers = #tpu.dot_dimension_numbers<[1], [0], [0], [1], [0, 0, 1, 1], [], []>} : vector<8x64xf32>, vector<64x384xf32>, vector<8x384xf32> -> vector<8x384xf32>
    %476 = vector.extract_strided_slice %473 {offsets = [0, 0], sizes = [8, 128], strides = [1, 1]} : vector<8x384xf32> to vector<8x128xf32>
    %477 = vector.extract_strided_slice %475 {offsets = [0, 0], sizes = [8, 128], strides = [1, 1]} : vector<8x384xf32> to vector<8x128xf32>
    %478 = arith.addf %476, %477 : vector<8x128xf32>
    %479 = arith.negf %478 : vector<8x128xf32>
    %480 = math.exp %479 : vector<8x128xf32>
    %cst_185 = arith.constant 1.000000e+00 : f32
    %481 = vector.broadcast %cst_185 : f32 to vector<8x128xf32>
    %482 = arith.addf %481, %480 : vector<8x128xf32>
    %483 = arith.divf %481, %482 : vector<8x128xf32>
    %484 = vector.extract_strided_slice %473 {offsets = [0, 128], sizes = [8, 128], strides = [1, 1]} : vector<8x384xf32> to vector<8x128xf32>
    %485 = vector.extract_strided_slice %475 {offsets = [0, 128], sizes = [8, 128], strides = [1, 1]} : vector<8x384xf32> to vector<8x128xf32>
    %486 = arith.addf %484, %485 : vector<8x128xf32>
    %487 = arith.negf %486 : vector<8x128xf32>
    %488 = math.exp %487 : vector<8x128xf32>
    %cst_186 = arith.constant 1.000000e+00 : f32
    %489 = vector.broadcast %cst_186 : f32 to vector<8x128xf32>
    %490 = arith.addf %489, %488 : vector<8x128xf32>
    %491 = arith.divf %489, %490 : vector<8x128xf32>
    %492 = vector.extract_strided_slice %473 {offsets = [0, 256], sizes = [8, 128], strides = [1, 1]} : vector<8x384xf32> to vector<8x128xf32>
    %493 = vector.extract_strided_slice %475 {offsets = [0, 256], sizes = [8, 128], strides = [1, 1]} : vector<8x384xf32> to vector<8x128xf32>
    %494 = arith.addf %493, %318 : vector<8x128xf32>
    %495 = arith.mulf %483, %494 : vector<8x128xf32>
    %496 = arith.addf %492, %495 : vector<8x128xf32>
    %497 = math.tanh %496 : vector<8x128xf32>
    %498 = arith.subf %470, %497 : vector<8x128xf32>
    %499 = arith.mulf %491, %498 : vector<8x128xf32>
    %500 = arith.addf %497, %499 : vector<8x128xf32>
    %c48_187 = arith.constant 48 : index
    %c0_188 = arith.constant 0 : index
    %501 = vector.load %arg11[%c48_187, %c0_188] : memref<64x384xf32, #tpu.memory_space<vmem>>, vector<8x384xf32>
    %c8_189 = arith.constant 8 : index
    %c0_190 = arith.constant 0 : index
    %502 = vector.load %arg12[%c8_189, %c0_190] : memref<64x384xf32, #tpu.memory_space<vmem>>, vector<8x384xf32>
    %503 = arith.addf %501, %502 : vector<8x384xf32>
    %504 = vector.extract_strided_slice %500 {offsets = [0, 0], sizes = [8, 64], strides = [1, 1]} : vector<8x128xf32> to vector<8x64xf32>
    %cst_191 = arith.constant dense<0.000000e+00> : vector<8x384xf32>
    %505 = tpu.matmul %504, %315, %cst_191 {dimension_numbers = #tpu.dot_dimension_numbers<[1], [0], [0], [1], [0, 0, 1, 1], [], []>} : vector<8x64xf32>, vector<64x384xf32>, vector<8x384xf32> -> vector<8x384xf32>
    %506 = vector.extract_strided_slice %503 {offsets = [0, 0], sizes = [8, 128], strides = [1, 1]} : vector<8x384xf32> to vector<8x128xf32>
    %507 = vector.extract_strided_slice %505 {offsets = [0, 0], sizes = [8, 128], strides = [1, 1]} : vector<8x384xf32> to vector<8x128xf32>
    %508 = arith.addf %506, %507 : vector<8x128xf32>
    %509 = arith.negf %508 : vector<8x128xf32>
    %510 = math.exp %509 : vector<8x128xf32>
    %cst_192 = arith.constant 1.000000e+00 : f32
    %511 = vector.broadcast %cst_192 : f32 to vector<8x128xf32>
    %512 = arith.addf %511, %510 : vector<8x128xf32>
    %513 = arith.divf %511, %512 : vector<8x128xf32>
    %514 = vector.extract_strided_slice %503 {offsets = [0, 128], sizes = [8, 128], strides = [1, 1]} : vector<8x384xf32> to vector<8x128xf32>
    %515 = vector.extract_strided_slice %505 {offsets = [0, 128], sizes = [8, 128], strides = [1, 1]} : vector<8x384xf32> to vector<8x128xf32>
    %516 = arith.addf %514, %515 : vector<8x128xf32>
    %517 = arith.negf %516 : vector<8x128xf32>
    %518 = math.exp %517 : vector<8x128xf32>
    %cst_193 = arith.constant 1.000000e+00 : f32
    %519 = vector.broadcast %cst_193 : f32 to vector<8x128xf32>
    %520 = arith.addf %519, %518 : vector<8x128xf32>
    %521 = arith.divf %519, %520 : vector<8x128xf32>
    %522 = vector.extract_strided_slice %503 {offsets = [0, 256], sizes = [8, 128], strides = [1, 1]} : vector<8x384xf32> to vector<8x128xf32>
    %523 = vector.extract_strided_slice %505 {offsets = [0, 256], sizes = [8, 128], strides = [1, 1]} : vector<8x384xf32> to vector<8x128xf32>
    %524 = arith.addf %523, %318 : vector<8x128xf32>
    %525 = arith.mulf %513, %524 : vector<8x128xf32>
    %526 = arith.addf %522, %525 : vector<8x128xf32>
    %527 = math.tanh %526 : vector<8x128xf32>
    %528 = arith.subf %500, %527 : vector<8x128xf32>
    %529 = arith.mulf %521, %528 : vector<8x128xf32>
    %530 = arith.addf %527, %529 : vector<8x128xf32>
    %c56_194 = arith.constant 56 : index
    %c0_195 = arith.constant 0 : index
    %531 = vector.load %arg11[%c56_194, %c0_195] : memref<64x384xf32, #tpu.memory_space<vmem>>, vector<8x384xf32>
    %c0_196 = arith.constant 0 : index
    %c0_197 = arith.constant 0 : index
    %532 = vector.load %arg12[%c0_196, %c0_197] : memref<64x384xf32, #tpu.memory_space<vmem>>, vector<8x384xf32>
    %533 = arith.addf %531, %532 : vector<8x384xf32>
    %534 = vector.extract_strided_slice %530 {offsets = [0, 0], sizes = [8, 64], strides = [1, 1]} : vector<8x128xf32> to vector<8x64xf32>
    %cst_198 = arith.constant dense<0.000000e+00> : vector<8x384xf32>
    %535 = tpu.matmul %534, %315, %cst_198 {dimension_numbers = #tpu.dot_dimension_numbers<[1], [0], [0], [1], [0, 0, 1, 1], [], []>} : vector<8x64xf32>, vector<64x384xf32>, vector<8x384xf32> -> vector<8x384xf32>
    %536 = vector.extract_strided_slice %533 {offsets = [0, 0], sizes = [8, 128], strides = [1, 1]} : vector<8x384xf32> to vector<8x128xf32>
    %537 = vector.extract_strided_slice %535 {offsets = [0, 0], sizes = [8, 128], strides = [1, 1]} : vector<8x384xf32> to vector<8x128xf32>
    %538 = arith.addf %536, %537 : vector<8x128xf32>
    %539 = arith.negf %538 : vector<8x128xf32>
    %540 = math.exp %539 : vector<8x128xf32>
    %cst_199 = arith.constant 1.000000e+00 : f32
    %541 = vector.broadcast %cst_199 : f32 to vector<8x128xf32>
    %542 = arith.addf %541, %540 : vector<8x128xf32>
    %543 = arith.divf %541, %542 : vector<8x128xf32>
    %544 = vector.extract_strided_slice %533 {offsets = [0, 128], sizes = [8, 128], strides = [1, 1]} : vector<8x384xf32> to vector<8x128xf32>
    %545 = vector.extract_strided_slice %535 {offsets = [0, 128], sizes = [8, 128], strides = [1, 1]} : vector<8x384xf32> to vector<8x128xf32>
    %546 = arith.addf %544, %545 : vector<8x128xf32>
    %547 = arith.negf %546 : vector<8x128xf32>
    %548 = math.exp %547 : vector<8x128xf32>
    %cst_200 = arith.constant 1.000000e+00 : f32
    %549 = vector.broadcast %cst_200 : f32 to vector<8x128xf32>
    %550 = arith.addf %549, %548 : vector<8x128xf32>
    %551 = arith.divf %549, %550 : vector<8x128xf32>
    %552 = vector.extract_strided_slice %533 {offsets = [0, 256], sizes = [8, 128], strides = [1, 1]} : vector<8x384xf32> to vector<8x128xf32>
    %553 = vector.extract_strided_slice %535 {offsets = [0, 256], sizes = [8, 128], strides = [1, 1]} : vector<8x384xf32> to vector<8x128xf32>
    %554 = arith.addf %553, %318 : vector<8x128xf32>
    %555 = arith.mulf %543, %554 : vector<8x128xf32>
    %556 = arith.addf %552, %555 : vector<8x128xf32>
    %557 = math.tanh %556 : vector<8x128xf32>
    %558 = arith.subf %530, %557 : vector<8x128xf32>
    %559 = arith.mulf %551, %558 : vector<8x128xf32>
    %560 = arith.addf %557, %559 : vector<8x128xf32>
    %561 = vector.extract_strided_slice %303 {offsets = [0, 0], sizes = [8, 64], strides = [1, 1]} : vector<8x128xf32> to vector<8x64xf32>
    %c0_201 = arith.constant 0 : index
    %c0_202 = arith.constant 0 : index
    %562 = vector.load %arg3[%c0_201, %c0_202] : memref<128x32xf32, #tpu.memory_space<vmem>>, vector<64x32xf32>
    %cst_203 = arith.constant dense<0.000000e+00> : vector<8x32xf32>
    %563 = tpu.matmul %561, %562, %cst_203 {dimension_numbers = #tpu.dot_dimension_numbers<[1], [0], [0], [1], [0, 0, 1, 1], [], []>} : vector<8x64xf32>, vector<64x32xf32>, vector<8x32xf32> -> vector<8x32xf32>
    %564 = vector.extract_strided_slice %560 {offsets = [0, 0], sizes = [8, 64], strides = [1, 1]} : vector<8x128xf32> to vector<8x64xf32>
    %c64_204 = arith.constant 64 : index
    %c0_205 = arith.constant 0 : index
    %565 = vector.load %arg3[%c64_204, %c0_205] : memref<128x32xf32, #tpu.memory_space<vmem>>, vector<64x32xf32>
    %cst_206 = arith.constant dense<0.000000e+00> : vector<8x32xf32>
    %566 = tpu.matmul %564, %565, %cst_206 {dimension_numbers = #tpu.dot_dimension_numbers<[1], [0], [0], [1], [0, 0, 1, 1], [], []>} : vector<8x64xf32>, vector<64x32xf32>, vector<8x32xf32> -> vector<8x32xf32>
    %567 = arith.addf %563, %566 : vector<8x32xf32>
    %c0_207 = arith.constant 0 : index
    %c0_208 = arith.constant 0 : index
    %568 = vector.load %arg4[%c0_207, %c0_208] : memref<3x32xf32, #tpu.memory_space<vmem>>, vector<1x32xf32>
    %569 = vector.broadcast %568 : vector<1x32xf32> to vector<8x32xf32>
    %570 = arith.addf %567, %569 : vector<8x32xf32>
    %571 = math.tanh %570 : vector<8x32xf32>
    %c1_209 = arith.constant 1 : index
    %c0_210 = arith.constant 0 : index
    %572 = vector.load %arg4[%c1_209, %c0_210] : memref<3x32xf32, #tpu.memory_space<vmem>>, vector<1x32xf32>
    %573 = vector.broadcast %572 : vector<1x32xf32> to vector<8x32xf32>
    %574 = arith.mulf %571, %573 : vector<8x32xf32>
    %cst_211 = arith.constant dense<0.000000e+00> : vector<8xf32>
    %575 = vector.multi_reduction <add>, %574, %cst_211 [1] : vector<8x32xf32> to vector<8xf32>
    %576 = vector.shape_cast %575 : vector<8xf32> to vector<8x1xf32>
    %c2_212 = arith.constant 2 : index
    %c0_213 = arith.constant 0 : index
    %577 = vector.load %arg4[%c2_212, %c0_213] : memref<3x32xf32, #tpu.memory_space<vmem>>, vector<1x1xf32>
    %578 = vector.broadcast %577 : vector<1x1xf32> to vector<8x1xf32>
    %579 = arith.addf %576, %578 : vector<8x1xf32>
    %580 = vector.extract_strided_slice %579 {offsets = [0, 0], sizes = [2, 1], strides = [1, 1]} : vector<8x1xf32> to vector<2x1xf32>
    %581 = arith.negf %580 : vector<2x1xf32>
    %582 = math.exp %581 : vector<2x1xf32>
    %cst_214 = arith.constant 1.000000e+00 : f32
    %583 = vector.broadcast %cst_214 : f32 to vector<2x1xf32>
    %584 = arith.addf %583, %582 : vector<2x1xf32>
    %585 = arith.divf %583, %584 : vector<2x1xf32>
    %c0_215 = arith.constant 0 : index
    %c0_216 = arith.constant 0 : index
    %586 = vector.load %arg6[%c0_215, %c0_216] : memref<2x1xf32, #tpu.memory_space<vmem>>, vector<2x1xf32>
    tpu.vector_store %arg6[%c0_215, %c0_216], %585 {strides = array<i32>} : memref<2x1xf32, #tpu.memory_space<vmem>>, vector<2x1xf32>,
    return
  }
}

</mosaic_0001>

<llo_original>
// kernel: discriminator_forward.1
$region0: #{discriminator_forward.1}
  #allocation0 [shape = 'u32[]', space=smem, size = 0x4, offset = 0x4, fixed_abs, tag = 'smem constant byte address 0x4 - core index']
  #allocation1 [shape = 'u32[144,128]{1,0:T(1,128)}', space=vmem, size = 0x12000, scoped, tag = 'internal scratch']
  #allocation2 [shape = 'f32[128,384]{1,0:T(8,128)}', space=vmem, size = 0x30000, scoped, tag = 'scratch operand']
  #allocation3 [shape = 'f32[128,384]{1,0:T(8,128)}', space=vmem, size = 0x30000, scoped, tag = 'scratch operand']
  #allocation4 [shape = 'f32[64,384]{1,0:T(8,128)}', space=vmem, size = 0x18000, scoped, tag = 'scratch operand']
  #allocation5 [shape = 'f32[64,384]{1,0:T(8,128)}', space=vmem, size = 0x18000, scoped, tag = 'scratch operand']
  #allocation6 [shape = 'f32[64,384]{1,0:T(8,128)}', space=vmem, size = 0x18000, scoped, tag = 'scratch operand']
  #allocation7 [shape = 'f32[64,384]{1,0:T(8,128)}', space=vmem, size = 0x18000, scoped, tag = 'scratch operand']
  #allocation8 [shape = 's32[3]{0}', space=sflag, size = 0xc, scoped, tag = 'scratch operand']
  #allocation9 [shape = 's32[]', space=sflag, size = 0x4, offset = 0, fixed_abs, tag = 'sflag constant byte address 0x0 - dummy sync flag']
  #allocation10 [shape = 's32[]', space=sflag, size = 0x4, offset = 0, fixed_abs, tag = 'sflag constant byte address 0x0 - dummy sync flag']
  #allocation11 [shape = 's32[]', space=sflag, size = 0x4, offset = 0, fixed_abs, tag = 'sflag constant byte address 0x0 - dummy sync flag']
  %s0 = inlined_call_operand.vmem [shape: f32[64,64], index: 0, kind: input, shape index: {}]
  %s1 = inlined_call_operand.vmem [shape: f32[2,8,128], index: 1, kind: input, shape index: {}]
  %s2 = inlined_call_operand.vmem [shape: f32[4,384], index: 2, kind: input, shape index: {}]
  %s3 = inlined_call_operand.vmem [shape: f32[128,32], index: 3, kind: input, shape index: {}]
  %s4 = inlined_call_operand.vmem [shape: f32[3,32], index: 4, kind: input, shape index: {}]
  %s5 = inlined_call_operand.vmem [shape: f32[320,384], index: 5, kind: input, shape index: {}]
  %s6 = inlined_call_operand.vmem [shape: f32[2,1], index: 6, kind: output, shape index: {}]
  %s7 = sld [smem:[#allocation0]]
  $region132: #{discriminator_forward.1} parent=0
    _
  %s9 = ssub.s32 1, %s7
  %s10 = scalar_select 0, %s9, %s7
  // Predicated region
  $region2: #{discriminator_forward.1} parent=0 // pred_check
    _
  $region3: #{discriminator_forward.1} parent=0 // pred_check_branch
    %12 = sbr.rel (0) target = $region5
  $region4: #{discriminator_forward.1} parent=0 // pred_region
    _
  $region5: #{discriminator_forward.1} parent=0 // pred_fallthru
    _
  // Predicated region
  $region6: #{discriminator_forward.1} parent=0 // pred_check
    _
  $region7: #{discriminator_forward.1} parent=0 // pred_check_branch
    %14 = sbr.rel (0) target = $region9
  $region8: #{discriminator_forward.1} parent=0 // pred_region
    _
  $region9: #{discriminator_forward.1} parent=0 // pred_fallthru
    _
  // Predicated region
  $region10: #{discriminator_forward.1} parent=0 // pred_check
    _
  $region11: #{discriminator_forward.1} parent=0 // pred_check_branch
    %16 = sbr.rel (0) target = $region13
  $region12: #{discriminator_forward.1} parent=0 // pred_region
    _
  $region13: #{discriminator_forward.1} parent=0 // pred_fallthru
    _
  // Predicated region
  $region14: #{discriminator_forward.1} parent=0 // pred_check
    _
  $region15: #{discriminator_forward.1} parent=0 // pred_check_branch
    %18 = sbr.rel (0) target = $region17
  $region16: #{discriminator_forward.1} parent=0 // pred_region
    _
  $region17: #{discriminator_forward.1} parent=0 // pred_fallthru
    _
  // Predicated region
  $region18: #{discriminator_forward.1} parent=0 // pred_check
    _
  $region19: #{discriminator_forward.1} parent=0 // pred_check_branch
    %20 = sbr.rel (0) target = $region21
  $region20: #{discriminator_forward.1} parent=0 // pred_region
    _
  $region21: #{discriminator_forward.1} parent=0 // pred_fallthru
    _
  %p22 = scmp.lt.u32.totalorder 384, 8
  %p23 = pneg %p22
  // Predicated region
  $region22: #{discriminator_forward.1} parent=0 // pred_check
    _
  $region23: #{discriminator_forward.1} parent=0 // pred_check_branch
    %25 = sbr.rel (%p22) target = $region25
  $region24: #{discriminator_forward.1} parent=0 // pred_region
    %s40 = sand.u32 384, 7
    %p41 = scmp.eq.s32.totalorder %s40, 0
    // Predicated region
    $region37: #{discriminator_forward.1} parent=24 // pred_check
      %p42 = pneg %p41
    $region38: #{discriminator_forward.1} parent=24 // pred_check_branch
      %44 = sbr.rel (%p42) target = $region40
    $region39: #{discriminator_forward.1} parent=24 // pred_region
      loop: start=0, step=1, limit=1
      $region41: #{discriminator_forward.1} parent=39 // loop_pre_header
        _
      $region42: #{discriminator_forward.1} parent=39 // loop_header
        %s46 = sphi 0, %s50
        %p47 = scmp.ge.s32.totalorder %s46, 1
        %s51 = sphi %s5, %s5
        %s52 = sphi [#allocation2], [#allocation2]
      $region43: #{discriminator_forward.1} parent=39 // loop_header_branch
        %49 = sbr.rel (%p47) target = $region47
      $region44: #{discriminator_forward.1} parent=39 // loop_body
        %v53 = vld [vmem:[%s51] sm:$0xff]
        %54 = vst [vmem:[%s52] sm:$0xff] %v53
        %v55 = vld [vmem:[%s51 + $0x8] sm:$0xff]
        %56 = vst [vmem:[%s52 + $0x8] sm:$0xff] %v55
        %v57 = vld [vmem:[%s51 + $0x10] sm:$0xff]
        %58 = vst [vmem:[%s52 + $0x10] sm:$0xff] %v57
        %v59 = vld [vmem:[%s51 + $0x18] sm:$0xff]
        %60 = vst [vmem:[%s52 + $0x18] sm:$0xff] %v59
        %v61 = vld [vmem:[%s51 + $0x20] sm:$0xff]
        %62 = vst [vmem:[%s52 + $0x20] sm:$0xff] %v61
        %v63 = vld [vmem:[%s51 + $0x28] sm:$0xff]
        %64 = vst [vmem:[%s52 + $0x28] sm:$0xff] %v63
        %v65 = vld [vmem:[%s51 + $0x30] sm:$0xff]
        %66 = vst [vmem:[%s52 + $0x30] sm:$0xff] %v65
        %v67 = vld [vmem:[%s51 + $0x38] sm:$0xff]
        %68 = vst [vmem:[%s52 + $0x38] sm:$0xff] %v67
        %v69 = vld [vmem:[%s51 + $0x40] sm:$0xff]
        %70 = vst [vmem:[%s52 + $0x40] sm:$0xff] %v69
        %v71 = vld [vmem:[%s51 + $0x48] sm:$0xff]
        %72 = vst [vmem:[%s52 + $0x48] sm:$0xff] %v71
        %v73 = vld [vmem:[%s51 + $0x50] sm:$0xff]
        %74 = vst [vmem:[%s52 + $0x50] sm:$0xff] %v73
        %v75 = vld [vmem:[%s51 + $0x58] sm:$0xff]
        %76 = vst [vmem:[%s52 + $0x58] sm:$0xff] %v75
        %v77 = vld [vmem:[%s51 + $0x60] sm:$0xff]
        %78 = vst [vmem:[%s52 + $0x60] sm:$0xff] %v77
        %v79 = vld [vmem:[%s51 + $0x68] sm:$0xff]
        %80 = vst [vmem:[%s52 + $0x68] sm:$0xff] %v79
        %v81 = vld [vmem:[%s51 + $0x70] sm:$0xff]
        %82 = vst [vmem:[%s52 + $0x70] sm:$0xff] %v81
        %v83 = vld [vmem:[%s51 + $0x78] sm:$0xff]
        %84 = vst [vmem:[%s52 + $0x78] sm:$0xff] %v83
        %v85 = vld [vmem:[%s51 + $0x80] sm:$0xff]
        %86 = vst [vmem:[%s52 + $0x80] sm:$0xff] %v85
        %v87 = vld [vmem:[%s51 + $0x88] sm:$0xff]
        %88 = vst [vmem:[%s52 + $0x88] sm:$0xff] %v87
        %v89 = vld [vmem:[%s51 + $0x90] sm:$0xff]
        %90 = vst [vmem:[%s52 + $0x90] sm:$0xff] %v89
        %v91 = vld [vmem:[%s51 + $0x98] sm:$0xff]
        %92 = vst [vmem:[%s52 + $0x98] sm:$0xff] %v91
        %v93 = vld [vmem:[%s51 + $0xa0] sm:$0xff]
        %94 = vst [vmem:[%s52 + $0xa0] sm:$0xff] %v93
        %v95 = vld [vmem:[%s51 + $0xa8] sm:$0xff]
        %96 = vst [vmem:[%s52 + $0xa8] sm:$0xff] %v95
        %v97 = vld [vmem:[%s51 + $0xb0] sm:$0xff]
        %98 = vst [vmem:[%s52 + $0xb0] sm:$0xff] %v97
        %v99 = vld [vmem:[%s51 + $0xb8] sm:$0xff]
        %100 = vst [vmem:[%s52 + $0xb8] sm:$0xff] %v99
        %v101 = vld [vmem:[%s51 + $0xc0] sm:$0xff]
        %102 = vst [vmem:[%s52 + $0xc0] sm:$0xff] %v101
        %v103 = vld [vmem:[%s51 + $0xc8] sm:$0xff]
        %104 = vst [vmem:[%s52 + $0xc8] sm:$0xff] %v103
        %v105 = vld [vmem:[%s51 + $0xd0] sm:$0xff]
        %106 = vst [vmem:[%s52 + $0xd0] sm:$0xff] %v105
        %v107 = vld [vmem:[%s51 + $0xd8] sm:$0xff]
        %108 = vst [vmem:[%s52 + $0xd8] sm:$0xff] %v107
        %v109 = vld [vmem:[%s51 + $0xe0] sm:$0xff]
        %110 = vst [vmem:[%s52 + $0xe0] sm:$0xff] %v109
        %v111 = vld [vmem:[%s51 + $0xe8] sm:$0xff]
        %112 = vst [vmem:[%s52 + $0xe8] sm:$0xff] %v111
        %v113 = vld [vmem:[%s51 + $0xf0] sm:$0xff]
        %114 = vst [vmem:[%s52 + $0xf0] sm:$0xff] %v113
        %v115 = vld [vmem:[%s51 + $0xf8] sm:$0xff]
        %116 = vst [vmem:[%s52 + $0xf8] sm:$0xff] %v115
        %v117 = vld [vmem:[%s51 + $0x100] sm:$0xff]
        %118 = vst [vmem:[%s52 + $0x100] sm:$0xff] %v117
        %v119 = vld [vmem:[%s51 + $0x108] sm:$0xff]
        %120 = vst [vmem:[%s52 + $0x108] sm:$0xff] %v119
        %v121 = vld [vmem:[%s51 + $0x110] sm:$0xff]
        %122 = vst [vmem:[%s52 + $0x110] sm:$0xff] %v121
        %v123 = vld [vmem:[%s51 + $0x118] sm:$0xff]
        %124 = vst [vmem:[%s52 + $0x118] sm:$0xff] %v123
        %v125 = vld [vmem:[%s51 + $0x120] sm:$0xff]
        %126 = vst [vmem:[%s52 + $0x120] sm:$0xff] %v125
        %v127 = vld [vmem:[%s51 + $0x128] sm:$0xff]
        %128 = vst [vmem:[%s52 + $0x128] sm:$0xff] %v127
        %v129 = vld [vmem:[%s51 + $0x130] sm:$0xff]
        %130 = vst [vmem:[%s52 + $0x130] sm:$0xff] %v129
        %v131 = vld [vmem:[%s51 + $0x138] sm:$0xff]
        %132 = vst [vmem:[%s52 + $0x138] sm:$0xff] %v131
        %v133 = vld [vmem:[%s51 + $0x140] sm:$0xff]
        %134 = vst [vmem:[%s52 + $0x140] sm:$0xff] %v133
        %v135 = vld [vmem:[%s51 + $0x148] sm:$0xff]
        %136 = vst [vmem:[%s52 + $0x148] sm:$0xff] %v135
        %v137 = vld [vmem:[%s51 + $0x150] sm:$0xff]
        %138 = vst [vmem:[%s52 + $0x150] sm:$0xff] %v137
        %v139 = vld [vmem:[%s51 + $0x158] sm:$0xff]
        %140 = vst [vmem:[%s52 + $0x158] sm:$0xff] %v139
        %v141 = vld [vmem:[%s51 + $0x160] sm:$0xff]
        %142 = vst [vmem:[%s52 + $0x160] sm:$0xff] %v141
        %v143 = vld [vmem:[%s51 + $0x168] sm:$0xff]
        %144 = vst [vmem:[%s52 + $0x168] sm:$0xff] %v143
        %v145 = vld [vmem:[%s51 + $0x170] sm:$0xff]
        %146 = vst [vmem:[%s52 + $0x170] sm:$0xff] %v145
        %v147 = vld [vmem:[%s51 + $0x178] sm:$0xff]
        %148 = vst [vmem:[%s52 + $0x178] sm:$0xff] %v147
      $region45: #{discriminator_forward.1} parent=39 // loop_footer
        %s50 = sadd.s32 1, %s46
      $region46: #{discriminator_forward.1} parent=39 // loop_footer_branch
        %45 = sbr.rel target = $region42
      $region47: #{discriminator_forward.1} parent=39 // loop_exit
        _
    $region40: #{discriminator_forward.1} parent=24 // pred_fallthru
      _
    %p149 = pneg %p41
    // Predicated region
    $region48: #{discriminator_forward.1} parent=24 // pred_check
      _
    $region49: #{discriminator_forward.1} parent=24 // pred_check_branch
      %151 = sbr.rel (%p41) target = $region51
    $region50: #{discriminator_forward.1} parent=24 // pred_region
      %s152 = sand.u32 384, 7
    $region51: #{discriminator_forward.1} parent=24 // pred_fallthru
      _
  $region25: #{discriminator_forward.1} parent=0 // pred_fallthru
    _
  // Predicated region
  $region26: #{discriminator_forward.1} parent=0 // pred_check
    %p26 = pneg %p22
  $region27: #{discriminator_forward.1} parent=0 // pred_check_branch
    %28 = sbr.rel (%p26) target = $region29
  $region28: #{discriminator_forward.1} parent=0 // pred_region
    %s29 = sshllo.u32 0, 384
    loop: start=0, step=1, limit=1
    $region30: #{discriminator_forward.1} parent=28 // loop_pre_header
      _
    $region31: #{discriminator_forward.1} parent=28 // loop_header
      %s31 = sphi 0, %s35
      %p32 = scmp.ge.s32.totalorder %s31, 1
      %s36 = sphi %s5, %s5
      %s37 = sphi [#allocation2], [#allocation2]
    $region32: #{discriminator_forward.1} parent=28 // loop_header_branch
      %34 = sbr.rel (%p32) target = $region36
    $region33: #{discriminator_forward.1} parent=28 // loop_body
      %v38 = vld [vmem:[%s36] sm:%s29]
      %39 = vst [vmem:[%s37] sm:%s29] %v38
    $region34: #{discriminator_forward.1} parent=28 // loop_footer
      %s35 = sadd.s32 1, %s31
    $region35: #{discriminator_forward.1} parent=28 // loop_footer_branch
      %30 = sbr.rel target = $region31
    $region36: #{discriminator_forward.1} parent=28 // loop_exit
      _
  $region29: #{discriminator_forward.1} parent=0 // pred_fallthru
    _
  // Predicated region
  $region52: #{discriminator_forward.1} parent=0 // pred_check
    _
  $region53: #{discriminator_forward.1} parent=0 // pred_check_branch
    %155 = sbr.rel (0) target = $region55
  $region54: #{discriminator_forward.1} parent=0 // pred_region
    %156 = vsyncadd [#allocation8], 6144
  $region55: #{discriminator_forward.1} parent=0 // pred_fallthru
    _
  %s157 = scalar_lea.vmem %s5, 384
  %s158 = scalar_lea.sflag [#allocation8], 1
  %p160 = scmp.lt.u32.totalorder 384, 8
  %p161 = pneg %p160
  // Predicated region
  $region56: #{discriminator_forward.1} parent=0 // pred_check
    _
  $region57: #{discriminator_forward.1} parent=0 // pred_check_branch
    %163 = sbr.rel (%p160) target = $region59
  $region58: #{discriminator_forward.1} parent=0 // pred_region
    %s178 = sand.u32 384, 7
    %p179 = scmp.eq.s32.totalorder %s178, 0
    // Predicated region
    $region71: #{discriminator_forward.1} parent=58 // pred_check
      %p180 = pneg %p179
    $region72: #{discriminator_forward.1} parent=58 // pred_check_branch
      %182 = sbr.rel (%p180) target = $region74
    $region73: #{discriminator_forward.1} parent=58 // pred_region
      loop: start=0, step=1, limit=1
      $region75: #{discriminator_forward.1} parent=73 // loop_pre_header
        _
      $region76: #{discriminator_forward.1} parent=73 // loop_header
        %s184 = sphi 0, %s188
        %p185 = scmp.ge.s32.totalorder %s184, 1
        %s189 = sphi %s157, %s157
        %s190 = sphi [#allocation3], [#allocation3]
      $region77: #{discriminator_forward.1} parent=73 // loop_header_branch
        %187 = sbr.rel (%p185) target = $region81
      $region78: #{discriminator_forward.1} parent=73 // loop_body
        %v191 = vld [vmem:[%s189] sm:$0xff]
        %192 = vst [vmem:[%s190] sm:$0xff] %v191
        %v193 = vld [vmem:[%s189 + $0x8] sm:$0xff]
        %194 = vst [vmem:[%s190 + $0x8] sm:$0xff] %v193
        %v195 = vld [vmem:[%s189 + $0x10] sm:$0xff]
        %196 = vst [vmem:[%s190 + $0x10] sm:$0xff] %v195
        %v197 = vld [vmem:[%s189 + $0x18] sm:$0xff]
        %198 = vst [vmem:[%s190 + $0x18] sm:$0xff] %v197
        %v199 = vld [vmem:[%s189 + $0x20] sm:$0xff]
        %200 = vst [vmem:[%s190 + $0x20] sm:$0xff] %v199
        %v201 = vld [vmem:[%s189 + $0x28] sm:$0xff]
        %202 = vst [vmem:[%s190 + $0x28] sm:$0xff] %v201
        %v203 = vld [vmem:[%s189 + $0x30] sm:$0xff]
        %204 = vst [vmem:[%s190 + $0x30] sm:$0xff] %v203
        %v205 = vld [vmem:[%s189 + $0x38] sm:$0xff]
        %206 = vst [vmem:[%s190 + $0x38] sm:$0xff] %v205
        %v207 = vld [vmem:[%s189 + $0x40] sm:$0xff]
        %208 = vst [vmem:[%s190 + $0x40] sm:$0xff] %v207
        %v209 = vld [vmem:[%s189 + $0x48] sm:$0xff]
        %210 = vst [vmem:[%s190 + $0x48] sm:$0xff] %v209
        %v211 = vld [vmem:[%s189 + $0x50] sm:$0xff]
        %212 = vst [vmem:[%s190 + $0x50] sm:$0xff] %v211
        %v213 = vld [vmem:[%s189 + $0x58] sm:$0xff]
        %214 = vst [vmem:[%s190 + $0x58] sm:$0xff] %v213
        %v215 = vld [vmem:[%s189 + $0x60] sm:$0xff]
        %216 = vst [vmem:[%s190 + $0x60] sm:$0xff] %v215
        %v217 = vld [vmem:[%s189 + $0x68] sm:$0xff]
        %218 = vst [vmem:[%s190 + $0x68] sm:$0xff] %v217
        %v219 = vld [vmem:[%s189 + $0x70] sm:$0xff]
        %220 = vst [vmem:[%s190 + $0x70] sm:$0xff] %v219
        %v221 = vld [vmem:[%s189 + $0x78] sm:$0xff]
        %222 = vst [vmem:[%s190 + $0x78] sm:$0xff] %v221
        %v223 = vld [vmem:[%s189 + $0x80] sm:$0xff]
        %224 = vst [vmem:[%s190 + $0x80] sm:$0xff] %v223
        %v225 = vld [vmem:[%s189 + $0x88] sm:$0xff]
        %226 = vst [vmem:[%s190 + $0x88] sm:$0xff] %v225
        %v227 = vld [vmem:[%s189 + $0x90] sm:$0xff]
        %228 = vst [vmem:[%s190 + $0x90] sm:$0xff] %v227
        %v229 = vld [vmem:[%s189 + $0x98] sm:$0xff]
        %230 = vst [vmem:[%s190 + $0x98] sm:$0xff] %v229
        %v231 = vld [vmem:[%s189 + $0xa0] sm:$0xff]
        %232 = vst [vmem:[%s190 + $0xa0] sm:$0xff] %v231
        %v233 = vld [vmem:[%s189 + $0xa8] sm:$0xff]
        %234 = vst [vmem:[%s190 + $0xa8] sm:$0xff] %v233
        %v235 = vld [vmem:[%s189 + $0xb0] sm:$0xff]
        %236 = vst [vmem:[%s190 + $0xb0] sm:$0xff] %v235
        %v237 = vld [vmem:[%s189 + $0xb8] sm:$0xff]
        %238 = vst [vmem:[%s190 + $0xb8] sm:$0xff] %v237
        %v239 = vld [vmem:[%s189 + $0xc0] sm:$0xff]
        %240 = vst [vmem:[%s190 + $0xc0] sm:$0xff] %v239
        %v241 = vld [vmem:[%s189 + $0xc8] sm:$0xff]
        %242 = vst [vmem:[%s190 + $0xc8] sm:$0xff] %v241
        %v243 = vld [vmem:[%s189 + $0xd0] sm:$0xff]
        %244 = vst [vmem:[%s190 + $0xd0] sm:$0xff] %v243
        %v245 = vld [vmem:[%s189 + $0xd8] sm:$0xff]
        %246 = vst [vmem:[%s190 + $0xd8] sm:$0xff] %v245
        %v247 = vld [vmem:[%s189 + $0xe0] sm:$0xff]
        %248 = vst [vmem:[%s190 + $0xe0] sm:$0xff] %v247
        %v249 = vld [vmem:[%s189 + $0xe8] sm:$0xff]
        %250 = vst [vmem:[%s190 + $0xe8] sm:$0xff] %v249
        %v251 = vld [vmem:[%s189 + $0xf0] sm:$0xff]
        %252 = vst [vmem:[%s190 + $0xf0] sm:$0xff] %v251
        %v253 = vld [vmem:[%s189 + $0xf8] sm:$0xff]
        %254 = vst [vmem:[%s190 + $0xf8] sm:$0xff] %v253
        %v255 = vld [vmem:[%s189 + $0x100] sm:$0xff]
        %256 = vst [vmem:[%s190 + $0x100] sm:$0xff] %v255
        %v257 = vld [vmem:[%s189 + $0x108] sm:$0xff]
        %258 = vst [vmem:[%s190 + $0x108] sm:$0xff] %v257
        %v259 = vld [vmem:[%s189 + $0x110] sm:$0xff]
        %260 = vst [vmem:[%s190 + $0x110] sm:$0xff] %v259
        %v261 = vld [vmem:[%s189 + $0x118] sm:$0xff]
        %262 = vst [vmem:[%s190 + $0x118] sm:$0xff] %v261
        %v263 = vld [vmem:[%s189 + $0x120] sm:$0xff]
        %264 = vst [vmem:[%s190 + $0x120] sm:$0xff] %v263
        %v265 = vld [vmem:[%s189 + $0x128] sm:$0xff]
        %266 = vst [vmem:[%s190 + $0x128] sm:$0xff] %v265
        %v267 = vld [vmem:[%s189 + $0x130] sm:$0xff]
        %268 = vst [vmem:[%s190 + $0x130] sm:$0xff] %v267
        %v269 = vld [vmem:[%s189 + $0x138] sm:$0xff]
        %270 = vst [vmem:[%s190 + $0x138] sm:$0xff] %v269
        %v271 = vld [vmem:[%s189 + $0x140] sm:$0xff]
        %272 = vst [vmem:[%s190 + $0x140] sm:$0xff] %v271
        %v273 = vld [vmem:[%s189 + $0x148] sm:$0xff]
        %274 = vst [vmem:[%s190 + $0x148] sm:$0xff] %v273
        %v275 = vld [vmem:[%s189 + $0x150] sm:$0xff]
        %276 = vst [vmem:[%s190 + $0x150] sm:$0xff] %v275
        %v277 = vld [vmem:[%s189 + $0x158] sm:$0xff]
        %278 = vst [vmem:[%s190 + $0x158] sm:$0xff] %v277
        %v279 = vld [vmem:[%s189 + $0x160] sm:$0xff]
        %280 = vst [vmem:[%s190 + $0x160] sm:$0xff] %v279
        %v281 = vld [vmem:[%s189 + $0x168] sm:$0xff]
        %282 = vst [vmem:[%s190 + $0x168] sm:$0xff] %v281
        %v283 = vld [vmem:[%s189 + $0x170] sm:$0xff]
        %284 = vst [vmem:[%s190 + $0x170] sm:$0xff] %v283
        %v285 = vld [vmem:[%s189 + $0x178] sm:$0xff]
        %286 = vst [vmem:[%s190 + $0x178] sm:$0xff] %v285
      $region79: #{discriminator_forward.1} parent=73 // loop_footer
        %s188 = sadd.s32 1, %s184
      $region80: #{discriminator_forward.1} parent=73 // loop_footer_branch
        %183 = sbr.rel target = $region76
      $region81: #{discriminator_forward.1} parent=73 // loop_exit
        _
    $region74: #{discriminator_forward.1} parent=58 // pred_fallthru
      _
    %p287 = pneg %p179
    // Predicated region
    $region82: #{discriminator_forward.1} parent=58 // pred_check
      _
    $region83: #{discriminator_forward.1} parent=58 // pred_check_branch
      %289 = sbr.rel (%p179) target = $region85
    $region84: #{discriminator_forward.1} parent=58 // pred_region
      %s290 = sand.u32 384, 7
    $region85: #{discriminator_forward.1} parent=58 // pred_fallthru
      _
  $region59: #{discriminator_forward.1} parent=0 // pred_fallthru
    _
  // Predicated region
  $region60: #{discriminator_forward.1} parent=0 // pred_check
    %p164 = pneg %p160
  $region61: #{discriminator_forward.1} parent=0 // pred_check_branch
    %166 = sbr.rel (%p164) target = $region63
  $region62: #{discriminator_forward.1} parent=0 // pred_region
    %s167 = sshllo.u32 0, 384
    loop: start=0, step=1, limit=1
    $region64: #{discriminator_forward.1} parent=62 // loop_pre_header
      _
    $region65: #{discriminator_forward.1} parent=62 // loop_header
      %s169 = sphi 0, %s173
      %p170 = scmp.ge.s32.totalorder %s169, 1
      %s174 = sphi %s157, %s157
      %s175 = sphi [#allocation3], [#allocation3]
    $region66: #{discriminator_forward.1} parent=62 // loop_header_branch
      %172 = sbr.rel (%p170) target = $region70
    $region67: #{discriminator_forward.1} parent=62 // loop_body
      %v176 = vld [vmem:[%s174] sm:%s167]
      %177 = vst [vmem:[%s175] sm:%s167] %v176
    $region68: #{discriminator_forward.1} parent=62 // loop_footer
      %s173 = sadd.s32 1, %s169
    $region69: #{discriminator_forward.1} parent=62 // loop_footer_branch
      %168 = sbr.rel target = $region65
    $region70: #{discriminator_forward.1} parent=62 // loop_exit
      _
  $region63: #{discriminator_forward.1} parent=0 // pred_fallthru
    _
  // Predicated region
  $region86: #{discriminator_forward.1} parent=0 // pred_check
    _
  $region87: #{discriminator_forward.1} parent=0 // pred_check_branch
    %293 = sbr.rel (0) target = $region89
  $region88: #{discriminator_forward.1} parent=0 // pred_region
    %294 = vsyncadd %s158, 6144
  $region89: #{discriminator_forward.1} parent=0 // pred_fallthru
    _
  %s295 = scalar_lea.vmem %s5, 768
  %s296 = scalar_lea.sflag [#allocation8], 2
  %p298 = scmp.lt.u32.totalorder 192, 8
  %p299 = pneg %p298
  // Predicated region
  $region90: #{discriminator_forward.1} parent=0 // pred_check
    _
  $region91: #{discriminator_forward.1} parent=0 // pred_check_branch
    %301 = sbr.rel (%p298) target = $region93
  $region92: #{discriminator_forward.1} parent=0 // pred_region
    %s316 = sand.u32 192, 7
    %p317 = scmp.eq.s32.totalorder %s316, 0
    // Predicated region
    $region105: #{discriminator_forward.1} parent=92 // pred_check
      %p318 = pneg %p317
    $region106: #{discriminator_forward.1} parent=92 // pred_check_branch
      %320 = sbr.rel (%p318) target = $region108
    $region107: #{discriminator_forward.1} parent=92 // pred_region
      loop: start=0, step=1, limit=1
      $region109: #{discriminator_forward.1} parent=107 // loop_pre_header
        _
      $region110: #{discriminator_forward.1} parent=107 // loop_header
        %s322 = sphi 0, %s326
        %p323 = scmp.ge.s32.totalorder %s322, 1
        %s327 = sphi %s295, %s295
        %s328 = sphi [#allocation4], [#allocation4]
      $region111: #{discriminator_forward.1} parent=107 // loop_header_branch
        %325 = sbr.rel (%p323) target = $region115
      $region112: #{discriminator_forward.1} parent=107 // loop_body
        %v329 = vld [vmem:[%s327] sm:$0xff]
        %330 = vst [vmem:[%s328] sm:$0xff] %v329
        %v331 = vld [vmem:[%s327 + $0x8] sm:$0xff]
        %332 = vst [vmem:[%s328 + $0x8] sm:$0xff] %v331
        %v333 = vld [vmem:[%s327 + $0x10] sm:$0xff]
        %334 = vst [vmem:[%s328 + $0x10] sm:$0xff] %v333
        %v335 = vld [vmem:[%s327 + $0x18] sm:$0xff]
        %336 = vst [vmem:[%s328 + $0x18] sm:$0xff] %v335
        %v337 = vld [vmem:[%s327 + $0x20] sm:$0xff]
        %338 = vst [vmem:[%s328 + $0x20] sm:$0xff] %v337
        %v339 = vld [vmem:[%s327 + $0x28] sm:$0xff]
        %340 = vst [vmem:[%s328 + $0x28] sm:$0xff] %v339
        %v341 = vld [vmem:[%s327 + $0x30] sm:$0xff]
        %342 = vst [vmem:[%s328 + $0x30] sm:$0xff] %v341
        %v343 = vld [vmem:[%s327 + $0x38] sm:$0xff]
        %344 = vst [vmem:[%s328 + $0x38] sm:$0xff] %v343
        %v345 = vld [vmem:[%s327 + $0x40] sm:$0xff]
        %346 = vst [vmem:[%s328 + $0x40] sm:$0xff] %v345
        %v347 = vld [vmem:[%s327 + $0x48] sm:$0xff]
        %348 = vst [vmem:[%s328 + $0x48] sm:$0xff] %v347
        %v349 = vld [vmem:[%s327 + $0x50] sm:$0xff]
        %350 = vst [vmem:[%s328 + $0x50] sm:$0xff] %v349
        %v351 = vld [vmem:[%s327 + $0x58] sm:$0xff]
        %352 = vst [vmem:[%s328 + $0x58] sm:$0xff] %v351
        %v353 = vld [vmem:[%s327 + $0x60] sm:$0xff]
        %354 = vst [vmem:[%s328 + $0x60] sm:$0xff] %v353
        %v355 = vld [vmem:[%s327 + $0x68] sm:$0xff]
        %356 = vst [vmem:[%s328 + $0x68] sm:$0xff] %v355
        %v357 = vld [vmem:[%s327 + $0x70] sm:$0xff]
        %358 = vst [vmem:[%s328 + $0x70] sm:$0xff] %v357
        %v359 = vld [vmem:[%s327 + $0x78] sm:$0xff]
        %360 = vst [vmem:[%s328 + $0x78] sm:$0xff] %v359
        %v361 = vld [vmem:[%s327 + $0x80] sm:$0xff]
        %362 = vst [vmem:[%s328 + $0x80] sm:$0xff] %v361
        %v363 = vld [vmem:[%s327 + $0x88] sm:$0xff]
        %364 = vst [vmem:[%s328 + $0x88] sm:$0xff] %v363
        %v365 = vld [vmem:[%s327 + $0x90] sm:$0xff]
        %366 = vst [vmem:[%s328 + $0x90] sm:$0xff] %v365
        %v367 = vld [vmem:[%s327 + $0x98] sm:$0xff]
        %368 = vst [vmem:[%s328 + $0x98] sm:$0xff] %v367
        %v369 = vld [vmem:[%s327 + $0xa0] sm:$0xff]
        %370 = vst [vmem:[%s328 + $0xa0] sm:$0xff] %v369
        %v371 = vld [vmem:[%s327 + $0xa8] sm:$0xff]
        %372 = vst [vmem:[%s328 + $0xa8] sm:$0xff] %v371
        %v373 = vld [vmem:[%s327 + $0xb0] sm:$0xff]
        %374 = vst [vmem:[%s328 + $0xb0] sm:$0xff] %v373
        %v375 = vld [vmem:[%s327 + $0xb8] sm:$0xff]
        %376 = vst [vmem:[%s328 + $0xb8] sm:$0xff] %v375
      $region113: #{discriminator_forward.1} parent=107 // loop_footer
        %s326 = sadd.s32 1, %s322
      $region114: #{discriminator_forward.1} parent=107 // loop_footer_branch
        %321 = sbr.rel target = $region110
      $region115: #{discriminator_forward.1} parent=107 // loop_exit
        _
    $region108: #{discriminator_forward.1} parent=92 // pred_fallthru
      _
    %p377 = pneg %p317
    // Predicated region
    $region116: #{discriminator_forward.1} parent=92 // pred_check
      _
    $region117: #{discriminator_forward.1} parent=92 // pred_check_branch
      %379 = sbr.rel (%p317) target = $region119
    $region118: #{discriminator_forward.1} parent=92 // pred_region
      %s380 = sand.u32 192, 7
    $region119: #{discriminator_forward.1} parent=92 // pred_fallthru
      _
  $region93: #{discriminator_forward.1} parent=0 // pred_fallthru
    _
  // Predicated region
  $region94: #{discriminator_forward.1} parent=0 // pred_check
    %p302 = pneg %p298
  $region95: #{discriminator_forward.1} parent=0 // pred_check_branch
    %304 = sbr.rel (%p302) target = $region97
  $region96: #{discriminator_forward.1} parent=0 // pred_region
    %s305 = sshllo.u32 0, 192
    loop: start=0, step=1, limit=1
    $region98: #{discriminator_forward.1} parent=96 // loop_pre_header
      _
    $region99: #{discriminator_forward.1} parent=96 // loop_header
      %s307 = sphi 0, %s311
      %p308 = scmp.ge.s32.totalorder %s307, 1
      %s312 = sphi %s295, %s295
      %s313 = sphi [#allocation4], [#allocation4]
    $region100: #{discriminator_forward.1} parent=96 // loop_header_branch
      %310 = sbr.rel (%p308) target = $region104
    $region101: #{discriminator_forward.1} parent=96 // loop_body
      %v314 = vld [vmem:[%s312] sm:%s305]
      %315 = vst [vmem:[%s313] sm:%s305] %v314
    $region102: #{discriminator_forward.1} parent=96 // loop_footer
      %s311 = sadd.s32 1, %s307
    $region103: #{discriminator_forward.1} parent=96 // loop_footer_branch
      %306 = sbr.rel target = $region99
    $region104: #{discriminator_forward.1} parent=96 // loop_exit
      _
  $region97: #{discriminator_forward.1} parent=0 // pred_fallthru
    _
  // Predicated region
  $region120: #{discriminator_forward.1} parent=0 // pred_check
    _
  $region121: #{discriminator_forward.1} parent=0 // pred_check_branch
    %383 = sbr.rel (0) target = $region123
  $region122: #{discriminator_forward.1} parent=0 // pred_region
    %384 = vsyncadd %s296, 3072
  $region123: #{discriminator_forward.1} parent=0 // pred_fallthru
    _
  %s385 = smul.u32 8, 16
  %s386 = smul.u32 %s385, 3
  %s387 = sshll.u32 %s386, 4
  %388 = dma.done [#allocation8], %s387
  %v389 = vld [vmem:[%s0] sm:$0xff]
  %v390 = vld [vmem:[%s0 + $0x8] sm:$0xff]
  %v391 = vld [vmem:[%s0 + $0x10] sm:$0xff]
  %v392 = vld [vmem:[%s0 + $0x18] sm:$0xff]
  %v393 = vld [vmem:[%s0 + $0x20] sm:$0xff]
  %v394 = vld [vmem:[%s0 + $0x28] sm:$0xff]
  %v395 = vld [vmem:[%s0 + $0x30] sm:$0xff]
  %v396 = vld [vmem:[%s0 + $0x38] sm:$0xff]
  %v397 = vld [vmem:[#allocation2] sm:$0xff]
  %v398 = vld [vmem:[#allocation2 + $0x8] sm:$0xff]
  %v399 = vld [vmem:[#allocation2 + $0x10] sm:$0xff]
  %v400 = vld [vmem:[#allocation2 + $0x18] sm:$0xff]
  %v401 = vld [vmem:[#allocation2 + $0x20] sm:$0xff]
  %v402 = vld [vmem:[#allocation2 + $0x28] sm:$0xff]
  %v403 = vld [vmem:[#allocation2 + $0x30] sm:$0xff]
  %v404 = vld [vmem:[#allocation2 + $0x38] sm:$0xff]
  %v405 = vld [vmem:[#allocation2 + $0x40] sm:$0xff]
  %v406 = vld [vmem:[#allocation2 + $0x48] sm:$0xff]
  %v407 = vld [vmem:[#allocation2 + $0x50] sm:$0xff]
  %v408 = vld [vmem:[#allocation2 + $0x58] sm:$0xff]
  %v409 = vld [vmem:[#allocation2 + $0x60] sm:$0xff]
  %v410 = vld [vmem:[#allocation2 + $0x68] sm:$0xff]
  %v411 = vld [vmem:[#allocation2 + $0x70] sm:$0xff]
  %v412 = vld [vmem:[#allocation2 + $0x78] sm:$0xff]
  %v413 = vld [vmem:[#allocation2 + $0x80] sm:$0xff]
  %v414 = vld [vmem:[#allocation2 + $0x88] sm:$0xff]
  %v415 = vld [vmem:[#allocation2 + $0x90] sm:$0xff]
  %v416 = vld [vmem:[#allocation2 + $0x98] sm:$0xff]
  %v417 = vld [vmem:[#allocation2 + $0xa0] sm:$0xff]
  %v418 = vld [vmem:[#allocation2 + $0xa8] sm:$0xff]
  %v419 = vld [vmem:[#allocation2 + $0xb0] sm:$0xff]
  %v420 = vld [vmem:[#allocation2 + $0xb8] sm:$0xff]
  %v421 = vld [vmem:[%s2] ss:$4 sm:$0x7]
  %v423 = vlaneseq
  %v424 = vshrl.u32 %v423, 7
  %v425 = vsub.s32 0, %v424
  %v426 = vrot.slane %v421, %v425
  %v427 = vlaneseq
  %v428 = vshrl.u32 %v427, 7
  %v429 = vsub.s32 1, %v428
  %v430 = vrot.slane %v421, %v429
  %v431 = vlaneseq
  %v432 = vshrl.u32 %v431, 7
  %v433 = vsub.s32 2, %v432
  %v434 = vrot.slane %v421, %v433
  %vm438 = vcmask 523264
  %v440 = vsel %vm438, %v389, 0
  %v443 = vsel %vm438, %v390, 0
  %v446 = vsel %vm438, %v391, 0
  %v449 = vsel %vm438, %v392, 0
  %v452 = vsel %vm438, %v393, 0
  %v455 = vsel %vm438, %v394, 0
  %v458 = vsel %vm438, %v395, 0
  %v461 = vsel %vm438, %v396, 0
  %463 = vmatprep.subr.mxu0 %v398
  %464 = vmatpush1.msra.mxu0 %v397
  %465 = vmatprep.subr.mxu0 %v401
  %466 = vmatpush1.msra.mxu0 %v400
  %467 = vmatprep.subr.mxu0 %v404
  %468 = vmatpush1.msra.mxu0 %v403
  %469 = vmatprep.subr.mxu0 %v407
  %470 = vmatpush1.msra.mxu0 %v406
  %471 = vmatprep.subr.mxu0 %v410
  %472 = vmatpush1.msra.mxu0 %v409
  %473 = vmatprep.subr.mxu0 %v413
  %474 = vmatpush1.msra.mxu0 %v412
  %475 = vmatprep.subr.mxu0 %v416
  %476 = vmatpush1.msra.mxu0 %v415
  %477 = vmatprep.subr.mxu0 %v419
  %478 = vmatpush1.msra.mxu0 %v418
  %479 = vmatprep.subr.mxu0 0.0
  %480 = vmatpush1.msra.mxu0 0.0
  %481 = vmatprep.subr.mxu0 0.0
  %482 = vmatpush1.msra.mxu0 0.0
  %483 = vmatprep.subr.mxu0 0.0
  %484 = vmatpush1.msra.mxu0 0.0
  %485 = vmatprep.subr.mxu0 0.0
  %486 = vmatpush1.msra.mxu0 0.0
  %487 = vmatprep.subr.mxu0 0.0
  %488 = vmatpush1.msra.mxu0 0.0
  %489 = vmatprep.subr.mxu0 0.0
  %490 = vmatpush1.msra.mxu0 0.0
  %491 = vmatprep.subr.mxu0 0.0
  %492 = vmatpush1.msra.mxu0 0.0
  %493 = vmatprep.subr.mxu0 0.0
  %494 = vmatpush1.msra.mxu0 0.0
  %495 = vmatprep.subr.mxu0 0.0
  %496 = vmatpush1.msra.mxu0 0.0
  %497 = vmatprep.subr.mxu0 0.0
  %498 = vmatpush1.msra.mxu0 0.0
  %499 = vmatprep.subr.mxu0 0.0
  %500 = vmatpush1.msra.mxu0 0.0
  %501 = vmatprep.subr.mxu0 0.0
  %502 = vmatpush1.msra.mxu0 0.0
  %503 = vmatprep.subr.mxu0 0.0
  %504 = vmatpush1.msra.mxu0 0.0
  %505 = vmatprep.subr.mxu0 0.0
  %506 = vmatpush1.msra.mxu0 0.0
  %507 = vmatprep.subr.mxu0 0.0
  %508 = vmatpush1.msra.mxu0 0.0
  %509 = vmatprep.subr.mxu0 0.0
  %510 = vmatpush1.msra.mxu0 0.0
  %511 = vmatprep.subr.mxu0 0.0
  %512 = vmatpush1.msra.mxu0 0.0
  %513 = vmatprep.subr.mxu0 0.0
  %514 = vmatpush1.msra.mxu0 0.0
  %515 = vmatprep.subr.mxu0 0.0
  %516 = vmatpush1.msra.mxu0 0.0
  %517 = vmatprep.subr.mxu0 0.0
  %518 = vmatpush1.msra.mxu0 0.0
  %519 = vmatprep.subr.mxu0 0.0
  %520 = vmatpush1.msra.mxu0 0.0
  %521 = vmatprep.subr.mxu0 0.0
  %522 = vmatpush1.msra.mxu0 0.0
  %523 = vmatprep.subr.mxu0 0.0
  %524 = vmatpush1.msra.mxu0 0.0
  %525 = vmatprep.subr.mxu0 0.0
  %526 = vmatpush1.msra.mxu0 0.0
  %527 = vmatprep.mubr.f32.mxu0 0.0
  %528 = vmatmul.mubr.f32.gmra.mrb[0].mxu0 %v440
  %v529 = vpop.f32.mrb[0].mxu0
  %v530 = vadd.f32 %v426, %v529
  %v531 = vpop.f32.mrb[0].mxu0
  %v532 = vadd.f32 %v430, %v531
  %533 = vmatprep.mubr.f32.mxu0 0.0
  %534 = vmatmul.mubr.f32.gmra.mrb[0].mxu0 %v443
  %v535 = vpop.f32.mrb[0].mxu0
  %v536 = vadd.f32 %v426, %v535
  %v537 = vpop.f32.mrb[0].mxu0
  %v538 = vadd.f32 %v430, %v537
  %539 = vmatprep.mubr.f32.mxu0 0.0
  %540 = vmatmul.mubr.f32.gmra.mrb[0].mxu0 %v446
  %v541 = vpop.f32.mrb[0].mxu0
  %v542 = vadd.f32 %v426, %v541
  %v543 = vpop.f32.mrb[0].mxu0
  %v544 = vadd.f32 %v430, %v543
  %545 = vmatprep.mubr.f32.mxu0 0.0
  %546 = vmatmul.mubr.f32.gmra.mrb[0].mxu0 %v449
  %v547 = vpop.f32.mrb[0].mxu0
  %v548 = vadd.f32 %v426, %v547
  %v549 = vpop.f32.mrb[0].mxu0
  %v550 = vadd.f32 %v430, %v549
  %551 = vmatprep.mubr.f32.mxu0 0.0
  %552 = vmatmul.mubr.f32.gmra.mrb[0].mxu0 %v452
  %v553 = vpop.f32.mrb[0].mxu0
  %v554 = vadd.f32 %v426, %v553
  %v555 = vpop.f32.mrb[0].mxu0
  %v556 = vadd.f32 %v430, %v555
  %557 = vmatprep.mubr.f32.mxu0 0.0
  %558 = vmatmul.mubr.f32.gmra.mrb[0].mxu0 %v455
  %v559 = vpop.f32.mrb[0].mxu0
  %v560 = vadd.f32 %v426, %v559
  %v561 = vpop.f32.mrb[0].mxu0
  %v562 = vadd.f32 %v430, %v561
  %563 = vmatprep.mubr.f32.mxu0 0.0
  %564 = vmatmul.mubr.f32.gmra.mrb[0].mxu0 %v458
  %v565 = vpop.f32.mrb[0].mxu0
  %v566 = vadd.f32 %v426, %v565
  %v567 = vpop.f32.mrb[0].mxu0
  %v568 = vadd.f32 %v430, %v567
  %569 = vmatprep.mubr.f32.mxu0 0.0
  %570 = vmatmul.mubr.f32.gmra.mrb[0].mxu0 %v461
  %v571 = vpop.f32.mrb[0].mxu0
  %v572 = vadd.f32 %v426, %v571
  %v573 = vpop.f32.mrb[0].mxu0
  %v574 = vadd.f32 %v430, %v573
  %575 = vdwg.mxu0
  %576 = vmatprep.subr.mxu0 0.0
  %577 = vmatpush1.msra.mxu0 %v399
  %578 = vmatprep.subr.mxu0 0.0
  %579 = vmatpush1.msra.mxu0 %v402
  %580 = vmatprep.subr.mxu0 0.0
  %581 = vmatpush1.msra.mxu0 %v405
  %582 = vmatprep.subr.mxu0 0.0
  %583 = vmatpush1.msra.mxu0 %v408
  %584 = vmatprep.subr.mxu0 0.0
  %585 = vmatpush1.msra.mxu0 %v411
  %586 = vmatprep.subr.mxu0 0.0
  %587 = vmatpush1.msra.mxu0 %v414
  %588 = vmatprep.subr.mxu0 0.0
  %589 = vmatpush1.msra.mxu0 %v417
  %590 = vmatprep.subr.mxu0 0.0
  %591 = vmatpush1.msra.mxu0 %v420
  %592 = vmatprep.subr.mxu0 0.0
  %593 = vmatpush1.msra.mxu0 0.0
  %594 = vmatprep.subr.mxu0 0.0
  %595 = vmatpush1.msra.mxu0 0.0
  %596 = vmatprep.subr.mxu0 0.0
  %597 = vmatpush1.msra.mxu0 0.0
  %598 = vmatprep.subr.mxu0 0.0
  %599 = vmatpush1.msra.mxu0 0.0
  %600 = vmatprep.subr.mxu0 0.0
  %601 = vmatpush1.msra.mxu0 0.0
  %602 = vmatprep.subr.mxu0 0.0
  %603 = vmatpush1.msra.mxu0 0.0
  %604 = vmatprep.subr.mxu0 0.0
  %605 = vmatpush1.msra.mxu0 0.0
  %606 = vmatprep.subr.mxu0 0.0
  %607 = vmatpush1.msra.mxu0 0.0
  %608 = vmatprep.subr.mxu0 0.0
  %609 = vmatpush1.msra.mxu0 0.0
  %610 = vmatprep.subr.mxu0 0.0
  %611 = vmatpush1.msra.mxu0 0.0
  %612 = vmatprep.subr.mxu0 0.0
  %613 = vmatpush1.msra.mxu0 0.0
  %614 = vmatprep.subr.mxu0 0.0
  %615 = vmatpush1.msra.mxu0 0.0
  %616 = vmatprep.subr.mxu0 0.0
  %617 = vmatpush1.msra.mxu0 0.0
  %618 = vmatprep.subr.mxu0 0.0
  %619 = vmatpush1.msra.mxu0 0.0
  %620 = vmatprep.subr.mxu0 0.0
  %621 = vmatpush1.msra.mxu0 0.0
  %622 = vmatprep.subr.mxu0 0.0
  %623 = vmatpush1.msra.mxu0 0.0
  %624 = vmatprep.subr.mxu0 0.0
  %625 = vmatpush1.msra.mxu0 0.0
  %626 = vmatprep.subr.mxu0 0.0
  %627 = vmatpush1.msra.mxu0 0.0
  %628 = vmatprep.subr.mxu0 0.0
  %629 = vmatpush1.msra.mxu0 0.0
  %630 = vmatprep.subr.mxu0 0.0
  %631 = vmatpush1.msra.mxu0 0.0
  %632 = vmatprep.subr.mxu0 0.0
  %633 = vmatpush1.msra.mxu0 0.0
  %634 = vmatprep.subr.mxu0 0.0
  %635 = vmatpush1.msra.mxu0 0.0
  %636 = vmatprep.subr.mxu0 0.0
  %637 = vmatpush1.msra.mxu0 0.0
  %638 = vmatprep.subr.mxu0 0.0
  %639 = vmatpush1.msra.mxu0 0.0
  %640 = vmatprep.mubr.f32.mxu0 0.0
  %641 = vmatmul.mubr.f32.gmra.mrb[0].mxu0 %v440
  %v642 = vpop.f32.mrb[0].mxu0
  %v643 = vadd.f32 %v434, %v642
  %v644 = vpop.f32.mrb[0].mxu0
  %645 = vmatprep.mubr.f32.mxu0 0.0
  %646 = vmatmul.mubr.f32.gmra.mrb[0].mxu0 %v443
  %v647 = vpop.f32.mrb[0].mxu0
  %v648 = vadd.f32 %v434, %v647
  %v649 = vpop.f32.mrb[0].mxu0
  %650 = vmatprep.mubr.f32.mxu0 0.0
  %651 = vmatmul.mubr.f32.gmra.mrb[0].mxu0 %v446
  %v652 = vpop.f32.mrb[0].mxu0
  %v653 = vadd.f32 %v434, %v652
  %v654 = vpop.f32.mrb[0].mxu0
  %655 = vmatprep.mubr.f32.mxu0 0.0
  %656 = vmatmul.mubr.f32.gmra.mrb[0].mxu0 %v449
  %v657 = vpop.f32.mrb[0].mxu0
  %v658 = vadd.f32 %v434, %v657
  %v659 = vpop.f32.mrb[0].mxu0
  %660 = vmatprep.mubr.f32.mxu0 0.0
  %661 = vmatmul.mubr.f32.gmra.mrb[0].mxu0 %v452
  %v662 = vpop.f32.mrb[0].mxu0
  %v663 = vadd.f32 %v434, %v662
  %v664 = vpop.f32.mrb[0].mxu0
  %665 = vmatprep.mubr.f32.mxu0 0.0
  %666 = vmatmul.mubr.f32.gmra.mrb[0].mxu0 %v455
  %v667 = vpop.f32.mrb[0].mxu0
  %v668 = vadd.f32 %v434, %v667
  %v669 = vpop.f32.mrb[0].mxu0
  %670 = vmatprep.mubr.f32.mxu0 0.0
  %671 = vmatmul.mubr.f32.gmra.mrb[0].mxu0 %v458
  %v672 = vpop.f32.mrb[0].mxu0
  %v673 = vadd.f32 %v434, %v672
  %v674 = vpop.f32.mrb[0].mxu0
  %675 = vmatprep.mubr.f32.mxu0 0.0
  %676 = vmatmul.mubr.f32.gmra.mrb[0].mxu0 %v461
  %v677 = vpop.f32.mrb[0].mxu0
  %v678 = vadd.f32 %v434, %v677
  %v679 = vpop.f32.mrb[0].mxu0
  %680 = vdwg.mxu0
  %681 = vst [vmem:[#allocation5] sm:$0xff] %v530
  %682 = vst [vmem:[#allocation5 + $0x8] sm:$0xff] %v532
  %683 = vst [vmem:[#allocation5 + $0x10] sm:$0xff] %v643
  %684 = vst [vmem:[#allocation5 + $0x18] sm:$0xff] %v536
  %685 = vst [vmem:[#allocation5 + $0x20] sm:$0xff] %v538
  %686 = vst [vmem:[#allocation5 + $0x28] sm:$0xff] %v648
  %687 = vst [vmem:[#allocation5 + $0x30] sm:$0xff] %v542
  %688 = vst [vmem:[#allocation5 + $0x38] sm:$0xff] %v544
  %689 = vst [vmem:[#allocation5 + $0x40] sm:$0xff] %v653
  %690 = vst [vmem:[#allocation5 + $0x48] sm:$0xff] %v548
  %691 = vst [vmem:[#allocation5 + $0x50] sm:$0xff] %v550
  %692 = vst [vmem:[#allocation5 + $0x58] sm:$0xff] %v658
  %693 = vst [vmem:[#allocation5 + $0x60] sm:$0xff] %v554
  %694 = vst [vmem:[#allocation5 + $0x68] sm:$0xff] %v556
  %695 = vst [vmem:[#allocation5 + $0x70] sm:$0xff] %v663
  %696 = vst [vmem:[#allocation5 + $0x78] sm:$0xff] %v560
  %697 = vst [vmem:[#allocation5 + $0x80] sm:$0xff] %v562
  %698 = vst [vmem:[#allocation5 + $0x88] sm:$0xff] %v668
  %699 = vst [vmem:[#allocation5 + $0x90] sm:$0xff] %v566
  %700 = vst [vmem:[#allocation5 + $0x98] sm:$0xff] %v568
  %701 = vst [vmem:[#allocation5 + $0xa0] sm:$0xff] %v673
  %702 = vst [vmem:[#allocation5 + $0xa8] sm:$0xff] %v572
  %703 = vst [vmem:[#allocation5 + $0xb0] sm:$0xff] %v574
  %704 = vst [vmem:[#allocation5 + $0xb8] sm:$0xff] %v678
  %v705 = vld [vmem:[#allocation2 + $0xc0] sm:$0xff]
  %v706 = vld [vmem:[#allocation2 + $0xc8] sm:$0xff]
  %v707 = vld [vmem:[#allocation2 + $0xd0] sm:$0xff]
  %v708 = vld [vmem:[#allocation2 + $0xd8] sm:$0xff]
  %v709 = vld [vmem:[#allocation2 + $0xe0] sm:$0xff]
  %v710 = vld [vmem:[#allocation2 + $0xe8] sm:$0xff]
  %v711 = vld [vmem:[#allocation2 + $0xf0] sm:$0xff]
  %v712 = vld [vmem:[#allocation2 + $0xf8] sm:$0xff]
  %v713 = vld [vmem:[#allocation2 + $0x100] sm:$0xff]
  %v714 = vld [vmem:[#allocation2 + $0x108] sm:$0xff]
  %v715 = vld [vmem:[#allocation2 + $0x110] sm:$0xff]
  %v716 = vld [vmem:[#allocation2 + $0x118] sm:$0xff]
  %v717 = vld [vmem:[#allocation2 + $0x120] sm:$0xff]
  %v718 = vld [vmem:[#allocation2 + $0x128] sm:$0xff]
  %v719 = vld [vmem:[#allocation2 + $0x130] sm:$0xff]
  %v720 = vld [vmem:[#allocation2 + $0x138] sm:$0xff]
  %v721 = vld [vmem:[#allocation2 + $0x140] sm:$0xff]
  %v722 = vld [vmem:[#allocation2 + $0x148] sm:$0xff]
  %v723 = vld [vmem:[#allocation2 + $0x150] sm:$0xff]
  %v724 = vld [vmem:[#allocation2 + $0x158] sm:$0xff]
  %v725 = vld [vmem:[#allocation2 + $0x160] sm:$0xff]
  %v726 = vld [vmem:[#allocation2 + $0x168] sm:$0xff]
  %v727 = vld [vmem:[#allocation2 + $0x170] sm:$0xff]
  %v728 = vld [vmem:[#allocation2 + $0x178] sm:$0xff]
  %v729 = vld [vmem:[%s2 + $0x2] sm:$0x1]
  %v730 = vlaneseq
  %v731 = vshrl.u32 %v730, 7
  %v732 = vsub.s32 0, %v731
  %v733 = vrot.slane %v729, %v732
  %s734 = scalar_lea.vmem %s2, 1
  %v735 = vld [vmem:[%s734] ss:$4 sm:$0x7]
  %v737 = vlaneseq
  %v738 = vshrl.u32 %v737, 7
  %v739 = vsub.s32 0, %v738
  %v740 = vrot.slane %v735, %v739
  %v741 = vlaneseq
  %v742 = vshrl.u32 %v741, 7
  %v743 = vsub.s32 1, %v742
  %v744 = vrot.slane %v735, %v743
  %v745 = vlaneseq
  %v746 = vshrl.u32 %v745, 7
  %v747 = vsub.s32 2, %v746
  %v748 = vrot.slane %v735, %v747
  %v752 = vld [vmem:[%s1] sm:$0xff]
  %v754 = vsel %vm438, %v752, 0
  %756 = vmatprep.subr.mxu0 %v706
  %757 = vmatpush1.msra.mxu0 %v705
  %758 = vmatprep.subr.mxu0 %v709
  %759 = vmatpush1.msra.mxu0 %v708
  %760 = vmatprep.subr.mxu0 %v712
  %761 = vmatpush1.msra.mxu0 %v711
  %762 = vmatprep.subr.mxu0 %v715
  %763 = vmatpush1.msra.mxu0 %v714
  %764 = vmatprep.subr.mxu0 %v718
  %765 = vmatpush1.msra.mxu0 %v717
  %766 = vmatprep.subr.mxu0 %v721
  %767 = vmatpush1.msra.mxu0 %v720
  %768 = vmatprep.subr.mxu0 %v724
  %769 = vmatpush1.msra.mxu0 %v723
  %770 = vmatprep.subr.mxu0 %v727
  %771 = vmatpush1.msra.mxu0 %v726
  %772 = vmatprep.subr.mxu0 0.0
  %773 = vmatpush1.msra.mxu0 0.0
  %774 = vmatprep.subr.mxu0 0.0
  %775 = vmatpush1.msra.mxu0 0.0
  %776 = vmatprep.subr.mxu0 0.0
  %777 = vmatpush1.msra.mxu0 0.0
  %778 = vmatprep.subr.mxu0 0.0
  %779 = vmatpush1.msra.mxu0 0.0
  %780 = vmatprep.subr.mxu0 0.0
  %781 = vmatpush1.msra.mxu0 0.0
  %782 = vmatprep.subr.mxu0 0.0
  %783 = vmatpush1.msra.mxu0 0.0
  %784 = vmatprep.subr.mxu0 0.0
  %785 = vmatpush1.msra.mxu0 0.0
  %786 = vmatprep.subr.mxu0 0.0
  %787 = vmatpush1.msra.mxu0 0.0
  %788 = vmatprep.subr.mxu0 0.0
  %789 = vmatpush1.msra.mxu0 0.0
  %790 = vmatprep.subr.mxu0 0.0
  %791 = vmatpush1.msra.mxu0 0.0
  %792 = vmatprep.subr.mxu0 0.0
  %793 = vmatpush1.msra.mxu0 0.0
  %794 = vmatprep.subr.mxu0 0.0
  %795 = vmatpush1.msra.mxu0 0.0
  %796 = vmatprep.subr.mxu0 0.0
  %797 = vmatpush1.msra.mxu0 0.0
  %798 = vmatprep.subr.mxu0 0.0
  %799 = vmatpush1.msra.mxu0 0.0
  %800 = vmatprep.subr.mxu0 0.0
  %801 = vmatpush1.msra.mxu0 0.0
  %802 = vmatprep.subr.mxu0 0.0
  %803 = vmatpush1.msra.mxu0 0.0
  %804 = vmatprep.subr.mxu0 0.0
  %805 = vmatpush1.msra.mxu0 0.0
  %806 = vmatprep.subr.mxu0 0.0
  %807 = vmatpush1.msra.mxu0 0.0
  %808 = vmatprep.subr.mxu0 0.0
  %809 = vmatpush1.msra.mxu0 0.0
  %810 = vmatprep.subr.mxu0 0.0
  %811 = vmatpush1.msra.mxu0 0.0
  %812 = vmatprep.subr.mxu0 0.0
  %813 = vmatpush1.msra.mxu0 0.0
  %814 = vmatprep.subr.mxu0 0.0
  %815 = vmatpush1.msra.mxu0 0.0
  %816 = vmatprep.subr.mxu0 0.0
  %817 = vmatpush1.msra.mxu0 0.0
  %818 = vmatprep.subr.mxu0 0.0
  %819 = vmatpush1.msra.mxu0 0.0
  %820 = vmatprep.mubr.f32.mxu0 0.0
  %821 = vmatmul.mubr.f32.gmra.mrb[0].mxu0 %v754
  %v822 = vpop.f32.mrb[0].mxu0
  %v823 = vadd.f32 0.0, %v822
  %v824 = vpop.f32.mrb[0].mxu0
  %v825 = vadd.f32 0.0, %v824
  %826 = vdwg.mxu0
  %827 = vmatprep.subr.mxu0 0.0
  %828 = vmatpush1.msra.mxu0 %v707
  %829 = vmatprep.subr.mxu0 0.0
  %830 = vmatpush1.msra.mxu0 %v710
  %831 = vmatprep.subr.mxu0 0.0
  %832 = vmatpush1.msra.mxu0 %v713
  %833 = vmatprep.subr.mxu0 0.0
  %834 = vmatpush1.msra.mxu0 %v716
  %835 = vmatprep.subr.mxu0 0.0
  %836 = vmatpush1.msra.mxu0 %v719
  %837 = vmatprep.subr.mxu0 0.0
  %838 = vmatpush1.msra.mxu0 %v722
  %839 = vmatprep.subr.mxu0 0.0
  %840 = vmatpush1.msra.mxu0 %v725
  %841 = vmatprep.subr.mxu0 0.0
  %842 = vmatpush1.msra.mxu0 %v728
  %843 = vmatprep.subr.mxu0 0.0
  %844 = vmatpush1.msra.mxu0 0.0
  %845 = vmatprep.subr.mxu0 0.0
  %846 = vmatpush1.msra.mxu0 0.0
  %847 = vmatprep.subr.mxu0 0.0
  %848 = vmatpush1.msra.mxu0 0.0
  %849 = vmatprep.subr.mxu0 0.0
  %850 = vmatpush1.msra.mxu0 0.0
  %851 = vmatprep.subr.mxu0 0.0
  %852 = vmatpush1.msra.mxu0 0.0
  %853 = vmatprep.subr.mxu0 0.0
  %854 = vmatpush1.msra.mxu0 0.0
  %855 = vmatprep.subr.mxu0 0.0
  %856 = vmatpush1.msra.mxu0 0.0
  %857 = vmatprep.subr.mxu0 0.0
  %858 = vmatpush1.msra.mxu0 0.0
  %859 = vmatprep.subr.mxu0 0.0
  %860 = vmatpush1.msra.mxu0 0.0
  %861 = vmatprep.subr.mxu0 0.0
  %862 = vmatpush1.msra.mxu0 0.0
  %863 = vmatprep.subr.mxu0 0.0
  %864 = vmatpush1.msra.mxu0 0.0
  %865 = vmatprep.subr.mxu0 0.0
  %866 = vmatpush1.msra.mxu0 0.0
  %867 = vmatprep.subr.mxu0 0.0
  %868 = vmatpush1.msra.mxu0 0.0
  %869 = vmatprep.subr.mxu0 0.0
  %870 = vmatpush1.msra.mxu0 0.0
  %871 = vmatprep.subr.mxu0 0.0
  %872 = vmatpush1.msra.mxu0 0.0
  %873 = vmatprep.subr.mxu0 0.0
  %874 = vmatpush1.msra.mxu0 0.0
  %875 = vmatprep.subr.mxu0 0.0
  %876 = vmatpush1.msra.mxu0 0.0
  %877 = vmatprep.subr.mxu0 0.0
  %878 = vmatpush1.msra.mxu0 0.0
  %879 = vmatprep.subr.mxu0 0.0
  %880 = vmatpush1.msra.mxu0 0.0
  %881 = vmatprep.subr.mxu0 0.0
  %882 = vmatpush1.msra.mxu0 0.0
  %883 = vmatprep.subr.mxu0 0.0
  %884 = vmatpush1.msra.mxu0 0.0
  %885 = vmatprep.subr.mxu0 0.0
  %886 = vmatpush1.msra.mxu0 0.0
  %887 = vmatprep.subr.mxu0 0.0
  %888 = vmatpush1.msra.mxu0 0.0
  %889 = vmatprep.subr.mxu0 0.0
  %890 = vmatpush1.msra.mxu0 0.0
  %891 = vmatprep.mubr.f32.mxu0 0.0
  %892 = vmatmul.mubr.f32.gmra.mrb[0].mxu0 %v754
  %v893 = vpop.f32.mrb[0].mxu0
  %v894 = vadd.f32 0.0, %v893
  %v895 = vpop.f32.mrb[0].mxu0
  %896 = vdwg.mxu0
  %v897 = vld [vmem:[#allocation5] sm:$0xff]
  %v898 = vld [vmem:[#allocation5 + $0x8] sm:$0xff]
  %v899 = vld [vmem:[#allocation5 + $0x10] sm:$0xff]
  %v900 = vadd.f32 %v897, %v823
  %v901 = vxor.u32 %v900, 2147483648
  %v902 = vmul.f32 %v901, 1.442695
  %v903 = vpow.pop %v902
  %v904 = vadd.f32 %v903, 1.0
  %v905 = vrcp.pop %v904
  %v906 = vmul.f32 1.0, %v905
  %v907 = vadd.f32 %v898, %v825
  %v908 = vxor.u32 %v907, 2147483648
  %v909 = vmul.f32 %v908, 1.442695
  %v910 = vpow.pop %v909
  %v911 = vadd.f32 %v910, 1.0
  %v912 = vrcp.pop %v911
  %v913 = vmul.f32 1.0, %v912
  %v914 = vadd.f32 %v894, %v733
  %v915 = vmul.f32 %v906, %v914
  %v916 = vadd.f32 %v899, %v915
  %v917 = vtanh.pop %v916
  %v918 = vsub.f32 %v752, %v917
  %v919 = vmul.f32 %v913, %v918
  %v920 = vadd.f32 %v917, %v919
  %v922 = vsel %vm438, %v920, 0
  %924 = vmatprep.subr.mxu0 %v706
  %925 = vmatpush1.msra.mxu0 %v705
  %926 = vmatprep.subr.mxu0 %v709
  %927 = vmatpush1.msra.mxu0 %v708
  %928 = vmatprep.subr.mxu0 %v712
  %929 = vmatpush1.msra.mxu0 %v711
  %930 = vmatprep.subr.mxu0 %v715
  %931 = vmatpush1.msra.mxu0 %v714
  %932 = vmatprep.subr.mxu0 %v718
  %933 = vmatpush1.msra.mxu0 %v717
  %934 = vmatprep.subr.mxu0 %v721
  %935 = vmatpush1.msra.mxu0 %v720
  %936 = vmatprep.subr.mxu0 %v724
  %937 = vmatpush1.msra.mxu0 %v723
  %938 = vmatprep.subr.mxu0 %v727
  %939 = vmatpush1.msra.mxu0 %v726
  %940 = vmatprep.subr.mxu0 0.0
  %941 = vmatpush1.msra.mxu0 0.0
  %942 = vmatprep.subr.mxu0 0.0
  %943 = vmatpush1.msra.mxu0 0.0
  %944 = vmatprep.subr.mxu0 0.0
  %945 = vmatpush1.msra.mxu0 0.0
  %946 = vmatprep.subr.mxu0 0.0
  %947 = vmatpush1.msra.mxu0 0.0
  %948 = vmatprep.subr.mxu0 0.0
  %949 = vmatpush1.msra.mxu0 0.0
  %950 = vmatprep.subr.mxu0 0.0
  %951 = vmatpush1.msra.mxu0 0.0
  %952 = vmatprep.subr.mxu0 0.0
  %953 = vmatpush1.msra.mxu0 0.0
  %954 = vmatprep.subr.mxu0 0.0
  %955 = vmatpush1.msra.mxu0 0.0
  %956 = vmatprep.subr.mxu0 0.0
  %957 = vmatpush1.msra.mxu0 0.0
  %958 = vmatprep.subr.mxu0 0.0
  %959 = vmatpush1.msra.mxu0 0.0
  %960 = vmatprep.subr.mxu0 0.0
  %961 = vmatpush1.msra.mxu0 0.0
  %962 = vmatprep.subr.mxu0 0.0
  %963 = vmatpush1.msra.mxu0 0.0
  %964 = vmatprep.subr.mxu0 0.0
  %965 = vmatpush1.msra.mxu0 0.0
  %966 = vmatprep.subr.mxu0 0.0
  %967 = vmatpush1.msra.mxu0 0.0
  %968 = vmatprep.subr.mxu0 0.0
  %969 = vmatpush1.msra.mxu0 0.0
  %970 = vmatprep.subr.mxu0 0.0
  %971 = vmatpush1.msra.mxu0 0.0
  %972 = vmatprep.subr.mxu0 0.0
  %973 = vmatpush1.msra.mxu0 0.0
  %974 = vmatprep.subr.mxu0 0.0
  %975 = vmatpush1.msra.mxu0 0.0
  %976 = vmatprep.subr.mxu0 0.0
  %977 = vmatpush1.msra.mxu0 0.0
  %978 = vmatprep.subr.mxu0 0.0
  %979 = vmatpush1.msra.mxu0 0.0
  %980 = vmatprep.subr.mxu0 0.0
  %981 = vmatpush1.msra.mxu0 0.0
  %982 = vmatprep.subr.mxu0 0.0
  %983 = vmatpush1.msra.mxu0 0.0
  %984 = vmatprep.subr.mxu0 0.0
  %985 = vmatpush1.msra.mxu0 0.0
  %986 = vmatprep.subr.mxu0 0.0
  %987 = vmatpush1.msra.mxu0 0.0
  %988 = vmatprep.mubr.f32.mxu0 0.0
  %989 = vmatmul.mubr.f32.gmra.mrb[0].mxu0 %v922
  %v990 = vpop.f32.mrb[0].mxu0
  %v991 = vadd.f32 0.0, %v990
  %v992 = vpop.f32.mrb[0].mxu0
  %v993 = vadd.f32 0.0, %v992
  %994 = vdwg.mxu0
  %995 = vmatprep.subr.mxu0 0.0
  %996 = vmatpush1.msra.mxu0 %v707
  %997 = vmatprep.subr.mxu0 0.0
  %998 = vmatpush1.msra.mxu0 %v710
  %999 = vmatprep.subr.mxu0 0.0
  %1000 = vmatpush1.msra.mxu0 %v713
  %1001 = vmatprep.subr.mxu0 0.0
  %1002 = vmatpush1.msra.mxu0 %v716
  %1003 = vmatprep.subr.mxu0 0.0
  %1004 = vmatpush1.msra.mxu0 %v719
  %1005 = vmatprep.subr.mxu0 0.0
  %1006 = vmatpush1.msra.mxu0 %v722
  %1007 = vmatprep.subr.mxu0 0.0
  %1008 = vmatpush1.msra.mxu0 %v725
  %1009 = vmatprep.subr.mxu0 0.0
  %1010 = vmatpush1.msra.mxu0 %v728
  %1011 = vmatprep.subr.mxu0 0.0
  %1012 = vmatpush1.msra.mxu0 0.0
  %1013 = vmatprep.subr.mxu0 0.0
  %1014 = vmatpush1.msra.mxu0 0.0
  %1015 = vmatprep.subr.mxu0 0.0
  %1016 = vmatpush1.msra.mxu0 0.0
  %1017 = vmatprep.subr.mxu0 0.0
  %1018 = vmatpush1.msra.mxu0 0.0
  %1019 = vmatprep.subr.mxu0 0.0
  %1020 = vmatpush1.msra.mxu0 0.0
  %1021 = vmatprep.subr.mxu0 0.0
  %1022 = vmatpush1.msra.mxu0 0.0
  %1023 = vmatprep.subr.mxu0 0.0
  %1024 = vmatpush1.msra.mxu0 0.0
  %1025 = vmatprep.subr.mxu0 0.0
  %1026 = vmatpush1.msra.mxu0 0.0
  %1027 = vmatprep.subr.mxu0 0.0
  %1028 = vmatpush1.msra.mxu0 0.0
  %1029 = vmatprep.subr.mxu0 0.0
  %1030 = vmatpush1.msra.mxu0 0.0
  %1031 = vmatprep.subr.mxu0 0.0
  %1032 = vmatpush1.msra.mxu0 0.0
  %1033 = vmatprep.subr.mxu0 0.0
  %1034 = vmatpush1.msra.mxu0 0.0
  %1035 = vmatprep.subr.mxu0 0.0
  %1036 = vmatpush1.msra.mxu0 0.0
  %1037 = vmatprep.subr.mxu0 0.0
  %1038 = vmatpush1.msra.mxu0 0.0
  %1039 = vmatprep.subr.mxu0 0.0
  %1040 = vmatpush1.msra.mxu0 0.0
  %1041 = vmatprep.subr.mxu0 0.0
  %1042 = vmatpush1.msra.mxu0 0.0
  %1043 = vmatprep.subr.mxu0 0.0
  %1044 = vmatpush1.msra.mxu0 0.0
  %1045 = vmatprep.subr.mxu0 0.0
  %1046 = vmatpush1.msra.mxu0 0.0
  %1047 = vmatprep.subr.mxu0 0.0
  %1048 = vmatpush1.msra.mxu0 0.0
  %1049 = vmatprep.subr.mxu0 0.0
  %1050 = vmatpush1.msra.mxu0 0.0
  %1051 = vmatprep.subr.mxu0 0.0
  %1052 = vmatpush1.msra.mxu0 0.0
  %1053 = vmatprep.subr.mxu0 0.0
  %1054 = vmatpush1.msra.mxu0 0.0
  %1055 = vmatprep.subr.mxu0 0.0
  %1056 = vmatpush1.msra.mxu0 0.0
  %1057 = vmatprep.subr.mxu0 0.0
  %1058 = vmatpush1.msra.mxu0 0.0
  %1059 = vmatprep.mubr.f32.mxu0 0.0
  %1060 = vmatmul.mubr.f32.gmra.mrb[0].mxu0 %v922
  %v1061 = vpop.f32.mrb[0].mxu0
  %v1062 = vadd.f32 0.0, %v1061
  %v1063 = vpop.f32.mrb[0].mxu0
  %1064 = vdwg.mxu0
  %s1065 = sshll.u32 %s386, 4
  %1066 = dma.done %s158, %s1065
  %v1067 = vld [vmem:[#allocation3] sm:$0xff]
  %v1068 = vld [vmem:[#allocation3 + $0x8] sm:$0xff]
  %v1069 = vld [vmem:[#allocation3 + $0x10] sm:$0xff]
  %v1070 = vld [vmem:[#allocation3 + $0x18] sm:$0xff]
  %v1071 = vld [vmem:[#allocation3 + $0x20] sm:$0xff]
  %v1072 = vld [vmem:[#allocation3 + $0x28] sm:$0xff]
  %v1073 = vld [vmem:[#allocation3 + $0x30] sm:$0xff]
  %v1074 = vld [vmem:[#allocation3 + $0x38] sm:$0xff]
  %v1075 = vld [vmem:[#allocation3 + $0x40] sm:$0xff]
  %v1076 = vld [vmem:[#allocation3 + $0x48] sm:$0xff]
  %v1077 = vld [vmem:[#allocation3 + $0x50] sm:$0xff]
  %v1078 = vld [vmem:[#allocation3 + $0x58] sm:$0xff]
  %v1079 = vld [vmem:[#allocation3 + $0x60] sm:$0xff]
  %v1080 = vld [vmem:[#allocation3 + $0x68] sm:$0xff]
  %v1081 = vld [vmem:[#allocation3 + $0x70] sm:$0xff]
  %v1082 = vld [vmem:[#allocation3 + $0x78] sm:$0xff]
  %v1083 = vld [vmem:[#allocation3 + $0x80] sm:$0xff]
  %v1084 = vld [vmem:[#allocation3 + $0x88] sm:$0xff]
  %v1085 = vld [vmem:[#allocation3 + $0x90] sm:$0xff]
  %v1086 = vld [vmem:[#allocation3 + $0x98] sm:$0xff]
  %v1087 = vld [vmem:[#allocation3 + $0xa0] sm:$0xff]
  %v1088 = vld [vmem:[#allocation3 + $0xa8] sm:$0xff]
  %v1089 = vld [vmem:[#allocation3 + $0xb0] sm:$0xff]
  %v1090 = vld [vmem:[#allocation3 + $0xb8] sm:$0xff]
  %1091 = vmatprep.subr.mxu0 %v1068
  %1092 = vmatpush1.msra.mxu0 %v1067
  %1093 = vmatprep.subr.mxu0 %v1071
  %1094 = vmatpush1.msra.mxu0 %v1070
  %1095 = vmatprep.subr.mxu0 %v1074
  %1096 = vmatpush1.msra.mxu0 %v1073
  %1097 = vmatprep.subr.mxu0 %v1077
  %1098 = vmatpush1.msra.mxu0 %v1076
  %1099 = vmatprep.subr.mxu0 %v1080
  %1100 = vmatpush1.msra.mxu0 %v1079
  %1101 = vmatprep.subr.mxu0 %v1083
  %1102 = vmatpush1.msra.mxu0 %v1082
  %1103 = vmatprep.subr.mxu0 %v1086
  %1104 = vmatpush1.msra.mxu0 %v1085
  %1105 = vmatprep.subr.mxu0 %v1089
  %1106 = vmatpush1.msra.mxu0 %v1088
  %1107 = vmatprep.subr.mxu0 0.0
  %1108 = vmatpush1.msra.mxu0 0.0
  %1109 = vmatprep.subr.mxu0 0.0
  %1110 = vmatpush1.msra.mxu0 0.0
  %1111 = vmatprep.subr.mxu0 0.0
  %1112 = vmatpush1.msra.mxu0 0.0
  %1113 = vmatprep.subr.mxu0 0.0
  %1114 = vmatpush1.msra.mxu0 0.0
  %1115 = vmatprep.subr.mxu0 0.0
  %1116 = vmatpush1.msra.mxu0 0.0
  %1117 = vmatprep.subr.mxu0 0.0
  %1118 = vmatpush1.msra.mxu0 0.0
  %1119 = vmatprep.subr.mxu0 0.0
  %1120 = vmatpush1.msra.mxu0 0.0
  %1121 = vmatprep.subr.mxu0 0.0
  %1122 = vmatpush1.msra.mxu0 0.0
  %1123 = vmatprep.subr.mxu0 0.0
  %1124 = vmatpush1.msra.mxu0 0.0
  %1125 = vmatprep.subr.mxu0 0.0
  %1126 = vmatpush1.msra.mxu0 0.0
  %1127 = vmatprep.subr.mxu0 0.0
  %1128 = vmatpush1.msra.mxu0 0.0
  %1129 = vmatprep.subr.mxu0 0.0
  %1130 = vmatpush1.msra.mxu0 0.0
  %1131 = vmatprep.subr.mxu0 0.0
  %1132 = vmatpush1.msra.mxu0 0.0
  %1133 = vmatprep.subr.mxu0 0.0
  %1134 = vmatpush1.msra.mxu0 0.0
  %1135 = vmatprep.subr.mxu0 0.0
  %1136 = vmatpush1.msra.mxu0 0.0
  %1137 = vmatprep.subr.mxu0 0.0
  %1138 = vmatpush1.msra.mxu0 0.0
  %1139 = vmatprep.subr.mxu0 0.0
  %1140 = vmatpush1.msra.mxu0 0.0
  %1141 = vmatprep.subr.mxu0 0.0
  %1142 = vmatpush1.msra.mxu0 0.0
  %1143 = vmatprep.subr.mxu0 0.0
  %1144 = vmatpush1.msra.mxu0 0.0
  %1145 = vmatprep.subr.mxu0 0.0
  %1146 = vmatpush1.msra.mxu0 0.0
  %1147 = vmatprep.subr.mxu0 0.0
  %1148 = vmatpush1.msra.mxu0 0.0
  %1149 = vmatprep.subr.mxu0 0.0
  %1150 = vmatpush1.msra.mxu0 0.0
  %1151 = vmatprep.subr.mxu0 0.0
  %1152 = vmatpush1.msra.mxu0 0.0
  %1153 = vmatprep.subr.mxu0 0.0
  %1154 = vmatpush1.msra.mxu0 0.0
  %1155 = vmatprep.mubr.f32.mxu0 0.0
  %1156 = vmatmul.mubr.f32.gmra.mrb[0].mxu0 %v922
  %v1157 = vpop.f32.mrb[0].mxu0
  %v1158 = vadd.f32 %v740, %v1157
  %v1159 = vpop.f32.mrb[0].mxu0
  %v1160 = vadd.f32 %v744, %v1159
  %1161 = vdwg.mxu0
  %1162 = vmatprep.subr.mxu0 0.0
  %1163 = vmatpush1.msra.mxu0 %v1069
  %1164 = vmatprep.subr.mxu0 0.0
  %1165 = vmatpush1.msra.mxu0 %v1072
  %1166 = vmatprep.subr.mxu0 0.0
  %1167 = vmatpush1.msra.mxu0 %v1075
  %1168 = vmatprep.subr.mxu0 0.0
  %1169 = vmatpush1.msra.mxu0 %v1078
  %1170 = vmatprep.subr.mxu0 0.0
  %1171 = vmatpush1.msra.mxu0 %v1081
  %1172 = vmatprep.subr.mxu0 0.0
  %1173 = vmatpush1.msra.mxu0 %v1084
  %1174 = vmatprep.subr.mxu0 0.0
  %1175 = vmatpush1.msra.mxu0 %v1087
  %1176 = vmatprep.subr.mxu0 0.0
  %1177 = vmatpush1.msra.mxu0 %v1090
  %1178 = vmatprep.subr.mxu0 0.0
  %1179 = vmatpush1.msra.mxu0 0.0
  %1180 = vmatprep.subr.mxu0 0.0
  %1181 = vmatpush1.msra.mxu0 0.0
  %1182 = vmatprep.subr.mxu0 0.0
  %1183 = vmatpush1.msra.mxu0 0.0
  %1184 = vmatprep.subr.mxu0 0.0
  %1185 = vmatpush1.msra.mxu0 0.0
  %1186 = vmatprep.subr.mxu0 0.0
  %1187 = vmatpush1.msra.mxu0 0.0
  %1188 = vmatprep.subr.mxu0 0.0
  %1189 = vmatpush1.msra.mxu0 0.0
  %1190 = vmatprep.subr.mxu0 0.0
  %1191 = vmatpush1.msra.mxu0 0.0
  %1192 = vmatprep.subr.mxu0 0.0
  %1193 = vmatpush1.msra.mxu0 0.0
  %1194 = vmatprep.subr.mxu0 0.0
  %1195 = vmatpush1.msra.mxu0 0.0
  %1196 = vmatprep.subr.mxu0 0.0
  %1197 = vmatpush1.msra.mxu0 0.0
  %1198 = vmatprep.subr.mxu0 0.0
  %1199 = vmatpush1.msra.mxu0 0.0
  %1200 = vmatprep.subr.mxu0 0.0
  %1201 = vmatpush1.msra.mxu0 0.0
  %1202 = vmatprep.subr.mxu0 0.0
  %1203 = vmatpush1.msra.mxu0 0.0
  %1204 = vmatprep.subr.mxu0 0.0
  %1205 = vmatpush1.msra.mxu0 0.0
  %1206 = vmatprep.subr.mxu0 0.0
  %1207 = vmatpush1.msra.mxu0 0.0
  %1208 = vmatprep.subr.mxu0 0.0
  %1209 = vmatpush1.msra.mxu0 0.0
  %1210 = vmatprep.subr.mxu0 0.0
  %1211 = vmatpush1.msra.mxu0 0.0
  %1212 = vmatprep.subr.mxu0 0.0
  %1213 = vmatpush1.msra.mxu0 0.0
  %1214 = vmatprep.subr.mxu0 0.0
  %1215 = vmatpush1.msra.mxu0 0.0
  %1216 = vmatprep.subr.mxu0 0.0
  %1217 = vmatpush1.msra.mxu0 0.0
  %1218 = vmatprep.subr.mxu0 0.0
  %1219 = vmatpush1.msra.mxu0 0.0
  %1220 = vmatprep.subr.mxu0 0.0
  %1221 = vmatpush1.msra.mxu0 0.0
  %1222 = vmatprep.subr.mxu0 0.0
  %1223 = vmatpush1.msra.mxu0 0.0
  %1224 = vmatprep.subr.mxu0 0.0
  %1225 = vmatpush1.msra.mxu0 0.0
  %1226 = vmatprep.mubr.f32.mxu0 0.0
  %1227 = vmatmul.mubr.f32.gmra.mrb[0].mxu0 %v922
  %v1228 = vpop.f32.mrb[0].mxu0
  %v1229 = vadd.f32 %v748, %v1228
  %v1230 = vpop.f32.mrb[0].mxu0
  %1231 = vdwg.mxu0
  %1232 = vst [vmem:[#allocation6] sm:$0xff] %v1158
  %1233 = vst [vmem:[#allocation6 + $0x8] sm:$0xff] %v1160
  %1234 = vst [vmem:[#allocation6 + $0x10] sm:$0xff] %v1229
  %v1235 = vld [vmem:[#allocation3 + $0xc0] sm:$0xff]
  %v1236 = vld [vmem:[#allocation3 + $0xc8] sm:$0xff]
  %v1237 = vld [vmem:[#allocation3 + $0xd0] sm:$0xff]
  %v1238 = vld [vmem:[#allocation3 + $0xd8] sm:$0xff]
  %v1239 = vld [vmem:[#allocation3 + $0xe0] sm:$0xff]
  %v1240 = vld [vmem:[#allocation3 + $0xe8] sm:$0xff]
  %v1241 = vld [vmem:[#allocation3 + $0xf0] sm:$0xff]
  %v1242 = vld [vmem:[#allocation3 + $0xf8] sm:$0xff]
  %v1243 = vld [vmem:[#allocation3 + $0x100] sm:$0xff]
  %v1244 = vld [vmem:[#allocation3 + $0x108] sm:$0xff]
  %v1245 = vld [vmem:[#allocation3 + $0x110] sm:$0xff]
  %v1246 = vld [vmem:[#allocation3 + $0x118] sm:$0xff]
  %v1247 = vld [vmem:[#allocation3 + $0x120] sm:$0xff]
  %v1248 = vld [vmem:[#allocation3 + $0x128] sm:$0xff]
  %v1249 = vld [vmem:[#allocation3 + $0x130] sm:$0xff]
  %v1250 = vld [vmem:[#allocation3 + $0x138] sm:$0xff]
  %v1251 = vld [vmem:[#allocation3 + $0x140] sm:$0xff]
  %v1252 = vld [vmem:[#allocation3 + $0x148] sm:$0xff]
  %v1253 = vld [vmem:[#allocation3 + $0x150] sm:$0xff]
  %v1254 = vld [vmem:[#allocation3 + $0x158] sm:$0xff]
  %v1255 = vld [vmem:[#allocation3 + $0x160] sm:$0xff]
  %v1256 = vld [vmem:[#allocation3 + $0x168] sm:$0xff]
  %v1257 = vld [vmem:[#allocation3 + $0x170] sm:$0xff]
  %v1258 = vld [vmem:[#allocation3 + $0x178] sm:$0xff]
  %1259 = vmatprep.subr.mxu0 %v1236
  %1260 = vmatpush1.msra.mxu0 %v1235
  %1261 = vmatprep.subr.mxu0 %v1239
  %1262 = vmatpush1.msra.mxu0 %v1238
  %1263 = vmatprep.subr.mxu0 %v1242
  %1264 = vmatpush1.msra.mxu0 %v1241
  %1265 = vmatprep.subr.mxu0 %v1245
  %1266 = vmatpush1.msra.mxu0 %v1244
  %1267 = vmatprep.subr.mxu0 %v1248
  %1268 = vmatpush1.msra.mxu0 %v1247
  %1269 = vmatprep.subr.mxu0 %v1251
  %1270 = vmatpush1.msra.mxu0 %v1250
  %1271 = vmatprep.subr.mxu0 %v1254
  %1272 = vmatpush1.msra.mxu0 %v1253
  %1273 = vmatprep.subr.mxu0 %v1257
  %1274 = vmatpush1.msra.mxu0 %v1256
  %1275 = vmatprep.subr.mxu0 0.0
  %1276 = vmatpush1.msra.mxu0 0.0
  %1277 = vmatprep.subr.mxu0 0.0
  %1278 = vmatpush1.msra.mxu0 0.0
  %1279 = vmatprep.subr.mxu0 0.0
  %1280 = vmatpush1.msra.mxu0 0.0
  %1281 = vmatprep.subr.mxu0 0.0
  %1282 = vmatpush1.msra.mxu0 0.0
  %1283 = vmatprep.subr.mxu0 0.0
  %1284 = vmatpush1.msra.mxu0 0.0
  %1285 = vmatprep.subr.mxu0 0.0
  %1286 = vmatpush1.msra.mxu0 0.0
  %1287 = vmatprep.subr.mxu0 0.0
  %1288 = vmatpush1.msra.mxu0 0.0
  %1289 = vmatprep.subr.mxu0 0.0
  %1290 = vmatpush1.msra.mxu0 0.0
  %1291 = vmatprep.subr.mxu0 0.0
  %1292 = vmatpush1.msra.mxu0 0.0
  %1293 = vmatprep.subr.mxu0 0.0
  %1294 = vmatpush1.msra.mxu0 0.0
  %1295 = vmatprep.subr.mxu0 0.0
  %1296 = vmatpush1.msra.mxu0 0.0
  %1297 = vmatprep.subr.mxu0 0.0
  %1298 = vmatpush1.msra.mxu0 0.0
  %1299 = vmatprep.subr.mxu0 0.0
  %1300 = vmatpush1.msra.mxu0 0.0
  %1301 = vmatprep.subr.mxu0 0.0
  %1302 = vmatpush1.msra.mxu0 0.0
  %1303 = vmatprep.subr.mxu0 0.0
  %1304 = vmatpush1.msra.mxu0 0.0
  %1305 = vmatprep.subr.mxu0 0.0
  %1306 = vmatpush1.msra.mxu0 0.0
  %1307 = vmatprep.subr.mxu0 0.0
  %1308 = vmatpush1.msra.mxu0 0.0
  %1309 = vmatprep.subr.mxu0 0.0
  %1310 = vmatpush1.msra.mxu0 0.0
  %1311 = vmatprep.subr.mxu0 0.0
  %1312 = vmatpush1.msra.mxu0 0.0
  %1313 = vmatprep.subr.mxu0 0.0
  %1314 = vmatpush1.msra.mxu0 0.0
  %1315 = vmatprep.subr.mxu0 0.0
  %1316 = vmatpush1.msra.mxu0 0.0
  %1317 = vmatprep.subr.mxu0 0.0
  %1318 = vmatpush1.msra.mxu0 0.0
  %1319 = vmatprep.subr.mxu0 0.0
  %1320 = vmatpush1.msra.mxu0 0.0
  %1321 = vmatprep.subr.mxu0 0.0
  %1322 = vmatpush1.msra.mxu0 0.0
  %1323 = vmatprep.mubr.f32.mxu0 0.0
  %1324 = vmatmul.mubr.f32.gmra.mrb[0].mxu0 %v922
  %v1325 = vpop.f32.mrb[0].mxu0
  %v1326 = vadd.f32 0.0, %v1325
  %v1327 = vpop.f32.mrb[0].mxu0
  %v1328 = vadd.f32 0.0, %v1327
  %1329 = vdwg.mxu0
  %1330 = vmatprep.subr.mxu0 0.0
  %1331 = vmatpush1.msra.mxu0 %v1237
  %1332 = vmatprep.subr.mxu0 0.0
  %1333 = vmatpush1.msra.mxu0 %v1240
  %1334 = vmatprep.subr.mxu0 0.0
  %1335 = vmatpush1.msra.mxu0 %v1243
  %1336 = vmatprep.subr.mxu0 0.0
  %1337 = vmatpush1.msra.mxu0 %v1246
  %1338 = vmatprep.subr.mxu0 0.0
  %1339 = vmatpush1.msra.mxu0 %v1249
  %1340 = vmatprep.subr.mxu0 0.0
  %1341 = vmatpush1.msra.mxu0 %v1252
  %1342 = vmatprep.subr.mxu0 0.0
  %1343 = vmatpush1.msra.mxu0 %v1255
  %1344 = vmatprep.subr.mxu0 0.0
  %1345 = vmatpush1.msra.mxu0 %v1258
  %1346 = vmatprep.subr.mxu0 0.0
  %1347 = vmatpush1.msra.mxu0 0.0
  %1348 = vmatprep.subr.mxu0 0.0
  %1349 = vmatpush1.msra.mxu0 0.0
  %1350 = vmatprep.subr.mxu0 0.0
  %1351 = vmatpush1.msra.mxu0 0.0
  %1352 = vmatprep.subr.mxu0 0.0
  %1353 = vmatpush1.msra.mxu0 0.0
  %1354 = vmatprep.subr.mxu0 0.0
  %1355 = vmatpush1.msra.mxu0 0.0
  %1356 = vmatprep.subr.mxu0 0.0
  %1357 = vmatpush1.msra.mxu0 0.0
  %1358 = vmatprep.subr.mxu0 0.0
  %1359 = vmatpush1.msra.mxu0 0.0
  %1360 = vmatprep.subr.mxu0 0.0
  %1361 = vmatpush1.msra.mxu0 0.0
  %1362 = vmatprep.subr.mxu0 0.0
  %1363 = vmatpush1.msra.mxu0 0.0
  %1364 = vmatprep.subr.mxu0 0.0
  %1365 = vmatpush1.msra.mxu0 0.0
  %1366 = vmatprep.subr.mxu0 0.0
  %1367 = vmatpush1.msra.mxu0 0.0
  %1368 = vmatprep.subr.mxu0 0.0
  %1369 = vmatpush1.msra.mxu0 0.0
  %1370 = vmatprep.subr.mxu0 0.0
  %1371 = vmatpush1.msra.mxu0 0.0
  %1372 = vmatprep.subr.mxu0 0.0
  %1373 = vmatpush1.msra.mxu0 0.0
  %1374 = vmatprep.subr.mxu0 0.0
  %1375 = vmatpush1.msra.mxu0 0.0
  %1376 = vmatprep.subr.mxu0 0.0
  %1377 = vmatpush1.msra.mxu0 0.0
  %1378 = vmatprep.subr.mxu0 0.0
  %1379 = vmatpush1.msra.mxu0 0.0
  %1380 = vmatprep.subr.mxu0 0.0
  %1381 = vmatpush1.msra.mxu0 0.0
  %1382 = vmatprep.subr.mxu0 0.0
  %1383 = vmatpush1.msra.mxu0 0.0
  %1384 = vmatprep.subr.mxu0 0.0
  %1385 = vmatpush1.msra.mxu0 0.0
  %1386 = vmatprep.subr.mxu0 0.0
  %1387 = vmatpush1.msra.mxu0 0.0
  %1388 = vmatprep.subr.mxu0 0.0
  %1389 = vmatpush1.msra.mxu0 0.0
  %1390 = vmatprep.subr.mxu0 0.0
  %1391 = vmatpush1.msra.mxu0 0.0
  %1392 = vmatprep.subr.mxu0 0.0
  %1393 = vmatpush1.msra.mxu0 0.0
  %1394 = vmatprep.mubr.f32.mxu0 0.0
  %1395 = vmatmul.mubr.f32.gmra.mrb[0].mxu0 %v922
  %v1396 = vpop.f32.mrb[0].mxu0
  %v1397 = vadd.f32 0.0, %v1396
  %v1398 = vpop.f32.mrb[0].mxu0
  %1399 = vdwg.mxu0
  %1400 = vst [vmem:[#allocation7] sm:$0xff] %v1326
  %1401 = vst [vmem:[#allocation7 + $0x8] sm:$0xff] %v1328
  %1402 = vst [vmem:[#allocation7 + $0x10] sm:$0xff] %v1397
  %v1403 = vld [vmem:[#allocation5 + $0x18] sm:$0xff]
  %v1404 = vld [vmem:[#allocation5 + $0x20] sm:$0xff]
  %v1405 = vld [vmem:[#allocation5 + $0x28] sm:$0xff]
  %v1406 = vadd.f32 %v1403, %v991
  %v1407 = vxor.u32 %v1406, 2147483648
  %v1408 = vmul.f32 %v1407, 1.442695
  %v1409 = vpow.pop %v1408
  %v1410 = vadd.f32 %v1409, 1.0
  %v1411 = vrcp.pop %v1410
  %v1412 = vmul.f32 1.0, %v1411
  %v1413 = vadd.f32 %v1404, %v993
  %v1414 = vxor.u32 %v1413, 2147483648
  %v1415 = vmul.f32 %v1414, 1.442695
  %v1416 = vpow.pop %v1415
  %v1417 = vadd.f32 %v1416, 1.0
  %v1418 = vrcp.pop %v1417
  %v1419 = vmul.f32 1.0, %v1418
  %v1420 = vadd.f32 %v1062, %v733
  %v1421 = vmul.f32 %v1412, %v1420
  %v1422 = vadd.f32 %v1405, %v1421
  %v1423 = vtanh.pop %v1422
  %v1424 = vsub.f32 %v920, %v1423
  %v1425 = vmul.f32 %v1419, %v1424
  %v1426 = vadd.f32 %v1423, %v1425
  %v1428 = vsel %vm438, %v1426, 0
  %1430 = vmatprep.subr.mxu0 %v706
  %1431 = vmatpush1.msra.mxu0 %v705
  %1432 = vmatprep.subr.mxu0 %v709
  %1433 = vmatpush1.msra.mxu0 %v708
  %1434 = vmatprep.subr.mxu0 %v712
  %1435 = vmatpush1.msra.mxu0 %v711
  %1436 = vmatprep.subr.mxu0 %v715
  %1437 = vmatpush1.msra.mxu0 %v714
  %1438 = vmatprep.subr.mxu0 %v718
  %1439 = vmatpush1.msra.mxu0 %v717
  %1440 = vmatprep.subr.mxu0 %v721
  %1441 = vmatpush1.msra.mxu0 %v720
  %1442 = vmatprep.subr.mxu0 %v724
  %1443 = vmatpush1.msra.mxu0 %v723
  %1444 = vmatprep.subr.mxu0 %v727
  %1445 = vmatpush1.msra.mxu0 %v726
  %1446 = vmatprep.subr.mxu0 0.0
  %1447 = vmatpush1.msra.mxu0 0.0
  %1448 = vmatprep.subr.mxu0 0.0
  %1449 = vmatpush1.msra.mxu0 0.0
  %1450 = vmatprep.subr.mxu0 0.0
  %1451 = vmatpush1.msra.mxu0 0.0
  %1452 = vmatprep.subr.mxu0 0.0
  %1453 = vmatpush1.msra.mxu0 0.0
  %1454 = vmatprep.subr.mxu0 0.0
  %1455 = vmatpush1.msra.mxu0 0.0
  %1456 = vmatprep.subr.mxu0 0.0
  %1457 = vmatpush1.msra.mxu0 0.0
  %1458 = vmatprep.subr.mxu0 0.0
  %1459 = vmatpush1.msra.mxu0 0.0
  %1460 = vmatprep.subr.mxu0 0.0
  %1461 = vmatpush1.msra.mxu0 0.0
  %1462 = vmatprep.subr.mxu0 0.0
  %1463 = vmatpush1.msra.mxu0 0.0
  %1464 = vmatprep.subr.mxu0 0.0
  %1465 = vmatpush1.msra.mxu0 0.0
  %1466 = vmatprep.subr.mxu0 0.0
  %1467 = vmatpush1.msra.mxu0 0.0
  %1468 = vmatprep.subr.mxu0 0.0
  %1469 = vmatpush1.msra.mxu0 0.0
  %1470 = vmatprep.subr.mxu0 0.0
  %1471 = vmatpush1.msra.mxu0 0.0
  %1472 = vmatprep.subr.mxu0 0.0
  %1473 = vmatpush1.msra.mxu0 0.0
  %1474 = vmatprep.subr.mxu0 0.0
  %1475 = vmatpush1.msra.mxu0 0.0
  %1476 = vmatprep.subr.mxu0 0.0
  %1477 = vmatpush1.msra.mxu0 0.0
  %1478 = vmatprep.subr.mxu0 0.0
  %1479 = vmatpush1.msra.mxu0 0.0
  %1480 = vmatprep.subr.mxu0 0.0
  %1481 = vmatpush1.msra.mxu0 0.0
  %1482 = vmatprep.subr.mxu0 0.0
  %1483 = vmatpush1.msra.mxu0 0.0
  %1484 = vmatprep.subr.mxu0 0.0
  %1485 = vmatpush1.msra.mxu0 0.0
  %1486 = vmatprep.subr.mxu0 0.0
  %1487 = vmatpush1.msra.mxu0 0.0
  %1488 = vmatprep.subr.mxu0 0.0
  %1489 = vmatpush1.msra.mxu0 0.0
  %1490 = vmatprep.subr.mxu0 0.0
  %1491 = vmatpush1.msra.mxu0 0.0
  %1492 = vmatprep.subr.mxu0 0.0
  %1493 = vmatpush1.msra.mxu0 0.0
  %1494 = vmatprep.mubr.f32.mxu0 0.0
  %1495 = vmatmul.mubr.f32.gmra.mrb[0].mxu0 %v1428
  %v1496 = vpop.f32.mrb[0].mxu0
  %v1497 = vadd.f32 0.0, %v1496
  %v1498 = vpop.f32.mrb[0].mxu0
  %v1499 = vadd.f32 0.0, %v1498
  %1500 = vdwg.mxu0
  %1501 = vmatprep.subr.mxu0 0.0
  %1502 = vmatpush1.msra.mxu0 %v707
  %1503 = vmatprep.subr.mxu0 0.0
  %1504 = vmatpush1.msra.mxu0 %v710
  %1505 = vmatprep.subr.mxu0 0.0
  %1506 = vmatpush1.msra.mxu0 %v713
  %1507 = vmatprep.subr.mxu0 0.0
  %1508 = vmatpush1.msra.mxu0 %v716
  %1509 = vmatprep.subr.mxu0 0.0
  %1510 = vmatpush1.msra.mxu0 %v719
  %1511 = vmatprep.subr.mxu0 0.0
  %1512 = vmatpush1.msra.mxu0 %v722
  %1513 = vmatprep.subr.mxu0 0.0
  %1514 = vmatpush1.msra.mxu0 %v725
  %1515 = vmatprep.subr.mxu0 0.0
  %1516 = vmatpush1.msra.mxu0 %v728
  %1517 = vmatprep.subr.mxu0 0.0
  %1518 = vmatpush1.msra.mxu0 0.0
  %1519 = vmatprep.subr.mxu0 0.0
  %1520 = vmatpush1.msra.mxu0 0.0
  %1521 = vmatprep.subr.mxu0 0.0
  %1522 = vmatpush1.msra.mxu0 0.0
  %1523 = vmatprep.subr.mxu0 0.0
  %1524 = vmatpush1.msra.mxu0 0.0
  %1525 = vmatprep.subr.mxu0 0.0
  %1526 = vmatpush1.msra.mxu0 0.0
  %1527 = vmatprep.subr.mxu0 0.0
  %1528 = vmatpush1.msra.mxu0 0.0
  %1529 = vmatprep.subr.mxu0 0.0
  %1530 = vmatpush1.msra.mxu0 0.0
  %1531 = vmatprep.subr.mxu0 0.0
  %1532 = vmatpush1.msra.mxu0 0.0
  %1533 = vmatprep.subr.mxu0 0.0
  %1534 = vmatpush1.msra.mxu0 0.0
  %1535 = vmatprep.subr.mxu0 0.0
  %1536 = vmatpush1.msra.mxu0 0.0
  %1537 = vmatprep.subr.mxu0 0.0
  %1538 = vmatpush1.msra.mxu0 0.0
  %1539 = vmatprep.subr.mxu0 0.0
  %1540 = vmatpush1.msra.mxu0 0.0
  %1541 = vmatprep.subr.mxu0 0.0
  %1542 = vmatpush1.msra.mxu0 0.0
  %1543 = vmatprep.subr.mxu0 0.0
  %1544 = vmatpush1.msra.mxu0 0.0
  %1545 = vmatprep.subr.mxu0 0.0
  %1546 = vmatpush1.msra.mxu0 0.0
  %1547 = vmatprep.subr.mxu0 0.0
  %1548 = vmatpush1.msra.mxu0 0.0
  %1549 = vmatprep.subr.mxu0 0.0
  %1550 = vmatpush1.msra.mxu0 0.0
  %1551 = vmatprep.subr.mxu0 0.0
  %1552 = vmatpush1.msra.mxu0 0.0
  %1553 = vmatprep.subr.mxu0 0.0
  %1554 = vmatpush1.msra.mxu0 0.0
  %1555 = vmatprep.subr.mxu0 0.0
  %1556 = vmatpush1.msra.mxu0 0.0
  %1557 = vmatprep.subr.mxu0 0.0
  %1558 = vmatpush1.msra.mxu0 0.0
  %1559 = vmatprep.subr.mxu0 0.0
  %1560 = vmatpush1.msra.mxu0 0.0
  %1561 = vmatprep.subr.mxu0 0.0
  %1562 = vmatpush1.msra.mxu0 0.0
  %1563 = vmatprep.subr.mxu0 0.0
  %1564 = vmatpush1.msra.mxu0 0.0
  %1565 = vmatprep.mubr.f32.mxu0 0.0
  %1566 = vmatmul.mubr.f32.gmra.mrb[0].mxu0 %v1428
  %v1567 = vpop.f32.mrb[0].mxu0
  %v1568 = vadd.f32 0.0, %v1567
  %v1569 = vpop.f32.mrb[0].mxu0
  %1570 = vdwg.mxu0
  %v1571 = vld [vmem:[#allocation3] sm:$0xff]
  %v1572 = vld [vmem:[#allocation3 + $0x8] sm:$0xff]
  %v1573 = vld [vmem:[#allocation3 + $0x10] sm:$0xff]
  %v1574 = vld [vmem:[#allocation3 + $0x18] sm:$0xff]
  %v1575 = vld [vmem:[#allocation3 + $0x20] sm:$0xff]
  %v1576 = vld [vmem:[#allocation3 + $0x28] sm:$0xff]
  %v1577 = vld [vmem:[#allocation3 + $0x30] sm:$0xff]
  %v1578 = vld [vmem:[#allocation3 + $0x38] sm:$0xff]
  %v1579 = vld [vmem:[#allocation3 + $0x40] sm:$0xff]
  %v1580 = vld [vmem:[#allocation3 + $0x48] sm:$0xff]
  %v1581 = vld [vmem:[#allocation3 + $0x50] sm:$0xff]
  %v1582 = vld [vmem:[#allocation3 + $0x58] sm:$0xff]
  %v1583 = vld [vmem:[#allocation3 + $0x60] sm:$0xff]
  %v1584 = vld [vmem:[#allocation3 + $0x68] sm:$0xff]
  %v1585 = vld [vmem:[#allocation3 + $0x70] sm:$0xff]
  %v1586 = vld [vmem:[#allocation3 + $0x78] sm:$0xff]
  %v1587 = vld [vmem:[#allocation3 + $0x80] sm:$0xff]
  %v1588 = vld [vmem:[#allocation3 + $0x88] sm:$0xff]
  %v1589 = vld [vmem:[#allocation3 + $0x90] sm:$0xff]
  %v1590 = vld [vmem:[#allocation3 + $0x98] sm:$0xff]
  %v1591 = vld [vmem:[#allocation3 + $0xa0] sm:$0xff]
  %v1592 = vld [vmem:[#allocation3 + $0xa8] sm:$0xff]
  %v1593 = vld [vmem:[#allocation3 + $0xb0] sm:$0xff]
  %v1594 = vld [vmem:[#allocation3 + $0xb8] sm:$0xff]
  %1595 = vmatprep.subr.mxu0 %v1572
  %1596 = vmatpush1.msra.mxu0 %v1571
  %1597 = vmatprep.subr.mxu0 %v1575
  %1598 = vmatpush1.msra.mxu0 %v1574
  %1599 = vmatprep.subr.mxu0 %v1578
  %1600 = vmatpush1.msra.mxu0 %v1577
  %1601 = vmatprep.subr.mxu0 %v1581
  %1602 = vmatpush1.msra.mxu0 %v1580
  %1603 = vmatprep.subr.mxu0 %v1584
  %1604 = vmatpush1.msra.mxu0 %v1583
  %1605 = vmatprep.subr.mxu0 %v1587
  %1606 = vmatpush1.msra.mxu0 %v1586
  %1607 = vmatprep.subr.mxu0 %v1590
  %1608 = vmatpush1.msra.mxu0 %v1589
  %1609 = vmatprep.subr.mxu0 %v1593
  %1610 = vmatpush1.msra.mxu0 %v1592
  %1611 = vmatprep.subr.mxu0 0.0
  %1612 = vmatpush1.msra.mxu0 0.0
  %1613 = vmatprep.subr.mxu0 0.0
  %1614 = vmatpush1.msra.mxu0 0.0
  %1615 = vmatprep.subr.mxu0 0.0
  %1616 = vmatpush1.msra.mxu0 0.0
  %1617 = vmatprep.subr.mxu0 0.0
  %1618 = vmatpush1.msra.mxu0 0.0
  %1619 = vmatprep.subr.mxu0 0.0
  %1620 = vmatpush1.msra.mxu0 0.0
  %1621 = vmatprep.subr.mxu0 0.0
  %1622 = vmatpush1.msra.mxu0 0.0
  %1623 = vmatprep.subr.mxu0 0.0
  %1624 = vmatpush1.msra.mxu0 0.0
  %1625 = vmatprep.subr.mxu0 0.0
  %1626 = vmatpush1.msra.mxu0 0.0
  %1627 = vmatprep.subr.mxu0 0.0
  %1628 = vmatpush1.msra.mxu0 0.0
  %1629 = vmatprep.subr.mxu0 0.0
  %1630 = vmatpush1.msra.mxu0 0.0
  %1631 = vmatprep.subr.mxu0 0.0
  %1632 = vmatpush1.msra.mxu0 0.0
  %1633 = vmatprep.subr.mxu0 0.0
  %1634 = vmatpush1.msra.mxu0 0.0
  %1635 = vmatprep.subr.mxu0 0.0
  %1636 = vmatpush1.msra.mxu0 0.0
  %1637 = vmatprep.subr.mxu0 0.0
  %1638 = vmatpush1.msra.mxu0 0.0
  %1639 = vmatprep.subr.mxu0 0.0
  %1640 = vmatpush1.msra.mxu0 0.0
  %1641 = vmatprep.subr.mxu0 0.0
  %1642 = vmatpush1.msra.mxu0 0.0
  %1643 = vmatprep.subr.mxu0 0.0
  %1644 = vmatpush1.msra.mxu0 0.0
  %1645 = vmatprep.subr.mxu0 0.0
  %1646 = vmatpush1.msra.mxu0 0.0
  %1647 = vmatprep.subr.mxu0 0.0
  %1648 = vmatpush1.msra.mxu0 0.0
  %1649 = vmatprep.subr.mxu0 0.0
  %1650 = vmatpush1.msra.mxu0 0.0
  %1651 = vmatprep.subr.mxu0 0.0
  %1652 = vmatpush1.msra.mxu0 0.0
  %1653 = vmatprep.subr.mxu0 0.0
  %1654 = vmatpush1.msra.mxu0 0.0
  %1655 = vmatprep.subr.mxu0 0.0
  %1656 = vmatpush1.msra.mxu0 0.0
  %1657 = vmatprep.subr.mxu0 0.0
  %1658 = vmatpush1.msra.mxu0 0.0
  %1659 = vmatprep.mubr.f32.mxu0 0.0
  %1660 = vmatmul.mubr.f32.gmra.mrb[0].mxu0 %v1428
  %v1661 = vpop.f32.mrb[0].mxu0
  %v1662 = vadd.f32 %v740, %v1661
  %v1663 = vpop.f32.mrb[0].mxu0
  %v1664 = vadd.f32 %v744, %v1663
  %1665 = vdwg.mxu0
  %1666 = vmatprep.subr.mxu0 0.0
  %1667 = vmatpush1.msra.mxu0 %v1573
  %1668 = vmatprep.subr.mxu0 0.0
  %1669 = vmatpush1.msra.mxu0 %v1576
  %1670 = vmatprep.subr.mxu0 0.0
  %1671 = vmatpush1.msra.mxu0 %v1579
  %1672 = vmatprep.subr.mxu0 0.0
  %1673 = vmatpush1.msra.mxu0 %v1582
  %1674 = vmatprep.subr.mxu0 0.0
  %1675 = vmatpush1.msra.mxu0 %v1585
  %1676 = vmatprep.subr.mxu0 0.0
  %1677 = vmatpush1.msra.mxu0 %v1588
  %1678 = vmatprep.subr.mxu0 0.0
  %1679 = vmatpush1.msra.mxu0 %v1591
  %1680 = vmatprep.subr.mxu0 0.0
  %1681 = vmatpush1.msra.mxu0 %v1594
  %1682 = vmatprep.subr.mxu0 0.0
  %1683 = vmatpush1.msra.mxu0 0.0
  %1684 = vmatprep.subr.mxu0 0.0
  %1685 = vmatpush1.msra.mxu0 0.0
  %1686 = vmatprep.subr.mxu0 0.0
  %1687 = vmatpush1.msra.mxu0 0.0
  %1688 = vmatprep.subr.mxu0 0.0
  %1689 = vmatpush1.msra.mxu0 0.0
  %1690 = vmatprep.subr.mxu0 0.0
  %1691 = vmatpush1.msra.mxu0 0.0
  %1692 = vmatprep.subr.mxu0 0.0
  %1693 = vmatpush1.msra.mxu0 0.0
  %1694 = vmatprep.subr.mxu0 0.0
  %1695 = vmatpush1.msra.mxu0 0.0
  %1696 = vmatprep.subr.mxu0 0.0
  %1697 = vmatpush1.msra.mxu0 0.0
  %1698 = vmatprep.subr.mxu0 0.0
  %1699 = vmatpush1.msra.mxu0 0.0
  %1700 = vmatprep.subr.mxu0 0.0
  %1701 = vmatpush1.msra.mxu0 0.0
  %1702 = vmatprep.subr.mxu0 0.0
  %1703 = vmatpush1.msra.mxu0 0.0
  %1704 = vmatprep.subr.mxu0 0.0
  %1705 = vmatpush1.msra.mxu0 0.0
  %1706 = vmatprep.subr.mxu0 0.0
  %1707 = vmatpush1.msra.mxu0 0.0
  %1708 = vmatprep.subr.mxu0 0.0
  %1709 = vmatpush1.msra.mxu0 0.0
  %1710 = vmatprep.subr.mxu0 0.0
  %1711 = vmatpush1.msra.mxu0 0.0
  %1712 = vmatprep.subr.mxu0 0.0
  %1713 = vmatpush1.msra.mxu0 0.0
  %1714 = vmatprep.subr.mxu0 0.0
  %1715 = vmatpush1.msra.mxu0 0.0
  %1716 = vmatprep.subr.mxu0 0.0
  %1717 = vmatpush1.msra.mxu0 0.0
  %1718 = vmatprep.subr.mxu0 0.0
  %1719 = vmatpush1.msra.mxu0 0.0
  %1720 = vmatprep.subr.mxu0 0.0
  %1721 = vmatpush1.msra.mxu0 0.0
  %1722 = vmatprep.subr.mxu0 0.0
  %1723 = vmatpush1.msra.mxu0 0.0
  %1724 = vmatprep.subr.mxu0 0.0
  %1725 = vmatpush1.msra.mxu0 0.0
  %1726 = vmatprep.subr.mxu0 0.0
  %1727 = vmatpush1.msra.mxu0 0.0
  %1728 = vmatprep.subr.mxu0 0.0
  %1729 = vmatpush1.msra.mxu0 0.0
  %1730 = vmatprep.mubr.f32.mxu0 0.0
  %1731 = vmatmul.mubr.f32.gmra.mrb[0].mxu0 %v1428
  %v1732 = vpop.f32.mrb[0].mxu0
  %v1733 = vadd.f32 %v748, %v1732
  %v1734 = vpop.f32.mrb[0].mxu0
  %1735 = vdwg.mxu0
  %1736 = vst [vmem:[#allocation6 + $0x18] sm:$0xff] %v1662
  %1737 = vst [vmem:[#allocation6 + $0x20] sm:$0xff] %v1664
  %1738 = vst [vmem:[#allocation6 + $0x28] sm:$0xff] %v1733
  %v1739 = vld [vmem:[#allocation3 + $0xc0] sm:$0xff]
  %v1740 = vld [vmem:[#allocation3 + $0xc8] sm:$0xff]
  %v1741 = vld [vmem:[#allocation3 + $0xd0] sm:$0xff]
  %v1742 = vld [vmem:[#allocation3 + $0xd8] sm:$0xff]
  %v1743 = vld [vmem:[#allocation3 + $0xe0] sm:$0xff]
  %v1744 = vld [vmem:[#allocation3 + $0xe8] sm:$0xff]
  %v1745 = vld [vmem:[#allocation3 + $0xf0] sm:$0xff]
  %v1746 = vld [vmem:[#allocation3 + $0xf8] sm:$0xff]
  %v1747 = vld [vmem:[#allocation3 + $0x100] sm:$0xff]
  %v1748 = vld [vmem:[#allocation3 + $0x108] sm:$0xff]
  %v1749 = vld [vmem:[#allocation3 + $0x110] sm:$0xff]
  %v1750 = vld [vmem:[#allocation3 + $0x118] sm:$0xff]
  %v1751 = vld [vmem:[#allocation3 + $0x120] sm:$0xff]
  %v1752 = vld [vmem:[#allocation3 + $0x128] sm:$0xff]
  %v1753 = vld [vmem:[#allocation3 + $0x130] sm:$0xff]
  %v1754 = vld [vmem:[#allocation3 + $0x138] sm:$0xff]
  %v1755 = vld [vmem:[#allocation3 + $0x140] sm:$0xff]
  %v1756 = vld [vmem:[#allocation3 + $0x148] sm:$0xff]
  %v1757 = vld [vmem:[#allocation3 + $0x150] sm:$0xff]
  %v1758 = vld [vmem:[#allocation3 + $0x158] sm:$0xff]
  %v1759 = vld [vmem:[#allocation3 + $0x160] sm:$0xff]
  %v1760 = vld [vmem:[#allocation3 + $0x168] sm:$0xff]
  %v1761 = vld [vmem:[#allocation3 + $0x170] sm:$0xff]
  %v1762 = vld [vmem:[#allocation3 + $0x178] sm:$0xff]
  %1763 = vmatprep.subr.mxu0 %v1740
  %1764 = vmatpush1.msra.mxu0 %v1739
  %1765 = vmatprep.subr.mxu0 %v1743
  %1766 = vmatpush1.msra.mxu0 %v1742
  %1767 = vmatprep.subr.mxu0 %v1746
  %1768 = vmatpush1.msra.mxu0 %v1745
  %1769 = vmatprep.subr.mxu0 %v1749
  %1770 = vmatpush1.msra.mxu0 %v1748
  %1771 = vmatprep.subr.mxu0 %v1752
  %1772 = vmatpush1.msra.mxu0 %v1751
  %1773 = vmatprep.subr.mxu0 %v1755
  %1774 = vmatpush1.msra.mxu0 %v1754
  %1775 = vmatprep.subr.mxu0 %v1758
  %1776 = vmatpush1.msra.mxu0 %v1757
  %1777 = vmatprep.subr.mxu0 %v1761
  %1778 = vmatpush1.msra.mxu0 %v1760
  %1779 = vmatprep.subr.mxu0 0.0
  %1780 = vmatpush1.msra.mxu0 0.0
  %1781 = vmatprep.subr.mxu0 0.0
  %1782 = vmatpush1.msra.mxu0 0.0
  %1783 = vmatprep.subr.mxu0 0.0
  %1784 = vmatpush1.msra.mxu0 0.0
  %1785 = vmatprep.subr.mxu0 0.0
  %1786 = vmatpush1.msra.mxu0 0.0
  %1787 = vmatprep.subr.mxu0 0.0
  %1788 = vmatpush1.msra.mxu0 0.0
  %1789 = vmatprep.subr.mxu0 0.0
  %1790 = vmatpush1.msra.mxu0 0.0
  %1791 = vmatprep.subr.mxu0 0.0
  %1792 = vmatpush1.msra.mxu0 0.0
  %1793 = vmatprep.subr.mxu0 0.0
  %1794 = vmatpush1.msra.mxu0 0.0
  %1795 = vmatprep.subr.mxu0 0.0
  %1796 = vmatpush1.msra.mxu0 0.0
  %1797 = vmatprep.subr.mxu0 0.0
  %1798 = vmatpush1.msra.mxu0 0.0
  %1799 = vmatprep.subr.mxu0 0.0
  %1800 = vmatpush1.msra.mxu0 0.0
  %1801 = vmatprep.subr.mxu0 0.0
  %1802 = vmatpush1.msra.mxu0 0.0
  %1803 = vmatprep.subr.mxu0 0.0
  %1804 = vmatpush1.msra.mxu0 0.0
  %1805 = vmatprep.subr.mxu0 0.0
  %1806 = vmatpush1.msra.mxu0 0.0
  %1807 = vmatprep.subr.mxu0 0.0
  %1808 = vmatpush1.msra.mxu0 0.0
  %1809 = vmatprep.subr.mxu0 0.0
  %1810 = vmatpush1.msra.mxu0 0.0
  %1811 = vmatprep.subr.mxu0 0.0
  %1812 = vmatpush1.msra.mxu0 0.0
  %1813 = vmatprep.subr.mxu0 0.0
  %1814 = vmatpush1.msra.mxu0 0.0
  %1815 = vmatprep.subr.mxu0 0.0
  %1816 = vmatpush1.msra.mxu0 0.0
  %1817 = vmatprep.subr.mxu0 0.0
  %1818 = vmatpush1.msra.mxu0 0.0
  %1819 = vmatprep.subr.mxu0 0.0
  %1820 = vmatpush1.msra.mxu0 0.0
  %1821 = vmatprep.subr.mxu0 0.0
  %1822 = vmatpush1.msra.mxu0 0.0
  %1823 = vmatprep.subr.mxu0 0.0
  %1824 = vmatpush1.msra.mxu0 0.0
  %1825 = vmatprep.subr.mxu0 0.0
  %1826 = vmatpush1.msra.mxu0 0.0
  %1827 = vmatprep.mubr.f32.mxu0 0.0
  %1828 = vmatmul.mubr.f32.gmra.mrb[0].mxu0 %v1428
  %v1829 = vpop.f32.mrb[0].mxu0
  %v1830 = vadd.f32 0.0, %v1829
  %v1831 = vpop.f32.mrb[0].mxu0
  %v1832 = vadd.f32 0.0, %v1831
  %1833 = vdwg.mxu0
  %1834 = vmatprep.subr.mxu0 0.0
  %1835 = vmatpush1.msra.mxu0 %v1741
  %1836 = vmatprep.subr.mxu0 0.0
  %1837 = vmatpush1.msra.mxu0 %v1744
  %1838 = vmatprep.subr.mxu0 0.0
  %1839 = vmatpush1.msra.mxu0 %v1747
  %1840 = vmatprep.subr.mxu0 0.0
  %1841 = vmatpush1.msra.mxu0 %v1750
  %1842 = vmatprep.subr.mxu0 0.0
  %1843 = vmatpush1.msra.mxu0 %v1753
  %1844 = vmatprep.subr.mxu0 0.0
  %1845 = vmatpush1.msra.mxu0 %v1756
  %1846 = vmatprep.subr.mxu0 0.0
  %1847 = vmatpush1.msra.mxu0 %v1759
  %1848 = vmatprep.subr.mxu0 0.0
  %1849 = vmatpush1.msra.mxu0 %v1762
  %1850 = vmatprep.subr.mxu0 0.0
  %1851 = vmatpush1.msra.mxu0 0.0
  %1852 = vmatprep.subr.mxu0 0.0
  %1853 = vmatpush1.msra.mxu0 0.0
  %1854 = vmatprep.subr.mxu0 0.0
  %1855 = vmatpush1.msra.mxu0 0.0
  %1856 = vmatprep.subr.mxu0 0.0
  %1857 = vmatpush1.msra.mxu0 0.0
  %1858 = vmatprep.subr.mxu0 0.0
  %1859 = vmatpush1.msra.mxu0 0.0
  %1860 = vmatprep.subr.mxu0 0.0
  %1861 = vmatpush1.msra.mxu0 0.0
  %1862 = vmatprep.subr.mxu0 0.0
  %1863 = vmatpush1.msra.mxu0 0.0
  %1864 = vmatprep.subr.mxu0 0.0
  %1865 = vmatpush1.msra.mxu0 0.0
  %1866 = vmatprep.subr.mxu0 0.0
  %1867 = vmatpush1.msra.mxu0 0.0
  %1868 = vmatprep.subr.mxu0 0.0
  %1869 = vmatpush1.msra.mxu0 0.0
  %1870 = vmatprep.subr.mxu0 0.0
  %1871 = vmatpush1.msra.mxu0 0.0
  %1872 = vmatprep.subr.mxu0 0.0
  %1873 = vmatpush1.msra.mxu0 0.0
  %1874 = vmatprep.subr.mxu0 0.0
  %1875 = vmatpush1.msra.mxu0 0.0
  %1876 = vmatprep.subr.mxu0 0.0
  %1877 = vmatpush1.msra.mxu0 0.0
  %1878 = vmatprep.subr.mxu0 0.0
  %1879 = vmatpush1.msra.mxu0 0.0
  %1880 = vmatprep.subr.mxu0 0.0
  %1881 = vmatpush1.msra.mxu0 0.0
  %1882 = vmatprep.subr.mxu0 0.0
  %1883 = vmatpush1.msra.mxu0 0.0
  %1884 = vmatprep.subr.mxu0 0.0
  %1885 = vmatpush1.msra.mxu0 0.0
  %1886 = vmatprep.subr.mxu0 0.0
  %1887 = vmatpush1.msra.mxu0 0.0
  %1888 = vmatprep.subr.mxu0 0.0
  %1889 = vmatpush1.msra.mxu0 0.0
  %1890 = vmatprep.subr.mxu0 0.0
  %1891 = vmatpush1.msra.mxu0 0.0
  %1892 = vmatprep.subr.mxu0 0.0
  %1893 = vmatpush1.msra.mxu0 0.0
  %1894 = vmatprep.subr.mxu0 0.0
  %1895 = vmatpush1.msra.mxu0 0.0
  %1896 = vmatprep.subr.mxu0 0.0
  %1897 = vmatpush1.msra.mxu0 0.0
  %1898 = vmatprep.mubr.f32.mxu0 0.0
  %1899 = vmatmul.mubr.f32.gmra.mrb[0].mxu0 %v1428
  %v1900 = vpop.f32.mrb[0].mxu0
  %v1901 = vadd.f32 0.0, %v1900
  %v1902 = vpop.f32.mrb[0].mxu0
  %1903 = vdwg.mxu0
  %1904 = vst [vmem:[#allocation7 + $0x18] sm:$0xff] %v1830
  %1905 = vst [vmem:[#allocation7 + $0x20] sm:$0xff] %v1832
  %1906 = vst [vmem:[#allocation7 + $0x28] sm:$0xff] %v1901
  %v1907 = vld [vmem:[#allocation5 + $0x30] sm:$0xff]
  %v1908 = vld [vmem:[#allocation5 + $0x38] sm:$0xff]
  %v1909 = vld [vmem:[#allocation5 + $0x40] sm:$0xff]
  %v1910 = vadd.f32 %v1907, %v1497
  %v1911 = vxor.u32 %v1910, 2147483648
  %v1912 = vmul.f32 %v1911, 1.442695
  %v1913 = vpow.pop %v1912
  %v1914 = vadd.f32 %v1913, 1.0
  %v1915 = vrcp.pop %v1914
  %v1916 = vmul.f32 1.0, %v1915
  %v1917 = vadd.f32 %v1908, %v1499
  %v1918 = vxor.u32 %v1917, 2147483648
  %v1919 = vmul.f32 %v1918, 1.442695
  %v1920 = vpow.pop %v1919
  %v1921 = vadd.f32 %v1920, 1.0
  %v1922 = vrcp.pop %v1921
  %v1923 = vmul.f32 1.0, %v1922
  %v1924 = vadd.f32 %v1568, %v733
  %v1925 = vmul.f32 %v1916, %v1924
  %v1926 = vadd.f32 %v1909, %v1925
  %v1927 = vtanh.pop %v1926
  %v1928 = vsub.f32 %v1426, %v1927
  %v1929 = vmul.f32 %v1923, %v1928
  %v1930 = vadd.f32 %v1927, %v1929
  %v1932 = vsel %vm438, %v1930, 0
  %1934 = vmatprep.subr.mxu0 %v706
  %1935 = vmatpush1.msra.mxu0 %v705
  %1936 = vmatprep.subr.mxu0 %v709
  %1937 = vmatpush1.msra.mxu0 %v708
  %1938 = vmatprep.subr.mxu0 %v712
  %1939 = vmatpush1.msra.mxu0 %v711
  %1940 = vmatprep.subr.mxu0 %v715
  %1941 = vmatpush1.msra.mxu0 %v714
  %1942 = vmatprep.subr.mxu0 %v718
  %1943 = vmatpush1.msra.mxu0 %v717
  %1944 = vmatprep.subr.mxu0 %v721
  %1945 = vmatpush1.msra.mxu0 %v720
  %1946 = vmatprep.subr.mxu0 %v724
  %1947 = vmatpush1.msra.mxu0 %v723
  %1948 = vmatprep.subr.mxu0 %v727
  %1949 = vmatpush1.msra.mxu0 %v726
  %1950 = vmatprep.subr.mxu0 0.0
  %1951 = vmatpush1.msra.mxu0 0.0
  %1952 = vmatprep.subr.mxu0 0.0
  %1953 = vmatpush1.msra.mxu0 0.0
  %1954 = vmatprep.subr.mxu0 0.0
  %1955 = vmatpush1.msra.mxu0 0.0
  %1956 = vmatprep.subr.mxu0 0.0
  %1957 = vmatpush1.msra.mxu0 0.0
  %1958 = vmatprep.subr.mxu0 0.0
  %1959 = vmatpush1.msra.mxu0 0.0
  %1960 = vmatprep.subr.mxu0 0.0
  %1961 = vmatpush1.msra.mxu0 0.0
  %1962 = vmatprep.subr.mxu0 0.0
  %1963 = vmatpush1.msra.mxu0 0.0
  %1964 = vmatprep.subr.mxu0 0.0
  %1965 = vmatpush1.msra.mxu0 0.0
  %1966 = vmatprep.subr.mxu0 0.0
  %1967 = vmatpush1.msra.mxu0 0.0
  %1968 = vmatprep.subr.mxu0 0.0
  %1969 = vmatpush1.msra.mxu0 0.0
  %1970 = vmatprep.subr.mxu0 0.0
  %1971 = vmatpush1.msra.mxu0 0.0
  %1972 = vmatprep.subr.mxu0 0.0
  %1973 = vmatpush1.msra.mxu0 0.0
  %1974 = vmatprep.subr.mxu0 0.0
  %1975 = vmatpush1.msra.mxu0 0.0
  %1976 = vmatprep.subr.mxu0 0.0
  %1977 = vmatpush1.msra.mxu0 0.0
  %1978 = vmatprep.subr.mxu0 0.0
  %1979 = vmatpush1.msra.mxu0 0.0
  %1980 = vmatprep.subr.mxu0 0.0
  %1981 = vmatpush1.msra.mxu0 0.0
  %1982 = vmatprep.subr.mxu0 0.0
  %1983 = vmatpush1.msra.mxu0 0.0
  %1984 = vmatprep.subr.mxu0 0.0
  %1985 = vmatpush1.msra.mxu0 0.0
  %1986 = vmatprep.subr.mxu0 0.0
  %1987 = vmatpush1.msra.mxu0 0.0
  %1988 = vmatprep.subr.mxu0 0.0
  %1989 = vmatpush1.msra.mxu0 0.0
  %1990 = vmatprep.subr.mxu0 0.0
  %1991 = vmatpush1.msra.mxu0 0.0
  %1992 = vmatprep.subr.mxu0 0.0
  %1993 = vmatpush1.msra.mxu0 0.0
  %1994 = vmatprep.subr.mxu0 0.0
  %1995 = vmatpush1.msra.mxu0 0.0
  %1996 = vmatprep.subr.mxu0 0.0
  %1997 = vmatpush1.msra.mxu0 0.0
  %1998 = vmatprep.mubr.f32.mxu0 0.0
  %1999 = vmatmul.mubr.f32.gmra.mrb[0].mxu0 %v1932
  %v2000 = vpop.f32.mrb[0].mxu0
  %v2001 = vadd.f32 0.0, %v2000
  %v2002 = vpop.f32.mrb[0].mxu0
  %v2003 = vadd.f32 0.0, %v2002
  %2004 = vdwg.mxu0
  %2005 = vmatprep.subr.mxu0 0.0
  %2006 = vmatpush1.msra.mxu0 %v707
  %2007 = vmatprep.subr.mxu0 0.0
  %2008 = vmatpush1.msra.mxu0 %v710
  %2009 = vmatprep.subr.mxu0 0.0
  %2010 = vmatpush1.msra.mxu0 %v713
  %2011 = vmatprep.subr.mxu0 0.0
  %2012 = vmatpush1.msra.mxu0 %v716
  %2013 = vmatprep.subr.mxu0 0.0
  %2014 = vmatpush1.msra.mxu0 %v719
  %2015 = vmatprep.subr.mxu0 0.0
  %2016 = vmatpush1.msra.mxu0 %v722
  %2017 = vmatprep.subr.mxu0 0.0
  %2018 = vmatpush1.msra.mxu0 %v725
  %2019 = vmatprep.subr.mxu0 0.0
  %2020 = vmatpush1.msra.mxu0 %v728
  %2021 = vmatprep.subr.mxu0 0.0
  %2022 = vmatpush1.msra.mxu0 0.0
  %2023 = vmatprep.subr.mxu0 0.0
  %2024 = vmatpush1.msra.mxu0 0.0
  %2025 = vmatprep.subr.mxu0 0.0
  %2026 = vmatpush1.msra.mxu0 0.0
  %2027 = vmatprep.subr.mxu0 0.0
  %2028 = vmatpush1.msra.mxu0 0.0
  %2029 = vmatprep.subr.mxu0 0.0
  %2030 = vmatpush1.msra.mxu0 0.0
  %2031 = vmatprep.subr.mxu0 0.0
  %2032 = vmatpush1.msra.mxu0 0.0
  %2033 = vmatprep.subr.mxu0 0.0
  %2034 = vmatpush1.msra.mxu0 0.0
  %2035 = vmatprep.subr.mxu0 0.0
  %2036 = vmatpush1.msra.mxu0 0.0
  %2037 = vmatprep.subr.mxu0 0.0
  %2038 = vmatpush1.msra.mxu0 0.0
  %2039 = vmatprep.subr.mxu0 0.0
  %2040 = vmatpush1.msra.mxu0 0.0
  %2041 = vmatprep.subr.mxu0 0.0
  %2042 = vmatpush1.msra.mxu0 0.0
  %2043 = vmatprep.subr.mxu0 0.0
  %2044 = vmatpush1.msra.mxu0 0.0
  %2045 = vmatprep.subr.mxu0 0.0
  %2046 = vmatpush1.msra.mxu0 0.0
  %2047 = vmatprep.subr.mxu0 0.0
  %2048 = vmatpush1.msra.mxu0 0.0
  %2049 = vmatprep.subr.mxu0 0.0
  %2050 = vmatpush1.msra.mxu0 0.0
  %2051 = vmatprep.subr.mxu0 0.0
  %2052 = vmatpush1.msra.mxu0 0.0
  %2053 = vmatprep.subr.mxu0 0.0
  %2054 = vmatpush1.msra.mxu0 0.0
  %2055 = vmatprep.subr.mxu0 0.0
  %2056 = vmatpush1.msra.mxu0 0.0
  %2057 = vmatprep.subr.mxu0 0.0
  %2058 = vmatpush1.msra.mxu0 0.0
  %2059 = vmatprep.subr.mxu0 0.0
  %2060 = vmatpush1.msra.mxu0 0.0
  %2061 = vmatprep.subr.mxu0 0.0
  %2062 = vmatpush1.msra.mxu0 0.0
  %2063 = vmatprep.subr.mxu0 0.0
  %2064 = vmatpush1.msra.mxu0 0.0
  %2065 = vmatprep.subr.mxu0 0.0
  %2066 = vmatpush1.msra.mxu0 0.0
  %2067 = vmatprep.subr.mxu0 0.0
  %2068 = vmatpush1.msra.mxu0 0.0
  %2069 = vmatprep.mubr.f32.mxu0 0.0
  %2070 = vmatmul.mubr.f32.gmra.mrb[0].mxu0 %v1932
  %v2071 = vpop.f32.mrb[0].mxu0
  %v2072 = vadd.f32 0.0, %v2071
  %v2073 = vpop.f32.mrb[0].mxu0
  %2074 = vdwg.mxu0
  %v2075 = vld [vmem:[#allocation3] sm:$0xff]
  %v2076 = vld [vmem:[#allocation3 + $0x8] sm:$0xff]
  %v2077 = vld [vmem:[#allocation3 + $0x10] sm:$0xff]
  %v2078 = vld [vmem:[#allocation3 + $0x18] sm:$0xff]
  %v2079 = vld [vmem:[#allocation3 + $0x20] sm:$0xff]
  %v2080 = vld [vmem:[#allocation3 + $0x28] sm:$0xff]
  %v2081 = vld [vmem:[#allocation3 + $0x30] sm:$0xff]
  %v2082 = vld [vmem:[#allocation3 + $0x38] sm:$0xff]
  %v2083 = vld [vmem:[#allocation3 + $0x40] sm:$0xff]
  %v2084 = vld [vmem:[#allocation3 + $0x48] sm:$0xff]
  %v2085 = vld [vmem:[#allocation3 + $0x50] sm:$0xff]
  %v2086 = vld [vmem:[#allocation3 + $0x58] sm:$0xff]
  %v2087 = vld [vmem:[#allocation3 + $0x60] sm:$0xff]
  %v2088 = vld [vmem:[#allocation3 + $0x68] sm:$0xff]
  %v2089 = vld [vmem:[#allocation3 + $0x70] sm:$0xff]
  %v2090 = vld [vmem:[#allocation3 + $0x78] sm:$0xff]
  %v2091 = vld [vmem:[#allocation3 + $0x80] sm:$0xff]
  %v2092 = vld [vmem:[#allocation3 + $0x88] sm:$0xff]
  %v2093 = vld [vmem:[#allocation3 + $0x90] sm:$0xff]
  %v2094 = vld [vmem:[#allocation3 + $0x98] sm:$0xff]
  %v2095 = vld [vmem:[#allocation3 + $0xa0] sm:$0xff]
  %v2096 = vld [vmem:[#allocation3 + $0xa8] sm:$0xff]
  %v2097 = vld [vmem:[#allocation3 + $0xb0] sm:$0xff]
  %v2098 = vld [vmem:[#allocation3 + $0xb8] sm:$0xff]
  %2099 = vmatprep.subr.mxu0 %v2076
  %2100 = vmatpush1.msra.mxu0 %v2075
  %2101 = vmatprep.subr.mxu0 %v2079
  %2102 = vmatpush1.msra.mxu0 %v2078
  %2103 = vmatprep.subr.mxu0 %v2082
  %2104 = vmatpush1.msra.mxu0 %v2081
  %2105 = vmatprep.subr.mxu0 %v2085
  %2106 = vmatpush1.msra.mxu0 %v2084
  %2107 = vmatprep.subr.mxu0 %v2088
  %2108 = vmatpush1.msra.mxu0 %v2087
  %2109 = vmatprep.subr.mxu0 %v2091
  %2110 = vmatpush1.msra.mxu0 %v2090
  %2111 = vmatprep.subr.mxu0 %v2094
  %2112 = vmatpush1.msra.mxu0 %v2093
  %2113 = vmatprep.subr.mxu0 %v2097
  %2114 = vmatpush1.msra.mxu0 %v2096
  %2115 = vmatprep.subr.mxu0 0.0
  %2116 = vmatpush1.msra.mxu0 0.0
  %2117 = vmatprep.subr.mxu0 0.0
  %2118 = vmatpush1.msra.mxu0 0.0
  %2119 = vmatprep.subr.mxu0 0.0
  %2120 = vmatpush1.msra.mxu0 0.0
  %2121 = vmatprep.subr.mxu0 0.0
  %2122 = vmatpush1.msra.mxu0 0.0
  %2123 = vmatprep.subr.mxu0 0.0
  %2124 = vmatpush1.msra.mxu0 0.0
  %2125 = vmatprep.subr.mxu0 0.0
  %2126 = vmatpush1.msra.mxu0 0.0
  %2127 = vmatprep.subr.mxu0 0.0
  %2128 = vmatpush1.msra.mxu0 0.0
  %2129 = vmatprep.subr.mxu0 0.0
  %2130 = vmatpush1.msra.mxu0 0.0
  %2131 = vmatprep.subr.mxu0 0.0
  %2132 = vmatpush1.msra.mxu0 0.0
  %2133 = vmatprep.subr.mxu0 0.0
  %2134 = vmatpush1.msra.mxu0 0.0
  %2135 = vmatprep.subr.mxu0 0.0
  %2136 = vmatpush1.msra.mxu0 0.0
  %2137 = vmatprep.subr.mxu0 0.0
  %2138 = vmatpush1.msra.mxu0 0.0
  %2139 = vmatprep.subr.mxu0 0.0
  %2140 = vmatpush1.msra.mxu0 0.0
  %2141 = vmatprep.subr.mxu0 0.0
  %2142 = vmatpush1.msra.mxu0 0.0
  %2143 = vmatprep.subr.mxu0 0.0
  %2144 = vmatpush1.msra.mxu0 0.0
  %2145 = vmatprep.subr.mxu0 0.0
  %2146 = vmatpush1.msra.mxu0 0.0
  %2147 = vmatprep.subr.mxu0 0.0
  %2148 = vmatpush1.msra.mxu0 0.0
  %2149 = vmatprep.subr.mxu0 0.0
  %2150 = vmatpush1.msra.mxu0 0.0
  %2151 = vmatprep.subr.mxu0 0.0
  %2152 = vmatpush1.msra.mxu0 0.0
  %2153 = vmatprep.subr.mxu0 0.0
  %2154 = vmatpush1.msra.mxu0 0.0
  %2155 = vmatprep.subr.mxu0 0.0
  %2156 = vmatpush1.msra.mxu0 0.0
  %2157 = vmatprep.subr.mxu0 0.0
  %2158 = vmatpush1.msra.mxu0 0.0
  %2159 = vmatprep.subr.mxu0 0.0
  %2160 = vmatpush1.msra.mxu0 0.0
  %2161 = vmatprep.subr.mxu0 0.0
  %2162 = vmatpush1.msra.mxu0 0.0
  %2163 = vmatprep.mubr.f32.mxu0 0.0
  %2164 = vmatmul.mubr.f32.gmra.mrb[0].mxu0 %v1932
  %v2165 = vpop.f32.mrb[0].mxu0
  %v2166 = vadd.f32 %v740, %v2165
  %v2167 = vpop.f32.mrb[0].mxu0
  %v2168 = vadd.f32 %v744, %v2167
  %2169 = vdwg.mxu0
  %2170 = vmatprep.subr.mxu0 0.0
  %2171 = vmatpush1.msra.mxu0 %v2077
  %2172 = vmatprep.subr.mxu0 0.0
  %2173 = vmatpush1.msra.mxu0 %v2080
  %2174 = vmatprep.subr.mxu0 0.0
  %2175 = vmatpush1.msra.mxu0 %v2083
  %2176 = vmatprep.subr.mxu0 0.0
  %2177 = vmatpush1.msra.mxu0 %v2086
  %2178 = vmatprep.subr.mxu0 0.0
  %2179 = vmatpush1.msra.mxu0 %v2089
  %2180 = vmatprep.subr.mxu0 0.0
  %2181 = vmatpush1.msra.mxu0 %v2092
  %2182 = vmatprep.subr.mxu0 0.0
  %2183 = vmatpush1.msra.mxu0 %v2095
  %2184 = vmatprep.subr.mxu0 0.0
  %2185 = vmatpush1.msra.mxu0 %v2098
  %2186 = vmatprep.subr.mxu0 0.0
  %2187 = vmatpush1.msra.mxu0 0.0
  %2188 = vmatprep.subr.mxu0 0.0
  %2189 = vmatpush1.msra.mxu0 0.0
  %2190 = vmatprep.subr.mxu0 0.0
  %2191 = vmatpush1.msra.mxu0 0.0
  %2192 = vmatprep.subr.mxu0 0.0
  %2193 = vmatpush1.msra.mxu0 0.0
  %2194 = vmatprep.subr.mxu0 0.0
  %2195 = vmatpush1.msra.mxu0 0.0
  %2196 = vmatprep.subr.mxu0 0.0
  %2197 = vmatpush1.msra.mxu0 0.0
  %2198 = vmatprep.subr.mxu0 0.0
  %2199 = vmatpush1.msra.mxu0 0.0
  %2200 = vmatprep.subr.mxu0 0.0
  %2201 = vmatpush1.msra.mxu0 0.0
  %2202 = vmatprep.subr.mxu0 0.0
  %2203 = vmatpush1.msra.mxu0 0.0
  %2204 = vmatprep.subr.mxu0 0.0
  %2205 = vmatpush1.msra.mxu0 0.0
  %2206 = vmatprep.subr.mxu0 0.0
  %2207 = vmatpush1.msra.mxu0 0.0
  %2208 = vmatprep.subr.mxu0 0.0
  %2209 = vmatpush1.msra.mxu0 0.0
  %2210 = vmatprep.subr.mxu0 0.0
  %2211 = vmatpush1.msra.mxu0 0.0
  %2212 = vmatprep.subr.mxu0 0.0
  %2213 = vmatpush1.msra.mxu0 0.0
  %2214 = vmatprep.subr.mxu0 0.0
  %2215 = vmatpush1.msra.mxu0 0.0
  %2216 = vmatprep.subr.mxu0 0.0
  %2217 = vmatpush1.msra.mxu0 0.0
  %2218 = vmatprep.subr.mxu0 0.0
  %2219 = vmatpush1.msra.mxu0 0.0
  %2220 = vmatprep.subr.mxu0 0.0
  %2221 = vmatpush1.msra.mxu0 0.0
  %2222 = vmatprep.subr.mxu0 0.0
  %2223 = vmatpush1.msra.mxu0 0.0
  %2224 = vmatprep.subr.mxu0 0.0
  %2225 = vmatpush1.msra.mxu0 0.0
  %2226 = vmatprep.subr.mxu0 0.0
  %2227 = vmatpush1.msra.mxu0 0.0
  %2228 = vmatprep.subr.mxu0 0.0
  %2229 = vmatpush1.msra.mxu0 0.0
  %2230 = vmatprep.subr.mxu0 0.0
  %2231 = vmatpush1.msra.mxu0 0.0
  %2232 = vmatprep.subr.mxu0 0.0
  %2233 = vmatpush1.msra.mxu0 0.0
  %2234 = vmatprep.mubr.f32.mxu0 0.0
  %2235 = vmatmul.mubr.f32.gmra.mrb[0].mxu0 %v1932
  %v2236 = vpop.f32.mrb[0].mxu0
  %v2237 = vadd.f32 %v748, %v2236
  %v2238 = vpop.f32.mrb[0].mxu0
  %2239 = vdwg.mxu0
  %2240 = vst [vmem:[#allocation6 + $0x30] sm:$0xff] %v2166
  %2241 = vst [vmem:[#allocation6 + $0x38] sm:$0xff] %v2168
  %2242 = vst [vmem:[#allocation6 + $0x40] sm:$0xff] %v2237
  %v2243 = vld [vmem:[#allocation3 + $0xc0] sm:$0xff]
  %v2244 = vld [vmem:[#allocation3 + $0xc8] sm:$0xff]
  %v2245 = vld [vmem:[#allocation3 + $0xd0] sm:$0xff]
  %v2246 = vld [vmem:[#allocation3 + $0xd8] sm:$0xff]
  %v2247 = vld [vmem:[#allocation3 + $0xe0] sm:$0xff]
  %v2248 = vld [vmem:[#allocation3 + $0xe8] sm:$0xff]
  %v2249 = vld [vmem:[#allocation3 + $0xf0] sm:$0xff]
  %v2250 = vld [vmem:[#allocation3 + $0xf8] sm:$0xff]
  %v2251 = vld [vmem:[#allocation3 + $0x100] sm:$0xff]
  %v2252 = vld [vmem:[#allocation3 + $0x108] sm:$0xff]
  %v2253 = vld [vmem:[#allocation3 + $0x110] sm:$0xff]
  %v2254 = vld [vmem:[#allocation3 + $0x118] sm:$0xff]
  %v2255 = vld [vmem:[#allocation3 + $0x120] sm:$0xff]
  %v2256 = vld [vmem:[#allocation3 + $0x128] sm:$0xff]
  %v2257 = vld [vmem:[#allocation3 + $0x130] sm:$0xff]
  %v2258 = vld [vmem:[#allocation3 + $0x138] sm:$0xff]
  %v2259 = vld [vmem:[#allocation3 + $0x140] sm:$0xff]
  %v2260 = vld [vmem:[#allocation3 + $0x148] sm:$0xff]
  %v2261 = vld [vmem:[#allocation3 + $0x150] sm:$0xff]
  %v2262 = vld [vmem:[#allocation3 + $0x158] sm:$0xff]
  %v2263 = vld [vmem:[#allocation3 + $0x160] sm:$0xff]
  %v2264 = vld [vmem:[#allocation3 + $0x168] sm:$0xff]
  %v2265 = vld [vmem:[#allocation3 + $0x170] sm:$0xff]
  %v2266 = vld [vmem:[#allocation3 + $0x178] sm:$0xff]
  %2267 = vmatprep.subr.mxu0 %v2244
  %2268 = vmatpush1.msra.mxu0 %v2243
  %2269 = vmatprep.subr.mxu0 %v2247
  %2270 = vmatpush1.msra.mxu0 %v2246
  %2271 = vmatprep.subr.mxu0 %v2250
  %2272 = vmatpush1.msra.mxu0 %v2249
  %2273 = vmatprep.subr.mxu0 %v2253
  %2274 = vmatpush1.msra.mxu0 %v2252
  %2275 = vmatprep.subr.mxu0 %v2256
  %2276 = vmatpush1.msra.mxu0 %v2255
  %2277 = vmatprep.subr.mxu0 %v2259
  %2278 = vmatpush1.msra.mxu0 %v2258
  %2279 = vmatprep.subr.mxu0 %v2262
  %2280 = vmatpush1.msra.mxu0 %v2261
  %2281 = vmatprep.subr.mxu0 %v2265
  %2282 = vmatpush1.msra.mxu0 %v2264
  %2283 = vmatprep.subr.mxu0 0.0
  %2284 = vmatpush1.msra.mxu0 0.0
  %2285 = vmatprep.subr.mxu0 0.0
  %2286 = vmatpush1.msra.mxu0 0.0
  %2287 = vmatprep.subr.mxu0 0.0
  %2288 = vmatpush1.msra.mxu0 0.0
  %2289 = vmatprep.subr.mxu0 0.0
  %2290 = vmatpush1.msra.mxu0 0.0
  %2291 = vmatprep.subr.mxu0 0.0
  %2292 = vmatpush1.msra.mxu0 0.0
  %2293 = vmatprep.subr.mxu0 0.0
  %2294 = vmatpush1.msra.mxu0 0.0
  %2295 = vmatprep.subr.mxu0 0.0
  %2296 = vmatpush1.msra.mxu0 0.0
  %2297 = vmatprep.subr.mxu0 0.0
  %2298 = vmatpush1.msra.mxu0 0.0
  %2299 = vmatprep.subr.mxu0 0.0
  %2300 = vmatpush1.msra.mxu0 0.0
  %2301 = vmatprep.subr.mxu0 0.0
  %2302 = vmatpush1.msra.mxu0 0.0
  %2303 = vmatprep.subr.mxu0 0.0
  %2304 = vmatpush1.msra.mxu0 0.0
  %2305 = vmatprep.subr.mxu0 0.0
  %2306 = vmatpush1.msra.mxu0 0.0
  %2307 = vmatprep.subr.mxu0 0.0
  %2308 = vmatpush1.msra.mxu0 0.0
  %2309 = vmatprep.subr.mxu0 0.0
  %2310 = vmatpush1.msra.mxu0 0.0
  %2311 = vmatprep.subr.mxu0 0.0
  %2312 = vmatpush1.msra.mxu0 0.0
  %2313 = vmatprep.subr.mxu0 0.0
  %2314 = vmatpush1.msra.mxu0 0.0
  %2315 = vmatprep.subr.mxu0 0.0
  %2316 = vmatpush1.msra.mxu0 0.0
  %2317 = vmatprep.subr.mxu0 0.0
  %2318 = vmatpush1.msra.mxu0 0.0
  %2319 = vmatprep.subr.mxu0 0.0
  %2320 = vmatpush1.msra.mxu0 0.0
  %2321 = vmatprep.subr.mxu0 0.0
  %2322 = vmatpush1.msra.mxu0 0.0
  %2323 = vmatprep.subr.mxu0 0.0
  %2324 = vmatpush1.msra.mxu0 0.0
  %2325 = vmatprep.subr.mxu0 0.0
  %2326 = vmatpush1.msra.mxu0 0.0
  %2327 = vmatprep.subr.mxu0 0.0
  %2328 = vmatpush1.msra.mxu0 0.0
  %2329 = vmatprep.subr.mxu0 0.0
  %2330 = vmatpush1.msra.mxu0 0.0
  %2331 = vmatprep.mubr.f32.mxu0 0.0
  %2332 = vmatmul.mubr.f32.gmra.mrb[0].mxu0 %v1932
  %v2333 = vpop.f32.mrb[0].mxu0
  %v2334 = vadd.f32 0.0, %v2333
  %v2335 = vpop.f32.mrb[0].mxu0
  %v2336 = vadd.f32 0.0, %v2335
  %2337 = vdwg.mxu0
  %2338 = vmatprep.subr.mxu0 0.0
  %2339 = vmatpush1.msra.mxu0 %v2245
  %2340 = vmatprep.subr.mxu0 0.0
  %2341 = vmatpush1.msra.mxu0 %v2248
  %2342 = vmatprep.subr.mxu0 0.0
  %2343 = vmatpush1.msra.mxu0 %v2251
  %2344 = vmatprep.subr.mxu0 0.0
  %2345 = vmatpush1.msra.mxu0 %v2254
  %2346 = vmatprep.subr.mxu0 0.0
  %2347 = vmatpush1.msra.mxu0 %v2257
  %2348 = vmatprep.subr.mxu0 0.0
  %2349 = vmatpush1.msra.mxu0 %v2260
  %2350 = vmatprep.subr.mxu0 0.0
  %2351 = vmatpush1.msra.mxu0 %v2263
  %2352 = vmatprep.subr.mxu0 0.0
  %2353 = vmatpush1.msra.mxu0 %v2266
  %2354 = vmatprep.subr.mxu0 0.0
  %2355 = vmatpush1.msra.mxu0 0.0
  %2356 = vmatprep.subr.mxu0 0.0
  %2357 = vmatpush1.msra.mxu0 0.0
  %2358 = vmatprep.subr.mxu0 0.0
  %2359 = vmatpush1.msra.mxu0 0.0
  %2360 = vmatprep.subr.mxu0 0.0
  %2361 = vmatpush1.msra.mxu0 0.0
  %2362 = vmatprep.subr.mxu0 0.0
  %2363 = vmatpush1.msra.mxu0 0.0
  %2364 = vmatprep.subr.mxu0 0.0
  %2365 = vmatpush1.msra.mxu0 0.0
  %2366 = vmatprep.subr.mxu0 0.0
  %2367 = vmatpush1.msra.mxu0 0.0
  %2368 = vmatprep.subr.mxu0 0.0
  %2369 = vmatpush1.msra.mxu0 0.0
  %2370 = vmatprep.subr.mxu0 0.0
  %2371 = vmatpush1.msra.mxu0 0.0
  %2372 = vmatprep.subr.mxu0 0.0
  %2373 = vmatpush1.msra.mxu0 0.0
  %2374 = vmatprep.subr.mxu0 0.0
  %2375 = vmatpush1.msra.mxu0 0.0
  %2376 = vmatprep.subr.mxu0 0.0
  %2377 = vmatpush1.msra.mxu0 0.0
  %2378 = vmatprep.subr.mxu0 0.0
  %2379 = vmatpush1.msra.mxu0 0.0
  %2380 = vmatprep.subr.mxu0 0.0
  %2381 = vmatpush1.msra.mxu0 0.0
  %2382 = vmatprep.subr.mxu0 0.0
  %2383 = vmatpush1.msra.mxu0 0.0
  %2384 = vmatprep.subr.mxu0 0.0
  %2385 = vmatpush1.msra.mxu0 0.0
  %2386 = vmatprep.subr.mxu0 0.0
  %2387 = vmatpush1.msra.mxu0 0.0
  %2388 = vmatprep.subr.mxu0 0.0
  %2389 = vmatpush1.msra.mxu0 0.0
  %2390 = vmatprep.subr.mxu0 0.0
  %2391 = vmatpush1.msra.mxu0 0.0
  %2392 = vmatprep.subr.mxu0 0.0
  %2393 = vmatpush1.msra.mxu0 0.0
  %2394 = vmatprep.subr.mxu0 0.0
  %2395 = vmatpush1.msra.mxu0 0.0
  %2396 = vmatprep.subr.mxu0 0.0
  %2397 = vmatpush1.msra.mxu0 0.0
  %2398 = vmatprep.subr.mxu0 0.0
  %2399 = vmatpush1.msra.mxu0 0.0
  %2400 = vmatprep.subr.mxu0 0.0
  %2401 = vmatpush1.msra.mxu0 0.0
  %2402 = vmatprep.mubr.f32.mxu0 0.0
  %2403 = vmatmul.mubr.f32.gmra.mrb[0].mxu0 %v1932
  %v2404 = vpop.f32.mrb[0].mxu0
  %v2405 = vadd.f32 0.0, %v2404
  %v2406 = vpop.f32.mrb[0].mxu0
  %2407 = vdwg.mxu0
  %2408 = vst [vmem:[#allocation7 + $0x30] sm:$0xff] %v2334
  %2409 = vst [vmem:[#allocation7 + $0x38] sm:$0xff] %v2336
  %2410 = vst [vmem:[#allocation7 + $0x40] sm:$0xff] %v2405
  %v2411 = vld [vmem:[#allocation5 + $0x48] sm:$0xff]
  %v2412 = vld [vmem:[#allocation5 + $0x50] sm:$0xff]
  %v2413 = vld [vmem:[#allocation5 + $0x58] sm:$0xff]
  %v2414 = vadd.f32 %v2411, %v2001
  %v2415 = vxor.u32 %v2414, 2147483648
  %v2416 = vmul.f32 %v2415, 1.442695
  %v2417 = vpow.pop %v2416
  %v2418 = vadd.f32 %v2417, 1.0
  %v2419 = vrcp.pop %v2418
  %v2420 = vmul.f32 1.0, %v2419
  %v2421 = vadd.f32 %v2412, %v2003
  %v2422 = vxor.u32 %v2421, 2147483648
  %v2423 = vmul.f32 %v2422, 1.442695
  %v2424 = vpow.pop %v2423
  %v2425 = vadd.f32 %v2424, 1.0
  %v2426 = vrcp.pop %v2425
  %v2427 = vmul.f32 1.0, %v2426
  %v2428 = vadd.f32 %v2072, %v733
  %v2429 = vmul.f32 %v2420, %v2428
  %v2430 = vadd.f32 %v2413, %v2429
  %v2431 = vtanh.pop %v2430
  %v2432 = vsub.f32 %v1930, %v2431
  %v2433 = vmul.f32 %v2427, %v2432
  %v2434 = vadd.f32 %v2431, %v2433
  %v2436 = vsel %vm438, %v2434, 0
  %2438 = vmatprep.subr.mxu0 %v706
  %2439 = vmatpush1.msra.mxu0 %v705
  %2440 = vmatprep.subr.mxu0 %v709
  %2441 = vmatpush1.msra.mxu0 %v708
  %2442 = vmatprep.subr.mxu0 %v712
  %2443 = vmatpush1.msra.mxu0 %v711
  %2444 = vmatprep.subr.mxu0 %v715
  %2445 = vmatpush1.msra.mxu0 %v714
  %2446 = vmatprep.subr.mxu0 %v718
  %2447 = vmatpush1.msra.mxu0 %v717
  %2448 = vmatprep.subr.mxu0 %v721
  %2449 = vmatpush1.msra.mxu0 %v720
  %2450 = vmatprep.subr.mxu0 %v724
  %2451 = vmatpush1.msra.mxu0 %v723
  %2452 = vmatprep.subr.mxu0 %v727
  %2453 = vmatpush1.msra.mxu0 %v726
  %2454 = vmatprep.subr.mxu0 0.0
  %2455 = vmatpush1.msra.mxu0 0.0
  %2456 = vmatprep.subr.mxu0 0.0
  %2457 = vmatpush1.msra.mxu0 0.0
  %2458 = vmatprep.subr.mxu0 0.0
  %2459 = vmatpush1.msra.mxu0 0.0
  %2460 = vmatprep.subr.mxu0 0.0
  %2461 = vmatpush1.msra.mxu0 0.0
  %2462 = vmatprep.subr.mxu0 0.0
  %2463 = vmatpush1.msra.mxu0 0.0
  %2464 = vmatprep.subr.mxu0 0.0
  %2465 = vmatpush1.msra.mxu0 0.0
  %2466 = vmatprep.subr.mxu0 0.0
  %2467 = vmatpush1.msra.mxu0 0.0
  %2468 = vmatprep.subr.mxu0 0.0
  %2469 = vmatpush1.msra.mxu0 0.0
  %2470 = vmatprep.subr.mxu0 0.0
  %2471 = vmatpush1.msra.mxu0 0.0
  %2472 = vmatprep.subr.mxu0 0.0
  %2473 = vmatpush1.msra.mxu0 0.0
  %2474 = vmatprep.subr.mxu0 0.0
  %2475 = vmatpush1.msra.mxu0 0.0
  %2476 = vmatprep.subr.mxu0 0.0
  %2477 = vmatpush1.msra.mxu0 0.0
  %2478 = vmatprep.subr.mxu0 0.0
  %2479 = vmatpush1.msra.mxu0 0.0
  %2480 = vmatprep.subr.mxu0 0.0
  %2481 = vmatpush1.msra.mxu0 0.0
  %2482 = vmatprep.subr.mxu0 0.0
  %2483 = vmatpush1.msra.mxu0 0.0
  %2484 = vmatprep.subr.mxu0 0.0
  %2485 = vmatpush1.msra.mxu0 0.0
  %2486 = vmatprep.subr.mxu0 0.0
  %2487 = vmatpush1.msra.mxu0 0.0
  %2488 = vmatprep.subr.mxu0 0.0
  %2489 = vmatpush1.msra.mxu0 0.0
  %2490 = vmatprep.subr.mxu0 0.0
  %2491 = vmatpush1.msra.mxu0 0.0
  %2492 = vmatprep.subr.mxu0 0.0
  %2493 = vmatpush1.msra.mxu0 0.0
  %2494 = vmatprep.subr.mxu0 0.0
  %2495 = vmatpush1.msra.mxu0 0.0
  %2496 = vmatprep.subr.mxu0 0.0
  %2497 = vmatpush1.msra.mxu0 0.0
  %2498 = vmatprep.subr.mxu0 0.0
  %2499 = vmatpush1.msra.mxu0 0.0
  %2500 = vmatprep.subr.mxu0 0.0
  %2501 = vmatpush1.msra.mxu0 0.0
  %2502 = vmatprep.mubr.f32.mxu0 0.0
  %2503 = vmatmul.mubr.f32.gmra.mrb[0].mxu0 %v2436
  %v2504 = vpop.f32.mrb[0].mxu0
  %v2505 = vadd.f32 0.0, %v2504
  %v2506 = vpop.f32.mrb[0].mxu0
  %v2507 = vadd.f32 0.0, %v2506
  %2508 = vdwg.mxu0
  %2509 = vmatprep.subr.mxu0 0.0
  %2510 = vmatpush1.msra.mxu0 %v707
  %2511 = vmatprep.subr.mxu0 0.0
  %2512 = vmatpush1.msra.mxu0 %v710
  %2513 = vmatprep.subr.mxu0 0.0
  %2514 = vmatpush1.msra.mxu0 %v713
  %2515 = vmatprep.subr.mxu0 0.0
  %2516 = vmatpush1.msra.mxu0 %v716
  %2517 = vmatprep.subr.mxu0 0.0
  %2518 = vmatpush1.msra.mxu0 %v719
  %2519 = vmatprep.subr.mxu0 0.0
  %2520 = vmatpush1.msra.mxu0 %v722
  %2521 = vmatprep.subr.mxu0 0.0
  %2522 = vmatpush1.msra.mxu0 %v725
  %2523 = vmatprep.subr.mxu0 0.0
  %2524 = vmatpush1.msra.mxu0 %v728
  %2525 = vmatprep.subr.mxu0 0.0
  %2526 = vmatpush1.msra.mxu0 0.0
  %2527 = vmatprep.subr.mxu0 0.0
  %2528 = vmatpush1.msra.mxu0 0.0
  %2529 = vmatprep.subr.mxu0 0.0
  %2530 = vmatpush1.msra.mxu0 0.0
  %2531 = vmatprep.subr.mxu0 0.0
  %2532 = vmatpush1.msra.mxu0 0.0
  %2533 = vmatprep.subr.mxu0 0.0
  %2534 = vmatpush1.msra.mxu0 0.0
  %2535 = vmatprep.subr.mxu0 0.0
  %2536 = vmatpush1.msra.mxu0 0.0
  %2537 = vmatprep.subr.mxu0 0.0
  %2538 = vmatpush1.msra.mxu0 0.0
  %2539 = vmatprep.subr.mxu0 0.0
  %2540 = vmatpush1.msra.mxu0 0.0
  %2541 = vmatprep.subr.mxu0 0.0
  %2542 = vmatpush1.msra.mxu0 0.0
  %2543 = vmatprep.subr.mxu0 0.0
  %2544 = vmatpush1.msra.mxu0 0.0
  %2545 = vmatprep.subr.mxu0 0.0
  %2546 = vmatpush1.msra.mxu0 0.0
  %2547 = vmatprep.subr.mxu0 0.0
  %2548 = vmatpush1.msra.mxu0 0.0
  %2549 = vmatprep.subr.mxu0 0.0
  %2550 = vmatpush1.msra.mxu0 0.0
  %2551 = vmatprep.subr.mxu0 0.0
  %2552 = vmatpush1.msra.mxu0 0.0
  %2553 = vmatprep.subr.mxu0 0.0
  %2554 = vmatpush1.msra.mxu0 0.0
  %2555 = vmatprep.subr.mxu0 0.0
  %2556 = vmatpush1.msra.mxu0 0.0
  %2557 = vmatprep.subr.mxu0 0.0
  %2558 = vmatpush1.msra.mxu0 0.0
  %2559 = vmatprep.subr.mxu0 0.0
  %2560 = vmatpush1.msra.mxu0 0.0
  %2561 = vmatprep.subr.mxu0 0.0
  %2562 = vmatpush1.msra.mxu0 0.0
  %2563 = vmatprep.subr.mxu0 0.0
  %2564 = vmatpush1.msra.mxu0 0.0
  %2565 = vmatprep.subr.mxu0 0.0
  %2566 = vmatpush1.msra.mxu0 0.0
  %2567 = vmatprep.subr.mxu0 0.0
  %2568 = vmatpush1.msra.mxu0 0.0
  %2569 = vmatprep.subr.mxu0 0.0
  %2570 = vmatpush1.msra.mxu0 0.0
  %2571 = vmatprep.subr.mxu0 0.0
  %2572 = vmatpush1.msra.mxu0 0.0
  %2573 = vmatprep.mubr.f32.mxu0 0.0
  %2574 = vmatmul.mubr.f32.gmra.mrb[0].mxu0 %v2436
  %v2575 = vpop.f32.mrb[0].mxu0
  %v2576 = vadd.f32 0.0, %v2575
  %v2577 = vpop.f32.mrb[0].mxu0
  %2578 = vdwg.mxu0
  %v2579 = vld [vmem:[#allocation3] sm:$0xff]
  %v2580 = vld [vmem:[#allocation3 + $0x8] sm:$0xff]
  %v2581 = vld [vmem:[#allocation3 + $0x10] sm:$0xff]
  %v2582 = vld [vmem:[#allocation3 + $0x18] sm:$0xff]
  %v2583 = vld [vmem:[#allocation3 + $0x20] sm:$0xff]
  %v2584 = vld [vmem:[#allocation3 + $0x28] sm:$0xff]
  %v2585 = vld [vmem:[#allocation3 + $0x30] sm:$0xff]
  %v2586 = vld [vmem:[#allocation3 + $0x38] sm:$0xff]
  %v2587 = vld [vmem:[#allocation3 + $0x40] sm:$0xff]
  %v2588 = vld [vmem:[#allocation3 + $0x48] sm:$0xff]
  %v2589 = vld [vmem:[#allocation3 + $0x50] sm:$0xff]
  %v2590 = vld [vmem:[#allocation3 + $0x58] sm:$0xff]
  %v2591 = vld [vmem:[#allocation3 + $0x60] sm:$0xff]
  %v2592 = vld [vmem:[#allocation3 + $0x68] sm:$0xff]
  %v2593 = vld [vmem:[#allocation3 + $0x70] sm:$0xff]
  %v2594 = vld [vmem:[#allocation3 + $0x78] sm:$0xff]
  %v2595 = vld [vmem:[#allocation3 + $0x80] sm:$0xff]
  %v2596 = vld [vmem:[#allocation3 + $0x88] sm:$0xff]
  %v2597 = vld [vmem:[#allocation3 + $0x90] sm:$0xff]
  %v2598 = vld [vmem:[#allocation3 + $0x98] sm:$0xff]
  %v2599 = vld [vmem:[#allocation3 + $0xa0] sm:$0xff]
  %v2600 = vld [vmem:[#allocation3 + $0xa8] sm:$0xff]
  %v2601 = vld [vmem:[#allocation3 + $0xb0] sm:$0xff]
  %v2602 = vld [vmem:[#allocation3 + $0xb8] sm:$0xff]
  %2603 = vmatprep.subr.mxu0 %v2580
  %2604 = vmatpush1.msra.mxu0 %v2579
  %2605 = vmatprep.subr.mxu0 %v2583
  %2606 = vmatpush1.msra.mxu0 %v2582
  %2607 = vmatprep.subr.mxu0 %v2586
  %2608 = vmatpush1.msra.mxu0 %v2585
  %2609 = vmatprep.subr.mxu0 %v2589
  %2610 = vmatpush1.msra.mxu0 %v2588
  %2611 = vmatprep.subr.mxu0 %v2592
  %2612 = vmatpush1.msra.mxu0 %v2591
  %2613 = vmatprep.subr.mxu0 %v2595
  %2614 = vmatpush1.msra.mxu0 %v2594
  %2615 = vmatprep.subr.mxu0 %v2598
  %2616 = vmatpush1.msra.mxu0 %v2597
  %2617 = vmatprep.subr.mxu0 %v2601
  %2618 = vmatpush1.msra.mxu0 %v2600
  %2619 = vmatprep.subr.mxu0 0.0
  %2620 = vmatpush1.msra.mxu0 0.0
  %2621 = vmatprep.subr.mxu0 0.0
  %2622 = vmatpush1.msra.mxu0 0.0
  %2623 = vmatprep.subr.mxu0 0.0
  %2624 = vmatpush1.msra.mxu0 0.0
  %2625 = vmatprep.subr.mxu0 0.0
  %2626 = vmatpush1.msra.mxu0 0.0
  %2627 = vmatprep.subr.mxu0 0.0
  %2628 = vmatpush1.msra.mxu0 0.0
  %2629 = vmatprep.subr.mxu0 0.0
  %2630 = vmatpush1.msra.mxu0 0.0
  %2631 = vmatprep.subr.mxu0 0.0
  %2632 = vmatpush1.msra.mxu0 0.0
  %2633 = vmatprep.subr.mxu0 0.0
  %2634 = vmatpush1.msra.mxu0 0.0
  %2635 = vmatprep.subr.mxu0 0.0
  %2636 = vmatpush1.msra.mxu0 0.0
  %2637 = vmatprep.subr.mxu0 0.0
  %2638 = vmatpush1.msra.mxu0 0.0
  %2639 = vmatprep.subr.mxu0 0.0
  %2640 = vmatpush1.msra.mxu0 0.0
  %2641 = vmatprep.subr.mxu0 0.0
  %2642 = vmatpush1.msra.mxu0 0.0
  %2643 = vmatprep.subr.mxu0 0.0
  %2644 = vmatpush1.msra.mxu0 0.0
  %2645 = vmatprep.subr.mxu0 0.0
  %2646 = vmatpush1.msra.mxu0 0.0
  %2647 = vmatprep.subr.mxu0 0.0
  %2648 = vmatpush1.msra.mxu0 0.0
  %2649 = vmatprep.subr.mxu0 0.0
  %2650 = vmatpush1.msra.mxu0 0.0
  %2651 = vmatprep.subr.mxu0 0.0
  %2652 = vmatpush1.msra.mxu0 0.0
  %2653 = vmatprep.subr.mxu0 0.0
  %2654 = vmatpush1.msra.mxu0 0.0
  %2655 = vmatprep.subr.mxu0 0.0
  %2656 = vmatpush1.msra.mxu0 0.0
  %2657 = vmatprep.subr.mxu0 0.0
  %2658 = vmatpush1.msra.mxu0 0.0
  %2659 = vmatprep.subr.mxu0 0.0
  %2660 = vmatpush1.msra.mxu0 0.0
  %2661 = vmatprep.subr.mxu0 0.0
  %2662 = vmatpush1.msra.mxu0 0.0
  %2663 = vmatprep.subr.mxu0 0.0
  %2664 = vmatpush1.msra.mxu0 0.0
  %2665 = vmatprep.subr.mxu0 0.0
  %2666 = vmatpush1.msra.mxu0 0.0
  %2667 = vmatprep.mubr.f32.mxu0 0.0
  %2668 = vmatmul.mubr.f32.gmra.mrb[0].mxu0 %v2436
  %v2669 = vpop.f32.mrb[0].mxu0
  %v2670 = vadd.f32 %v740, %v2669
  %v2671 = vpop.f32.mrb[0].mxu0
  %v2672 = vadd.f32 %v744, %v2671
  %2673 = vdwg.mxu0
  %2674 = vmatprep.subr.mxu0 0.0
  %2675 = vmatpush1.msra.mxu0 %v2581
  %2676 = vmatprep.subr.mxu0 0.0
  %2677 = vmatpush1.msra.mxu0 %v2584
  %2678 = vmatprep.subr.mxu0 0.0
  %2679 = vmatpush1.msra.mxu0 %v2587
  %2680 = vmatprep.subr.mxu0 0.0
  %2681 = vmatpush1.msra.mxu0 %v2590
  %2682 = vmatprep.subr.mxu0 0.0
  %2683 = vmatpush1.msra.mxu0 %v2593
  %2684 = vmatprep.subr.mxu0 0.0
  %2685 = vmatpush1.msra.mxu0 %v2596
  %2686 = vmatprep.subr.mxu0 0.0
  %2687 = vmatpush1.msra.mxu0 %v2599
  %2688 = vmatprep.subr.mxu0 0.0
  %2689 = vmatpush1.msra.mxu0 %v2602
  %2690 = vmatprep.subr.mxu0 0.0
  %2691 = vmatpush1.msra.mxu0 0.0
  %2692 = vmatprep.subr.mxu0 0.0
  %2693 = vmatpush1.msra.mxu0 0.0
  %2694 = vmatprep.subr.mxu0 0.0
  %2695 = vmatpush1.msra.mxu0 0.0
  %2696 = vmatprep.subr.mxu0 0.0
  %2697 = vmatpush1.msra.mxu0 0.0
  %2698 = vmatprep.subr.mxu0 0.0
  %2699 = vmatpush1.msra.mxu0 0.0
  %2700 = vmatprep.subr.mxu0 0.0
  %2701 = vmatpush1.msra.mxu0 0.0
  %2702 = vmatprep.subr.mxu0 0.0
  %2703 = vmatpush1.msra.mxu0 0.0
  %2704 = vmatprep.subr.mxu0 0.0
  %2705 = vmatpush1.msra.mxu0 0.0
  %2706 = vmatprep.subr.mxu0 0.0
  %2707 = vmatpush1.msra.mxu0 0.0
  %2708 = vmatprep.subr.mxu0 0.0
  %2709 = vmatpush1.msra.mxu0 0.0
  %2710 = vmatprep.subr.mxu0 0.0
  %2711 = vmatpush1.msra.mxu0 0.0
  %2712 = vmatprep.subr.mxu0 0.0
  %2713 = vmatpush1.msra.mxu0 0.0
  %2714 = vmatprep.subr.mxu0 0.0
  %2715 = vmatpush1.msra.mxu0 0.0
  %2716 = vmatprep.subr.mxu0 0.0
  %2717 = vmatpush1.msra.mxu0 0.0
  %2718 = vmatprep.subr.mxu0 0.0
  %2719 = vmatpush1.msra.mxu0 0.0
  %2720 = vmatprep.subr.mxu0 0.0
  %2721 = vmatpush1.msra.mxu0 0.0
  %2722 = vmatprep.subr.mxu0 0.0
  %2723 = vmatpush1.msra.mxu0 0.0
  %2724 = vmatprep.subr.mxu0 0.0
  %2725 = vmatpush1.msra.mxu0 0.0
  %2726 = vmatprep.subr.mxu0 0.0
  %2727 = vmatpush1.msra.mxu0 0.0
  %2728 = vmatprep.subr.mxu0 0.0
  %2729 = vmatpush1.msra.mxu0 0.0
  %2730 = vmatprep.subr.mxu0 0.0
  %2731 = vmatpush1.msra.mxu0 0.0
  %2732 = vmatprep.subr.mxu0 0.0
  %2733 = vmatpush1.msra.mxu0 0.0
  %2734 = vmatprep.subr.mxu0 0.0
  %2735 = vmatpush1.msra.mxu0 0.0
  %2736 = vmatprep.subr.mxu0 0.0
  %2737 = vmatpush1.msra.mxu0 0.0
  %2738 = vmatprep.mubr.f32.mxu0 0.0
  %2739 = vmatmul.mubr.f32.gmra.mrb[0].mxu0 %v2436
  %v2740 = vpop.f32.mrb[0].mxu0
  %v2741 = vadd.f32 %v748, %v2740
  %v2742 = vpop.f32.mrb[0].mxu0
  %2743 = vdwg.mxu0
  %2744 = vst [vmem:[#allocation6 + $0x48] sm:$0xff] %v2670
  %2745 = vst [vmem:[#allocation6 + $0x50] sm:$0xff] %v2672
  %2746 = vst [vmem:[#allocation6 + $0x58] sm:$0xff] %v2741
  %v2747 = vld [vmem:[#allocation3 + $0xc0] sm:$0xff]
  %v2748 = vld [vmem:[#allocation3 + $0xc8] sm:$0xff]
  %v2749 = vld [vmem:[#allocation3 + $0xd0] sm:$0xff]
  %v2750 = vld [vmem:[#allocation3 + $0xd8] sm:$0xff]
  %v2751 = vld [vmem:[#allocation3 + $0xe0] sm:$0xff]
  %v2752 = vld [vmem:[#allocation3 + $0xe8] sm:$0xff]
  %v2753 = vld [vmem:[#allocation3 + $0xf0] sm:$0xff]
  %v2754 = vld [vmem:[#allocation3 + $0xf8] sm:$0xff]
  %v2755 = vld [vmem:[#allocation3 + $0x100] sm:$0xff]
  %v2756 = vld [vmem:[#allocation3 + $0x108] sm:$0xff]
  %v2757 = vld [vmem:[#allocation3 + $0x110] sm:$0xff]
  %v2758 = vld [vmem:[#allocation3 + $0x118] sm:$0xff]
  %v2759 = vld [vmem:[#allocation3 + $0x120] sm:$0xff]
  %v2760 = vld [vmem:[#allocation3 + $0x128] sm:$0xff]
  %v2761 = vld [vmem:[#allocation3 + $0x130] sm:$0xff]
  %v2762 = vld [vmem:[#allocation3 + $0x138] sm:$0xff]
  %v2763 = vld [vmem:[#allocation3 + $0x140] sm:$0xff]
  %v2764 = vld [vmem:[#allocation3 + $0x148] sm:$0xff]
  %v2765 = vld [vmem:[#allocation3 + $0x150] sm:$0xff]
  %v2766 = vld [vmem:[#allocation3 + $0x158] sm:$0xff]
  %v2767 = vld [vmem:[#allocation3 + $0x160] sm:$0xff]
  %v2768 = vld [vmem:[#allocation3 + $0x168] sm:$0xff]
  %v2769 = vld [vmem:[#allocation3 + $0x170] sm:$0xff]
  %v2770 = vld [vmem:[#allocation3 + $0x178] sm:$0xff]
  %2771 = vmatprep.subr.mxu0 %v2748
  %2772 = vmatpush1.msra.mxu0 %v2747
  %2773 = vmatprep.subr.mxu0 %v2751
  %2774 = vmatpush1.msra.mxu0 %v2750
  %2775 = vmatprep.subr.mxu0 %v2754
  %2776 = vmatpush1.msra.mxu0 %v2753
  %2777 = vmatprep.subr.mxu0 %v2757
  %2778 = vmatpush1.msra.mxu0 %v2756
  %2779 = vmatprep.subr.mxu0 %v2760
  %2780 = vmatpush1.msra.mxu0 %v2759
  %2781 = vmatprep.subr.mxu0 %v2763
  %2782 = vmatpush1.msra.mxu0 %v2762
  %2783 = vmatprep.subr.mxu0 %v2766
  %2784 = vmatpush1.msra.mxu0 %v2765
  %2785 = vmatprep.subr.mxu0 %v2769
  %2786 = vmatpush1.msra.mxu0 %v2768
  %2787 = vmatprep.subr.mxu0 0.0
  %2788 = vmatpush1.msra.mxu0 0.0
  %2789 = vmatprep.subr.mxu0 0.0
  %2790 = vmatpush1.msra.mxu0 0.0
  %2791 = vmatprep.subr.mxu0 0.0
  %2792 = vmatpush1.msra.mxu0 0.0
  %2793 = vmatprep.subr.mxu0 0.0
  %2794 = vmatpush1.msra.mxu0 0.0
  %2795 = vmatprep.subr.mxu0 0.0
  %2796 = vmatpush1.msra.mxu0 0.0
  %2797 = vmatprep.subr.mxu0 0.0
  %2798 = vmatpush1.msra.mxu0 0.0
  %2799 = vmatprep.subr.mxu0 0.0
  %2800 = vmatpush1.msra.mxu0 0.0
  %2801 = vmatprep.subr.mxu0 0.0
  %2802 = vmatpush1.msra.mxu0 0.0
  %2803 = vmatprep.subr.mxu0 0.0
  %2804 = vmatpush1.msra.mxu0 0.0
  %2805 = vmatprep.subr.mxu0 0.0
  %2806 = vmatpush1.msra.mxu0 0.0
  %2807 = vmatprep.subr.mxu0 0.0
  %2808 = vmatpush1.msra.mxu0 0.0
  %2809 = vmatprep.subr.mxu0 0.0
  %2810 = vmatpush1.msra.mxu0 0.0
  %2811 = vmatprep.subr.mxu0 0.0
  %2812 = vmatpush1.msra.mxu0 0.0
  %2813 = vmatprep.subr.mxu0 0.0
  %2814 = vmatpush1.msra.mxu0 0.0
  %2815 = vmatprep.subr.mxu0 0.0
  %2816 = vmatpush1.msra.mxu0 0.0
  %2817 = vmatprep.subr.mxu0 0.0
  %2818 = vmatpush1.msra.mxu0 0.0
  %2819 = vmatprep.subr.mxu0 0.0
  %2820 = vmatpush1.msra.mxu0 0.0
  %2821 = vmatprep.subr.mxu0 0.0
  %2822 = vmatpush1.msra.mxu0 0.0
  %2823 = vmatprep.subr.mxu0 0.0
  %2824 = vmatpush1.msra.mxu0 0.0
  %2825 = vmatprep.subr.mxu0 0.0
  %2826 = vmatpush1.msra.mxu0 0.0
  %2827 = vmatprep.subr.mxu0 0.0
  %2828 = vmatpush1.msra.mxu0 0.0
  %2829 = vmatprep.subr.mxu0 0.0
  %2830 = vmatpush1.msra.mxu0 0.0
  %2831 = vmatprep.subr.mxu0 0.0
  %2832 = vmatpush1.msra.mxu0 0.0
  %2833 = vmatprep.subr.mxu0 0.0
  %2834 = vmatpush1.msra.mxu0 0.0
  %2835 = vmatprep.mubr.f32.mxu0 0.0
  %2836 = vmatmul.mubr.f32.gmra.mrb[0].mxu0 %v2436
  %v2837 = vpop.f32.mrb[0].mxu0
  %v2838 = vadd.f32 0.0, %v2837
  %v2839 = vpop.f32.mrb[0].mxu0
  %v2840 = vadd.f32 0.0, %v2839
  %2841 = vdwg.mxu0
  %2842 = vmatprep.subr.mxu0 0.0
  %2843 = vmatpush1.msra.mxu0 %v2749
  %2844 = vmatprep.subr.mxu0 0.0
  %2845 = vmatpush1.msra.mxu0 %v2752
  %2846 = vmatprep.subr.mxu0 0.0
  %2847 = vmatpush1.msra.mxu0 %v2755
  %2848 = vmatprep.subr.mxu0 0.0
  %2849 = vmatpush1.msra.mxu0 %v2758
  %2850 = vmatprep.subr.mxu0 0.0
  %2851 = vmatpush1.msra.mxu0 %v2761
  %2852 = vmatprep.subr.mxu0 0.0
  %2853 = vmatpush1.msra.mxu0 %v2764
  %2854 = vmatprep.subr.mxu0 0.0
  %2855 = vmatpush1.msra.mxu0 %v2767
  %2856 = vmatprep.subr.mxu0 0.0
  %2857 = vmatpush1.msra.mxu0 %v2770
  %2858 = vmatprep.subr.mxu0 0.0
  %2859 = vmatpush1.msra.mxu0 0.0
  %2860 = vmatprep.subr.mxu0 0.0
  %2861 = vmatpush1.msra.mxu0 0.0
  %2862 = vmatprep.subr.mxu0 0.0
  %2863 = vmatpush1.msra.mxu0 0.0
  %2864 = vmatprep.subr.mxu0 0.0
  %2865 = vmatpush1.msra.mxu0 0.0
  %2866 = vmatprep.subr.mxu0 0.0
  %2867 = vmatpush1.msra.mxu0 0.0
  %2868 = vmatprep.subr.mxu0 0.0
  %2869 = vmatpush1.msra.mxu0 0.0
  %2870 = vmatprep.subr.mxu0 0.0
  %2871 = vmatpush1.msra.mxu0 0.0
  %2872 = vmatprep.subr.mxu0 0.0
  %2873 = vmatpush1.msra.mxu0 0.0
  %2874 = vmatprep.subr.mxu0 0.0
  %2875 = vmatpush1.msra.mxu0 0.0
  %2876 = vmatprep.subr.mxu0 0.0
  %2877 = vmatpush1.msra.mxu0 0.0
  %2878 = vmatprep.subr.mxu0 0.0
  %2879 = vmatpush1.msra.mxu0 0.0
  %2880 = vmatprep.subr.mxu0 0.0
  %2881 = vmatpush1.msra.mxu0 0.0
  %2882 = vmatprep.subr.mxu0 0.0
  %2883 = vmatpush1.msra.mxu0 0.0
  %2884 = vmatprep.subr.mxu0 0.0
  %2885 = vmatpush1.msra.mxu0 0.0
  %2886 = vmatprep.subr.mxu0 0.0
  %2887 = vmatpush1.msra.mxu0 0.0
  %2888 = vmatprep.subr.mxu0 0.0
  %2889 = vmatpush1.msra.mxu0 0.0
  %2890 = vmatprep.subr.mxu0 0.0
  %2891 = vmatpush1.msra.mxu0 0.0
  %2892 = vmatprep.subr.mxu0 0.0
  %2893 = vmatpush1.msra.mxu0 0.0
  %2894 = vmatprep.subr.mxu0 0.0
  %2895 = vmatpush1.msra.mxu0 0.0
  %2896 = vmatprep.subr.mxu0 0.0
  %2897 = vmatpush1.msra.mxu0 0.0
  %2898 = vmatprep.subr.mxu0 0.0
  %2899 = vmatpush1.msra.mxu0 0.0
  %2900 = vmatprep.subr.mxu0 0.0
  %2901 = vmatpush1.msra.mxu0 0.0
  %2902 = vmatprep.subr.mxu0 0.0
  %2903 = vmatpush1.msra.mxu0 0.0
  %2904 = vmatprep.subr.mxu0 0.0
  %2905 = vmatpush1.msra.mxu0 0.0
  %2906 = vmatprep.mubr.f32.mxu0 0.0
  %2907 = vmatmul.mubr.f32.gmra.mrb[0].mxu0 %v2436
  %v2908 = vpop.f32.mrb[0].mxu0
  %v2909 = vadd.f32 0.0, %v2908
  %v2910 = vpop.f32.mrb[0].mxu0
  %2911 = vdwg.mxu0
  %2912 = vst [vmem:[#allocation7 + $0x48] sm:$0xff] %v2838
  %2913 = vst [vmem:[#allocation7 + $0x50] sm:$0xff] %v2840
  %2914 = vst [vmem:[#allocation7 + $0x58] sm:$0xff] %v2909
  %v2915 = vld [vmem:[#allocation5 + $0x60] sm:$0xff]
  %v2916 = vld [vmem:[#allocation5 + $0x68] sm:$0xff]
  %v2917 = vld [vmem:[#allocation5 + $0x70] sm:$0xff]
  %v2918 = vadd.f32 %v2915, %v2505
  %v2919 = vxor.u32 %v2918, 2147483648
  %v2920 = vmul.f32 %v2919, 1.442695
  %v2921 = vpow.pop %v2920
  %v2922 = vadd.f32 %v2921, 1.0
  %v2923 = vrcp.pop %v2922
  %v2924 = vmul.f32 1.0, %v2923
  %v2925 = vadd.f32 %v2916, %v2507
  %v2926 = vxor.u32 %v2925, 2147483648
  %v2927 = vmul.f32 %v2926, 1.442695
  %v2928 = vpow.pop %v2927
  %v2929 = vadd.f32 %v2928, 1.0
  %v2930 = vrcp.pop %v2929
  %v2931 = vmul.f32 1.0, %v2930
  %v2932 = vadd.f32 %v2576, %v733
  %v2933 = vmul.f32 %v2924, %v2932
  %v2934 = vadd.f32 %v2917, %v2933
  %v2935 = vtanh.pop %v2934
  %v2936 = vsub.f32 %v2434, %v2935
  %v2937 = vmul.f32 %v2931, %v2936
  %v2938 = vadd.f32 %v2935, %v2937
  %v2940 = vsel %vm438, %v2938, 0
  %2942 = vmatprep.subr.mxu0 %v706
  %2943 = vmatpush1.msra.mxu0 %v705
  %2944 = vmatprep.subr.mxu0 %v709
  %2945 = vmatpush1.msra.mxu0 %v708
  %2946 = vmatprep.subr.mxu0 %v712
  %2947 = vmatpush1.msra.mxu0 %v711
  %2948 = vmatprep.subr.mxu0 %v715
  %2949 = vmatpush1.msra.mxu0 %v714
  %2950 = vmatprep.subr.mxu0 %v718
  %2951 = vmatpush1.msra.mxu0 %v717
  %2952 = vmatprep.subr.mxu0 %v721
  %2953 = vmatpush1.msra.mxu0 %v720
  %2954 = vmatprep.subr.mxu0 %v724
  %2955 = vmatpush1.msra.mxu0 %v723
  %2956 = vmatprep.subr.mxu0 %v727
  %2957 = vmatpush1.msra.mxu0 %v726
  %2958 = vmatprep.subr.mxu0 0.0
  %2959 = vmatpush1.msra.mxu0 0.0
  %2960 = vmatprep.subr.mxu0 0.0
  %2961 = vmatpush1.msra.mxu0 0.0
  %2962 = vmatprep.subr.mxu0 0.0
  %2963 = vmatpush1.msra.mxu0 0.0
  %2964 = vmatprep.subr.mxu0 0.0
  %2965 = vmatpush1.msra.mxu0 0.0
  %2966 = vmatprep.subr.mxu0 0.0
  %2967 = vmatpush1.msra.mxu0 0.0
  %2968 = vmatprep.subr.mxu0 0.0
  %2969 = vmatpush1.msra.mxu0 0.0
  %2970 = vmatprep.subr.mxu0 0.0
  %2971 = vmatpush1.msra.mxu0 0.0
  %2972 = vmatprep.subr.mxu0 0.0
  %2973 = vmatpush1.msra.mxu0 0.0
  %2974 = vmatprep.subr.mxu0 0.0
  %2975 = vmatpush1.msra.mxu0 0.0
  %2976 = vmatprep.subr.mxu0 0.0
  %2977 = vmatpush1.msra.mxu0 0.0
  %2978 = vmatprep.subr.mxu0 0.0
  %2979 = vmatpush1.msra.mxu0 0.0
  %2980 = vmatprep.subr.mxu0 0.0
  %2981 = vmatpush1.msra.mxu0 0.0
  %2982 = vmatprep.subr.mxu0 0.0
  %2983 = vmatpush1.msra.mxu0 0.0
  %2984 = vmatprep.subr.mxu0 0.0
  %2985 = vmatpush1.msra.mxu0 0.0
  %2986 = vmatprep.subr.mxu0 0.0
  %2987 = vmatpush1.msra.mxu0 0.0
  %2988 = vmatprep.subr.mxu0 0.0
  %2989 = vmatpush1.msra.mxu0 0.0
  %2990 = vmatprep.subr.mxu0 0.0
  %2991 = vmatpush1.msra.mxu0 0.0
  %2992 = vmatprep.subr.mxu0 0.0
  %2993 = vmatpush1.msra.mxu0 0.0
  %2994 = vmatprep.subr.mxu0 0.0
  %2995 = vmatpush1.msra.mxu0 0.0
  %2996 = vmatprep.subr.mxu0 0.0
  %2997 = vmatpush1.msra.mxu0 0.0
  %2998 = vmatprep.subr.mxu0 0.0
  %2999 = vmatpush1.msra.mxu0 0.0
  %3000 = vmatprep.subr.mxu0 0.0
  %3001 = vmatpush1.msra.mxu0 0.0
  %3002 = vmatprep.subr.mxu0 0.0
  %3003 = vmatpush1.msra.mxu0 0.0
  %3004 = vmatprep.subr.mxu0 0.0
  %3005 = vmatpush1.msra.mxu0 0.0
  %3006 = vmatprep.mubr.f32.mxu0 0.0
  %3007 = vmatmul.mubr.f32.gmra.mrb[0].mxu0 %v2940
  %v3008 = vpop.f32.mrb[0].mxu0
  %v3009 = vadd.f32 0.0, %v3008
  %v3010 = vpop.f32.mrb[0].mxu0
  %v3011 = vadd.f32 0.0, %v3010
  %3012 = vdwg.mxu0
  %3013 = vmatprep.subr.mxu0 0.0
  %3014 = vmatpush1.msra.mxu0 %v707
  %3015 = vmatprep.subr.mxu0 0.0
  %3016 = vmatpush1.msra.mxu0 %v710
  %3017 = vmatprep.subr.mxu0 0.0
  %3018 = vmatpush1.msra.mxu0 %v713
  %3019 = vmatprep.subr.mxu0 0.0
  %3020 = vmatpush1.msra.mxu0 %v716
  %3021 = vmatprep.subr.mxu0 0.0
  %3022 = vmatpush1.msra.mxu0 %v719
  %3023 = vmatprep.subr.mxu0 0.0
  %3024 = vmatpush1.msra.mxu0 %v722
  %3025 = vmatprep.subr.mxu0 0.0
  %3026 = vmatpush1.msra.mxu0 %v725
  %3027 = vmatprep.subr.mxu0 0.0
  %3028 = vmatpush1.msra.mxu0 %v728
  %3029 = vmatprep.subr.mxu0 0.0
  %3030 = vmatpush1.msra.mxu0 0.0
  %3031 = vmatprep.subr.mxu0 0.0
  %3032 = vmatpush1.msra.mxu0 0.0
  %3033 = vmatprep.subr.mxu0 0.0
  %3034 = vmatpush1.msra.mxu0 0.0
  %3035 = vmatprep.subr.mxu0 0.0
  %3036 = vmatpush1.msra.mxu0 0.0
  %3037 = vmatprep.subr.mxu0 0.0
  %3038 = vmatpush1.msra.mxu0 0.0
  %3039 = vmatprep.subr.mxu0 0.0
  %3040 = vmatpush1.msra.mxu0 0.0
  %3041 = vmatprep.subr.mxu0 0.0
  %3042 = vmatpush1.msra.mxu0 0.0
  %3043 = vmatprep.subr.mxu0 0.0
  %3044 = vmatpush1.msra.mxu0 0.0
  %3045 = vmatprep.subr.mxu0 0.0
  %3046 = vmatpush1.msra.mxu0 0.0
  %3047 = vmatprep.subr.mxu0 0.0
  %3048 = vmatpush1.msra.mxu0 0.0
  %3049 = vmatprep.subr.mxu0 0.0
  %3050 = vmatpush1.msra.mxu0 0.0
  %3051 = vmatprep.subr.mxu0 0.0
  %3052 = vmatpush1.msra.mxu0 0.0
  %3053 = vmatprep.subr.mxu0 0.0
  %3054 = vmatpush1.msra.mxu0 0.0
  %3055 = vmatprep.subr.mxu0 0.0
  %3056 = vmatpush1.msra.mxu0 0.0
  %3057 = vmatprep.subr.mxu0 0.0
  %3058 = vmatpush1.msra.mxu0 0.0
  %3059 = vmatprep.subr.mxu0 0.0
  %3060 = vmatpush1.msra.mxu0 0.0
  %3061 = vmatprep.subr.mxu0 0.0
  %3062 = vmatpush1.msra.mxu0 0.0
  %3063 = vmatprep.subr.mxu0 0.0
  %3064 = vmatpush1.msra.mxu0 0.0
  %3065 = vmatprep.subr.mxu0 0.0
  %3066 = vmatpush1.msra.mxu0 0.0
  %3067 = vmatprep.subr.mxu0 0.0
  %3068 = vmatpush1.msra.mxu0 0.0
  %3069 = vmatprep.subr.mxu0 0.0
  %3070 = vmatpush1.msra.mxu0 0.0
  %3071 = vmatprep.subr.mxu0 0.0
  %3072 = vmatpush1.msra.mxu0 0.0
  %3073 = vmatprep.subr.mxu0 0.0
  %3074 = vmatpush1.msra.mxu0 0.0
  %3075 = vmatprep.subr.mxu0 0.0
  %3076 = vmatpush1.msra.mxu0 0.0
  %3077 = vmatprep.mubr.f32.mxu0 0.0
  %3078 = vmatmul.mubr.f32.gmra.mrb[0].mxu0 %v2940
  %v3079 = vpop.f32.mrb[0].mxu0
  %v3080 = vadd.f32 0.0, %v3079
  %v3081 = vpop.f32.mrb[0].mxu0
  %3082 = vdwg.mxu0
  %v3083 = vld [vmem:[#allocation3] sm:$0xff]
  %v3084 = vld [vmem:[#allocation3 + $0x8] sm:$0xff]
  %v3085 = vld [vmem:[#allocation3 + $0x10] sm:$0xff]
  %v3086 = vld [vmem:[#allocation3 + $0x18] sm:$0xff]
  %v3087 = vld [vmem:[#allocation3 + $0x20] sm:$0xff]
  %v3088 = vld [vmem:[#allocation3 + $0x28] sm:$0xff]
  %v3089 = vld [vmem:[#allocation3 + $0x30] sm:$0xff]
  %v3090 = vld [vmem:[#allocation3 + $0x38] sm:$0xff]
  %v3091 = vld [vmem:[#allocation3 + $0x40] sm:$0xff]
  %v3092 = vld [vmem:[#allocation3 + $0x48] sm:$0xff]
  %v3093 = vld [vmem:[#allocation3 + $0x50] sm:$0xff]
  %v3094 = vld [vmem:[#allocation3 + $0x58] sm:$0xff]
  %v3095 = vld [vmem:[#allocation3 + $0x60] sm:$0xff]
  %v3096 = vld [vmem:[#allocation3 + $0x68] sm:$0xff]
  %v3097 = vld [vmem:[#allocation3 + $0x70] sm:$0xff]
  %v3098 = vld [vmem:[#allocation3 + $0x78] sm:$0xff]
  %v3099 = vld [vmem:[#allocation3 + $0x80] sm:$0xff]
  %v3100 = vld [vmem:[#allocation3 + $0x88] sm:$0xff]
  %v3101 = vld [vmem:[#allocation3 + $0x90] sm:$0xff]
  %v3102 = vld [vmem:[#allocation3 + $0x98] sm:$0xff]
  %v3103 = vld [vmem:[#allocation3 + $0xa0] sm:$0xff]
  %v3104 = vld [vmem:[#allocation3 + $0xa8] sm:$0xff]
  %v3105 = vld [vmem:[#allocation3 + $0xb0] sm:$0xff]
  %v3106 = vld [vmem:[#allocation3 + $0xb8] sm:$0xff]
  %3107 = vmatprep.subr.mxu0 %v3084
  %3108 = vmatpush1.msra.mxu0 %v3083
  %3109 = vmatprep.subr.mxu0 %v3087
  %3110 = vmatpush1.msra.mxu0 %v3086
  %3111 = vmatprep.subr.mxu0 %v3090
  %3112 = vmatpush1.msra.mxu0 %v3089
  %3113 = vmatprep.subr.mxu0 %v3093
  %3114 = vmatpush1.msra.mxu0 %v3092
  %3115 = vmatprep.subr.mxu0 %v3096
  %3116 = vmatpush1.msra.mxu0 %v3095
  %3117 = vmatprep.subr.mxu0 %v3099
  %3118 = vmatpush1.msra.mxu0 %v3098
  %3119 = vmatprep.subr.mxu0 %v3102
  %3120 = vmatpush1.msra.mxu0 %v3101
  %3121 = vmatprep.subr.mxu0 %v3105
  %3122 = vmatpush1.msra.mxu0 %v3104
  %3123 = vmatprep.subr.mxu0 0.0
  %3124 = vmatpush1.msra.mxu0 0.0
  %3125 = vmatprep.subr.mxu0 0.0
  %3126 = vmatpush1.msra.mxu0 0.0
  %3127 = vmatprep.subr.mxu0 0.0
  %3128 = vmatpush1.msra.mxu0 0.0
  %3129 = vmatprep.subr.mxu0 0.0
  %3130 = vmatpush1.msra.mxu0 0.0
  %3131 = vmatprep.subr.mxu0 0.0
  %3132 = vmatpush1.msra.mxu0 0.0
  %3133 = vmatprep.subr.mxu0 0.0
  %3134 = vmatpush1.msra.mxu0 0.0
  %3135 = vmatprep.subr.mxu0 0.0
  %3136 = vmatpush1.msra.mxu0 0.0
  %3137 = vmatprep.subr.mxu0 0.0
  %3138 = vmatpush1.msra.mxu0 0.0
  %3139 = vmatprep.subr.mxu0 0.0
  %3140 = vmatpush1.msra.mxu0 0.0
  %3141 = vmatprep.subr.mxu0 0.0
  %3142 = vmatpush1.msra.mxu0 0.0
  %3143 = vmatprep.subr.mxu0 0.0
  %3144 = vmatpush1.msra.mxu0 0.0
  %3145 = vmatprep.subr.mxu0 0.0
  %3146 = vmatpush1.msra.mxu0 0.0
  %3147 = vmatprep.subr.mxu0 0.0
  %3148 = vmatpush1.msra.mxu0 0.0
  %3149 = vmatprep.subr.mxu0 0.0
  %3150 = vmatpush1.msra.mxu0 0.0
  %3151 = vmatprep.subr.mxu0 0.0
  %3152 = vmatpush1.msra.mxu0 0.0
  %3153 = vmatprep.subr.mxu0 0.0
  %3154 = vmatpush1.msra.mxu0 0.0
  %3155 = vmatprep.subr.mxu0 0.0
  %3156 = vmatpush1.msra.mxu0 0.0
  %3157 = vmatprep.subr.mxu0 0.0
  %3158 = vmatpush1.msra.mxu0 0.0
  %3159 = vmatprep.subr.mxu0 0.0
  %3160 = vmatpush1.msra.mxu0 0.0
  %3161 = vmatprep.subr.mxu0 0.0
  %3162 = vmatpush1.msra.mxu0 0.0
  %3163 = vmatprep.subr.mxu0 0.0
  %3164 = vmatpush1.msra.mxu0 0.0
  %3165 = vmatprep.subr.mxu0 0.0
  %3166 = vmatpush1.msra.mxu0 0.0
  %3167 = vmatprep.subr.mxu0 0.0
  %3168 = vmatpush1.msra.mxu0 0.0
  %3169 = vmatprep.subr.mxu0 0.0
  %3170 = vmatpush1.msra.mxu0 0.0
  %3171 = vmatprep.mubr.f32.mxu0 0.0
  %3172 = vmatmul.mubr.f32.gmra.mrb[0].mxu0 %v2940
  %v3173 = vpop.f32.mrb[0].mxu0
  %v3174 = vadd.f32 %v740, %v3173
  %v3175 = vpop.f32.mrb[0].mxu0
  %v3176 = vadd.f32 %v744, %v3175
  %3177 = vdwg.mxu0
  %3178 = vmatprep.subr.mxu0 0.0
  %3179 = vmatpush1.msra.mxu0 %v3085
  %3180 = vmatprep.subr.mxu0 0.0
  %3181 = vmatpush1.msra.mxu0 %v3088
  %3182 = vmatprep.subr.mxu0 0.0
  %3183 = vmatpush1.msra.mxu0 %v3091
  %3184 = vmatprep.subr.mxu0 0.0
  %3185 = vmatpush1.msra.mxu0 %v3094
  %3186 = vmatprep.subr.mxu0 0.0
  %3187 = vmatpush1.msra.mxu0 %v3097
  %3188 = vmatprep.subr.mxu0 0.0
  %3189 = vmatpush1.msra.mxu0 %v3100
  %3190 = vmatprep.subr.mxu0 0.0
  %3191 = vmatpush1.msra.mxu0 %v3103
  %3192 = vmatprep.subr.mxu0 0.0
  %3193 = vmatpush1.msra.mxu0 %v3106
  %3194 = vmatprep.subr.mxu0 0.0
  %3195 = vmatpush1.msra.mxu0 0.0
  %3196 = vmatprep.subr.mxu0 0.0
  %3197 = vmatpush1.msra.mxu0 0.0
  %3198 = vmatprep.subr.mxu0 0.0
  %3199 = vmatpush1.msra.mxu0 0.0
  %3200 = vmatprep.subr.mxu0 0.0
  %3201 = vmatpush1.msra.mxu0 0.0
  %3202 = vmatprep.subr.mxu0 0.0
  %3203 = vmatpush1.msra.mxu0 0.0
  %3204 = vmatprep.subr.mxu0 0.0
  %3205 = vmatpush1.msra.mxu0 0.0
  %3206 = vmatprep.subr.mxu0 0.0
  %3207 = vmatpush1.msra.mxu0 0.0
  %3208 = vmatprep.subr.mxu0 0.0
  %3209 = vmatpush1.msra.mxu0 0.0
  %3210 = vmatprep.subr.mxu0 0.0
  %3211 = vmatpush1.msra.mxu0 0.0
  %3212 = vmatprep.subr.mxu0 0.0
  %3213 = vmatpush1.msra.mxu0 0.0
  %3214 = vmatprep.subr.mxu0 0.0
  %3215 = vmatpush1.msra.mxu0 0.0
  %3216 = vmatprep.subr.mxu0 0.0
  %3217 = vmatpush1.msra.mxu0 0.0
  %3218 = vmatprep.subr.mxu0 0.0
  %3219 = vmatpush1.msra.mxu0 0.0
  %3220 = vmatprep.subr.mxu0 0.0
  %3221 = vmatpush1.msra.mxu0 0.0
  %3222 = vmatprep.subr.mxu0 0.0
  %3223 = vmatpush1.msra.mxu0 0.0
  %3224 = vmatprep.subr.mxu0 0.0
  %3225 = vmatpush1.msra.mxu0 0.0
  %3226 = vmatprep.subr.mxu0 0.0
  %3227 = vmatpush1.msra.mxu0 0.0
  %3228 = vmatprep.subr.mxu0 0.0
  %3229 = vmatpush1.msra.mxu0 0.0
  %3230 = vmatprep.subr.mxu0 0.0
  %3231 = vmatpush1.msra.mxu0 0.0
  %3232 = vmatprep.subr.mxu0 0.0
  %3233 = vmatpush1.msra.mxu0 0.0
  %3234 = vmatprep.subr.mxu0 0.0
  %3235 = vmatpush1.msra.mxu0 0.0
  %3236 = vmatprep.subr.mxu0 0.0
  %3237 = vmatpush1.msra.mxu0 0.0
  %3238 = vmatprep.subr.mxu0 0.0
  %3239 = vmatpush1.msra.mxu0 0.0
  %3240 = vmatprep.subr.mxu0 0.0
  %3241 = vmatpush1.msra.mxu0 0.0
  %3242 = vmatprep.mubr.f32.mxu0 0.0
  %3243 = vmatmul.mubr.f32.gmra.mrb[0].mxu0 %v2940
  %v3244 = vpop.f32.mrb[0].mxu0
  %v3245 = vadd.f32 %v748, %v3244
  %v3246 = vpop.f32.mrb[0].mxu0
  %3247 = vdwg.mxu0
  %3248 = vst [vmem:[#allocation6 + $0x60] sm:$0xff] %v3174
  %3249 = vst [vmem:[#allocation6 + $0x68] sm:$0xff] %v3176
  %3250 = vst [vmem:[#allocation6 + $0x70] sm:$0xff] %v3245
  %v3251 = vld [vmem:[#allocation3 + $0xc0] sm:$0xff]
  %v3252 = vld [vmem:[#allocation3 + $0xc8] sm:$0xff]
  %v3253 = vld [vmem:[#allocation3 + $0xd0] sm:$0xff]
  %v3254 = vld [vmem:[#allocation3 + $0xd8] sm:$0xff]
  %v3255 = vld [vmem:[#allocation3 + $0xe0] sm:$0xff]
  %v3256 = vld [vmem:[#allocation3 + $0xe8] sm:$0xff]
  %v3257 = vld [vmem:[#allocation3 + $0xf0] sm:$0xff]
  %v3258 = vld [vmem:[#allocation3 + $0xf8] sm:$0xff]
  %v3259 = vld [vmem:[#allocation3 + $0x100] sm:$0xff]
  %v3260 = vld [vmem:[#allocation3 + $0x108] sm:$0xff]
  %v3261 = vld [vmem:[#allocation3 + $0x110] sm:$0xff]
  %v3262 = vld [vmem:[#allocation3 + $0x118] sm:$0xff]
  %v3263 = vld [vmem:[#allocation3 + $0x120] sm:$0xff]
  %v3264 = vld [vmem:[#allocation3 + $0x128] sm:$0xff]
  %v3265 = vld [vmem:[#allocation3 + $0x130] sm:$0xff]
  %v3266 = vld [vmem:[#allocation3 + $0x138] sm:$0xff]
  %v3267 = vld [vmem:[#allocation3 + $0x140] sm:$0xff]
  %v3268 = vld [vmem:[#allocation3 + $0x148] sm:$0xff]
  %v3269 = vld [vmem:[#allocation3 + $0x150] sm:$0xff]
  %v3270 = vld [vmem:[#allocation3 + $0x158] sm:$0xff]
  %v3271 = vld [vmem:[#allocation3 + $0x160] sm:$0xff]
  %v3272 = vld [vmem:[#allocation3 + $0x168] sm:$0xff]
  %v3273 = vld [vmem:[#allocation3 + $0x170] sm:$0xff]
  %v3274 = vld [vmem:[#allocation3 + $0x178] sm:$0xff]
  %3275 = vmatprep.subr.mxu0 %v3252
  %3276 = vmatpush1.msra.mxu0 %v3251
  %3277 = vmatprep.subr.mxu0 %v3255
  %3278 = vmatpush1.msra.mxu0 %v3254
  %3279 = vmatprep.subr.mxu0 %v3258
  %3280 = vmatpush1.msra.mxu0 %v3257
  %3281 = vmatprep.subr.mxu0 %v3261
  %3282 = vmatpush1.msra.mxu0 %v3260
  %3283 = vmatprep.subr.mxu0 %v3264
  %3284 = vmatpush1.msra.mxu0 %v3263
  %3285 = vmatprep.subr.mxu0 %v3267
  %3286 = vmatpush1.msra.mxu0 %v3266
  %3287 = vmatprep.subr.mxu0 %v3270
  %3288 = vmatpush1.msra.mxu0 %v3269
  %3289 = vmatprep.subr.mxu0 %v3273
  %3290 = vmatpush1.msra.mxu0 %v3272
  %3291 = vmatprep.subr.mxu0 0.0
  %3292 = vmatpush1.msra.mxu0 0.0
  %3293 = vmatprep.subr.mxu0 0.0
  %3294 = vmatpush1.msra.mxu0 0.0
  %3295 = vmatprep.subr.mxu0 0.0
  %3296 = vmatpush1.msra.mxu0 0.0
  %3297 = vmatprep.subr.mxu0 0.0
  %3298 = vmatpush1.msra.mxu0 0.0
  %3299 = vmatprep.subr.mxu0 0.0
  %3300 = vmatpush1.msra.mxu0 0.0
  %3301 = vmatprep.subr.mxu0 0.0
  %3302 = vmatpush1.msra.mxu0 0.0
  %3303 = vmatprep.subr.mxu0 0.0
  %3304 = vmatpush1.msra.mxu0 0.0
  %3305 = vmatprep.subr.mxu0 0.0
  %3306 = vmatpush1.msra.mxu0 0.0
  %3307 = vmatprep.subr.mxu0 0.0
  %3308 = vmatpush1.msra.mxu0 0.0
  %3309 = vmatprep.subr.mxu0 0.0
  %3310 = vmatpush1.msra.mxu0 0.0
  %3311 = vmatprep.subr.mxu0 0.0
  %3312 = vmatpush1.msra.mxu0 0.0
  %3313 = vmatprep.subr.mxu0 0.0
  %3314 = vmatpush1.msra.mxu0 0.0
  %3315 = vmatprep.subr.mxu0 0.0
  %3316 = vmatpush1.msra.mxu0 0.0
  %3317 = vmatprep.subr.mxu0 0.0
  %3318 = vmatpush1.msra.mxu0 0.0
  %3319 = vmatprep.subr.mxu0 0.0
  %3320 = vmatpush1.msra.mxu0 0.0
  %3321 = vmatprep.subr.mxu0 0.0
  %3322 = vmatpush1.msra.mxu0 0.0
  %3323 = vmatprep.subr.mxu0 0.0
  %3324 = vmatpush1.msra.mxu0 0.0
  %3325 = vmatprep.subr.mxu0 0.0
  %3326 = vmatpush1.msra.mxu0 0.0
  %3327 = vmatprep.subr.mxu0 0.0
  %3328 = vmatpush1.msra.mxu0 0.0
  %3329 = vmatprep.subr.mxu0 0.0
  %3330 = vmatpush1.msra.mxu0 0.0
  %3331 = vmatprep.subr.mxu0 0.0
  %3332 = vmatpush1.msra.mxu0 0.0
  %3333 = vmatprep.subr.mxu0 0.0
  %3334 = vmatpush1.msra.mxu0 0.0
  %3335 = vmatprep.subr.mxu0 0.0
  %3336 = vmatpush1.msra.mxu0 0.0
  %3337 = vmatprep.subr.mxu0 0.0
  %3338 = vmatpush1.msra.mxu0 0.0
  %3339 = vmatprep.mubr.f32.mxu0 0.0
  %3340 = vmatmul.mubr.f32.gmra.mrb[0].mxu0 %v2940
  %v3341 = vpop.f32.mrb[0].mxu0
  %v3342 = vadd.f32 0.0, %v3341
  %v3343 = vpop.f32.mrb[0].mxu0
  %v3344 = vadd.f32 0.0, %v3343
  %3345 = vdwg.mxu0
  %3346 = vmatprep.subr.mxu0 0.0
  %3347 = vmatpush1.msra.mxu0 %v3253
  %3348 = vmatprep.subr.mxu0 0.0
  %3349 = vmatpush1.msra.mxu0 %v3256
  %3350 = vmatprep.subr.mxu0 0.0
  %3351 = vmatpush1.msra.mxu0 %v3259
  %3352 = vmatprep.subr.mxu0 0.0
  %3353 = vmatpush1.msra.mxu0 %v3262
  %3354 = vmatprep.subr.mxu0 0.0
  %3355 = vmatpush1.msra.mxu0 %v3265
  %3356 = vmatprep.subr.mxu0 0.0
  %3357 = vmatpush1.msra.mxu0 %v3268
  %3358 = vmatprep.subr.mxu0 0.0
  %3359 = vmatpush1.msra.mxu0 %v3271
  %3360 = vmatprep.subr.mxu0 0.0
  %3361 = vmatpush1.msra.mxu0 %v3274
  %3362 = vmatprep.subr.mxu0 0.0
  %3363 = vmatpush1.msra.mxu0 0.0
  %3364 = vmatprep.subr.mxu0 0.0
  %3365 = vmatpush1.msra.mxu0 0.0
  %3366 = vmatprep.subr.mxu0 0.0
  %3367 = vmatpush1.msra.mxu0 0.0
  %3368 = vmatprep.subr.mxu0 0.0
  %3369 = vmatpush1.msra.mxu0 0.0
  %3370 = vmatprep.subr.mxu0 0.0
  %3371 = vmatpush1.msra.mxu0 0.0
  %3372 = vmatprep.subr.mxu0 0.0
  %3373 = vmatpush1.msra.mxu0 0.0
  %3374 = vmatprep.subr.mxu0 0.0
  %3375 = vmatpush1.msra.mxu0 0.0
  %3376 = vmatprep.subr.mxu0 0.0
  %3377 = vmatpush1.msra.mxu0 0.0
  %3378 = vmatprep.subr.mxu0 0.0
  %3379 = vmatpush1.msra.mxu0 0.0
  %3380 = vmatprep.subr.mxu0 0.0
  %3381 = vmatpush1.msra.mxu0 0.0
  %3382 = vmatprep.subr.mxu0 0.0
  %3383 = vmatpush1.msra.mxu0 0.0
  %3384 = vmatprep.subr.mxu0 0.0
  %3385 = vmatpush1.msra.mxu0 0.0
  %3386 = vmatprep.subr.mxu0 0.0
  %3387 = vmatpush1.msra.mxu0 0.0
  %3388 = vmatprep.subr.mxu0 0.0
  %3389 = vmatpush1.msra.mxu0 0.0
  %3390 = vmatprep.subr.mxu0 0.0
  %3391 = vmatpush1.msra.mxu0 0.0
  %3392 = vmatprep.subr.mxu0 0.0
  %3393 = vmatpush1.msra.mxu0 0.0
  %3394 = vmatprep.subr.mxu0 0.0
  %3395 = vmatpush1.msra.mxu0 0.0
  %3396 = vmatprep.subr.mxu0 0.0
  %3397 = vmatpush1.msra.mxu0 0.0
  %3398 = vmatprep.subr.mxu0 0.0
  %3399 = vmatpush1.msra.mxu0 0.0
  %3400 = vmatprep.subr.mxu0 0.0
  %3401 = vmatpush1.msra.mxu0 0.0
  %3402 = vmatprep.subr.mxu0 0.0
  %3403 = vmatpush1.msra.mxu0 0.0
  %3404 = vmatprep.subr.mxu0 0.0
  %3405 = vmatpush1.msra.mxu0 0.0
  %3406 = vmatprep.subr.mxu0 0.0
  %3407 = vmatpush1.msra.mxu0 0.0
  %3408 = vmatprep.subr.mxu0 0.0
  %3409 = vmatpush1.msra.mxu0 0.0
  %3410 = vmatprep.mubr.f32.mxu0 0.0
  %3411 = vmatmul.mubr.f32.gmra.mrb[0].mxu0 %v2940
  %v3412 = vpop.f32.mrb[0].mxu0
  %v3413 = vadd.f32 0.0, %v3412
  %v3414 = vpop.f32.mrb[0].mxu0
  %3415 = vdwg.mxu0
  %3416 = vst [vmem:[#allocation7 + $0x60] sm:$0xff] %v3342
  %3417 = vst [vmem:[#allocation7 + $0x68] sm:$0xff] %v3344
  %3418 = vst [vmem:[#allocation7 + $0x70] sm:$0xff] %v3413
  %v3419 = vld [vmem:[#allocation5 + $0x78] sm:$0xff]
  %v3420 = vld [vmem:[#allocation5 + $0x80] sm:$0xff]
  %v3421 = vld [vmem:[#allocation5 + $0x88] sm:$0xff]
  %v3422 = vadd.f32 %v3419, %v3009
  %v3423 = vxor.u32 %v3422, 2147483648
  %v3424 = vmul.f32 %v3423, 1.442695
  %v3425 = vpow.pop %v3424
  %v3426 = vadd.f32 %v3425, 1.0
  %v3427 = vrcp.pop %v3426
  %v3428 = vmul.f32 1.0, %v3427
  %v3429 = vadd.f32 %v3420, %v3011
  %v3430 = vxor.u32 %v3429, 2147483648
  %v3431 = vmul.f32 %v3430, 1.442695
  %v3432 = vpow.pop %v3431
  %v3433 = vadd.f32 %v3432, 1.0
  %v3434 = vrcp.pop %v3433
  %v3435 = vmul.f32 1.0, %v3434
  %v3436 = vadd.f32 %v3080, %v733
  %v3437 = vmul.f32 %v3428, %v3436
  %v3438 = vadd.f32 %v3421, %v3437
  %v3439 = vtanh.pop %v3438
  %v3440 = vsub.f32 %v2938, %v3439
  %v3441 = vmul.f32 %v3435, %v3440
  %v3442 = vadd.f32 %v3439, %v3441
  %v3444 = vsel %vm438, %v3442, 0
  %3446 = vmatprep.subr.mxu0 %v706
  %3447 = vmatpush1.msra.mxu0 %v705
  %3448 = vmatprep.subr.mxu0 %v709
  %3449 = vmatpush1.msra.mxu0 %v708
  %3450 = vmatprep.subr.mxu0 %v712
  %3451 = vmatpush1.msra.mxu0 %v711
  %3452 = vmatprep.subr.mxu0 %v715
  %3453 = vmatpush1.msra.mxu0 %v714
  %3454 = vmatprep.subr.mxu0 %v718
  %3455 = vmatpush1.msra.mxu0 %v717
  %3456 = vmatprep.subr.mxu0 %v721
  %3457 = vmatpush1.msra.mxu0 %v720
  %3458 = vmatprep.subr.mxu0 %v724
  %3459 = vmatpush1.msra.mxu0 %v723
  %3460 = vmatprep.subr.mxu0 %v727
  %3461 = vmatpush1.msra.mxu0 %v726
  %3462 = vmatprep.subr.mxu0 0.0
  %3463 = vmatpush1.msra.mxu0 0.0
  %3464 = vmatprep.subr.mxu0 0.0
  %3465 = vmatpush1.msra.mxu0 0.0
  %3466 = vmatprep.subr.mxu0 0.0
  %3467 = vmatpush1.msra.mxu0 0.0
  %3468 = vmatprep.subr.mxu0 0.0
  %3469 = vmatpush1.msra.mxu0 0.0
  %3470 = vmatprep.subr.mxu0 0.0
  %3471 = vmatpush1.msra.mxu0 0.0
  %3472 = vmatprep.subr.mxu0 0.0
  %3473 = vmatpush1.msra.mxu0 0.0
  %3474 = vmatprep.subr.mxu0 0.0
  %3475 = vmatpush1.msra.mxu0 0.0
  %3476 = vmatprep.subr.mxu0 0.0
  %3477 = vmatpush1.msra.mxu0 0.0
  %3478 = vmatprep.subr.mxu0 0.0
  %3479 = vmatpush1.msra.mxu0 0.0
  %3480 = vmatprep.subr.mxu0 0.0
  %3481 = vmatpush1.msra.mxu0 0.0
  %3482 = vmatprep.subr.mxu0 0.0
  %3483 = vmatpush1.msra.mxu0 0.0
  %3484 = vmatprep.subr.mxu0 0.0
  %3485 = vmatpush1.msra.mxu0 0.0
  %3486 = vmatprep.subr.mxu0 0.0
  %3487 = vmatpush1.msra.mxu0 0.0
  %3488 = vmatprep.subr.mxu0 0.0
  %3489 = vmatpush1.msra.mxu0 0.0
  %3490 = vmatprep.subr.mxu0 0.0
  %3491 = vmatpush1.msra.mxu0 0.0
  %3492 = vmatprep.subr.mxu0 0.0
  %3493 = vmatpush1.msra.mxu0 0.0
  %3494 = vmatprep.subr.mxu0 0.0
  %3495 = vmatpush1.msra.mxu0 0.0
  %3496 = vmatprep.subr.mxu0 0.0
  %3497 = vmatpush1.msra.mxu0 0.0
  %3498 = vmatprep.subr.mxu0 0.0
  %3499 = vmatpush1.msra.mxu0 0.0
  %3500 = vmatprep.subr.mxu0 0.0
  %3501 = vmatpush1.msra.mxu0 0.0
  %3502 = vmatprep.subr.mxu0 0.0
  %3503 = vmatpush1.msra.mxu0 0.0
  %3504 = vmatprep.subr.mxu0 0.0
  %3505 = vmatpush1.msra.mxu0 0.0
  %3506 = vmatprep.subr.mxu0 0.0
  %3507 = vmatpush1.msra.mxu0 0.0
  %3508 = vmatprep.subr.mxu0 0.0
  %3509 = vmatpush1.msra.mxu0 0.0
  %3510 = vmatprep.mubr.f32.mxu0 0.0
  %3511 = vmatmul.mubr.f32.gmra.mrb[0].mxu0 %v3444
  %v3512 = vpop.f32.mrb[0].mxu0
  %v3513 = vadd.f32 0.0, %v3512
  %v3514 = vpop.f32.mrb[0].mxu0
  %v3515 = vadd.f32 0.0, %v3514
  %3516 = vdwg.mxu0
  %3517 = vmatprep.subr.mxu0 0.0
  %3518 = vmatpush1.msra.mxu0 %v707
  %3519 = vmatprep.subr.mxu0 0.0
  %3520 = vmatpush1.msra.mxu0 %v710
  %3521 = vmatprep.subr.mxu0 0.0
  %3522 = vmatpush1.msra.mxu0 %v713
  %3523 = vmatprep.subr.mxu0 0.0
  %3524 = vmatpush1.msra.mxu0 %v716
  %3525 = vmatprep.subr.mxu0 0.0
  %3526 = vmatpush1.msra.mxu0 %v719
  %3527 = vmatprep.subr.mxu0 0.0
  %3528 = vmatpush1.msra.mxu0 %v722
  %3529 = vmatprep.subr.mxu0 0.0
  %3530 = vmatpush1.msra.mxu0 %v725
  %3531 = vmatprep.subr.mxu0 0.0
  %3532 = vmatpush1.msra.mxu0 %v728
  %3533 = vmatprep.subr.mxu0 0.0
  %3534 = vmatpush1.msra.mxu0 0.0
  %3535 = vmatprep.subr.mxu0 0.0
  %3536 = vmatpush1.msra.mxu0 0.0
  %3537 = vmatprep.subr.mxu0 0.0
  %3538 = vmatpush1.msra.mxu0 0.0
  %3539 = vmatprep.subr.mxu0 0.0
  %3540 = vmatpush1.msra.mxu0 0.0
  %3541 = vmatprep.subr.mxu0 0.0
  %3542 = vmatpush1.msra.mxu0 0.0
  %3543 = vmatprep.subr.mxu0 0.0
  %3544 = vmatpush1.msra.mxu0 0.0
  %3545 = vmatprep.subr.mxu0 0.0
  %3546 = vmatpush1.msra.mxu0 0.0
  %3547 = vmatprep.subr.mxu0 0.0
  %3548 = vmatpush1.msra.mxu0 0.0
  %3549 = vmatprep.subr.mxu0 0.0
  %3550 = vmatpush1.msra.mxu0 0.0
  %3551 = vmatprep.subr.mxu0 0.0
  %3552 = vmatpush1.msra.mxu0 0.0
  %3553 = vmatprep.subr.mxu0 0.0
  %3554 = vmatpush1.msra.mxu0 0.0
  %3555 = vmatprep.subr.mxu0 0.0
  %3556 = vmatpush1.msra.mxu0 0.0
  %3557 = vmatprep.subr.mxu0 0.0
  %3558 = vmatpush1.msra.mxu0 0.0
  %3559 = vmatprep.subr.mxu0 0.0
  %3560 = vmatpush1.msra.mxu0 0.0
  %3561 = vmatprep.subr.mxu0 0.0
  %3562 = vmatpush1.msra.mxu0 0.0
  %3563 = vmatprep.subr.mxu0 0.0
  %3564 = vmatpush1.msra.mxu0 0.0
  %3565 = vmatprep.subr.mxu0 0.0
  %3566 = vmatpush1.msra.mxu0 0.0
  %3567 = vmatprep.subr.mxu0 0.0
  %3568 = vmatpush1.msra.mxu0 0.0
  %3569 = vmatprep.subr.mxu0 0.0
  %3570 = vmatpush1.msra.mxu0 0.0
  %3571 = vmatprep.subr.mxu0 0.0
  %3572 = vmatpush1.msra.mxu0 0.0
  %3573 = vmatprep.subr.mxu0 0.0
  %3574 = vmatpush1.msra.mxu0 0.0
  %3575 = vmatprep.subr.mxu0 0.0
  %3576 = vmatpush1.msra.mxu0 0.0
  %3577 = vmatprep.subr.mxu0 0.0
  %3578 = vmatpush1.msra.mxu0 0.0
  %3579 = vmatprep.subr.mxu0 0.0
  %3580 = vmatpush1.msra.mxu0 0.0
  %3581 = vmatprep.mubr.f32.mxu0 0.0
  %3582 = vmatmul.mubr.f32.gmra.mrb[0].mxu0 %v3444
  %v3583 = vpop.f32.mrb[0].mxu0
  %v3584 = vadd.f32 0.0, %v3583
  %v3585 = vpop.f32.mrb[0].mxu0
  %3586 = vdwg.mxu0
  %v3587 = vld [vmem:[#allocation3] sm:$0xff]
  %v3588 = vld [vmem:[#allocation3 + $0x8] sm:$0xff]
  %v3589 = vld [vmem:[#allocation3 + $0x10] sm:$0xff]
  %v3590 = vld [vmem:[#allocation3 + $0x18] sm:$0xff]
  %v3591 = vld [vmem:[#allocation3 + $0x20] sm:$0xff]
  %v3592 = vld [vmem:[#allocation3 + $0x28] sm:$0xff]
  %v3593 = vld [vmem:[#allocation3 + $0x30] sm:$0xff]
  %v3594 = vld [vmem:[#allocation3 + $0x38] sm:$0xff]
  %v3595 = vld [vmem:[#allocation3 + $0x40] sm:$0xff]
  %v3596 = vld [vmem:[#allocation3 + $0x48] sm:$0xff]
  %v3597 = vld [vmem:[#allocation3 + $0x50] sm:$0xff]
  %v3598 = vld [vmem:[#allocation3 + $0x58] sm:$0xff]
  %v3599 = vld [vmem:[#allocation3 + $0x60] sm:$0xff]
  %v3600 = vld [vmem:[#allocation3 + $0x68] sm:$0xff]
  %v3601 = vld [vmem:[#allocation3 + $0x70] sm:$0xff]
  %v3602 = vld [vmem:[#allocation3 + $0x78] sm:$0xff]
  %v3603 = vld [vmem:[#allocation3 + $0x80] sm:$0xff]
  %v3604 = vld [vmem:[#allocation3 + $0x88] sm:$0xff]
  %v3605 = vld [vmem:[#allocation3 + $0x90] sm:$0xff]
  %v3606 = vld [vmem:[#allocation3 + $0x98] sm:$0xff]
  %v3607 = vld [vmem:[#allocation3 + $0xa0] sm:$0xff]
  %v3608 = vld [vmem:[#allocation3 + $0xa8] sm:$0xff]
  %v3609 = vld [vmem:[#allocation3 + $0xb0] sm:$0xff]
  %v3610 = vld [vmem:[#allocation3 + $0xb8] sm:$0xff]
  %3611 = vmatprep.subr.mxu0 %v3588
  %3612 = vmatpush1.msra.mxu0 %v3587
  %3613 = vmatprep.subr.mxu0 %v3591
  %3614 = vmatpush1.msra.mxu0 %v3590
  %3615 = vmatprep.subr.mxu0 %v3594
  %3616 = vmatpush1.msra.mxu0 %v3593
  %3617 = vmatprep.subr.mxu0 %v3597
  %3618 = vmatpush1.msra.mxu0 %v3596
  %3619 = vmatprep.subr.mxu0 %v3600
  %3620 = vmatpush1.msra.mxu0 %v3599
  %3621 = vmatprep.subr.mxu0 %v3603
  %3622 = vmatpush1.msra.mxu0 %v3602
  %3623 = vmatprep.subr.mxu0 %v3606
  %3624 = vmatpush1.msra.mxu0 %v3605
  %3625 = vmatprep.subr.mxu0 %v3609
  %3626 = vmatpush1.msra.mxu0 %v3608
  %3627 = vmatprep.subr.mxu0 0.0
  %3628 = vmatpush1.msra.mxu0 0.0
  %3629 = vmatprep.subr.mxu0 0.0
  %3630 = vmatpush1.msra.mxu0 0.0
  %3631 = vmatprep.subr.mxu0 0.0
  %3632 = vmatpush1.msra.mxu0 0.0
  %3633 = vmatprep.subr.mxu0 0.0
  %3634 = vmatpush1.msra.mxu0 0.0
  %3635 = vmatprep.subr.mxu0 0.0
  %3636 = vmatpush1.msra.mxu0 0.0
  %3637 = vmatprep.subr.mxu0 0.0
  %3638 = vmatpush1.msra.mxu0 0.0
  %3639 = vmatprep.subr.mxu0 0.0
  %3640 = vmatpush1.msra.mxu0 0.0
  %3641 = vmatprep.subr.mxu0 0.0
  %3642 = vmatpush1.msra.mxu0 0.0
  %3643 = vmatprep.subr.mxu0 0.0
  %3644 = vmatpush1.msra.mxu0 0.0
  %3645 = vmatprep.subr.mxu0 0.0
  %3646 = vmatpush1.msra.mxu0 0.0
  %3647 = vmatprep.subr.mxu0 0.0
  %3648 = vmatpush1.msra.mxu0 0.0
  %3649 = vmatprep.subr.mxu0 0.0
  %3650 = vmatpush1.msra.mxu0 0.0
  %3651 = vmatprep.subr.mxu0 0.0
  %3652 = vmatpush1.msra.mxu0 0.0
  %3653 = vmatprep.subr.mxu0 0.0
  %3654 = vmatpush1.msra.mxu0 0.0
  %3655 = vmatprep.subr.mxu0 0.0
  %3656 = vmatpush1.msra.mxu0 0.0
  %3657 = vmatprep.subr.mxu0 0.0
  %3658 = vmatpush1.msra.mxu0 0.0
  %3659 = vmatprep.subr.mxu0 0.0
  %3660 = vmatpush1.msra.mxu0 0.0
  %3661 = vmatprep.subr.mxu0 0.0
  %3662 = vmatpush1.msra.mxu0 0.0
  %3663 = vmatprep.subr.mxu0 0.0
  %3664 = vmatpush1.msra.mxu0 0.0
  %3665 = vmatprep.subr.mxu0 0.0
  %3666 = vmatpush1.msra.mxu0 0.0
  %3667 = vmatprep.subr.mxu0 0.0
  %3668 = vmatpush1.msra.mxu0 0.0
  %3669 = vmatprep.subr.mxu0 0.0
  %3670 = vmatpush1.msra.mxu0 0.0
  %3671 = vmatprep.subr.mxu0 0.0
  %3672 = vmatpush1.msra.mxu0 0.0
  %3673 = vmatprep.subr.mxu0 0.0
  %3674 = vmatpush1.msra.mxu0 0.0
  %3675 = vmatprep.mubr.f32.mxu0 0.0
  %3676 = vmatmul.mubr.f32.gmra.mrb[0].mxu0 %v3444
  %v3677 = vpop.f32.mrb[0].mxu0
  %v3678 = vadd.f32 %v740, %v3677
  %v3679 = vpop.f32.mrb[0].mxu0
  %v3680 = vadd.f32 %v744, %v3679
  %3681 = vdwg.mxu0
  %3682 = vmatprep.subr.mxu0 0.0
  %3683 = vmatpush1.msra.mxu0 %v3589
  %3684 = vmatprep.subr.mxu0 0.0
  %3685 = vmatpush1.msra.mxu0 %v3592
  %3686 = vmatprep.subr.mxu0 0.0
  %3687 = vmatpush1.msra.mxu0 %v3595
  %3688 = vmatprep.subr.mxu0 0.0
  %3689 = vmatpush1.msra.mxu0 %v3598
  %3690 = vmatprep.subr.mxu0 0.0
  %3691 = vmatpush1.msra.mxu0 %v3601
  %3692 = vmatprep.subr.mxu0 0.0
  %3693 = vmatpush1.msra.mxu0 %v3604
  %3694 = vmatprep.subr.mxu0 0.0
  %3695 = vmatpush1.msra.mxu0 %v3607
  %3696 = vmatprep.subr.mxu0 0.0
  %3697 = vmatpush1.msra.mxu0 %v3610
  %3698 = vmatprep.subr.mxu0 0.0
  %3699 = vmatpush1.msra.mxu0 0.0
  %3700 = vmatprep.subr.mxu0 0.0
  %3701 = vmatpush1.msra.mxu0 0.0
  %3702 = vmatprep.subr.mxu0 0.0
  %3703 = vmatpush1.msra.mxu0 0.0
  %3704 = vmatprep.subr.mxu0 0.0
  %3705 = vmatpush1.msra.mxu0 0.0
  %3706 = vmatprep.subr.mxu0 0.0
  %3707 = vmatpush1.msra.mxu0 0.0
  %3708 = vmatprep.subr.mxu0 0.0
  %3709 = vmatpush1.msra.mxu0 0.0
  %3710 = vmatprep.subr.mxu0 0.0
  %3711 = vmatpush1.msra.mxu0 0.0
  %3712 = vmatprep.subr.mxu0 0.0
  %3713 = vmatpush1.msra.mxu0 0.0
  %3714 = vmatprep.subr.mxu0 0.0
  %3715 = vmatpush1.msra.mxu0 0.0
  %3716 = vmatprep.subr.mxu0 0.0
  %3717 = vmatpush1.msra.mxu0 0.0
  %3718 = vmatprep.subr.mxu0 0.0
  %3719 = vmatpush1.msra.mxu0 0.0
  %3720 = vmatprep.subr.mxu0 0.0
  %3721 = vmatpush1.msra.mxu0 0.0
  %3722 = vmatprep.subr.mxu0 0.0
  %3723 = vmatpush1.msra.mxu0 0.0
  %3724 = vmatprep.subr.mxu0 0.0
  %3725 = vmatpush1.msra.mxu0 0.0
  %3726 = vmatprep.subr.mxu0 0.0
  %3727 = vmatpush1.msra.mxu0 0.0
  %3728 = vmatprep.subr.mxu0 0.0
  %3729 = vmatpush1.msra.mxu0 0.0
  %3730 = vmatprep.subr.mxu0 0.0
  %3731 = vmatpush1.msra.mxu0 0.0
  %3732 = vmatprep.subr.mxu0 0.0
  %3733 = vmatpush1.msra.mxu0 0.0
  %3734 = vmatprep.subr.mxu0 0.0
  %3735 = vmatpush1.msra.mxu0 0.0
  %3736 = vmatprep.subr.mxu0 0.0
  %3737 = vmatpush1.msra.mxu0 0.0
  %3738 = vmatprep.subr.mxu0 0.0
  %3739 = vmatpush1.msra.mxu0 0.0
  %3740 = vmatprep.subr.mxu0 0.0
  %3741 = vmatpush1.msra.mxu0 0.0
  %3742 = vmatprep.subr.mxu0 0.0
  %3743 = vmatpush1.msra.mxu0 0.0
  %3744 = vmatprep.subr.mxu0 0.0
  %3745 = vmatpush1.msra.mxu0 0.0
  %3746 = vmatprep.mubr.f32.mxu0 0.0
  %3747 = vmatmul.mubr.f32.gmra.mrb[0].mxu0 %v3444
  %v3748 = vpop.f32.mrb[0].mxu0
  %v3749 = vadd.f32 %v748, %v3748
  %v3750 = vpop.f32.mrb[0].mxu0
  %3751 = vdwg.mxu0
  %3752 = vst [vmem:[#allocation6 + $0x78] sm:$0xff] %v3678
  %3753 = vst [vmem:[#allocation6 + $0x80] sm:$0xff] %v3680
  %3754 = vst [vmem:[#allocation6 + $0x88] sm:$0xff] %v3749
  %v3755 = vld [vmem:[#allocation3 + $0xc0] sm:$0xff]
  %v3756 = vld [vmem:[#allocation3 + $0xc8] sm:$0xff]
  %v3757 = vld [vmem:[#allocation3 + $0xd0] sm:$0xff]
  %v3758 = vld [vmem:[#allocation3 + $0xd8] sm:$0xff]
  %v3759 = vld [vmem:[#allocation3 + $0xe0] sm:$0xff]
  %v3760 = vld [vmem:[#allocation3 + $0xe8] sm:$0xff]
  %v3761 = vld [vmem:[#allocation3 + $0xf0] sm:$0xff]
  %v3762 = vld [vmem:[#allocation3 + $0xf8] sm:$0xff]
  %v3763 = vld [vmem:[#allocation3 + $0x100] sm:$0xff]
  %v3764 = vld [vmem:[#allocation3 + $0x108] sm:$0xff]
  %v3765 = vld [vmem:[#allocation3 + $0x110] sm:$0xff]
  %v3766 = vld [vmem:[#allocation3 + $0x118] sm:$0xff]
  %v3767 = vld [vmem:[#allocation3 + $0x120] sm:$0xff]
  %v3768 = vld [vmem:[#allocation3 + $0x128] sm:$0xff]
  %v3769 = vld [vmem:[#allocation3 + $0x130] sm:$0xff]
  %v3770 = vld [vmem:[#allocation3 + $0x138] sm:$0xff]
  %v3771 = vld [vmem:[#allocation3 + $0x140] sm:$0xff]
  %v3772 = vld [vmem:[#allocation3 + $0x148] sm:$0xff]
  %v3773 = vld [vmem:[#allocation3 + $0x150] sm:$0xff]
  %v3774 = vld [vmem:[#allocation3 + $0x158] sm:$0xff]
  %v3775 = vld [vmem:[#allocation3 + $0x160] sm:$0xff]
  %v3776 = vld [vmem:[#allocation3 + $0x168] sm:$0xff]
  %v3777 = vld [vmem:[#allocation3 + $0x170] sm:$0xff]
  %v3778 = vld [vmem:[#allocation3 + $0x178] sm:$0xff]
  %3779 = vmatprep.subr.mxu0 %v3756
  %3780 = vmatpush1.msra.mxu0 %v3755
  %3781 = vmatprep.subr.mxu0 %v3759
  %3782 = vmatpush1.msra.mxu0 %v3758
  %3783 = vmatprep.subr.mxu0 %v3762
  %3784 = vmatpush1.msra.mxu0 %v3761
  %3785 = vmatprep.subr.mxu0 %v3765
  %3786 = vmatpush1.msra.mxu0 %v3764
  %3787 = vmatprep.subr.mxu0 %v3768
  %3788 = vmatpush1.msra.mxu0 %v3767
  %3789 = vmatprep.subr.mxu0 %v3771
  %3790 = vmatpush1.msra.mxu0 %v3770
  %3791 = vmatprep.subr.mxu0 %v3774
  %3792 = vmatpush1.msra.mxu0 %v3773
  %3793 = vmatprep.subr.mxu0 %v3777
  %3794 = vmatpush1.msra.mxu0 %v3776
  %3795 = vmatprep.subr.mxu0 0.0
  %3796 = vmatpush1.msra.mxu0 0.0
  %3797 = vmatprep.subr.mxu0 0.0
  %3798 = vmatpush1.msra.mxu0 0.0
  %3799 = vmatprep.subr.mxu0 0.0
  %3800 = vmatpush1.msra.mxu0 0.0
  %3801 = vmatprep.subr.mxu0 0.0
  %3802 = vmatpush1.msra.mxu0 0.0
  %3803 = vmatprep.subr.mxu0 0.0
  %3804 = vmatpush1.msra.mxu0 0.0
  %3805 = vmatprep.subr.mxu0 0.0
  %3806 = vmatpush1.msra.mxu0 0.0
  %3807 = vmatprep.subr.mxu0 0.0
  %3808 = vmatpush1.msra.mxu0 0.0
  %3809 = vmatprep.subr.mxu0 0.0
  %3810 = vmatpush1.msra.mxu0 0.0
  %3811 = vmatprep.subr.mxu0 0.0
  %3812 = vmatpush1.msra.mxu0 0.0
  %3813 = vmatprep.subr.mxu0 0.0
  %3814 = vmatpush1.msra.mxu0 0.0
  %3815 = vmatprep.subr.mxu0 0.0
  %3816 = vmatpush1.msra.mxu0 0.0
  %3817 = vmatprep.subr.mxu0 0.0
  %3818 = vmatpush1.msra.mxu0 0.0
  %3819 = vmatprep.subr.mxu0 0.0
  %3820 = vmatpush1.msra.mxu0 0.0
  %3821 = vmatprep.subr.mxu0 0.0
  %3822 = vmatpush1.msra.mxu0 0.0
  %3823 = vmatprep.subr.mxu0 0.0
  %3824 = vmatpush1.msra.mxu0 0.0
  %3825 = vmatprep.subr.mxu0 0.0
  %3826 = vmatpush1.msra.mxu0 0.0
  %3827 = vmatprep.subr.mxu0 0.0
  %3828 = vmatpush1.msra.mxu0 0.0
  %3829 = vmatprep.subr.mxu0 0.0
  %3830 = vmatpush1.msra.mxu0 0.0
  %3831 = vmatprep.subr.mxu0 0.0
  %3832 = vmatpush1.msra.mxu0 0.0
  %3833 = vmatprep.subr.mxu0 0.0
  %3834 = vmatpush1.msra.mxu0 0.0
  %3835 = vmatprep.subr.mxu0 0.0
  %3836 = vmatpush1.msra.mxu0 0.0
  %3837 = vmatprep.subr.mxu0 0.0
  %3838 = vmatpush1.msra.mxu0 0.0
  %3839 = vmatprep.subr.mxu0 0.0
  %3840 = vmatpush1.msra.mxu0 0.0
  %3841 = vmatprep.subr.mxu0 0.0
  %3842 = vmatpush1.msra.mxu0 0.0
  %3843 = vmatprep.mubr.f32.mxu0 0.0
  %3844 = vmatmul.mubr.f32.gmra.mrb[0].mxu0 %v3444
  %v3845 = vpop.f32.mrb[0].mxu0
  %v3846 = vadd.f32 0.0, %v3845
  %v3847 = vpop.f32.mrb[0].mxu0
  %v3848 = vadd.f32 0.0, %v3847
  %3849 = vdwg.mxu0
  %3850 = vmatprep.subr.mxu0 0.0
  %3851 = vmatpush1.msra.mxu0 %v3757
  %3852 = vmatprep.subr.mxu0 0.0
  %3853 = vmatpush1.msra.mxu0 %v3760
  %3854 = vmatprep.subr.mxu0 0.0
  %3855 = vmatpush1.msra.mxu0 %v3763
  %3856 = vmatprep.subr.mxu0 0.0
  %3857 = vmatpush1.msra.mxu0 %v3766
  %3858 = vmatprep.subr.mxu0 0.0
  %3859 = vmatpush1.msra.mxu0 %v3769
  %3860 = vmatprep.subr.mxu0 0.0
  %3861 = vmatpush1.msra.mxu0 %v3772
  %3862 = vmatprep.subr.mxu0 0.0
  %3863 = vmatpush1.msra.mxu0 %v3775
  %3864 = vmatprep.subr.mxu0 0.0
  %3865 = vmatpush1.msra.mxu0 %v3778
  %3866 = vmatprep.subr.mxu0 0.0
  %3867 = vmatpush1.msra.mxu0 0.0
  %3868 = vmatprep.subr.mxu0 0.0
  %3869 = vmatpush1.msra.mxu0 0.0
  %3870 = vmatprep.subr.mxu0 0.0
  %3871 = vmatpush1.msra.mxu0 0.0
  %3872 = vmatprep.subr.mxu0 0.0
  %3873 = vmatpush1.msra.mxu0 0.0
  %3874 = vmatprep.subr.mxu0 0.0
  %3875 = vmatpush1.msra.mxu0 0.0
  %3876 = vmatprep.subr.mxu0 0.0
  %3877 = vmatpush1.msra.mxu0 0.0
  %3878 = vmatprep.subr.mxu0 0.0
  %3879 = vmatpush1.msra.mxu0 0.0
  %3880 = vmatprep.subr.mxu0 0.0
  %3881 = vmatpush1.msra.mxu0 0.0
  %3882 = vmatprep.subr.mxu0 0.0
  %3883 = vmatpush1.msra.mxu0 0.0
  %3884 = vmatprep.subr.mxu0 0.0
  %3885 = vmatpush1.msra.mxu0 0.0
  %3886 = vmatprep.subr.mxu0 0.0
  %3887 = vmatpush1.msra.mxu0 0.0
  %3888 = vmatprep.subr.mxu0 0.0
  %3889 = vmatpush1.msra.mxu0 0.0
  %3890 = vmatprep.subr.mxu0 0.0
  %3891 = vmatpush1.msra.mxu0 0.0
  %3892 = vmatprep.subr.mxu0 0.0
  %3893 = vmatpush1.msra.mxu0 0.0
  %3894 = vmatprep.subr.mxu0 0.0
  %3895 = vmatpush1.msra.mxu0 0.0
  %3896 = vmatprep.subr.mxu0 0.0
  %3897 = vmatpush1.msra.mxu0 0.0
  %3898 = vmatprep.subr.mxu0 0.0
  %3899 = vmatpush1.msra.mxu0 0.0
  %3900 = vmatprep.subr.mxu0 0.0
  %3901 = vmatpush1.msra.mxu0 0.0
  %3902 = vmatprep.subr.mxu0 0.0
  %3903 = vmatpush1.msra.mxu0 0.0
  %3904 = vmatprep.subr.mxu0 0.0
  %3905 = vmatpush1.msra.mxu0 0.0
  %3906 = vmatprep.subr.mxu0 0.0
  %3907 = vmatpush1.msra.mxu0 0.0
  %3908 = vmatprep.subr.mxu0 0.0
  %3909 = vmatpush1.msra.mxu0 0.0
  %3910 = vmatprep.subr.mxu0 0.0
  %3911 = vmatpush1.msra.mxu0 0.0
  %3912 = vmatprep.subr.mxu0 0.0
  %3913 = vmatpush1.msra.mxu0 0.0
  %3914 = vmatprep.mubr.f32.mxu0 0.0
  %3915 = vmatmul.mubr.f32.gmra.mrb[0].mxu0 %v3444
  %v3916 = vpop.f32.mrb[0].mxu0
  %v3917 = vadd.f32 0.0, %v3916
  %v3918 = vpop.f32.mrb[0].mxu0
  %3919 = vdwg.mxu0
  %3920 = vst [vmem:[#allocation7 + $0x78] sm:$0xff] %v3846
  %3921 = vst [vmem:[#allocation7 + $0x80] sm:$0xff] %v3848
  %3922 = vst [vmem:[#allocation7 + $0x88] sm:$0xff] %v3917
  %v3923 = vld [vmem:[#allocation5 + $0x90] sm:$0xff]
  %v3924 = vld [vmem:[#allocation5 + $0x98] sm:$0xff]
  %v3925 = vld [vmem:[#allocation5 + $0xa0] sm:$0xff]
  %v3926 = vadd.f32 %v3923, %v3513
  %v3927 = vxor.u32 %v3926, 2147483648
  %v3928 = vmul.f32 %v3927, 1.442695
  %v3929 = vpow.pop %v3928
  %v3930 = vadd.f32 %v3929, 1.0
  %v3931 = vrcp.pop %v3930
  %v3932 = vmul.f32 1.0, %v3931
  %v3933 = vadd.f32 %v3924, %v3515
  %v3934 = vxor.u32 %v3933, 2147483648
  %v3935 = vmul.f32 %v3934, 1.442695
  %v3936 = vpow.pop %v3935
  %v3937 = vadd.f32 %v3936, 1.0
  %v3938 = vrcp.pop %v3937
  %v3939 = vmul.f32 1.0, %v3938
  %v3940 = vadd.f32 %v3584, %v733
  %v3941 = vmul.f32 %v3932, %v3940
  %v3942 = vadd.f32 %v3925, %v3941
  %v3943 = vtanh.pop %v3942
  %v3944 = vsub.f32 %v3442, %v3943
  %v3945 = vmul.f32 %v3939, %v3944
  %v3946 = vadd.f32 %v3943, %v3945
  %v3948 = vsel %vm438, %v3946, 0
  %3950 = vmatprep.subr.mxu0 %v706
  %3951 = vmatpush1.msra.mxu0 %v705
  %3952 = vmatprep.subr.mxu0 %v709
  %3953 = vmatpush1.msra.mxu0 %v708
  %3954 = vmatprep.subr.mxu0 %v712
  %3955 = vmatpush1.msra.mxu0 %v711
  %3956 = vmatprep.subr.mxu0 %v715
  %3957 = vmatpush1.msra.mxu0 %v714
  %3958 = vmatprep.subr.mxu0 %v718
  %3959 = vmatpush1.msra.mxu0 %v717
  %3960 = vmatprep.subr.mxu0 %v721
  %3961 = vmatpush1.msra.mxu0 %v720
  %3962 = vmatprep.subr.mxu0 %v724
  %3963 = vmatpush1.msra.mxu0 %v723
  %3964 = vmatprep.subr.mxu0 %v727
  %3965 = vmatpush1.msra.mxu0 %v726
  %3966 = vmatprep.subr.mxu0 0.0
  %3967 = vmatpush1.msra.mxu0 0.0
  %3968 = vmatprep.subr.mxu0 0.0
  %3969 = vmatpush1.msra.mxu0 0.0
  %3970 = vmatprep.subr.mxu0 0.0
  %3971 = vmatpush1.msra.mxu0 0.0
  %3972 = vmatprep.subr.mxu0 0.0
  %3973 = vmatpush1.msra.mxu0 0.0
  %3974 = vmatprep.subr.mxu0 0.0
  %3975 = vmatpush1.msra.mxu0 0.0
  %3976 = vmatprep.subr.mxu0 0.0
  %3977 = vmatpush1.msra.mxu0 0.0
  %3978 = vmatprep.subr.mxu0 0.0
  %3979 = vmatpush1.msra.mxu0 0.0
  %3980 = vmatprep.subr.mxu0 0.0
  %3981 = vmatpush1.msra.mxu0 0.0
  %3982 = vmatprep.subr.mxu0 0.0
  %3983 = vmatpush1.msra.mxu0 0.0
  %3984 = vmatprep.subr.mxu0 0.0
  %3985 = vmatpush1.msra.mxu0 0.0
  %3986 = vmatprep.subr.mxu0 0.0
  %3987 = vmatpush1.msra.mxu0 0.0
  %3988 = vmatprep.subr.mxu0 0.0
  %3989 = vmatpush1.msra.mxu0 0.0
  %3990 = vmatprep.subr.mxu0 0.0
  %3991 = vmatpush1.msra.mxu0 0.0
  %3992 = vmatprep.subr.mxu0 0.0
  %3993 = vmatpush1.msra.mxu0 0.0
  %3994 = vmatprep.subr.mxu0 0.0
  %3995 = vmatpush1.msra.mxu0 0.0
  %3996 = vmatprep.subr.mxu0 0.0
  %3997 = vmatpush1.msra.mxu0 0.0
  %3998 = vmatprep.subr.mxu0 0.0
  %3999 = vmatpush1.msra.mxu0 0.0
  %4000 = vmatprep.subr.mxu0 0.0
  %4001 = vmatpush1.msra.mxu0 0.0
  %4002 = vmatprep.subr.mxu0 0.0
  %4003 = vmatpush1.msra.mxu0 0.0
  %4004 = vmatprep.subr.mxu0 0.0
  %4005 = vmatpush1.msra.mxu0 0.0
  %4006 = vmatprep.subr.mxu0 0.0
  %4007 = vmatpush1.msra.mxu0 0.0
  %4008 = vmatprep.subr.mxu0 0.0
  %4009 = vmatpush1.msra.mxu0 0.0
  %4010 = vmatprep.subr.mxu0 0.0
  %4011 = vmatpush1.msra.mxu0 0.0
  %4012 = vmatprep.subr.mxu0 0.0
  %4013 = vmatpush1.msra.mxu0 0.0
  %4014 = vmatprep.mubr.f32.mxu0 0.0
  %4015 = vmatmul.mubr.f32.gmra.mrb[0].mxu0 %v3948
  %v4016 = vpop.f32.mrb[0].mxu0
  %v4017 = vadd.f32 0.0, %v4016
  %v4018 = vpop.f32.mrb[0].mxu0
  %v4019 = vadd.f32 0.0, %v4018
  %4020 = vdwg.mxu0
  %4021 = vmatprep.subr.mxu0 0.0
  %4022 = vmatpush1.msra.mxu0 %v707
  %4023 = vmatprep.subr.mxu0 0.0
  %4024 = vmatpush1.msra.mxu0 %v710
  %4025 = vmatprep.subr.mxu0 0.0
  %4026 = vmatpush1.msra.mxu0 %v713
  %4027 = vmatprep.subr.mxu0 0.0
  %4028 = vmatpush1.msra.mxu0 %v716
  %4029 = vmatprep.subr.mxu0 0.0
  %4030 = vmatpush1.msra.mxu0 %v719
  %4031 = vmatprep.subr.mxu0 0.0
  %4032 = vmatpush1.msra.mxu0 %v722
  %4033 = vmatprep.subr.mxu0 0.0
  %4034 = vmatpush1.msra.mxu0 %v725
  %4035 = vmatprep.subr.mxu0 0.0
  %4036 = vmatpush1.msra.mxu0 %v728
  %4037 = vmatprep.subr.mxu0 0.0
  %4038 = vmatpush1.msra.mxu0 0.0
  %4039 = vmatprep.subr.mxu0 0.0
  %4040 = vmatpush1.msra.mxu0 0.0
  %4041 = vmatprep.subr.mxu0 0.0
  %4042 = vmatpush1.msra.mxu0 0.0
  %4043 = vmatprep.subr.mxu0 0.0
  %4044 = vmatpush1.msra.mxu0 0.0
  %4045 = vmatprep.subr.mxu0 0.0
  %4046 = vmatpush1.msra.mxu0 0.0
  %4047 = vmatprep.subr.mxu0 0.0
  %4048 = vmatpush1.msra.mxu0 0.0
  %4049 = vmatprep.subr.mxu0 0.0
  %4050 = vmatpush1.msra.mxu0 0.0
  %4051 = vmatprep.subr.mxu0 0.0
  %4052 = vmatpush1.msra.mxu0 0.0
  %4053 = vmatprep.subr.mxu0 0.0
  %4054 = vmatpush1.msra.mxu0 0.0
  %4055 = vmatprep.subr.mxu0 0.0
  %4056 = vmatpush1.msra.mxu0 0.0
  %4057 = vmatprep.subr.mxu0 0.0
  %4058 = vmatpush1.msra.mxu0 0.0
  %4059 = vmatprep.subr.mxu0 0.0
  %4060 = vmatpush1.msra.mxu0 0.0
  %4061 = vmatprep.subr.mxu0 0.0
  %4062 = vmatpush1.msra.mxu0 0.0
  %4063 = vmatprep.subr.mxu0 0.0
  %4064 = vmatpush1.msra.mxu0 0.0
  %4065 = vmatprep.subr.mxu0 0.0
  %4066 = vmatpush1.msra.mxu0 0.0
  %4067 = vmatprep.subr.mxu0 0.0
  %4068 = vmatpush1.msra.mxu0 0.0
  %4069 = vmatprep.subr.mxu0 0.0
  %4070 = vmatpush1.msra.mxu0 0.0
  %4071 = vmatprep.subr.mxu0 0.0
  %4072 = vmatpush1.msra.mxu0 0.0
  %4073 = vmatprep.subr.mxu0 0.0
  %4074 = vmatpush1.msra.mxu0 0.0
  %4075 = vmatprep.subr.mxu0 0.0
  %4076 = vmatpush1.msra.mxu0 0.0
  %4077 = vmatprep.subr.mxu0 0.0
  %4078 = vmatpush1.msra.mxu0 0.0
  %4079 = vmatprep.subr.mxu0 0.0
  %4080 = vmatpush1.msra.mxu0 0.0
  %4081 = vmatprep.subr.mxu0 0.0
  %4082 = vmatpush1.msra.mxu0 0.0
  %4083 = vmatprep.subr.mxu0 0.0
  %4084 = vmatpush1.msra.mxu0 0.0
  %4085 = vmatprep.mubr.f32.mxu0 0.0
  %4086 = vmatmul.mubr.f32.gmra.mrb[0].mxu0 %v3948
  %v4087 = vpop.f32.mrb[0].mxu0
  %v4088 = vadd.f32 0.0, %v4087
  %v4089 = vpop.f32.mrb[0].mxu0
  %4090 = vdwg.mxu0
  %v4091 = vld [vmem:[#allocation3] sm:$0xff]
  %v4092 = vld [vmem:[#allocation3 + $0x8] sm:$0xff]
  %v4093 = vld [vmem:[#allocation3 + $0x10] sm:$0xff]
  %v4094 = vld [vmem:[#allocation3 + $0x18] sm:$0xff]
  %v4095 = vld [vmem:[#allocation3 + $0x20] sm:$0xff]
  %v4096 = vld [vmem:[#allocation3 + $0x28] sm:$0xff]
  %v4097 = vld [vmem:[#allocation3 + $0x30] sm:$0xff]
  %v4098 = vld [vmem:[#allocation3 + $0x38] sm:$0xff]
  %v4099 = vld [vmem:[#allocation3 + $0x40] sm:$0xff]
  %v4100 = vld [vmem:[#allocation3 + $0x48] sm:$0xff]
  %v4101 = vld [vmem:[#allocation3 + $0x50] sm:$0xff]
  %v4102 = vld [vmem:[#allocation3 + $0x58] sm:$0xff]
  %v4103 = vld [vmem:[#allocation3 + $0x60] sm:$0xff]
  %v4104 = vld [vmem:[#allocation3 + $0x68] sm:$0xff]
  %v4105 = vld [vmem:[#allocation3 + $0x70] sm:$0xff]
  %v4106 = vld [vmem:[#allocation3 + $0x78] sm:$0xff]
  %v4107 = vld [vmem:[#allocation3 + $0x80] sm:$0xff]
  %v4108 = vld [vmem:[#allocation3 + $0x88] sm:$0xff]
  %v4109 = vld [vmem:[#allocation3 + $0x90] sm:$0xff]
  %v4110 = vld [vmem:[#allocation3 + $0x98] sm:$0xff]
  %v4111 = vld [vmem:[#allocation3 + $0xa0] sm:$0xff]
  %v4112 = vld [vmem:[#allocation3 + $0xa8] sm:$0xff]
  %v4113 = vld [vmem:[#allocation3 + $0xb0] sm:$0xff]
  %v4114 = vld [vmem:[#allocation3 + $0xb8] sm:$0xff]
  %4115 = vmatprep.subr.mxu0 %v4092
  %4116 = vmatpush1.msra.mxu0 %v4091
  %4117 = vmatprep.subr.mxu0 %v4095
  %4118 = vmatpush1.msra.mxu0 %v4094
  %4119 = vmatprep.subr.mxu0 %v4098
  %4120 = vmatpush1.msra.mxu0 %v4097
  %4121 = vmatprep.subr.mxu0 %v4101
  %4122 = vmatpush1.msra.mxu0 %v4100
  %4123 = vmatprep.subr.mxu0 %v4104
  %4124 = vmatpush1.msra.mxu0 %v4103
  %4125 = vmatprep.subr.mxu0 %v4107
  %4126 = vmatpush1.msra.mxu0 %v4106
  %4127 = vmatprep.subr.mxu0 %v4110
  %4128 = vmatpush1.msra.mxu0 %v4109
  %4129 = vmatprep.subr.mxu0 %v4113
  %4130 = vmatpush1.msra.mxu0 %v4112
  %4131 = vmatprep.subr.mxu0 0.0
  %4132 = vmatpush1.msra.mxu0 0.0
  %4133 = vmatprep.subr.mxu0 0.0
  %4134 = vmatpush1.msra.mxu0 0.0
  %4135 = vmatprep.subr.mxu0 0.0
  %4136 = vmatpush1.msra.mxu0 0.0
  %4137 = vmatprep.subr.mxu0 0.0
  %4138 = vmatpush1.msra.mxu0 0.0
  %4139 = vmatprep.subr.mxu0 0.0
  %4140 = vmatpush1.msra.mxu0 0.0
  %4141 = vmatprep.subr.mxu0 0.0
  %4142 = vmatpush1.msra.mxu0 0.0
  %4143 = vmatprep.subr.mxu0 0.0
  %4144 = vmatpush1.msra.mxu0 0.0
  %4145 = vmatprep.subr.mxu0 0.0
  %4146 = vmatpush1.msra.mxu0 0.0
  %4147 = vmatprep.subr.mxu0 0.0
  %4148 = vmatpush1.msra.mxu0 0.0
  %4149 = vmatprep.subr.mxu0 0.0
  %4150 = vmatpush1.msra.mxu0 0.0
  %4151 = vmatprep.subr.mxu0 0.0
  %4152 = vmatpush1.msra.mxu0 0.0
  %4153 = vmatprep.subr.mxu0 0.0
  %4154 = vmatpush1.msra.mxu0 0.0
  %4155 = vmatprep.subr.mxu0 0.0
  %4156 = vmatpush1.msra.mxu0 0.0
  %4157 = vmatprep.subr.mxu0 0.0
  %4158 = vmatpush1.msra.mxu0 0.0
  %4159 = vmatprep.subr.mxu0 0.0
  %4160 = vmatpush1.msra.mxu0 0.0
  %4161 = vmatprep.subr.mxu0 0.0
  %4162 = vmatpush1.msra.mxu0 0.0
  %4163 = vmatprep.subr.mxu0 0.0
  %4164 = vmatpush1.msra.mxu0 0.0
  %4165 = vmatprep.subr.mxu0 0.0
  %4166 = vmatpush1.msra.mxu0 0.0
  %4167 = vmatprep.subr.mxu0 0.0
  %4168 = vmatpush1.msra.mxu0 0.0
  %4169 = vmatprep.subr.mxu0 0.0
  %4170 = vmatpush1.msra.mxu0 0.0
  %4171 = vmatprep.subr.mxu0 0.0
  %4172 = vmatpush1.msra.mxu0 0.0
  %4173 = vmatprep.subr.mxu0 0.0
  %4174 = vmatpush1.msra.mxu0 0.0
  %4175 = vmatprep.subr.mxu0 0.0
  %4176 = vmatpush1.msra.mxu0 0.0
  %4177 = vmatprep.subr.mxu0 0.0
  %4178 = vmatpush1.msra.mxu0 0.0
  %4179 = vmatprep.mubr.f32.mxu0 0.0
  %4180 = vmatmul.mubr.f32.gmra.mrb[0].mxu0 %v3948
  %v4181 = vpop.f32.mrb[0].mxu0
  %v4182 = vadd.f32 %v740, %v4181
  %v4183 = vpop.f32.mrb[0].mxu0
  %v4184 = vadd.f32 %v744, %v4183
  %4185 = vdwg.mxu0
  %4186 = vmatprep.subr.mxu0 0.0
  %4187 = vmatpush1.msra.mxu0 %v4093
  %4188 = vmatprep.subr.mxu0 0.0
  %4189 = vmatpush1.msra.mxu0 %v4096
  %4190 = vmatprep.subr.mxu0 0.0
  %4191 = vmatpush1.msra.mxu0 %v4099
  %4192 = vmatprep.subr.mxu0 0.0
  %4193 = vmatpush1.msra.mxu0 %v4102
  %4194 = vmatprep.subr.mxu0 0.0
  %4195 = vmatpush1.msra.mxu0 %v4105
  %4196 = vmatprep.subr.mxu0 0.0
  %4197 = vmatpush1.msra.mxu0 %v4108
  %4198 = vmatprep.subr.mxu0 0.0
  %4199 = vmatpush1.msra.mxu0 %v4111
  %4200 = vmatprep.subr.mxu0 0.0
  %4201 = vmatpush1.msra.mxu0 %v4114
  %4202 = vmatprep.subr.mxu0 0.0
  %4203 = vmatpush1.msra.mxu0 0.0
  %4204 = vmatprep.subr.mxu0 0.0
  %4205 = vmatpush1.msra.mxu0 0.0
  %4206 = vmatprep.subr.mxu0 0.0
  %4207 = vmatpush1.msra.mxu0 0.0
  %4208 = vmatprep.subr.mxu0 0.0
  %4209 = vmatpush1.msra.mxu0 0.0
  %4210 = vmatprep.subr.mxu0 0.0
  %4211 = vmatpush1.msra.mxu0 0.0
  %4212 = vmatprep.subr.mxu0 0.0
  %4213 = vmatpush1.msra.mxu0 0.0
  %4214 = vmatprep.subr.mxu0 0.0
  %4215 = vmatpush1.msra.mxu0 0.0
  %4216 = vmatprep.subr.mxu0 0.0
  %4217 = vmatpush1.msra.mxu0 0.0
  %4218 = vmatprep.subr.mxu0 0.0
  %4219 = vmatpush1.msra.mxu0 0.0
  %4220 = vmatprep.subr.mxu0 0.0
  %4221 = vmatpush1.msra.mxu0 0.0
  %4222 = vmatprep.subr.mxu0 0.0
  %4223 = vmatpush1.msra.mxu0 0.0
  %4224 = vmatprep.subr.mxu0 0.0
  %4225 = vmatpush1.msra.mxu0 0.0
  %4226 = vmatprep.subr.mxu0 0.0
  %4227 = vmatpush1.msra.mxu0 0.0
  %4228 = vmatprep.subr.mxu0 0.0
  %4229 = vmatpush1.msra.mxu0 0.0
  %4230 = vmatprep.subr.mxu0 0.0
  %4231 = vmatpush1.msra.mxu0 0.0
  %4232 = vmatprep.subr.mxu0 0.0
  %4233 = vmatpush1.msra.mxu0 0.0
  %4234 = vmatprep.subr.mxu0 0.0
  %4235 = vmatpush1.msra.mxu0 0.0
  %4236 = vmatprep.subr.mxu0 0.0
  %4237 = vmatpush1.msra.mxu0 0.0
  %4238 = vmatprep.subr.mxu0 0.0
  %4239 = vmatpush1.msra.mxu0 0.0
  %4240 = vmatprep.subr.mxu0 0.0
  %4241 = vmatpush1.msra.mxu0 0.0
  %4242 = vmatprep.subr.mxu0 0.0
  %4243 = vmatpush1.msra.mxu0 0.0
  %4244 = vmatprep.subr.mxu0 0.0
  %4245 = vmatpush1.msra.mxu0 0.0
  %4246 = vmatprep.subr.mxu0 0.0
  %4247 = vmatpush1.msra.mxu0 0.0
  %4248 = vmatprep.subr.mxu0 0.0
  %4249 = vmatpush1.msra.mxu0 0.0
  %4250 = vmatprep.mubr.f32.mxu0 0.0
  %4251 = vmatmul.mubr.f32.gmra.mrb[0].mxu0 %v3948
  %v4252 = vpop.f32.mrb[0].mxu0
  %v4253 = vadd.f32 %v748, %v4252
  %v4254 = vpop.f32.mrb[0].mxu0
  %4255 = vdwg.mxu0
  %4256 = vst [vmem:[#allocation6 + $0x90] sm:$0xff] %v4182
  %4257 = vst [vmem:[#allocation6 + $0x98] sm:$0xff] %v4184
  %4258 = vst [vmem:[#allocation6 + $0xa0] sm:$0xff] %v4253
  %v4259 = vld [vmem:[#allocation3 + $0xc0] sm:$0xff]
  %v4260 = vld [vmem:[#allocation3 + $0xc8] sm:$0xff]
  %v4261 = vld [vmem:[#allocation3 + $0xd0] sm:$0xff]
  %v4262 = vld [vmem:[#allocation3 + $0xd8] sm:$0xff]
  %v4263 = vld [vmem:[#allocation3 + $0xe0] sm:$0xff]
  %v4264 = vld [vmem:[#allocation3 + $0xe8] sm:$0xff]
  %v4265 = vld [vmem:[#allocation3 + $0xf0] sm:$0xff]
  %v4266 = vld [vmem:[#allocation3 + $0xf8] sm:$0xff]
  %v4267 = vld [vmem:[#allocation3 + $0x100] sm:$0xff]
  %v4268 = vld [vmem:[#allocation3 + $0x108] sm:$0xff]
  %v4269 = vld [vmem:[#allocation3 + $0x110] sm:$0xff]
  %v4270 = vld [vmem:[#allocation3 + $0x118] sm:$0xff]
  %v4271 = vld [vmem:[#allocation3 + $0x120] sm:$0xff]
  %v4272 = vld [vmem:[#allocation3 + $0x128] sm:$0xff]
  %v4273 = vld [vmem:[#allocation3 + $0x130] sm:$0xff]
  %v4274 = vld [vmem:[#allocation3 + $0x138] sm:$0xff]
  %v4275 = vld [vmem:[#allocation3 + $0x140] sm:$0xff]
  %v4276 = vld [vmem:[#allocation3 + $0x148] sm:$0xff]
  %v4277 = vld [vmem:[#allocation3 + $0x150] sm:$0xff]
  %v4278 = vld [vmem:[#allocation3 + $0x158] sm:$0xff]
  %v4279 = vld [vmem:[#allocation3 + $0x160] sm:$0xff]
  %v4280 = vld [vmem:[#allocation3 + $0x168] sm:$0xff]
  %v4281 = vld [vmem:[#allocation3 + $0x170] sm:$0xff]
  %v4282 = vld [vmem:[#allocation3 + $0x178] sm:$0xff]
  %4283 = vmatprep.subr.mxu0 %v4260
  %4284 = vmatpush1.msra.mxu0 %v4259
  %4285 = vmatprep.subr.mxu0 %v4263
  %4286 = vmatpush1.msra.mxu0 %v4262
  %4287 = vmatprep.subr.mxu0 %v4266
  %4288 = vmatpush1.msra.mxu0 %v4265
  %4289 = vmatprep.subr.mxu0 %v4269
  %4290 = vmatpush1.msra.mxu0 %v4268
  %4291 = vmatprep.subr.mxu0 %v4272
  %4292 = vmatpush1.msra.mxu0 %v4271
  %4293 = vmatprep.subr.mxu0 %v4275
  %4294 = vmatpush1.msra.mxu0 %v4274
  %4295 = vmatprep.subr.mxu0 %v4278
  %4296 = vmatpush1.msra.mxu0 %v4277
  %4297 = vmatprep.subr.mxu0 %v4281
  %4298 = vmatpush1.msra.mxu0 %v4280
  %4299 = vmatprep.subr.mxu0 0.0
  %4300 = vmatpush1.msra.mxu0 0.0
  %4301 = vmatprep.subr.mxu0 0.0
  %4302 = vmatpush1.msra.mxu0 0.0
  %4303 = vmatprep.subr.mxu0 0.0
  %4304 = vmatpush1.msra.mxu0 0.0
  %4305 = vmatprep.subr.mxu0 0.0
  %4306 = vmatpush1.msra.mxu0 0.0
  %4307 = vmatprep.subr.mxu0 0.0
  %4308 = vmatpush1.msra.mxu0 0.0
  %4309 = vmatprep.subr.mxu0 0.0
  %4310 = vmatpush1.msra.mxu0 0.0
  %4311 = vmatprep.subr.mxu0 0.0
  %4312 = vmatpush1.msra.mxu0 0.0
  %4313 = vmatprep.subr.mxu0 0.0
  %4314 = vmatpush1.msra.mxu0 0.0
  %4315 = vmatprep.subr.mxu0 0.0
  %4316 = vmatpush1.msra.mxu0 0.0
  %4317 = vmatprep.subr.mxu0 0.0
  %4318 = vmatpush1.msra.mxu0 0.0
  %4319 = vmatprep.subr.mxu0 0.0
  %4320 = vmatpush1.msra.mxu0 0.0
  %4321 = vmatprep.subr.mxu0 0.0
  %4322 = vmatpush1.msra.mxu0 0.0
  %4323 = vmatprep.subr.mxu0 0.0
  %4324 = vmatpush1.msra.mxu0 0.0
  %4325 = vmatprep.subr.mxu0 0.0
  %4326 = vmatpush1.msra.mxu0 0.0
  %4327 = vmatprep.subr.mxu0 0.0
  %4328 = vmatpush1.msra.mxu0 0.0
  %4329 = vmatprep.subr.mxu0 0.0
  %4330 = vmatpush1.msra.mxu0 0.0
  %4331 = vmatprep.subr.mxu0 0.0
  %4332 = vmatpush1.msra.mxu0 0.0
  %4333 = vmatprep.subr.mxu0 0.0
  %4334 = vmatpush1.msra.mxu0 0.0
  %4335 = vmatprep.subr.mxu0 0.0
  %4336 = vmatpush1.msra.mxu0 0.0
  %4337 = vmatprep.subr.mxu0 0.0
  %4338 = vmatpush1.msra.mxu0 0.0
  %4339 = vmatprep.subr.mxu0 0.0
  %4340 = vmatpush1.msra.mxu0 0.0
  %4341 = vmatprep.subr.mxu0 0.0
  %4342 = vmatpush1.msra.mxu0 0.0
  %4343 = vmatprep.subr.mxu0 0.0
  %4344 = vmatpush1.msra.mxu0 0.0
  %4345 = vmatprep.subr.mxu0 0.0
  %4346 = vmatpush1.msra.mxu0 0.0
  %4347 = vmatprep.mubr.f32.mxu0 0.0
  %4348 = vmatmul.mubr.f32.gmra.mrb[0].mxu0 %v3948
  %v4349 = vpop.f32.mrb[0].mxu0
  %v4350 = vadd.f32 0.0, %v4349
  %v4351 = vpop.f32.mrb[0].mxu0
  %v4352 = vadd.f32 0.0, %v4351
  %4353 = vdwg.mxu0
  %4354 = vmatprep.subr.mxu0 0.0
  %4355 = vmatpush1.msra.mxu0 %v4261
  %4356 = vmatprep.subr.mxu0 0.0
  %4357 = vmatpush1.msra.mxu0 %v4264
  %4358 = vmatprep.subr.mxu0 0.0
  %4359 = vmatpush1.msra.mxu0 %v4267
  %4360 = vmatprep.subr.mxu0 0.0
  %4361 = vmatpush1.msra.mxu0 %v4270
  %4362 = vmatprep.subr.mxu0 0.0
  %4363 = vmatpush1.msra.mxu0 %v4273
  %4364 = vmatprep.subr.mxu0 0.0
  %4365 = vmatpush1.msra.mxu0 %v4276
  %4366 = vmatprep.subr.mxu0 0.0
  %4367 = vmatpush1.msra.mxu0 %v4279
  %4368 = vmatprep.subr.mxu0 0.0
  %4369 = vmatpush1.msra.mxu0 %v4282
  %4370 = vmatprep.subr.mxu0 0.0
  %4371 = vmatpush1.msra.mxu0 0.0
  %4372 = vmatprep.subr.mxu0 0.0
  %4373 = vmatpush1.msra.mxu0 0.0
  %4374 = vmatprep.subr.mxu0 0.0
  %4375 = vmatpush1.msra.mxu0 0.0
  %4376 = vmatprep.subr.mxu0 0.0
  %4377 = vmatpush1.msra.mxu0 0.0
  %4378 = vmatprep.subr.mxu0 0.0
  %4379 = vmatpush1.msra.mxu0 0.0
  %4380 = vmatprep.subr.mxu0 0.0
  %4381 = vmatpush1.msra.mxu0 0.0
  %4382 = vmatprep.subr.mxu0 0.0
  %4383 = vmatpush1.msra.mxu0 0.0
  %4384 = vmatprep.subr.mxu0 0.0
  %4385 = vmatpush1.msra.mxu0 0.0
  %4386 = vmatprep.subr.mxu0 0.0
  %4387 = vmatpush1.msra.mxu0 0.0
  %4388 = vmatprep.subr.mxu0 0.0
  %4389 = vmatpush1.msra.mxu0 0.0
  %4390 = vmatprep.subr.mxu0 0.0
  %4391 = vmatpush1.msra.mxu0 0.0
  %4392 = vmatprep.subr.mxu0 0.0
  %4393 = vmatpush1.msra.mxu0 0.0
  %4394 = vmatprep.subr.mxu0 0.0
  %4395 = vmatpush1.msra.mxu0 0.0
  %4396 = vmatprep.subr.mxu0 0.0
  %4397 = vmatpush1.msra.mxu0 0.0
  %4398 = vmatprep.subr.mxu0 0.0
  %4399 = vmatpush1.msra.mxu0 0.0
  %4400 = vmatprep.subr.mxu0 0.0
  %4401 = vmatpush1.msra.mxu0 0.0
  %4402 = vmatprep.subr.mxu0 0.0
  %4403 = vmatpush1.msra.mxu0 0.0
  %4404 = vmatprep.subr.mxu0 0.0
  %4405 = vmatpush1.msra.mxu0 0.0
  %4406 = vmatprep.subr.mxu0 0.0
  %4407 = vmatpush1.msra.mxu0 0.0
  %4408 = vmatprep.subr.mxu0 0.0
  %4409 = vmatpush1.msra.mxu0 0.0
  %4410 = vmatprep.subr.mxu0 0.0
  %4411 = vmatpush1.msra.mxu0 0.0
  %4412 = vmatprep.subr.mxu0 0.0
  %4413 = vmatpush1.msra.mxu0 0.0
  %4414 = vmatprep.subr.mxu0 0.0
  %4415 = vmatpush1.msra.mxu0 0.0
  %4416 = vmatprep.subr.mxu0 0.0
  %4417 = vmatpush1.msra.mxu0 0.0
  %4418 = vmatprep.mubr.f32.mxu0 0.0
  %4419 = vmatmul.mubr.f32.gmra.mrb[0].mxu0 %v3948
  %v4420 = vpop.f32.mrb[0].mxu0
  %v4421 = vadd.f32 0.0, %v4420
  %v4422 = vpop.f32.mrb[0].mxu0
  %4423 = vdwg.mxu0
  %4424 = vst [vmem:[#allocation7 + $0x90] sm:$0xff] %v4350
  %4425 = vst [vmem:[#allocation7 + $0x98] sm:$0xff] %v4352
  %4426 = vst [vmem:[#allocation7 + $0xa0] sm:$0xff] %v4421
  %v4427 = vld [vmem:[#allocation5 + $0xa8] sm:$0xff]
  %v4428 = vld [vmem:[#allocation5 + $0xb0] sm:$0xff]
  %v4429 = vld [vmem:[#allocation5 + $0xb8] sm:$0xff]
  %v4430 = vadd.f32 %v4427, %v4017
  %v4431 = vxor.u32 %v4430, 2147483648
  %v4432 = vmul.f32 %v4431, 1.442695
  %v4433 = vpow.pop %v4432
  %v4434 = vadd.f32 %v4433, 1.0
  %v4435 = vrcp.pop %v4434
  %v4436 = vmul.f32 1.0, %v4435
  %v4437 = vadd.f32 %v4428, %v4019
  %v4438 = vxor.u32 %v4437, 2147483648
  %v4439 = vmul.f32 %v4438, 1.442695
  %v4440 = vpow.pop %v4439
  %v4441 = vadd.f32 %v4440, 1.0
  %v4442 = vrcp.pop %v4441
  %v4443 = vmul.f32 1.0, %v4442
  %v4444 = vadd.f32 %v4088, %v733
  %v4445 = vmul.f32 %v4436, %v4444
  %v4446 = vadd.f32 %v4429, %v4445
  %v4447 = vtanh.pop %v4446
  %v4448 = vsub.f32 %v3946, %v4447
  %v4449 = vmul.f32 %v4443, %v4448
  %v4450 = vadd.f32 %v4447, %v4449
  %v4451 = vld [vmem:[#allocation3] sm:$0xff]
  %v4452 = vld [vmem:[#allocation3 + $0x8] sm:$0xff]
  %v4453 = vld [vmem:[#allocation3 + $0x10] sm:$0xff]
  %v4454 = vld [vmem:[#allocation3 + $0x18] sm:$0xff]
  %v4455 = vld [vmem:[#allocation3 + $0x20] sm:$0xff]
  %v4456 = vld [vmem:[#allocation3 + $0x28] sm:$0xff]
  %v4457 = vld [vmem:[#allocation3 + $0x30] sm:$0xff]
  %v4458 = vld [vmem:[#allocation3 + $0x38] sm:$0xff]
  %v4459 = vld [vmem:[#allocation3 + $0x40] sm:$0xff]
  %v4460 = vld [vmem:[#allocation3 + $0x48] sm:$0xff]
  %v4461 = vld [vmem:[#allocation3 + $0x50] sm:$0xff]
  %v4462 = vld [vmem:[#allocation3 + $0x58] sm:$0xff]
  %v4463 = vld [vmem:[#allocation3 + $0x60] sm:$0xff]
  %v4464 = vld [vmem:[#allocation3 + $0x68] sm:$0xff]
  %v4465 = vld [vmem:[#allocation3 + $0x70] sm:$0xff]
  %v4466 = vld [vmem:[#allocation3 + $0x78] sm:$0xff]
  %v4467 = vld [vmem:[#allocation3 + $0x80] sm:$0xff]
  %v4468 = vld [vmem:[#allocation3 + $0x88] sm:$0xff]
  %v4469 = vld [vmem:[#allocation3 + $0x90] sm:$0xff]
  %v4470 = vld [vmem:[#allocation3 + $0x98] sm:$0xff]
  %v4471 = vld [vmem:[#allocation3 + $0xa0] sm:$0xff]
  %v4472 = vld [vmem:[#allocation3 + $0xa8] sm:$0xff]
  %v4473 = vld [vmem:[#allocation3 + $0xb0] sm:$0xff]
  %v4474 = vld [vmem:[#allocation3 + $0xb8] sm:$0xff]
  %v4476 = vsel %vm438, %v4450, 0
  %4478 = vmatprep.subr.mxu0 %v4452
  %4479 = vmatpush1.msra.mxu0 %v4451
  %4480 = vmatprep.subr.mxu0 %v4455
  %4481 = vmatpush1.msra.mxu0 %v4454
  %4482 = vmatprep.subr.mxu0 %v4458
  %4483 = vmatpush1.msra.mxu0 %v4457
  %4484 = vmatprep.subr.mxu0 %v4461
  %4485 = vmatpush1.msra.mxu0 %v4460
  %4486 = vmatprep.subr.mxu0 %v4464
  %4487 = vmatpush1.msra.mxu0 %v4463
  %4488 = vmatprep.subr.mxu0 %v4467
  %4489 = vmatpush1.msra.mxu0 %v4466
  %4490 = vmatprep.subr.mxu0 %v4470
  %4491 = vmatpush1.msra.mxu0 %v4469
  %4492 = vmatprep.subr.mxu0 %v4473
  %4493 = vmatpush1.msra.mxu0 %v4472
  %4494 = vmatprep.subr.mxu0 0.0
  %4495 = vmatpush1.msra.mxu0 0.0
  %4496 = vmatprep.subr.mxu0 0.0
  %4497 = vmatpush1.msra.mxu0 0.0
  %4498 = vmatprep.subr.mxu0 0.0
  %4499 = vmatpush1.msra.mxu0 0.0
  %4500 = vmatprep.subr.mxu0 0.0
  %4501 = vmatpush1.msra.mxu0 0.0
  %4502 = vmatprep.subr.mxu0 0.0
  %4503 = vmatpush1.msra.mxu0 0.0
  %4504 = vmatprep.subr.mxu0 0.0
  %4505 = vmatpush1.msra.mxu0 0.0
  %4506 = vmatprep.subr.mxu0 0.0
  %4507 = vmatpush1.msra.mxu0 0.0
  %4508 = vmatprep.subr.mxu0 0.0
  %4509 = vmatpush1.msra.mxu0 0.0
  %4510 = vmatprep.subr.mxu0 0.0
  %4511 = vmatpush1.msra.mxu0 0.0
  %4512 = vmatprep.subr.mxu0 0.0
  %4513 = vmatpush1.msra.mxu0 0.0
  %4514 = vmatprep.subr.mxu0 0.0
  %4515 = vmatpush1.msra.mxu0 0.0
  %4516 = vmatprep.subr.mxu0 0.0
  %4517 = vmatpush1.msra.mxu0 0.0
  %4518 = vmatprep.subr.mxu0 0.0
  %4519 = vmatpush1.msra.mxu0 0.0
  %4520 = vmatprep.subr.mxu0 0.0
  %4521 = vmatpush1.msra.mxu0 0.0
  %4522 = vmatprep.subr.mxu0 0.0
  %4523 = vmatpush1.msra.mxu0 0.0
  %4524 = vmatprep.subr.mxu0 0.0
  %4525 = vmatpush1.msra.mxu0 0.0
  %4526 = vmatprep.subr.mxu0 0.0
  %4527 = vmatpush1.msra.mxu0 0.0
  %4528 = vmatprep.subr.mxu0 0.0
  %4529 = vmatpush1.msra.mxu0 0.0
  %4530 = vmatprep.subr.mxu0 0.0
  %4531 = vmatpush1.msra.mxu0 0.0
  %4532 = vmatprep.subr.mxu0 0.0
  %4533 = vmatpush1.msra.mxu0 0.0
  %4534 = vmatprep.subr.mxu0 0.0
  %4535 = vmatpush1.msra.mxu0 0.0
  %4536 = vmatprep.subr.mxu0 0.0
  %4537 = vmatpush1.msra.mxu0 0.0
  %4538 = vmatprep.subr.mxu0 0.0
  %4539 = vmatpush1.msra.mxu0 0.0
  %4540 = vmatprep.subr.mxu0 0.0
  %4541 = vmatpush1.msra.mxu0 0.0
  %4542 = vmatprep.mubr.f32.mxu0 0.0
  %4543 = vmatmul.mubr.f32.gmra.mrb[0].mxu0 %v4476
  %v4544 = vpop.f32.mrb[0].mxu0
  %v4545 = vadd.f32 %v740, %v4544
  %v4546 = vpop.f32.mrb[0].mxu0
  %v4547 = vadd.f32 %v744, %v4546
  %4548 = vdwg.mxu0
  %4549 = vmatprep.subr.mxu0 0.0
  %4550 = vmatpush1.msra.mxu0 %v4453
  %4551 = vmatprep.subr.mxu0 0.0
  %4552 = vmatpush1.msra.mxu0 %v4456
  %4553 = vmatprep.subr.mxu0 0.0
  %4554 = vmatpush1.msra.mxu0 %v4459
  %4555 = vmatprep.subr.mxu0 0.0
  %4556 = vmatpush1.msra.mxu0 %v4462
  %4557 = vmatprep.subr.mxu0 0.0
  %4558 = vmatpush1.msra.mxu0 %v4465
  %4559 = vmatprep.subr.mxu0 0.0
  %4560 = vmatpush1.msra.mxu0 %v4468
  %4561 = vmatprep.subr.mxu0 0.0
  %4562 = vmatpush1.msra.mxu0 %v4471
  %4563 = vmatprep.subr.mxu0 0.0
  %4564 = vmatpush1.msra.mxu0 %v4474
  %4565 = vmatprep.subr.mxu0 0.0
  %4566 = vmatpush1.msra.mxu0 0.0
  %4567 = vmatprep.subr.mxu0 0.0
  %4568 = vmatpush1.msra.mxu0 0.0
  %4569 = vmatprep.subr.mxu0 0.0
  %4570 = vmatpush1.msra.mxu0 0.0
  %4571 = vmatprep.subr.mxu0 0.0
  %4572 = vmatpush1.msra.mxu0 0.0
  %4573 = vmatprep.subr.mxu0 0.0
  %4574 = vmatpush1.msra.mxu0 0.0
  %4575 = vmatprep.subr.mxu0 0.0
  %4576 = vmatpush1.msra.mxu0 0.0
  %4577 = vmatprep.subr.mxu0 0.0
  %4578 = vmatpush1.msra.mxu0 0.0
  %4579 = vmatprep.subr.mxu0 0.0
  %4580 = vmatpush1.msra.mxu0 0.0
  %4581 = vmatprep.subr.mxu0 0.0
  %4582 = vmatpush1.msra.mxu0 0.0
  %4583 = vmatprep.subr.mxu0 0.0
  %4584 = vmatpush1.msra.mxu0 0.0
  %4585 = vmatprep.subr.mxu0 0.0
  %4586 = vmatpush1.msra.mxu0 0.0
  %4587 = vmatprep.subr.mxu0 0.0
  %4588 = vmatpush1.msra.mxu0 0.0
  %4589 = vmatprep.subr.mxu0 0.0
  %4590 = vmatpush1.msra.mxu0 0.0
  %4591 = vmatprep.subr.mxu0 0.0
  %4592 = vmatpush1.msra.mxu0 0.0
  %4593 = vmatprep.subr.mxu0 0.0
  %4594 = vmatpush1.msra.mxu0 0.0
  %4595 = vmatprep.subr.mxu0 0.0
  %4596 = vmatpush1.msra.mxu0 0.0
  %4597 = vmatprep.subr.mxu0 0.0
  %4598 = vmatpush1.msra.mxu0 0.0
  %4599 = vmatprep.subr.mxu0 0.0
  %4600 = vmatpush1.msra.mxu0 0.0
  %4601 = vmatprep.subr.mxu0 0.0
  %4602 = vmatpush1.msra.mxu0 0.0
  %4603 = vmatprep.subr.mxu0 0.0
  %4604 = vmatpush1.msra.mxu0 0.0
  %4605 = vmatprep.subr.mxu0 0.0
  %4606 = vmatpush1.msra.mxu0 0.0
  %4607 = vmatprep.subr.mxu0 0.0
  %4608 = vmatpush1.msra.mxu0 0.0
  %4609 = vmatprep.subr.mxu0 0.0
  %4610 = vmatpush1.msra.mxu0 0.0
  %4611 = vmatprep.subr.mxu0 0.0
  %4612 = vmatpush1.msra.mxu0 0.0
  %4613 = vmatprep.mubr.f32.mxu0 0.0
  %4614 = vmatmul.mubr.f32.gmra.mrb[0].mxu0 %v4476
  %v4615 = vpop.f32.mrb[0].mxu0
  %v4616 = vadd.f32 %v748, %v4615
  %v4617 = vpop.f32.mrb[0].mxu0
  %4618 = vdwg.mxu0
  %4619 = vst [vmem:[#allocation6 + $0xa8] sm:$0xff] %v4545
  %4620 = vst [vmem:[#allocation6 + $0xb0] sm:$0xff] %v4547
  %4621 = vst [vmem:[#allocation6 + $0xb8] sm:$0xff] %v4616
  %v4622 = vld [vmem:[#allocation3 + $0xc0] sm:$0xff]
  %v4623 = vld [vmem:[#allocation3 + $0xc8] sm:$0xff]
  %v4624 = vld [vmem:[#allocation3 + $0xd0] sm:$0xff]
  %v4625 = vld [vmem:[#allocation3 + $0xd8] sm:$0xff]
  %v4626 = vld [vmem:[#allocation3 + $0xe0] sm:$0xff]
  %v4627 = vld [vmem:[#allocation3 + $0xe8] sm:$0xff]
  %v4628 = vld [vmem:[#allocation3 + $0xf0] sm:$0xff]
  %v4629 = vld [vmem:[#allocation3 + $0xf8] sm:$0xff]
  %v4630 = vld [vmem:[#allocation3 + $0x100] sm:$0xff]
  %v4631 = vld [vmem:[#allocation3 + $0x108] sm:$0xff]
  %v4632 = vld [vmem:[#allocation3 + $0x110] sm:$0xff]
  %v4633 = vld [vmem:[#allocation3 + $0x118] sm:$0xff]
  %v4634 = vld [vmem:[#allocation3 + $0x120] sm:$0xff]
  %v4635 = vld [vmem:[#allocation3 + $0x128] sm:$0xff]
  %v4636 = vld [vmem:[#allocation3 + $0x130] sm:$0xff]
  %v4637 = vld [vmem:[#allocation3 + $0x138] sm:$0xff]
  %v4638 = vld [vmem:[#allocation3 + $0x140] sm:$0xff]
  %v4639 = vld [vmem:[#allocation3 + $0x148] sm:$0xff]
  %v4640 = vld [vmem:[#allocation3 + $0x150] sm:$0xff]
  %v4641 = vld [vmem:[#allocation3 + $0x158] sm:$0xff]
  %v4642 = vld [vmem:[#allocation3 + $0x160] sm:$0xff]
  %v4643 = vld [vmem:[#allocation3 + $0x168] sm:$0xff]
  %v4644 = vld [vmem:[#allocation3 + $0x170] sm:$0xff]
  %v4645 = vld [vmem:[#allocation3 + $0x178] sm:$0xff]
  %4646 = vmatprep.subr.mxu0 %v4623
  %4647 = vmatpush1.msra.mxu0 %v4622
  %4648 = vmatprep.subr.mxu0 %v4626
  %4649 = vmatpush1.msra.mxu0 %v4625
  %4650 = vmatprep.subr.mxu0 %v4629
  %4651 = vmatpush1.msra.mxu0 %v4628
  %4652 = vmatprep.subr.mxu0 %v4632
  %4653 = vmatpush1.msra.mxu0 %v4631
  %4654 = vmatprep.subr.mxu0 %v4635
  %4655 = vmatpush1.msra.mxu0 %v4634
  %4656 = vmatprep.subr.mxu0 %v4638
  %4657 = vmatpush1.msra.mxu0 %v4637
  %4658 = vmatprep.subr.mxu0 %v4641
  %4659 = vmatpush1.msra.mxu0 %v4640
  %4660 = vmatprep.subr.mxu0 %v4644
  %4661 = vmatpush1.msra.mxu0 %v4643
  %4662 = vmatprep.subr.mxu0 0.0
  %4663 = vmatpush1.msra.mxu0 0.0
  %4664 = vmatprep.subr.mxu0 0.0
  %4665 = vmatpush1.msra.mxu0 0.0
  %4666 = vmatprep.subr.mxu0 0.0
  %4667 = vmatpush1.msra.mxu0 0.0
  %4668 = vmatprep.subr.mxu0 0.0
  %4669 = vmatpush1.msra.mxu0 0.0
  %4670 = vmatprep.subr.mxu0 0.0
  %4671 = vmatpush1.msra.mxu0 0.0
  %4672 = vmatprep.subr.mxu0 0.0
  %4673 = vmatpush1.msra.mxu0 0.0
  %4674 = vmatprep.subr.mxu0 0.0
  %4675 = vmatpush1.msra.mxu0 0.0
  %4676 = vmatprep.subr.mxu0 0.0
  %4677 = vmatpush1.msra.mxu0 0.0
  %4678 = vmatprep.subr.mxu0 0.0
  %4679 = vmatpush1.msra.mxu0 0.0
  %4680 = vmatprep.subr.mxu0 0.0
  %4681 = vmatpush1.msra.mxu0 0.0
  %4682 = vmatprep.subr.mxu0 0.0
  %4683 = vmatpush1.msra.mxu0 0.0
  %4684 = vmatprep.subr.mxu0 0.0
  %4685 = vmatpush1.msra.mxu0 0.0
  %4686 = vmatprep.subr.mxu0 0.0
  %4687 = vmatpush1.msra.mxu0 0.0
  %4688 = vmatprep.subr.mxu0 0.0
  %4689 = vmatpush1.msra.mxu0 0.0
  %4690 = vmatprep.subr.mxu0 0.0
  %4691 = vmatpush1.msra.mxu0 0.0
  %4692 = vmatprep.subr.mxu0 0.0
  %4693 = vmatpush1.msra.mxu0 0.0
  %4694 = vmatprep.subr.mxu0 0.0
  %4695 = vmatpush1.msra.mxu0 0.0
  %4696 = vmatprep.subr.mxu0 0.0
  %4697 = vmatpush1.msra.mxu0 0.0
  %4698 = vmatprep.subr.mxu0 0.0
  %4699 = vmatpush1.msra.mxu0 0.0
  %4700 = vmatprep.subr.mxu0 0.0
  %4701 = vmatpush1.msra.mxu0 0.0
  %4702 = vmatprep.subr.mxu0 0.0
  %4703 = vmatpush1.msra.mxu0 0.0
  %4704 = vmatprep.subr.mxu0 0.0
  %4705 = vmatpush1.msra.mxu0 0.0
  %4706 = vmatprep.subr.mxu0 0.0
  %4707 = vmatpush1.msra.mxu0 0.0
  %4708 = vmatprep.subr.mxu0 0.0
  %4709 = vmatpush1.msra.mxu0 0.0
  %4710 = vmatprep.mubr.f32.mxu0 0.0
  %4711 = vmatmul.mubr.f32.gmra.mrb[0].mxu0 %v4476
  %v4712 = vpop.f32.mrb[0].mxu0
  %v4713 = vadd.f32 0.0, %v4712
  %v4714 = vpop.f32.mrb[0].mxu0
  %v4715 = vadd.f32 0.0, %v4714
  %4716 = vdwg.mxu0
  %4717 = vmatprep.subr.mxu0 0.0
  %4718 = vmatpush1.msra.mxu0 %v4624
  %4719 = vmatprep.subr.mxu0 0.0
  %4720 = vmatpush1.msra.mxu0 %v4627
  %4721 = vmatprep.subr.mxu0 0.0
  %4722 = vmatpush1.msra.mxu0 %v4630
  %4723 = vmatprep.subr.mxu0 0.0
  %4724 = vmatpush1.msra.mxu0 %v4633
  %4725 = vmatprep.subr.mxu0 0.0
  %4726 = vmatpush1.msra.mxu0 %v4636
  %4727 = vmatprep.subr.mxu0 0.0
  %4728 = vmatpush1.msra.mxu0 %v4639
  %4729 = vmatprep.subr.mxu0 0.0
  %4730 = vmatpush1.msra.mxu0 %v4642
  %4731 = vmatprep.subr.mxu0 0.0
  %4732 = vmatpush1.msra.mxu0 %v4645
  %4733 = vmatprep.subr.mxu0 0.0
  %4734 = vmatpush1.msra.mxu0 0.0
  %4735 = vmatprep.subr.mxu0 0.0
  %4736 = vmatpush1.msra.mxu0 0.0
  %4737 = vmatprep.subr.mxu0 0.0
  %4738 = vmatpush1.msra.mxu0 0.0
  %4739 = vmatprep.subr.mxu0 0.0
  %4740 = vmatpush1.msra.mxu0 0.0
  %4741 = vmatprep.subr.mxu0 0.0
  %4742 = vmatpush1.msra.mxu0 0.0
  %4743 = vmatprep.subr.mxu0 0.0
  %4744 = vmatpush1.msra.mxu0 0.0
  %4745 = vmatprep.subr.mxu0 0.0
  %4746 = vmatpush1.msra.mxu0 0.0
  %4747 = vmatprep.subr.mxu0 0.0
  %4748 = vmatpush1.msra.mxu0 0.0
  %4749 = vmatprep.subr.mxu0 0.0
  %4750 = vmatpush1.msra.mxu0 0.0
  %4751 = vmatprep.subr.mxu0 0.0
  %4752 = vmatpush1.msra.mxu0 0.0
  %4753 = vmatprep.subr.mxu0 0.0
  %4754 = vmatpush1.msra.mxu0 0.0
  %4755 = vmatprep.subr.mxu0 0.0
  %4756 = vmatpush1.msra.mxu0 0.0
  %4757 = vmatprep.subr.mxu0 0.0
  %4758 = vmatpush1.msra.mxu0 0.0
  %4759 = vmatprep.subr.mxu0 0.0
  %4760 = vmatpush1.msra.mxu0 0.0
  %4761 = vmatprep.subr.mxu0 0.0
  %4762 = vmatpush1.msra.mxu0 0.0
  %4763 = vmatprep.subr.mxu0 0.0
  %4764 = vmatpush1.msra.mxu0 0.0
  %4765 = vmatprep.subr.mxu0 0.0
  %4766 = vmatpush1.msra.mxu0 0.0
  %4767 = vmatprep.subr.mxu0 0.0
  %4768 = vmatpush1.msra.mxu0 0.0
  %4769 = vmatprep.subr.mxu0 0.0
  %4770 = vmatpush1.msra.mxu0 0.0
  %4771 = vmatprep.subr.mxu0 0.0
  %4772 = vmatpush1.msra.mxu0 0.0
  %4773 = vmatprep.subr.mxu0 0.0
  %4774 = vmatpush1.msra.mxu0 0.0
  %4775 = vmatprep.subr.mxu0 0.0
  %4776 = vmatpush1.msra.mxu0 0.0
  %4777 = vmatprep.subr.mxu0 0.0
  %4778 = vmatpush1.msra.mxu0 0.0
  %4779 = vmatprep.subr.mxu0 0.0
  %4780 = vmatpush1.msra.mxu0 0.0
  %4781 = vmatprep.mubr.f32.mxu0 0.0
  %4782 = vmatmul.mubr.f32.gmra.mrb[0].mxu0 %v4476
  %v4783 = vpop.f32.mrb[0].mxu0
  %v4784 = vadd.f32 0.0, %v4783
  %v4785 = vpop.f32.mrb[0].mxu0
  %4786 = vdwg.mxu0
  %4787 = vst [vmem:[#allocation7 + $0xa8] sm:$0xff] %v4713
  %4788 = vst [vmem:[#allocation7 + $0xb0] sm:$0xff] %v4715
  %4789 = vst [vmem:[#allocation7 + $0xb8] sm:$0xff] %v4784
  %s4790 = smul.u32 8, 8
  %s4791 = smul.u32 %s4790, 3
  %s4792 = sshll.u32 %s4791, 4
  %4793 = dma.done %s296, %s4792
  %v4794 = vld [vmem:[#allocation4] sm:$0xff]
  %v4795 = vld [vmem:[#allocation4 + $0x8] sm:$0xff]
  %v4796 = vld [vmem:[#allocation4 + $0x10] sm:$0xff]
  %v4797 = vld [vmem:[#allocation4 + $0x18] sm:$0xff]
  %v4798 = vld [vmem:[#allocation4 + $0x20] sm:$0xff]
  %v4799 = vld [vmem:[#allocation4 + $0x28] sm:$0xff]
  %v4800 = vld [vmem:[#allocation4 + $0x30] sm:$0xff]
  %v4801 = vld [vmem:[#allocation4 + $0x38] sm:$0xff]
  %v4802 = vld [vmem:[#allocation4 + $0x40] sm:$0xff]
  %v4803 = vld [vmem:[#allocation4 + $0x48] sm:$0xff]
  %v4804 = vld [vmem:[#allocation4 + $0x50] sm:$0xff]
  %v4805 = vld [vmem:[#allocation4 + $0x58] sm:$0xff]
  %v4806 = vld [vmem:[#allocation4 + $0x60] sm:$0xff]
  %v4807 = vld [vmem:[#allocation4 + $0x68] sm:$0xff]
  %v4808 = vld [vmem:[#allocation4 + $0x70] sm:$0xff]
  %v4809 = vld [vmem:[#allocation4 + $0x78] sm:$0xff]
  %v4810 = vld [vmem:[#allocation4 + $0x80] sm:$0xff]
  %v4811 = vld [vmem:[#allocation4 + $0x88] sm:$0xff]
  %v4812 = vld [vmem:[#allocation4 + $0x90] sm:$0xff]
  %v4813 = vld [vmem:[#allocation4 + $0x98] sm:$0xff]
  %v4814 = vld [vmem:[#allocation4 + $0xa0] sm:$0xff]
  %v4815 = vld [vmem:[#allocation4 + $0xa8] sm:$0xff]
  %v4816 = vld [vmem:[#allocation4 + $0xb0] sm:$0xff]
  %v4817 = vld [vmem:[#allocation4 + $0xb8] sm:$0xff]
  %v4818 = vld [vmem:[%s2 + $0x3] sm:$0x1]
  %v4819 = vlaneseq
  %v4820 = vshrl.u32 %v4819, 7
  %v4821 = vsub.s32 0, %v4820
  %v4822 = vrot.slane %v4818, %v4821
  %s4823 = scalar_lea.vmem %s1, 8
  %v4824 = vld [vmem:[%s4823] sm:$0xff]
  %v4825 = vld [vmem:[#allocation6] sm:$0xff]
  %v4826 = vld [vmem:[#allocation6 + $0x8] sm:$0xff]
  %v4827 = vld [vmem:[#allocation6 + $0x10] sm:$0xff]
  %v4828 = vld [vmem:[#allocation7 + $0xa8] sm:$0xff]
  %v4829 = vld [vmem:[#allocation7 + $0xb0] sm:$0xff]
  %v4830 = vld [vmem:[#allocation7 + $0xb8] sm:$0xff]
  %v4831 = vadd.f32 %v4825, %v4828
  %v4832 = vadd.f32 %v4826, %v4829
  %v4833 = vadd.f32 %v4827, %v4830
  %v4835 = vsel %vm438, %v4824, 0
  %4837 = vmatprep.subr.mxu0 %v4795
  %4838 = vmatpush1.msra.mxu0 %v4794
  %4839 = vmatprep.subr.mxu0 %v4798
  %4840 = vmatpush1.msra.mxu0 %v4797
  %4841 = vmatprep.subr.mxu0 %v4801
  %4842 = vmatpush1.msra.mxu0 %v4800
  %4843 = vmatprep.subr.mxu0 %v4804
  %4844 = vmatpush1.msra.mxu0 %v4803
  %4845 = vmatprep.subr.mxu0 %v4807
  %4846 = vmatpush1.msra.mxu0 %v4806
  %4847 = vmatprep.subr.mxu0 %v4810
  %4848 = vmatpush1.msra.mxu0 %v4809
  %4849 = vmatprep.subr.mxu0 %v4813
  %4850 = vmatpush1.msra.mxu0 %v4812
  %4851 = vmatprep.subr.mxu0 %v4816
  %4852 = vmatpush1.msra.mxu0 %v4815
  %4853 = vmatprep.subr.mxu0 0.0
  %4854 = vmatpush1.msra.mxu0 0.0
  %4855 = vmatprep.subr.mxu0 0.0
  %4856 = vmatpush1.msra.mxu0 0.0
  %4857 = vmatprep.subr.mxu0 0.0
  %4858 = vmatpush1.msra.mxu0 0.0
  %4859 = vmatprep.subr.mxu0 0.0
  %4860 = vmatpush1.msra.mxu0 0.0
  %4861 = vmatprep.subr.mxu0 0.0
  %4862 = vmatpush1.msra.mxu0 0.0
  %4863 = vmatprep.subr.mxu0 0.0
  %4864 = vmatpush1.msra.mxu0 0.0
  %4865 = vmatprep.subr.mxu0 0.0
  %4866 = vmatpush1.msra.mxu0 0.0
  %4867 = vmatprep.subr.mxu0 0.0
  %4868 = vmatpush1.msra.mxu0 0.0
  %4869 = vmatprep.subr.mxu0 0.0
  %4870 = vmatpush1.msra.mxu0 0.0
  %4871 = vmatprep.subr.mxu0 0.0
  %4872 = vmatpush1.msra.mxu0 0.0
  %4873 = vmatprep.subr.mxu0 0.0
  %4874 = vmatpush1.msra.mxu0 0.0
  %4875 = vmatprep.subr.mxu0 0.0
  %4876 = vmatpush1.msra.mxu0 0.0
  %4877 = vmatprep.subr.mxu0 0.0
  %4878 = vmatpush1.msra.mxu0 0.0
  %4879 = vmatprep.subr.mxu0 0.0
  %4880 = vmatpush1.msra.mxu0 0.0
  %4881 = vmatprep.subr.mxu0 0.0
  %4882 = vmatpush1.msra.mxu0 0.0
  %4883 = vmatprep.subr.mxu0 0.0
  %4884 = vmatpush1.msra.mxu0 0.0
  %4885 = vmatprep.subr.mxu0 0.0
  %4886 = vmatpush1.msra.mxu0 0.0
  %4887 = vmatprep.subr.mxu0 0.0
  %4888 = vmatpush1.msra.mxu0 0.0
  %4889 = vmatprep.subr.mxu0 0.0
  %4890 = vmatpush1.msra.mxu0 0.0
  %4891 = vmatprep.subr.mxu0 0.0
  %4892 = vmatpush1.msra.mxu0 0.0
  %4893 = vmatprep.subr.mxu0 0.0
  %4894 = vmatpush1.msra.mxu0 0.0
  %4895 = vmatprep.subr.mxu0 0.0
  %4896 = vmatpush1.msra.mxu0 0.0
  %4897 = vmatprep.subr.mxu0 0.0
  %4898 = vmatpush1.msra.mxu0 0.0
  %4899 = vmatprep.subr.mxu0 0.0
  %4900 = vmatpush1.msra.mxu0 0.0
  %4901 = vmatprep.mubr.f32.mxu0 0.0
  %4902 = vmatmul.mubr.f32.gmra.mrb[0].mxu0 %v4835
  %v4903 = vpop.f32.mrb[0].mxu0
  %v4904 = vadd.f32 0.0, %v4903
  %v4905 = vpop.f32.mrb[0].mxu0
  %v4906 = vadd.f32 0.0, %v4905
  %4907 = vdwg.mxu0
  %4908 = vmatprep.subr.mxu0 0.0
  %4909 = vmatpush1.msra.mxu0 %v4796
  %4910 = vmatprep.subr.mxu0 0.0
  %4911 = vmatpush1.msra.mxu0 %v4799
  %4912 = vmatprep.subr.mxu0 0.0
  %4913 = vmatpush1.msra.mxu0 %v4802
  %4914 = vmatprep.subr.mxu0 0.0
  %4915 = vmatpush1.msra.mxu0 %v4805
  %4916 = vmatprep.subr.mxu0 0.0
  %4917 = vmatpush1.msra.mxu0 %v4808
  %4918 = vmatprep.subr.mxu0 0.0
  %4919 = vmatpush1.msra.mxu0 %v4811
  %4920 = vmatprep.subr.mxu0 0.0
  %4921 = vmatpush1.msra.mxu0 %v4814
  %4922 = vmatprep.subr.mxu0 0.0
  %4923 = vmatpush1.msra.mxu0 %v4817
  %4924 = vmatprep.subr.mxu0 0.0
  %4925 = vmatpush1.msra.mxu0 0.0
  %4926 = vmatprep.subr.mxu0 0.0
  %4927 = vmatpush1.msra.mxu0 0.0
  %4928 = vmatprep.subr.mxu0 0.0
  %4929 = vmatpush1.msra.mxu0 0.0
  %4930 = vmatprep.subr.mxu0 0.0
  %4931 = vmatpush1.msra.mxu0 0.0
  %4932 = vmatprep.subr.mxu0 0.0
  %4933 = vmatpush1.msra.mxu0 0.0
  %4934 = vmatprep.subr.mxu0 0.0
  %4935 = vmatpush1.msra.mxu0 0.0
  %4936 = vmatprep.subr.mxu0 0.0
  %4937 = vmatpush1.msra.mxu0 0.0
  %4938 = vmatprep.subr.mxu0 0.0
  %4939 = vmatpush1.msra.mxu0 0.0
  %4940 = vmatprep.subr.mxu0 0.0
  %4941 = vmatpush1.msra.mxu0 0.0
  %4942 = vmatprep.subr.mxu0 0.0
  %4943 = vmatpush1.msra.mxu0 0.0
  %4944 = vmatprep.subr.mxu0 0.0
  %4945 = vmatpush1.msra.mxu0 0.0
  %4946 = vmatprep.subr.mxu0 0.0
  %4947 = vmatpush1.msra.mxu0 0.0
  %4948 = vmatprep.subr.mxu0 0.0
  %4949 = vmatpush1.msra.mxu0 0.0
  %4950 = vmatprep.subr.mxu0 0.0
  %4951 = vmatpush1.msra.mxu0 0.0
  %4952 = vmatprep.subr.mxu0 0.0
  %4953 = vmatpush1.msra.mxu0 0.0
  %4954 = vmatprep.subr.mxu0 0.0
  %4955 = vmatpush1.msra.mxu0 0.0
  %4956 = vmatprep.subr.mxu0 0.0
  %4957 = vmatpush1.msra.mxu0 0.0
  %4958 = vmatprep.subr.mxu0 0.0
  %4959 = vmatpush1.msra.mxu0 0.0
  %4960 = vmatprep.subr.mxu0 0.0
  %4961 = vmatpush1.msra.mxu0 0.0
  %4962 = vmatprep.subr.mxu0 0.0
  %4963 = vmatpush1.msra.mxu0 0.0
  %4964 = vmatprep.subr.mxu0 0.0
  %4965 = vmatpush1.msra.mxu0 0.0
  %4966 = vmatprep.subr.mxu0 0.0
  %4967 = vmatpush1.msra.mxu0 0.0
  %4968 = vmatprep.subr.mxu0 0.0
  %4969 = vmatpush1.msra.mxu0 0.0
  %4970 = vmatprep.subr.mxu0 0.0
  %4971 = vmatpush1.msra.mxu0 0.0
  %4972 = vmatprep.mubr.f32.mxu0 0.0
  %4973 = vmatmul.mubr.f32.gmra.mrb[0].mxu0 %v4835
  %v4974 = vpop.f32.mrb[0].mxu0
  %v4975 = vadd.f32 0.0, %v4974
  %v4976 = vpop.f32.mrb[0].mxu0
  %4977 = vdwg.mxu0
  %v4978 = vadd.f32 %v4831, %v4904
  %v4979 = vxor.u32 %v4978, 2147483648
  %v4980 = vmul.f32 %v4979, 1.442695
  %v4981 = vpow.pop %v4980
  %v4982 = vadd.f32 %v4981, 1.0
  %v4983 = vrcp.pop %v4982
  %v4984 = vmul.f32 1.0, %v4983
  %v4985 = vadd.f32 %v4832, %v4906
  %v4986 = vxor.u32 %v4985, 2147483648
  %v4987 = vmul.f32 %v4986, 1.442695
  %v4988 = vpow.pop %v4987
  %v4989 = vadd.f32 %v4988, 1.0
  %v4990 = vrcp.pop %v4989
  %v4991 = vmul.f32 1.0, %v4990
  %v4992 = vadd.f32 %v4975, %v4822
  %v4993 = vmul.f32 %v4984, %v4992
  %v4994 = vadd.f32 %v4833, %v4993
  %v4995 = vtanh.pop %v4994
  %v4996 = vsub.f32 %v4824, %v4995
  %v4997 = vmul.f32 %v4991, %v4996
  %v4998 = vadd.f32 %v4995, %v4997
  %v4999 = vld [vmem:[#allocation6 + $0x18] sm:$0xff]
  %v5000 = vld [vmem:[#allocation6 + $0x20] sm:$0xff]
  %v5001 = vld [vmem:[#allocation6 + $0x28] sm:$0xff]
  %v5002 = vld [vmem:[#allocation7 + $0x90] sm:$0xff]
  %v5003 = vld [vmem:[#allocation7 + $0x98] sm:$0xff]
  %v5004 = vld [vmem:[#allocation7 + $0xa0] sm:$0xff]
  %v5005 = vadd.f32 %v4999, %v5002
  %v5006 = vadd.f32 %v5000, %v5003
  %v5007 = vadd.f32 %v5001, %v5004
  %v5009 = vsel %vm438, %v4998, 0
  %5011 = vmatprep.subr.mxu0 %v4795
  %5012 = vmatpush1.msra.mxu0 %v4794
  %5013 = vmatprep.subr.mxu0 %v4798
  %5014 = vmatpush1.msra.mxu0 %v4797
  %5015 = vmatprep.subr.mxu0 %v4801
  %5016 = vmatpush1.msra.mxu0 %v4800
  %5017 = vmatprep.subr.mxu0 %v4804
  %5018 = vmatpush1.msra.mxu0 %v4803
  %5019 = vmatprep.subr.mxu0 %v4807
  %5020 = vmatpush1.msra.mxu0 %v4806
  %5021 = vmatprep.subr.mxu0 %v4810
  %5022 = vmatpush1.msra.mxu0 %v4809
  %5023 = vmatprep.subr.mxu0 %v4813
  %5024 = vmatpush1.msra.mxu0 %v4812
  %5025 = vmatprep.subr.mxu0 %v4816
  %5026 = vmatpush1.msra.mxu0 %v4815
  %5027 = vmatprep.subr.mxu0 0.0
  %5028 = vmatpush1.msra.mxu0 0.0
  %5029 = vmatprep.subr.mxu0 0.0
  %5030 = vmatpush1.msra.mxu0 0.0
  %5031 = vmatprep.subr.mxu0 0.0
  %5032 = vmatpush1.msra.mxu0 0.0
  %5033 = vmatprep.subr.mxu0 0.0
  %5034 = vmatpush1.msra.mxu0 0.0
  %5035 = vmatprep.subr.mxu0 0.0
  %5036 = vmatpush1.msra.mxu0 0.0
  %5037 = vmatprep.subr.mxu0 0.0
  %5038 = vmatpush1.msra.mxu0 0.0
  %5039 = vmatprep.subr.mxu0 0.0
  %5040 = vmatpush1.msra.mxu0 0.0
  %5041 = vmatprep.subr.mxu0 0.0
  %5042 = vmatpush1.msra.mxu0 0.0
  %5043 = vmatprep.subr.mxu0 0.0
  %5044 = vmatpush1.msra.mxu0 0.0
  %5045 = vmatprep.subr.mxu0 0.0
  %5046 = vmatpush1.msra.mxu0 0.0
  %5047 = vmatprep.subr.mxu0 0.0
  %5048 = vmatpush1.msra.mxu0 0.0
  %5049 = vmatprep.subr.mxu0 0.0
  %5050 = vmatpush1.msra.mxu0 0.0
  %5051 = vmatprep.subr.mxu0 0.0
  %5052 = vmatpush1.msra.mxu0 0.0
  %5053 = vmatprep.subr.mxu0 0.0
  %5054 = vmatpush1.msra.mxu0 0.0
  %5055 = vmatprep.subr.mxu0 0.0
  %5056 = vmatpush1.msra.mxu0 0.0
  %5057 = vmatprep.subr.mxu0 0.0
  %5058 = vmatpush1.msra.mxu0 0.0
  %5059 = vmatprep.subr.mxu0 0.0
  %5060 = vmatpush1.msra.mxu0 0.0
  %5061 = vmatprep.subr.mxu0 0.0
  %5062 = vmatpush1.msra.mxu0 0.0
  %5063 = vmatprep.subr.mxu0 0.0
  %5064 = vmatpush1.msra.mxu0 0.0
  %5065 = vmatprep.subr.mxu0 0.0
  %5066 = vmatpush1.msra.mxu0 0.0
  %5067 = vmatprep.subr.mxu0 0.0
  %5068 = vmatpush1.msra.mxu0 0.0
  %5069 = vmatprep.subr.mxu0 0.0
  %5070 = vmatpush1.msra.mxu0 0.0
  %5071 = vmatprep.subr.mxu0 0.0
  %5072 = vmatpush1.msra.mxu0 0.0
  %5073 = vmatprep.subr.mxu0 0.0
  %5074 = vmatpush1.msra.mxu0 0.0
  %5075 = vmatprep.mubr.f32.mxu0 0.0
  %5076 = vmatmul.mubr.f32.gmra.mrb[0].mxu0 %v5009
  %v5077 = vpop.f32.mrb[0].mxu0
  %v5078 = vadd.f32 0.0, %v5077
  %v5079 = vpop.f32.mrb[0].mxu0
  %v5080 = vadd.f32 0.0, %v5079
  %5081 = vdwg.mxu0
  %5082 = vmatprep.subr.mxu0 0.0
  %5083 = vmatpush1.msra.mxu0 %v4796
  %5084 = vmatprep.subr.mxu0 0.0
  %5085 = vmatpush1.msra.mxu0 %v4799
  %5086 = vmatprep.subr.mxu0 0.0
  %5087 = vmatpush1.msra.mxu0 %v4802
  %5088 = vmatprep.subr.mxu0 0.0
  %5089 = vmatpush1.msra.mxu0 %v4805
  %5090 = vmatprep.subr.mxu0 0.0
  %5091 = vmatpush1.msra.mxu0 %v4808
  %5092 = vmatprep.subr.mxu0 0.0
  %5093 = vmatpush1.msra.mxu0 %v4811
  %5094 = vmatprep.subr.mxu0 0.0
  %5095 = vmatpush1.msra.mxu0 %v4814
  %5096 = vmatprep.subr.mxu0 0.0
  %5097 = vmatpush1.msra.mxu0 %v4817
  %5098 = vmatprep.subr.mxu0 0.0
  %5099 = vmatpush1.msra.mxu0 0.0
  %5100 = vmatprep.subr.mxu0 0.0
  %5101 = vmatpush1.msra.mxu0 0.0
  %5102 = vmatprep.subr.mxu0 0.0
  %5103 = vmatpush1.msra.mxu0 0.0
  %5104 = vmatprep.subr.mxu0 0.0
  %5105 = vmatpush1.msra.mxu0 0.0
  %5106 = vmatprep.subr.mxu0 0.0
  %5107 = vmatpush1.msra.mxu0 0.0
  %5108 = vmatprep.subr.mxu0 0.0
  %5109 = vmatpush1.msra.mxu0 0.0
  %5110 = vmatprep.subr.mxu0 0.0
  %5111 = vmatpush1.msra.mxu0 0.0
  %5112 = vmatprep.subr.mxu0 0.0
  %5113 = vmatpush1.msra.mxu0 0.0
  %5114 = vmatprep.subr.mxu0 0.0
  %5115 = vmatpush1.msra.mxu0 0.0
  %5116 = vmatprep.subr.mxu0 0.0
  %5117 = vmatpush1.msra.mxu0 0.0
  %5118 = vmatprep.subr.mxu0 0.0
  %5119 = vmatpush1.msra.mxu0 0.0
  %5120 = vmatprep.subr.mxu0 0.0
  %5121 = vmatpush1.msra.mxu0 0.0
  %5122 = vmatprep.subr.mxu0 0.0
  %5123 = vmatpush1.msra.mxu0 0.0
  %5124 = vmatprep.subr.mxu0 0.0
  %5125 = vmatpush1.msra.mxu0 0.0
  %5126 = vmatprep.subr.mxu0 0.0
  %5127 = vmatpush1.msra.mxu0 0.0
  %5128 = vmatprep.subr.mxu0 0.0
  %5129 = vmatpush1.msra.mxu0 0.0
  %5130 = vmatprep.subr.mxu0 0.0
  %5131 = vmatpush1.msra.mxu0 0.0
  %5132 = vmatprep.subr.mxu0 0.0
  %5133 = vmatpush1.msra.mxu0 0.0
  %5134 = vmatprep.subr.mxu0 0.0
  %5135 = vmatpush1.msra.mxu0 0.0
  %5136 = vmatprep.subr.mxu0 0.0
  %5137 = vmatpush1.msra.mxu0 0.0
  %5138 = vmatprep.subr.mxu0 0.0
  %5139 = vmatpush1.msra.mxu0 0.0
  %5140 = vmatprep.subr.mxu0 0.0
  %5141 = vmatpush1.msra.mxu0 0.0
  %5142 = vmatprep.subr.mxu0 0.0
  %5143 = vmatpush1.msra.mxu0 0.0
  %5144 = vmatprep.subr.mxu0 0.0
  %5145 = vmatpush1.msra.mxu0 0.0
  %5146 = vmatprep.mubr.f32.mxu0 0.0
  %5147 = vmatmul.mubr.f32.gmra.mrb[0].mxu0 %v5009
  %v5148 = vpop.f32.mrb[0].mxu0
  %v5149 = vadd.f32 0.0, %v5148
  %v5150 = vpop.f32.mrb[0].mxu0
  %5151 = vdwg.mxu0
  %v5152 = vadd.f32 %v5005, %v5078
  %v5153 = vxor.u32 %v5152, 2147483648
  %v5154 = vmul.f32 %v5153, 1.442695
  %v5155 = vpow.pop %v5154
  %v5156 = vadd.f32 %v5155, 1.0
  %v5157 = vrcp.pop %v5156
  %v5158 = vmul.f32 1.0, %v5157
  %v5159 = vadd.f32 %v5006, %v5080
  %v5160 = vxor.u32 %v5159, 2147483648
  %v5161 = vmul.f32 %v5160, 1.442695
  %v5162 = vpow.pop %v5161
  %v5163 = vadd.f32 %v5162, 1.0
  %v5164 = vrcp.pop %v5163
  %v5165 = vmul.f32 1.0, %v5164
  %v5166 = vadd.f32 %v5149, %v4822
  %v5167 = vmul.f32 %v5158, %v5166
  %v5168 = vadd.f32 %v5007, %v5167
  %v5169 = vtanh.pop %v5168
  %v5170 = vsub.f32 %v4998, %v5169
  %v5171 = vmul.f32 %v5165, %v5170
  %v5172 = vadd.f32 %v5169, %v5171
  %v5173 = vld [vmem:[#allocation6 + $0x30] sm:$0xff]
  %v5174 = vld [vmem:[#allocation6 + $0x38] sm:$0xff]
  %v5175 = vld [vmem:[#allocation6 + $0x40] sm:$0xff]
  %v5176 = vld [vmem:[#allocation7 + $0x78] sm:$0xff]
  %v5177 = vld [vmem:[#allocation7 + $0x80] sm:$0xff]
  %v5178 = vld [vmem:[#allocation7 + $0x88] sm:$0xff]
  %v5179 = vadd.f32 %v5173, %v5176
  %v5180 = vadd.f32 %v5174, %v5177
  %v5181 = vadd.f32 %v5175, %v5178
  %v5183 = vsel %vm438, %v5172, 0
  %5185 = vmatprep.subr.mxu0 %v4795
  %5186 = vmatpush1.msra.mxu0 %v4794
  %5187 = vmatprep.subr.mxu0 %v4798
  %5188 = vmatpush1.msra.mxu0 %v4797
  %5189 = vmatprep.subr.mxu0 %v4801
  %5190 = vmatpush1.msra.mxu0 %v4800
  %5191 = vmatprep.subr.mxu0 %v4804
  %5192 = vmatpush1.msra.mxu0 %v4803
  %5193 = vmatprep.subr.mxu0 %v4807
  %5194 = vmatpush1.msra.mxu0 %v4806
  %5195 = vmatprep.subr.mxu0 %v4810
  %5196 = vmatpush1.msra.mxu0 %v4809
  %5197 = vmatprep.subr.mxu0 %v4813
  %5198 = vmatpush1.msra.mxu0 %v4812
  %5199 = vmatprep.subr.mxu0 %v4816
  %5200 = vmatpush1.msra.mxu0 %v4815
  %5201 = vmatprep.subr.mxu0 0.0
  %5202 = vmatpush1.msra.mxu0 0.0
  %5203 = vmatprep.subr.mxu0 0.0
  %5204 = vmatpush1.msra.mxu0 0.0
  %5205 = vmatprep.subr.mxu0 0.0
  %5206 = vmatpush1.msra.mxu0 0.0
  %5207 = vmatprep.subr.mxu0 0.0
  %5208 = vmatpush1.msra.mxu0 0.0
  %5209 = vmatprep.subr.mxu0 0.0
  %5210 = vmatpush1.msra.mxu0 0.0
  %5211 = vmatprep.subr.mxu0 0.0
  %5212 = vmatpush1.msra.mxu0 0.0
  %5213 = vmatprep.subr.mxu0 0.0
  %5214 = vmatpush1.msra.mxu0 0.0
  %5215 = vmatprep.subr.mxu0 0.0
  %5216 = vmatpush1.msra.mxu0 0.0
  %5217 = vmatprep.subr.mxu0 0.0
  %5218 = vmatpush1.msra.mxu0 0.0
  %5219 = vmatprep.subr.mxu0 0.0
  %5220 = vmatpush1.msra.mxu0 0.0
  %5221 = vmatprep.subr.mxu0 0.0
  %5222 = vmatpush1.msra.mxu0 0.0
  %5223 = vmatprep.subr.mxu0 0.0
  %5224 = vmatpush1.msra.mxu0 0.0
  %5225 = vmatprep.subr.mxu0 0.0
  %5226 = vmatpush1.msra.mxu0 0.0
  %5227 = vmatprep.subr.mxu0 0.0
  %5228 = vmatpush1.msra.mxu0 0.0
  %5229 = vmatprep.subr.mxu0 0.0
  %5230 = vmatpush1.msra.mxu0 0.0
  %5231 = vmatprep.subr.mxu0 0.0
  %5232 = vmatpush1.msra.mxu0 0.0
  %5233 = vmatprep.subr.mxu0 0.0
  %5234 = vmatpush1.msra.mxu0 0.0
  %5235 = vmatprep.subr.mxu0 0.0
  %5236 = vmatpush1.msra.mxu0 0.0
  %5237 = vmatprep.subr.mxu0 0.0
  %5238 = vmatpush1.msra.mxu0 0.0
  %5239 = vmatprep.subr.mxu0 0.0
  %5240 = vmatpush1.msra.mxu0 0.0
  %5241 = vmatprep.subr.mxu0 0.0
  %5242 = vmatpush1.msra.mxu0 0.0
  %5243 = vmatprep.subr.mxu0 0.0
  %5244 = vmatpush1.msra.mxu0 0.0
  %5245 = vmatprep.subr.mxu0 0.0
  %5246 = vmatpush1.msra.mxu0 0.0
  %5247 = vmatprep.subr.mxu0 0.0
  %5248 = vmatpush1.msra.mxu0 0.0
  %5249 = vmatprep.mubr.f32.mxu0 0.0
  %5250 = vmatmul.mubr.f32.gmra.mrb[0].mxu0 %v5183
  %v5251 = vpop.f32.mrb[0].mxu0
  %v5252 = vadd.f32 0.0, %v5251
  %v5253 = vpop.f32.mrb[0].mxu0
  %v5254 = vadd.f32 0.0, %v5253
  %5255 = vdwg.mxu0
  %5256 = vmatprep.subr.mxu0 0.0
  %5257 = vmatpush1.msra.mxu0 %v4796
  %5258 = vmatprep.subr.mxu0 0.0
  %5259 = vmatpush1.msra.mxu0 %v4799
  %5260 = vmatprep.subr.mxu0 0.0
  %5261 = vmatpush1.msra.mxu0 %v4802
  %5262 = vmatprep.subr.mxu0 0.0
  %5263 = vmatpush1.msra.mxu0 %v4805
  %5264 = vmatprep.subr.mxu0 0.0
  %5265 = vmatpush1.msra.mxu0 %v4808
  %5266 = vmatprep.subr.mxu0 0.0
  %5267 = vmatpush1.msra.mxu0 %v4811
  %5268 = vmatprep.subr.mxu0 0.0
  %5269 = vmatpush1.msra.mxu0 %v4814
  %5270 = vmatprep.subr.mxu0 0.0
  %5271 = vmatpush1.msra.mxu0 %v4817
  %5272 = vmatprep.subr.mxu0 0.0
  %5273 = vmatpush1.msra.mxu0 0.0
  %5274 = vmatprep.subr.mxu0 0.0
  %5275 = vmatpush1.msra.mxu0 0.0
  %5276 = vmatprep.subr.mxu0 0.0
  %5277 = vmatpush1.msra.mxu0 0.0
  %5278 = vmatprep.subr.mxu0 0.0
  %5279 = vmatpush1.msra.mxu0 0.0
  %5280 = vmatprep.subr.mxu0 0.0
  %5281 = vmatpush1.msra.mxu0 0.0
  %5282 = vmatprep.subr.mxu0 0.0
  %5283 = vmatpush1.msra.mxu0 0.0
  %5284 = vmatprep.subr.mxu0 0.0
  %5285 = vmatpush1.msra.mxu0 0.0
  %5286 = vmatprep.subr.mxu0 0.0
  %5287 = vmatpush1.msra.mxu0 0.0
  %5288 = vmatprep.subr.mxu0 0.0
  %5289 = vmatpush1.msra.mxu0 0.0
  %5290 = vmatprep.subr.mxu0 0.0
  %5291 = vmatpush1.msra.mxu0 0.0
  %5292 = vmatprep.subr.mxu0 0.0
  %5293 = vmatpush1.msra.mxu0 0.0
  %5294 = vmatprep.subr.mxu0 0.0
  %5295 = vmatpush1.msra.mxu0 0.0
  %5296 = vmatprep.subr.mxu0 0.0
  %5297 = vmatpush1.msra.mxu0 0.0
  %5298 = vmatprep.subr.mxu0 0.0
  %5299 = vmatpush1.msra.mxu0 0.0
  %5300 = vmatprep.subr.mxu0 0.0
  %5301 = vmatpush1.msra.mxu0 0.0
  %5302 = vmatprep.subr.mxu0 0.0
  %5303 = vmatpush1.msra.mxu0 0.0
  %5304 = vmatprep.subr.mxu0 0.0
  %5305 = vmatpush1.msra.mxu0 0.0
  %5306 = vmatprep.subr.mxu0 0.0
  %5307 = vmatpush1.msra.mxu0 0.0
  %5308 = vmatprep.subr.mxu0 0.0
  %5309 = vmatpush1.msra.mxu0 0.0
  %5310 = vmatprep.subr.mxu0 0.0
  %5311 = vmatpush1.msra.mxu0 0.0
  %5312 = vmatprep.subr.mxu0 0.0
  %5313 = vmatpush1.msra.mxu0 0.0
  %5314 = vmatprep.subr.mxu0 0.0
  %5315 = vmatpush1.msra.mxu0 0.0
  %5316 = vmatprep.subr.mxu0 0.0
  %5317 = vmatpush1.msra.mxu0 0.0
  %5318 = vmatprep.subr.mxu0 0.0
  %5319 = vmatpush1.msra.mxu0 0.0
  %5320 = vmatprep.mubr.f32.mxu0 0.0
  %5321 = vmatmul.mubr.f32.gmra.mrb[0].mxu0 %v5183
  %v5322 = vpop.f32.mrb[0].mxu0
  %v5323 = vadd.f32 0.0, %v5322
  %v5324 = vpop.f32.mrb[0].mxu0
  %5325 = vdwg.mxu0
  %v5326 = vadd.f32 %v5179, %v5252
  %v5327 = vxor.u32 %v5326, 2147483648
  %v5328 = vmul.f32 %v5327, 1.442695
  %v5329 = vpow.pop %v5328
  %v5330 = vadd.f32 %v5329, 1.0
  %v5331 = vrcp.pop %v5330
  %v5332 = vmul.f32 1.0, %v5331
  %v5333 = vadd.f32 %v5180, %v5254
  %v5334 = vxor.u32 %v5333, 2147483648
  %v5335 = vmul.f32 %v5334, 1.442695
  %v5336 = vpow.pop %v5335
  %v5337 = vadd.f32 %v5336, 1.0
  %v5338 = vrcp.pop %v5337
  %v5339 = vmul.f32 1.0, %v5338
  %v5340 = vadd.f32 %v5323, %v4822
  %v5341 = vmul.f32 %v5332, %v5340
  %v5342 = vadd.f32 %v5181, %v5341
  %v5343 = vtanh.pop %v5342
  %v5344 = vsub.f32 %v5172, %v5343
  %v5345 = vmul.f32 %v5339, %v5344
  %v5346 = vadd.f32 %v5343, %v5345
  %v5347 = vld [vmem:[#allocation6 + $0x48] sm:$0xff]
  %v5348 = vld [vmem:[#allocation6 + $0x50] sm:$0xff]
  %v5349 = vld [vmem:[#allocation6 + $0x58] sm:$0xff]
  %v5350 = vld [vmem:[#allocation7 + $0x60] sm:$0xff]
  %v5351 = vld [vmem:[#allocation7 + $0x68] sm:$0xff]
  %v5352 = vld [vmem:[#allocation7 + $0x70] sm:$0xff]
  %v5353 = vadd.f32 %v5347, %v5350
  %v5354 = vadd.f32 %v5348, %v5351
  %v5355 = vadd.f32 %v5349, %v5352
  %v5357 = vsel %vm438, %v5346, 0
  %5359 = vmatprep.subr.mxu0 %v4795
  %5360 = vmatpush1.msra.mxu0 %v4794
  %5361 = vmatprep.subr.mxu0 %v4798
  %5362 = vmatpush1.msra.mxu0 %v4797
  %5363 = vmatprep.subr.mxu0 %v4801
  %5364 = vmatpush1.msra.mxu0 %v4800
  %5365 = vmatprep.subr.mxu0 %v4804
  %5366 = vmatpush1.msra.mxu0 %v4803
  %5367 = vmatprep.subr.mxu0 %v4807
  %5368 = vmatpush1.msra.mxu0 %v4806
  %5369 = vmatprep.subr.mxu0 %v4810
  %5370 = vmatpush1.msra.mxu0 %v4809
  %5371 = vmatprep.subr.mxu0 %v4813
  %5372 = vmatpush1.msra.mxu0 %v4812
  %5373 = vmatprep.subr.mxu0 %v4816
  %5374 = vmatpush1.msra.mxu0 %v4815
  %5375 = vmatprep.subr.mxu0 0.0
  %5376 = vmatpush1.msra.mxu0 0.0
  %5377 = vmatprep.subr.mxu0 0.0
  %5378 = vmatpush1.msra.mxu0 0.0
  %5379 = vmatprep.subr.mxu0 0.0
  %5380 = vmatpush1.msra.mxu0 0.0
  %5381 = vmatprep.subr.mxu0 0.0
  %5382 = vmatpush1.msra.mxu0 0.0
  %5383 = vmatprep.subr.mxu0 0.0
  %5384 = vmatpush1.msra.mxu0 0.0
  %5385 = vmatprep.subr.mxu0 0.0
  %5386 = vmatpush1.msra.mxu0 0.0
  %5387 = vmatprep.subr.mxu0 0.0
  %5388 = vmatpush1.msra.mxu0 0.0
  %5389 = vmatprep.subr.mxu0 0.0
  %5390 = vmatpush1.msra.mxu0 0.0
  %5391 = vmatprep.subr.mxu0 0.0
  %5392 = vmatpush1.msra.mxu0 0.0
  %5393 = vmatprep.subr.mxu0 0.0
  %5394 = vmatpush1.msra.mxu0 0.0
  %5395 = vmatprep.subr.mxu0 0.0
  %5396 = vmatpush1.msra.mxu0 0.0
  %5397 = vmatprep.subr.mxu0 0.0
  %5398 = vmatpush1.msra.mxu0 0.0
  %5399 = vmatprep.subr.mxu0 0.0
  %5400 = vmatpush1.msra.mxu0 0.0
  %5401 = vmatprep.subr.mxu0 0.0
  %5402 = vmatpush1.msra.mxu0 0.0
  %5403 = vmatprep.subr.mxu0 0.0
  %5404 = vmatpush1.msra.mxu0 0.0
  %5405 = vmatprep.subr.mxu0 0.0
  %5406 = vmatpush1.msra.mxu0 0.0
  %5407 = vmatprep.subr.mxu0 0.0
  %5408 = vmatpush1.msra.mxu0 0.0
  %5409 = vmatprep.subr.mxu0 0.0
  %5410 = vmatpush1.msra.mxu0 0.0
  %5411 = vmatprep.subr.mxu0 0.0
  %5412 = vmatpush1.msra.mxu0 0.0
  %5413 = vmatprep.subr.mxu0 0.0
  %5414 = vmatpush1.msra.mxu0 0.0
  %5415 = vmatprep.subr.mxu0 0.0
  %5416 = vmatpush1.msra.mxu0 0.0
  %5417 = vmatprep.subr.mxu0 0.0
  %5418 = vmatpush1.msra.mxu0 0.0
  %5419 = vmatprep.subr.mxu0 0.0
  %5420 = vmatpush1.msra.mxu0 0.0
  %5421 = vmatprep.subr.mxu0 0.0
  %5422 = vmatpush1.msra.mxu0 0.0
  %5423 = vmatprep.mubr.f32.mxu0 0.0
  %5424 = vmatmul.mubr.f32.gmra.mrb[0].mxu0 %v5357
  %v5425 = vpop.f32.mrb[0].mxu0
  %v5426 = vadd.f32 0.0, %v5425
  %v5427 = vpop.f32.mrb[0].mxu0
  %v5428 = vadd.f32 0.0, %v5427
  %5429 = vdwg.mxu0
  %5430 = vmatprep.subr.mxu0 0.0
  %5431 = vmatpush1.msra.mxu0 %v4796
  %5432 = vmatprep.subr.mxu0 0.0
  %5433 = vmatpush1.msra.mxu0 %v4799
  %5434 = vmatprep.subr.mxu0 0.0
  %5435 = vmatpush1.msra.mxu0 %v4802
  %5436 = vmatprep.subr.mxu0 0.0
  %5437 = vmatpush1.msra.mxu0 %v4805
  %5438 = vmatprep.subr.mxu0 0.0
  %5439 = vmatpush1.msra.mxu0 %v4808
  %5440 = vmatprep.subr.mxu0 0.0
  %5441 = vmatpush1.msra.mxu0 %v4811
  %5442 = vmatprep.subr.mxu0 0.0
  %5443 = vmatpush1.msra.mxu0 %v4814
  %5444 = vmatprep.subr.mxu0 0.0
  %5445 = vmatpush1.msra.mxu0 %v4817
  %5446 = vmatprep.subr.mxu0 0.0
  %5447 = vmatpush1.msra.mxu0 0.0
  %5448 = vmatprep.subr.mxu0 0.0
  %5449 = vmatpush1.msra.mxu0 0.0
  %5450 = vmatprep.subr.mxu0 0.0
  %5451 = vmatpush1.msra.mxu0 0.0
  %5452 = vmatprep.subr.mxu0 0.0
  %5453 = vmatpush1.msra.mxu0 0.0
  %5454 = vmatprep.subr.mxu0 0.0
  %5455 = vmatpush1.msra.mxu0 0.0
  %5456 = vmatprep.subr.mxu0 0.0
  %5457 = vmatpush1.msra.mxu0 0.0
  %5458 = vmatprep.subr.mxu0 0.0
  %5459 = vmatpush1.msra.mxu0 0.0
  %5460 = vmatprep.subr.mxu0 0.0
  %5461 = vmatpush1.msra.mxu0 0.0
  %5462 = vmatprep.subr.mxu0 0.0
  %5463 = vmatpush1.msra.mxu0 0.0
  %5464 = vmatprep.subr.mxu0 0.0
  %5465 = vmatpush1.msra.mxu0 0.0
  %5466 = vmatprep.subr.mxu0 0.0
  %5467 = vmatpush1.msra.mxu0 0.0
  %5468 = vmatprep.subr.mxu0 0.0
  %5469 = vmatpush1.msra.mxu0 0.0
  %5470 = vmatprep.subr.mxu0 0.0
  %5471 = vmatpush1.msra.mxu0 0.0
  %5472 = vmatprep.subr.mxu0 0.0
  %5473 = vmatpush1.msra.mxu0 0.0
  %5474 = vmatprep.subr.mxu0 0.0
  %5475 = vmatpush1.msra.mxu0 0.0
  %5476 = vmatprep.subr.mxu0 0.0
  %5477 = vmatpush1.msra.mxu0 0.0
  %5478 = vmatprep.subr.mxu0 0.0
  %5479 = vmatpush1.msra.mxu0 0.0
  %5480 = vmatprep.subr.mxu0 0.0
  %5481 = vmatpush1.msra.mxu0 0.0
  %5482 = vmatprep.subr.mxu0 0.0
  %5483 = vmatpush1.msra.mxu0 0.0
  %5484 = vmatprep.subr.mxu0 0.0
  %5485 = vmatpush1.msra.mxu0 0.0
  %5486 = vmatprep.subr.mxu0 0.0
  %5487 = vmatpush1.msra.mxu0 0.0
  %5488 = vmatprep.subr.mxu0 0.0
  %5489 = vmatpush1.msra.mxu0 0.0
  %5490 = vmatprep.subr.mxu0 0.0
  %5491 = vmatpush1.msra.mxu0 0.0
  %5492 = vmatprep.subr.mxu0 0.0
  %5493 = vmatpush1.msra.mxu0 0.0
  %5494 = vmatprep.mubr.f32.mxu0 0.0
  %5495 = vmatmul.mubr.f32.gmra.mrb[0].mxu0 %v5357
  %v5496 = vpop.f32.mrb[0].mxu0
  %v5497 = vadd.f32 0.0, %v5496
  %v5498 = vpop.f32.mrb[0].mxu0
  %5499 = vdwg.mxu0
  %v5500 = vadd.f32 %v5353, %v5426
  %v5501 = vxor.u32 %v5500, 2147483648
  %v5502 = vmul.f32 %v5501, 1.442695
  %v5503 = vpow.pop %v5502
  %v5504 = vadd.f32 %v5503, 1.0
  %v5505 = vrcp.pop %v5504
  %v5506 = vmul.f32 1.0, %v5505
  %v5507 = vadd.f32 %v5354, %v5428
  %v5508 = vxor.u32 %v5507, 2147483648
  %v5509 = vmul.f32 %v5508, 1.442695
  %v5510 = vpow.pop %v5509
  %v5511 = vadd.f32 %v5510, 1.0
  %v5512 = vrcp.pop %v5511
  %v5513 = vmul.f32 1.0, %v5512
  %v5514 = vadd.f32 %v5497, %v4822
  %v5515 = vmul.f32 %v5506, %v5514
  %v5516 = vadd.f32 %v5355, %v5515
  %v5517 = vtanh.pop %v5516
  %v5518 = vsub.f32 %v5346, %v5517
  %v5519 = vmul.f32 %v5513, %v5518
  %v5520 = vadd.f32 %v5517, %v5519
  %v5521 = vld [vmem:[#allocation6 + $0x60] sm:$0xff]
  %v5522 = vld [vmem:[#allocation6 + $0x68] sm:$0xff]
  %v5523 = vld [vmem:[#allocation6 + $0x70] sm:$0xff]
  %v5524 = vld [vmem:[#allocation7 + $0x48] sm:$0xff]
  %v5525 = vld [vmem:[#allocation7 + $0x50] sm:$0xff]
  %v5526 = vld [vmem:[#allocation7 + $0x58] sm:$0xff]
  %v5527 = vadd.f32 %v5521, %v5524
  %v5528 = vadd.f32 %v5522, %v5525
  %v5529 = vadd.f32 %v5523, %v5526
  %v5531 = vsel %vm438, %v5520, 0
  %5533 = vmatprep.subr.mxu0 %v4795
  %5534 = vmatpush1.msra.mxu0 %v4794
  %5535 = vmatprep.subr.mxu0 %v4798
  %5536 = vmatpush1.msra.mxu0 %v4797
  %5537 = vmatprep.subr.mxu0 %v4801
  %5538 = vmatpush1.msra.mxu0 %v4800
  %5539 = vmatprep.subr.mxu0 %v4804
  %5540 = vmatpush1.msra.mxu0 %v4803
  %5541 = vmatprep.subr.mxu0 %v4807
  %5542 = vmatpush1.msra.mxu0 %v4806
  %5543 = vmatprep.subr.mxu0 %v4810
  %5544 = vmatpush1.msra.mxu0 %v4809
  %5545 = vmatprep.subr.mxu0 %v4813
  %5546 = vmatpush1.msra.mxu0 %v4812
  %5547 = vmatprep.subr.mxu0 %v4816
  %5548 = vmatpush1.msra.mxu0 %v4815
  %5549 = vmatprep.subr.mxu0 0.0
  %5550 = vmatpush1.msra.mxu0 0.0
  %5551 = vmatprep.subr.mxu0 0.0
  %5552 = vmatpush1.msra.mxu0 0.0
  %5553 = vmatprep.subr.mxu0 0.0
  %5554 = vmatpush1.msra.mxu0 0.0
  %5555 = vmatprep.subr.mxu0 0.0
  %5556 = vmatpush1.msra.mxu0 0.0
  %5557 = vmatprep.subr.mxu0 0.0
  %5558 = vmatpush1.msra.mxu0 0.0
  %5559 = vmatprep.subr.mxu0 0.0
  %5560 = vmatpush1.msra.mxu0 0.0
  %5561 = vmatprep.subr.mxu0 0.0
  %5562 = vmatpush1.msra.mxu0 0.0
  %5563 = vmatprep.subr.mxu0 0.0
  %5564 = vmatpush1.msra.mxu0 0.0
  %5565 = vmatprep.subr.mxu0 0.0
  %5566 = vmatpush1.msra.mxu0 0.0
  %5567 = vmatprep.subr.mxu0 0.0
  %5568 = vmatpush1.msra.mxu0 0.0
  %5569 = vmatprep.subr.mxu0 0.0
  %5570 = vmatpush1.msra.mxu0 0.0
  %5571 = vmatprep.subr.mxu0 0.0
  %5572 = vmatpush1.msra.mxu0 0.0
  %5573 = vmatprep.subr.mxu0 0.0
  %5574 = vmatpush1.msra.mxu0 0.0
  %5575 = vmatprep.subr.mxu0 0.0
  %5576 = vmatpush1.msra.mxu0 0.0
  %5577 = vmatprep.subr.mxu0 0.0
  %5578 = vmatpush1.msra.mxu0 0.0
  %5579 = vmatprep.subr.mxu0 0.0
  %5580 = vmatpush1.msra.mxu0 0.0
  %5581 = vmatprep.subr.mxu0 0.0
  %5582 = vmatpush1.msra.mxu0 0.0
  %5583 = vmatprep.subr.mxu0 0.0
  %5584 = vmatpush1.msra.mxu0 0.0
  %5585 = vmatprep.subr.mxu0 0.0
  %5586 = vmatpush1.msra.mxu0 0.0
  %5587 = vmatprep.subr.mxu0 0.0
  %5588 = vmatpush1.msra.mxu0 0.0
  %5589 = vmatprep.subr.mxu0 0.0
  %5590 = vmatpush1.msra.mxu0 0.0
  %5591 = vmatprep.subr.mxu0 0.0
  %5592 = vmatpush1.msra.mxu0 0.0
  %5593 = vmatprep.subr.mxu0 0.0
  %5594 = vmatpush1.msra.mxu0 0.0
  %5595 = vmatprep.subr.mxu0 0.0
  %5596 = vmatpush1.msra.mxu0 0.0
  %5597 = vmatprep.mubr.f32.mxu0 0.0
  %5598 = vmatmul.mubr.f32.gmra.mrb[0].mxu0 %v5531
  %v5599 = vpop.f32.mrb[0].mxu0
  %v5600 = vadd.f32 0.0, %v5599
  %v5601 = vpop.f32.mrb[0].mxu0
  %v5602 = vadd.f32 0.0, %v5601
  %5603 = vdwg.mxu0
  %5604 = vmatprep.subr.mxu0 0.0
  %5605 = vmatpush1.msra.mxu0 %v4796
  %5606 = vmatprep.subr.mxu0 0.0
  %5607 = vmatpush1.msra.mxu0 %v4799
  %5608 = vmatprep.subr.mxu0 0.0
  %5609 = vmatpush1.msra.mxu0 %v4802
  %5610 = vmatprep.subr.mxu0 0.0
  %5611 = vmatpush1.msra.mxu0 %v4805
  %5612 = vmatprep.subr.mxu0 0.0
  %5613 = vmatpush1.msra.mxu0 %v4808
  %5614 = vmatprep.subr.mxu0 0.0
  %5615 = vmatpush1.msra.mxu0 %v4811
  %5616 = vmatprep.subr.mxu0 0.0
  %5617 = vmatpush1.msra.mxu0 %v4814
  %5618 = vmatprep.subr.mxu0 0.0
  %5619 = vmatpush1.msra.mxu0 %v4817
  %5620 = vmatprep.subr.mxu0 0.0
  %5621 = vmatpush1.msra.mxu0 0.0
  %5622 = vmatprep.subr.mxu0 0.0
  %5623 = vmatpush1.msra.mxu0 0.0
  %5624 = vmatprep.subr.mxu0 0.0
  %5625 = vmatpush1.msra.mxu0 0.0
  %5626 = vmatprep.subr.mxu0 0.0
  %5627 = vmatpush1.msra.mxu0 0.0
  %5628 = vmatprep.subr.mxu0 0.0
  %5629 = vmatpush1.msra.mxu0 0.0
  %5630 = vmatprep.subr.mxu0 0.0
  %5631 = vmatpush1.msra.mxu0 0.0
  %5632 = vmatprep.subr.mxu0 0.0
  %5633 = vmatpush1.msra.mxu0 0.0
  %5634 = vmatprep.subr.mxu0 0.0
  %5635 = vmatpush1.msra.mxu0 0.0
  %5636 = vmatprep.subr.mxu0 0.0
  %5637 = vmatpush1.msra.mxu0 0.0
  %5638 = vmatprep.subr.mxu0 0.0
  %5639 = vmatpush1.msra.mxu0 0.0
  %5640 = vmatprep.subr.mxu0 0.0
  %5641 = vmatpush1.msra.mxu0 0.0
  %5642 = vmatprep.subr.mxu0 0.0
  %5643 = vmatpush1.msra.mxu0 0.0
  %5644 = vmatprep.subr.mxu0 0.0
  %5645 = vmatpush1.msra.mxu0 0.0
  %5646 = vmatprep.subr.mxu0 0.0
  %5647 = vmatpush1.msra.mxu0 0.0
  %5648 = vmatprep.subr.mxu0 0.0
  %5649 = vmatpush1.msra.mxu0 0.0
  %5650 = vmatprep.subr.mxu0 0.0
  %5651 = vmatpush1.msra.mxu0 0.0
  %5652 = vmatprep.subr.mxu0 0.0
  %5653 = vmatpush1.msra.mxu0 0.0
  %5654 = vmatprep.subr.mxu0 0.0
  %5655 = vmatpush1.msra.mxu0 0.0
  %5656 = vmatprep.subr.mxu0 0.0
  %5657 = vmatpush1.msra.mxu0 0.0
  %5658 = vmatprep.subr.mxu0 0.0
  %5659 = vmatpush1.msra.mxu0 0.0
  %5660 = vmatprep.subr.mxu0 0.0
  %5661 = vmatpush1.msra.mxu0 0.0
  %5662 = vmatprep.subr.mxu0 0.0
  %5663 = vmatpush1.msra.mxu0 0.0
  %5664 = vmatprep.subr.mxu0 0.0
  %5665 = vmatpush1.msra.mxu0 0.0
  %5666 = vmatprep.subr.mxu0 0.0
  %5667 = vmatpush1.msra.mxu0 0.0
  %5668 = vmatprep.mubr.f32.mxu0 0.0
  %5669 = vmatmul.mubr.f32.gmra.mrb[0].mxu0 %v5531
  %v5670 = vpop.f32.mrb[0].mxu0
  %v5671 = vadd.f32 0.0, %v5670
  %v5672 = vpop.f32.mrb[0].mxu0
  %5673 = vdwg.mxu0
  %v5674 = vadd.f32 %v5527, %v5600
  %v5675 = vxor.u32 %v5674, 2147483648
  %v5676 = vmul.f32 %v5675, 1.442695
  %v5677 = vpow.pop %v5676
  %v5678 = vadd.f32 %v5677, 1.0
  %v5679 = vrcp.pop %v5678
  %v5680 = vmul.f32 1.0, %v5679
  %v5681 = vadd.f32 %v5528, %v5602
  %v5682 = vxor.u32 %v5681, 2147483648
  %v5683 = vmul.f32 %v5682, 1.442695
  %v5684 = vpow.pop %v5683
  %v5685 = vadd.f32 %v5684, 1.0
  %v5686 = vrcp.pop %v5685
  %v5687 = vmul.f32 1.0, %v5686
  %v5688 = vadd.f32 %v5671, %v4822
  %v5689 = vmul.f32 %v5680, %v5688
  %v5690 = vadd.f32 %v5529, %v5689
  %v5691 = vtanh.pop %v5690
  %v5692 = vsub.f32 %v5520, %v5691
  %v5693 = vmul.f32 %v5687, %v5692
  %v5694 = vadd.f32 %v5691, %v5693
  %v5695 = vld [vmem:[#allocation6 + $0x78] sm:$0xff]
  %v5696 = vld [vmem:[#allocation6 + $0x80] sm:$0xff]
  %v5697 = vld [vmem:[#allocation6 + $0x88] sm:$0xff]
  %v5698 = vld [vmem:[#allocation7 + $0x30] sm:$0xff]
  %v5699 = vld [vmem:[#allocation7 + $0x38] sm:$0xff]
  %v5700 = vld [vmem:[#allocation7 + $0x40] sm:$0xff]
  %v5701 = vadd.f32 %v5695, %v5698
  %v5702 = vadd.f32 %v5696, %v5699
  %v5703 = vadd.f32 %v5697, %v5700
  %v5705 = vsel %vm438, %v5694, 0
  %5707 = vmatprep.subr.mxu0 %v4795
  %5708 = vmatpush1.msra.mxu0 %v4794
  %5709 = vmatprep.subr.mxu0 %v4798
  %5710 = vmatpush1.msra.mxu0 %v4797
  %5711 = vmatprep.subr.mxu0 %v4801
  %5712 = vmatpush1.msra.mxu0 %v4800
  %5713 = vmatprep.subr.mxu0 %v4804
  %5714 = vmatpush1.msra.mxu0 %v4803
  %5715 = vmatprep.subr.mxu0 %v4807
  %5716 = vmatpush1.msra.mxu0 %v4806
  %5717 = vmatprep.subr.mxu0 %v4810
  %5718 = vmatpush1.msra.mxu0 %v4809
  %5719 = vmatprep.subr.mxu0 %v4813
  %5720 = vmatpush1.msra.mxu0 %v4812
  %5721 = vmatprep.subr.mxu0 %v4816
  %5722 = vmatpush1.msra.mxu0 %v4815
  %5723 = vmatprep.subr.mxu0 0.0
  %5724 = vmatpush1.msra.mxu0 0.0
  %5725 = vmatprep.subr.mxu0 0.0
  %5726 = vmatpush1.msra.mxu0 0.0
  %5727 = vmatprep.subr.mxu0 0.0
  %5728 = vmatpush1.msra.mxu0 0.0
  %5729 = vmatprep.subr.mxu0 0.0
  %5730 = vmatpush1.msra.mxu0 0.0
  %5731 = vmatprep.subr.mxu0 0.0
  %5732 = vmatpush1.msra.mxu0 0.0
  %5733 = vmatprep.subr.mxu0 0.0
  %5734 = vmatpush1.msra.mxu0 0.0
  %5735 = vmatprep.subr.mxu0 0.0
  %5736 = vmatpush1.msra.mxu0 0.0
  %5737 = vmatprep.subr.mxu0 0.0
  %5738 = vmatpush1.msra.mxu0 0.0
  %5739 = vmatprep.subr.mxu0 0.0
  %5740 = vmatpush1.msra.mxu0 0.0
  %5741 = vmatprep.subr.mxu0 0.0
  %5742 = vmatpush1.msra.mxu0 0.0
  %5743 = vmatprep.subr.mxu0 0.0
  %5744 = vmatpush1.msra.mxu0 0.0
  %5745 = vmatprep.subr.mxu0 0.0
  %5746 = vmatpush1.msra.mxu0 0.0
  %5747 = vmatprep.subr.mxu0 0.0
  %5748 = vmatpush1.msra.mxu0 0.0
  %5749 = vmatprep.subr.mxu0 0.0
  %5750 = vmatpush1.msra.mxu0 0.0
  %5751 = vmatprep.subr.mxu0 0.0
  %5752 = vmatpush1.msra.mxu0 0.0
  %5753 = vmatprep.subr.mxu0 0.0
  %5754 = vmatpush1.msra.mxu0 0.0
  %5755 = vmatprep.subr.mxu0 0.0
  %5756 = vmatpush1.msra.mxu0 0.0
  %5757 = vmatprep.subr.mxu0 0.0
  %5758 = vmatpush1.msra.mxu0 0.0
  %5759 = vmatprep.subr.mxu0 0.0
  %5760 = vmatpush1.msra.mxu0 0.0
  %5761 = vmatprep.subr.mxu0 0.0
  %5762 = vmatpush1.msra.mxu0 0.0
  %5763 = vmatprep.subr.mxu0 0.0
  %5764 = vmatpush1.msra.mxu0 0.0
  %5765 = vmatprep.subr.mxu0 0.0
  %5766 = vmatpush1.msra.mxu0 0.0
  %5767 = vmatprep.subr.mxu0 0.0
  %5768 = vmatpush1.msra.mxu0 0.0
  %5769 = vmatprep.subr.mxu0 0.0
  %5770 = vmatpush1.msra.mxu0 0.0
  %5771 = vmatprep.mubr.f32.mxu0 0.0
  %5772 = vmatmul.mubr.f32.gmra.mrb[0].mxu0 %v5705
  %v5773 = vpop.f32.mrb[0].mxu0
  %v5774 = vadd.f32 0.0, %v5773
  %v5775 = vpop.f32.mrb[0].mxu0
  %v5776 = vadd.f32 0.0, %v5775
  %5777 = vdwg.mxu0
  %5778 = vmatprep.subr.mxu0 0.0
  %5779 = vmatpush1.msra.mxu0 %v4796
  %5780 = vmatprep.subr.mxu0 0.0
  %5781 = vmatpush1.msra.mxu0 %v4799
  %5782 = vmatprep.subr.mxu0 0.0
  %5783 = vmatpush1.msra.mxu0 %v4802
  %5784 = vmatprep.subr.mxu0 0.0
  %5785 = vmatpush1.msra.mxu0 %v4805
  %5786 = vmatprep.subr.mxu0 0.0
  %5787 = vmatpush1.msra.mxu0 %v4808
  %5788 = vmatprep.subr.mxu0 0.0
  %5789 = vmatpush1.msra.mxu0 %v4811
  %5790 = vmatprep.subr.mxu0 0.0
  %5791 = vmatpush1.msra.mxu0 %v4814
  %5792 = vmatprep.subr.mxu0 0.0
  %5793 = vmatpush1.msra.mxu0 %v4817
  %5794 = vmatprep.subr.mxu0 0.0
  %5795 = vmatpush1.msra.mxu0 0.0
  %5796 = vmatprep.subr.mxu0 0.0
  %5797 = vmatpush1.msra.mxu0 0.0
  %5798 = vmatprep.subr.mxu0 0.0
  %5799 = vmatpush1.msra.mxu0 0.0
  %5800 = vmatprep.subr.mxu0 0.0
  %5801 = vmatpush1.msra.mxu0 0.0
  %5802 = vmatprep.subr.mxu0 0.0
  %5803 = vmatpush1.msra.mxu0 0.0
  %5804 = vmatprep.subr.mxu0 0.0
  %5805 = vmatpush1.msra.mxu0 0.0
  %5806 = vmatprep.subr.mxu0 0.0
  %5807 = vmatpush1.msra.mxu0 0.0
  %5808 = vmatprep.subr.mxu0 0.0
  %5809 = vmatpush1.msra.mxu0 0.0
  %5810 = vmatprep.subr.mxu0 0.0
  %5811 = vmatpush1.msra.mxu0 0.0
  %5812 = vmatprep.subr.mxu0 0.0
  %5813 = vmatpush1.msra.mxu0 0.0
  %5814 = vmatprep.subr.mxu0 0.0
  %5815 = vmatpush1.msra.mxu0 0.0
  %5816 = vmatprep.subr.mxu0 0.0
  %5817 = vmatpush1.msra.mxu0 0.0
  %5818 = vmatprep.subr.mxu0 0.0
  %5819 = vmatpush1.msra.mxu0 0.0
  %5820 = vmatprep.subr.mxu0 0.0
  %5821 = vmatpush1.msra.mxu0 0.0
  %5822 = vmatprep.subr.mxu0 0.0
  %5823 = vmatpush1.msra.mxu0 0.0
  %5824 = vmatprep.subr.mxu0 0.0
  %5825 = vmatpush1.msra.mxu0 0.0
  %5826 = vmatprep.subr.mxu0 0.0
  %5827 = vmatpush1.msra.mxu0 0.0
  %5828 = vmatprep.subr.mxu0 0.0
  %5829 = vmatpush1.msra.mxu0 0.0
  %5830 = vmatprep.subr.mxu0 0.0
  %5831 = vmatpush1.msra.mxu0 0.0
  %5832 = vmatprep.subr.mxu0 0.0
  %5833 = vmatpush1.msra.mxu0 0.0
  %5834 = vmatprep.subr.mxu0 0.0
  %5835 = vmatpush1.msra.mxu0 0.0
  %5836 = vmatprep.subr.mxu0 0.0
  %5837 = vmatpush1.msra.mxu0 0.0
  %5838 = vmatprep.subr.mxu0 0.0
  %5839 = vmatpush1.msra.mxu0 0.0
  %5840 = vmatprep.subr.mxu0 0.0
  %5841 = vmatpush1.msra.mxu0 0.0
  %5842 = vmatprep.mubr.f32.mxu0 0.0
  %5843 = vmatmul.mubr.f32.gmra.mrb[0].mxu0 %v5705
  %v5844 = vpop.f32.mrb[0].mxu0
  %v5845 = vadd.f32 0.0, %v5844
  %v5846 = vpop.f32.mrb[0].mxu0
  %5847 = vdwg.mxu0
  %v5848 = vadd.f32 %v5701, %v5774
  %v5849 = vxor.u32 %v5848, 2147483648
  %v5850 = vmul.f32 %v5849, 1.442695
  %v5851 = vpow.pop %v5850
  %v5852 = vadd.f32 %v5851, 1.0
  %v5853 = vrcp.pop %v5852
  %v5854 = vmul.f32 1.0, %v5853
  %v5855 = vadd.f32 %v5702, %v5776
  %v5856 = vxor.u32 %v5855, 2147483648
  %v5857 = vmul.f32 %v5856, 1.442695
  %v5858 = vpow.pop %v5857
  %v5859 = vadd.f32 %v5858, 1.0
  %v5860 = vrcp.pop %v5859
  %v5861 = vmul.f32 1.0, %v5860
  %v5862 = vadd.f32 %v5845, %v4822
  %v5863 = vmul.f32 %v5854, %v5862
  %v5864 = vadd.f32 %v5703, %v5863
  %v5865 = vtanh.pop %v5864
  %v5866 = vsub.f32 %v5694, %v5865
  %v5867 = vmul.f32 %v5861, %v5866
  %v5868 = vadd.f32 %v5865, %v5867
  %v5869 = vld [vmem:[#allocation6 + $0x90] sm:$0xff]
  %v5870 = vld [vmem:[#allocation6 + $0x98] sm:$0xff]
  %v5871 = vld [vmem:[#allocation6 + $0xa0] sm:$0xff]
  %v5872 = vld [vmem:[#allocation7 + $0x18] sm:$0xff]
  %v5873 = vld [vmem:[#allocation7 + $0x20] sm:$0xff]
  %v5874 = vld [vmem:[#allocation7 + $0x28] sm:$0xff]
  %v5875 = vadd.f32 %v5869, %v5872
  %v5876 = vadd.f32 %v5870, %v5873
  %v5877 = vadd.f32 %v5871, %v5874
  %v5879 = vsel %vm438, %v5868, 0
  %5881 = vmatprep.subr.mxu0 %v4795
  %5882 = vmatpush1.msra.mxu0 %v4794
  %5883 = vmatprep.subr.mxu0 %v4798
  %5884 = vmatpush1.msra.mxu0 %v4797
  %5885 = vmatprep.subr.mxu0 %v4801
  %5886 = vmatpush1.msra.mxu0 %v4800
  %5887 = vmatprep.subr.mxu0 %v4804
  %5888 = vmatpush1.msra.mxu0 %v4803
  %5889 = vmatprep.subr.mxu0 %v4807
  %5890 = vmatpush1.msra.mxu0 %v4806
  %5891 = vmatprep.subr.mxu0 %v4810
  %5892 = vmatpush1.msra.mxu0 %v4809
  %5893 = vmatprep.subr.mxu0 %v4813
  %5894 = vmatpush1.msra.mxu0 %v4812
  %5895 = vmatprep.subr.mxu0 %v4816
  %5896 = vmatpush1.msra.mxu0 %v4815
  %5897 = vmatprep.subr.mxu0 0.0
  %5898 = vmatpush1.msra.mxu0 0.0
  %5899 = vmatprep.subr.mxu0 0.0
  %5900 = vmatpush1.msra.mxu0 0.0
  %5901 = vmatprep.subr.mxu0 0.0
  %5902 = vmatpush1.msra.mxu0 0.0
  %5903 = vmatprep.subr.mxu0 0.0
  %5904 = vmatpush1.msra.mxu0 0.0
  %5905 = vmatprep.subr.mxu0 0.0
  %5906 = vmatpush1.msra.mxu0 0.0
  %5907 = vmatprep.subr.mxu0 0.0
  %5908 = vmatpush1.msra.mxu0 0.0
  %5909 = vmatprep.subr.mxu0 0.0
  %5910 = vmatpush1.msra.mxu0 0.0
  %5911 = vmatprep.subr.mxu0 0.0
  %5912 = vmatpush1.msra.mxu0 0.0
  %5913 = vmatprep.subr.mxu0 0.0
  %5914 = vmatpush1.msra.mxu0 0.0
  %5915 = vmatprep.subr.mxu0 0.0
  %5916 = vmatpush1.msra.mxu0 0.0
  %5917 = vmatprep.subr.mxu0 0.0
  %5918 = vmatpush1.msra.mxu0 0.0
  %5919 = vmatprep.subr.mxu0 0.0
  %5920 = vmatpush1.msra.mxu0 0.0
  %5921 = vmatprep.subr.mxu0 0.0
  %5922 = vmatpush1.msra.mxu0 0.0
  %5923 = vmatprep.subr.mxu0 0.0
  %5924 = vmatpush1.msra.mxu0 0.0
  %5925 = vmatprep.subr.mxu0 0.0
  %5926 = vmatpush1.msra.mxu0 0.0
  %5927 = vmatprep.subr.mxu0 0.0
  %5928 = vmatpush1.msra.mxu0 0.0
  %5929 = vmatprep.subr.mxu0 0.0
  %5930 = vmatpush1.msra.mxu0 0.0
  %5931 = vmatprep.subr.mxu0 0.0
  %5932 = vmatpush1.msra.mxu0 0.0
  %5933 = vmatprep.subr.mxu0 0.0
  %5934 = vmatpush1.msra.mxu0 0.0
  %5935 = vmatprep.subr.mxu0 0.0
  %5936 = vmatpush1.msra.mxu0 0.0
  %5937 = vmatprep.subr.mxu0 0.0
  %5938 = vmatpush1.msra.mxu0 0.0
  %5939 = vmatprep.subr.mxu0 0.0
  %5940 = vmatpush1.msra.mxu0 0.0
  %5941 = vmatprep.subr.mxu0 0.0
  %5942 = vmatpush1.msra.mxu0 0.0
  %5943 = vmatprep.subr.mxu0 0.0
  %5944 = vmatpush1.msra.mxu0 0.0
  %5945 = vmatprep.mubr.f32.mxu0 0.0
  %5946 = vmatmul.mubr.f32.gmra.mrb[0].mxu0 %v5879
  %v5947 = vpop.f32.mrb[0].mxu0
  %v5948 = vadd.f32 0.0, %v5947
  %v5949 = vpop.f32.mrb[0].mxu0
  %v5950 = vadd.f32 0.0, %v5949
  %5951 = vdwg.mxu0
  %5952 = vmatprep.subr.mxu0 0.0
  %5953 = vmatpush1.msra.mxu0 %v4796
  %5954 = vmatprep.subr.mxu0 0.0
  %5955 = vmatpush1.msra.mxu0 %v4799
  %5956 = vmatprep.subr.mxu0 0.0
  %5957 = vmatpush1.msra.mxu0 %v4802
  %5958 = vmatprep.subr.mxu0 0.0
  %5959 = vmatpush1.msra.mxu0 %v4805
  %5960 = vmatprep.subr.mxu0 0.0
  %5961 = vmatpush1.msra.mxu0 %v4808
  %5962 = vmatprep.subr.mxu0 0.0
  %5963 = vmatpush1.msra.mxu0 %v4811
  %5964 = vmatprep.subr.mxu0 0.0
  %5965 = vmatpush1.msra.mxu0 %v4814
  %5966 = vmatprep.subr.mxu0 0.0
  %5967 = vmatpush1.msra.mxu0 %v4817
  %5968 = vmatprep.subr.mxu0 0.0
  %5969 = vmatpush1.msra.mxu0 0.0
  %5970 = vmatprep.subr.mxu0 0.0
  %5971 = vmatpush1.msra.mxu0 0.0
  %5972 = vmatprep.subr.mxu0 0.0
  %5973 = vmatpush1.msra.mxu0 0.0
  %5974 = vmatprep.subr.mxu0 0.0
  %5975 = vmatpush1.msra.mxu0 0.0
  %5976 = vmatprep.subr.mxu0 0.0
  %5977 = vmatpush1.msra.mxu0 0.0
  %5978 = vmatprep.subr.mxu0 0.0
  %5979 = vmatpush1.msra.mxu0 0.0
  %5980 = vmatprep.subr.mxu0 0.0
  %5981 = vmatpush1.msra.mxu0 0.0
  %5982 = vmatprep.subr.mxu0 0.0
  %5983 = vmatpush1.msra.mxu0 0.0
  %5984 = vmatprep.subr.mxu0 0.0
  %5985 = vmatpush1.msra.mxu0 0.0
  %5986 = vmatprep.subr.mxu0 0.0
  %5987 = vmatpush1.msra.mxu0 0.0
  %5988 = vmatprep.subr.mxu0 0.0
  %5989 = vmatpush1.msra.mxu0 0.0
  %5990 = vmatprep.subr.mxu0 0.0
  %5991 = vmatpush1.msra.mxu0 0.0
  %5992 = vmatprep.subr.mxu0 0.0
  %5993 = vmatpush1.msra.mxu0 0.0
  %5994 = vmatprep.subr.mxu0 0.0
  %5995 = vmatpush1.msra.mxu0 0.0
  %5996 = vmatprep.subr.mxu0 0.0
  %5997 = vmatpush1.msra.mxu0 0.0
  %5998 = vmatprep.subr.mxu0 0.0
  %5999 = vmatpush1.msra.mxu0 0.0
  %6000 = vmatprep.subr.mxu0 0.0
  %6001 = vmatpush1.msra.mxu0 0.0
  %6002 = vmatprep.subr.mxu0 0.0
  %6003 = vmatpush1.msra.mxu0 0.0
  %6004 = vmatprep.subr.mxu0 0.0
  %6005 = vmatpush1.msra.mxu0 0.0
  %6006 = vmatprep.subr.mxu0 0.0
  %6007 = vmatpush1.msra.mxu0 0.0
  %6008 = vmatprep.subr.mxu0 0.0
  %6009 = vmatpush1.msra.mxu0 0.0
  %6010 = vmatprep.subr.mxu0 0.0
  %6011 = vmatpush1.msra.mxu0 0.0
  %6012 = vmatprep.subr.mxu0 0.0
  %6013 = vmatpush1.msra.mxu0 0.0
  %6014 = vmatprep.subr.mxu0 0.0
  %6015 = vmatpush1.msra.mxu0 0.0
  %6016 = vmatprep.mubr.f32.mxu0 0.0
  %6017 = vmatmul.mubr.f32.gmra.mrb[0].mxu0 %v5879
  %v6018 = vpop.f32.mrb[0].mxu0
  %v6019 = vadd.f32 0.0, %v6018
  %v6020 = vpop.f32.mrb[0].mxu0
  %6021 = vdwg.mxu0
  %v6022 = vadd.f32 %v5875, %v5948
  %v6023 = vxor.u32 %v6022, 2147483648
  %v6024 = vmul.f32 %v6023, 1.442695
  %v6025 = vpow.pop %v6024
  %v6026 = vadd.f32 %v6025, 1.0
  %v6027 = vrcp.pop %v6026
  %v6028 = vmul.f32 1.0, %v6027
  %v6029 = vadd.f32 %v5876, %v5950
  %v6030 = vxor.u32 %v6029, 2147483648
  %v6031 = vmul.f32 %v6030, 1.442695
  %v6032 = vpow.pop %v6031
  %v6033 = vadd.f32 %v6032, 1.0
  %v6034 = vrcp.pop %v6033
  %v6035 = vmul.f32 1.0, %v6034
  %v6036 = vadd.f32 %v6019, %v4822
  %v6037 = vmul.f32 %v6028, %v6036
  %v6038 = vadd.f32 %v5877, %v6037
  %v6039 = vtanh.pop %v6038
  %v6040 = vsub.f32 %v5868, %v6039
  %v6041 = vmul.f32 %v6035, %v6040
  %v6042 = vadd.f32 %v6039, %v6041
  %v6043 = vld [vmem:[#allocation6 + $0xa8] sm:$0xff]
  %v6044 = vld [vmem:[#allocation6 + $0xb0] sm:$0xff]
  %v6045 = vld [vmem:[#allocation6 + $0xb8] sm:$0xff]
  %v6046 = vld [vmem:[#allocation7] sm:$0xff]
  %v6047 = vld [vmem:[#allocation7 + $0x8] sm:$0xff]
  %v6048 = vld [vmem:[#allocation7 + $0x10] sm:$0xff]
  %v6049 = vadd.f32 %v6043, %v6046
  %v6050 = vadd.f32 %v6044, %v6047
  %v6051 = vadd.f32 %v6045, %v6048
  %v6053 = vsel %vm438, %v6042, 0
  %6055 = vmatprep.subr.mxu0 %v4795
  %6056 = vmatpush1.msra.mxu0 %v4794
  %6057 = vmatprep.subr.mxu0 %v4798
  %6058 = vmatpush1.msra.mxu0 %v4797
  %6059 = vmatprep.subr.mxu0 %v4801
  %6060 = vmatpush1.msra.mxu0 %v4800
  %6061 = vmatprep.subr.mxu0 %v4804
  %6062 = vmatpush1.msra.mxu0 %v4803
  %6063 = vmatprep.subr.mxu0 %v4807
  %6064 = vmatpush1.msra.mxu0 %v4806
  %6065 = vmatprep.subr.mxu0 %v4810
  %6066 = vmatpush1.msra.mxu0 %v4809
  %6067 = vmatprep.subr.mxu0 %v4813
  %6068 = vmatpush1.msra.mxu0 %v4812
  %6069 = vmatprep.subr.mxu0 %v4816
  %6070 = vmatpush1.msra.mxu0 %v4815
  %6071 = vmatprep.subr.mxu0 0.0
  %6072 = vmatpush1.msra.mxu0 0.0
  %6073 = vmatprep.subr.mxu0 0.0
  %6074 = vmatpush1.msra.mxu0 0.0
  %6075 = vmatprep.subr.mxu0 0.0
  %6076 = vmatpush1.msra.mxu0 0.0
  %6077 = vmatprep.subr.mxu0 0.0
  %6078 = vmatpush1.msra.mxu0 0.0
  %6079 = vmatprep.subr.mxu0 0.0
  %6080 = vmatpush1.msra.mxu0 0.0
  %6081 = vmatprep.subr.mxu0 0.0
  %6082 = vmatpush1.msra.mxu0 0.0
  %6083 = vmatprep.subr.mxu0 0.0
  %6084 = vmatpush1.msra.mxu0 0.0
  %6085 = vmatprep.subr.mxu0 0.0
  %6086 = vmatpush1.msra.mxu0 0.0
  %6087 = vmatprep.subr.mxu0 0.0
  %6088 = vmatpush1.msra.mxu0 0.0
  %6089 = vmatprep.subr.mxu0 0.0
  %6090 = vmatpush1.msra.mxu0 0.0
  %6091 = vmatprep.subr.mxu0 0.0
  %6092 = vmatpush1.msra.mxu0 0.0
  %6093 = vmatprep.subr.mxu0 0.0
  %6094 = vmatpush1.msra.mxu0 0.0
  %6095 = vmatprep.subr.mxu0 0.0
  %6096 = vmatpush1.msra.mxu0 0.0
  %6097 = vmatprep.subr.mxu0 0.0
  %6098 = vmatpush1.msra.mxu0 0.0
  %6099 = vmatprep.subr.mxu0 0.0
  %6100 = vmatpush1.msra.mxu0 0.0
  %6101 = vmatprep.subr.mxu0 0.0
  %6102 = vmatpush1.msra.mxu0 0.0
  %6103 = vmatprep.subr.mxu0 0.0
  %6104 = vmatpush1.msra.mxu0 0.0
  %6105 = vmatprep.subr.mxu0 0.0
  %6106 = vmatpush1.msra.mxu0 0.0
  %6107 = vmatprep.subr.mxu0 0.0
  %6108 = vmatpush1.msra.mxu0 0.0
  %6109 = vmatprep.subr.mxu0 0.0
  %6110 = vmatpush1.msra.mxu0 0.0
  %6111 = vmatprep.subr.mxu0 0.0
  %6112 = vmatpush1.msra.mxu0 0.0
  %6113 = vmatprep.subr.mxu0 0.0
  %6114 = vmatpush1.msra.mxu0 0.0
  %6115 = vmatprep.subr.mxu0 0.0
  %6116 = vmatpush1.msra.mxu0 0.0
  %6117 = vmatprep.subr.mxu0 0.0
  %6118 = vmatpush1.msra.mxu0 0.0
  %6119 = vmatprep.mubr.f32.mxu0 0.0
  %6120 = vmatmul.mubr.f32.gmra.mrb[0].mxu0 %v6053
  %v6121 = vpop.f32.mrb[0].mxu0
  %v6122 = vadd.f32 0.0, %v6121
  %v6123 = vpop.f32.mrb[0].mxu0
  %v6124 = vadd.f32 0.0, %v6123
  %6125 = vdwg.mxu0
  %6126 = vmatprep.subr.mxu0 0.0
  %6127 = vmatpush1.msra.mxu0 %v4796
  %6128 = vmatprep.subr.mxu0 0.0
  %6129 = vmatpush1.msra.mxu0 %v4799
  %6130 = vmatprep.subr.mxu0 0.0
  %6131 = vmatpush1.msra.mxu0 %v4802
  %6132 = vmatprep.subr.mxu0 0.0
  %6133 = vmatpush1.msra.mxu0 %v4805
  %6134 = vmatprep.subr.mxu0 0.0
  %6135 = vmatpush1.msra.mxu0 %v4808
  %6136 = vmatprep.subr.mxu0 0.0
  %6137 = vmatpush1.msra.mxu0 %v4811
  %6138 = vmatprep.subr.mxu0 0.0
  %6139 = vmatpush1.msra.mxu0 %v4814
  %6140 = vmatprep.subr.mxu0 0.0
  %6141 = vmatpush1.msra.mxu0 %v4817
  %6142 = vmatprep.subr.mxu0 0.0
  %6143 = vmatpush1.msra.mxu0 0.0
  %6144 = vmatprep.subr.mxu0 0.0
  %6145 = vmatpush1.msra.mxu0 0.0
  %6146 = vmatprep.subr.mxu0 0.0
  %6147 = vmatpush1.msra.mxu0 0.0
  %6148 = vmatprep.subr.mxu0 0.0
  %6149 = vmatpush1.msra.mxu0 0.0
  %6150 = vmatprep.subr.mxu0 0.0
  %6151 = vmatpush1.msra.mxu0 0.0
  %6152 = vmatprep.subr.mxu0 0.0
  %6153 = vmatpush1.msra.mxu0 0.0
  %6154 = vmatprep.subr.mxu0 0.0
  %6155 = vmatpush1.msra.mxu0 0.0
  %6156 = vmatprep.subr.mxu0 0.0
  %6157 = vmatpush1.msra.mxu0 0.0
  %6158 = vmatprep.subr.mxu0 0.0
  %6159 = vmatpush1.msra.mxu0 0.0
  %6160 = vmatprep.subr.mxu0 0.0
  %6161 = vmatpush1.msra.mxu0 0.0
  %6162 = vmatprep.subr.mxu0 0.0
  %6163 = vmatpush1.msra.mxu0 0.0
  %6164 = vmatprep.subr.mxu0 0.0
  %6165 = vmatpush1.msra.mxu0 0.0
  %6166 = vmatprep.subr.mxu0 0.0
  %6167 = vmatpush1.msra.mxu0 0.0
  %6168 = vmatprep.subr.mxu0 0.0
  %6169 = vmatpush1.msra.mxu0 0.0
  %6170 = vmatprep.subr.mxu0 0.0
  %6171 = vmatpush1.msra.mxu0 0.0
  %6172 = vmatprep.subr.mxu0 0.0
  %6173 = vmatpush1.msra.mxu0 0.0
  %6174 = vmatprep.subr.mxu0 0.0
  %6175 = vmatpush1.msra.mxu0 0.0
  %6176 = vmatprep.subr.mxu0 0.0
  %6177 = vmatpush1.msra.mxu0 0.0
  %6178 = vmatprep.subr.mxu0 0.0
  %6179 = vmatpush1.msra.mxu0 0.0
  %6180 = vmatprep.subr.mxu0 0.0
  %6181 = vmatpush1.msra.mxu0 0.0
  %6182 = vmatprep.subr.mxu0 0.0
  %6183 = vmatpush1.msra.mxu0 0.0
  %6184 = vmatprep.subr.mxu0 0.0
  %6185 = vmatpush1.msra.mxu0 0.0
  %6186 = vmatprep.subr.mxu0 0.0
  %6187 = vmatpush1.msra.mxu0 0.0
  %6188 = vmatprep.subr.mxu0 0.0
  %6189 = vmatpush1.msra.mxu0 0.0
  %6190 = vmatprep.mubr.f32.mxu0 0.0
  %6191 = vmatmul.mubr.f32.gmra.mrb[0].mxu0 %v6053
  %v6192 = vpop.f32.mrb[0].mxu0
  %v6193 = vadd.f32 0.0, %v6192
  %v6194 = vpop.f32.mrb[0].mxu0
  %6195 = vdwg.mxu0
  %v6196 = vadd.f32 %v6049, %v6122
  %v6197 = vxor.u32 %v6196, 2147483648
  %v6198 = vmul.f32 %v6197, 1.442695
  %v6199 = vpow.pop %v6198
  %v6200 = vadd.f32 %v6199, 1.0
  %v6201 = vrcp.pop %v6200
  %v6202 = vmul.f32 1.0, %v6201
  %v6203 = vadd.f32 %v6050, %v6124
  %v6204 = vxor.u32 %v6203, 2147483648
  %v6205 = vmul.f32 %v6204, 1.442695
  %v6206 = vpow.pop %v6205
  %v6207 = vadd.f32 %v6206, 1.0
  %v6208 = vrcp.pop %v6207
  %v6209 = vmul.f32 1.0, %v6208
  %v6210 = vadd.f32 %v6193, %v4822
  %v6211 = vmul.f32 %v6202, %v6210
  %v6212 = vadd.f32 %v6051, %v6211
  %v6213 = vtanh.pop %v6212
  %v6214 = vsub.f32 %v6042, %v6213
  %v6215 = vmul.f32 %v6209, %v6214
  %v6216 = vadd.f32 %v6213, %v6215
  %v6217 = vld [vmem:[%s3] sm:$0xff]
  %v6218 = vld [vmem:[%s3 + $0x8] sm:$0xff]
  %v6219 = vld [vmem:[%s3 + $0x10] sm:$0xff]
  %v6220 = vld [vmem:[%s3 + $0x18] sm:$0xff]
  %v6221 = vld [vmem:[%s3 + $0x20] sm:$0xff]
  %v6222 = vld [vmem:[%s3 + $0x28] sm:$0xff]
  %v6223 = vld [vmem:[%s3 + $0x30] sm:$0xff]
  %v6224 = vld [vmem:[%s3 + $0x38] sm:$0xff]
  %v6225 = vld [vmem:[%s3 + $0x40] sm:$0xff]
  %v6226 = vld [vmem:[%s3 + $0x48] sm:$0xff]
  %v6227 = vld [vmem:[%s3 + $0x50] sm:$0xff]
  %v6228 = vld [vmem:[%s3 + $0x58] sm:$0xff]
  %v6229 = vld [vmem:[%s3 + $0x60] sm:$0xff]
  %v6230 = vld [vmem:[%s3 + $0x68] sm:$0xff]
  %v6231 = vld [vmem:[%s3 + $0x70] sm:$0xff]
  %v6232 = vld [vmem:[%s3 + $0x78] sm:$0xff]
  %v6234 = vsel %vm438, %v6216, 0
  %6236 = vmatprep.subr.mxu0 0.0
  %6237 = vmatpush1.msra.mxu0 %v6225
  %6238 = vmatprep.subr.mxu0 0.0
  %6239 = vmatpush1.msra.mxu0 %v6226
  %6240 = vmatprep.subr.mxu0 0.0
  %6241 = vmatpush1.msra.mxu0 %v6227
  %6242 = vmatprep.subr.mxu0 0.0
  %6243 = vmatpush1.msra.mxu0 %v6228
  %6244 = vmatprep.subr.mxu0 0.0
  %6245 = vmatpush1.msra.mxu0 %v6229
  %6246 = vmatprep.subr.mxu0 0.0
  %6247 = vmatpush1.msra.mxu0 %v6230
  %6248 = vmatprep.subr.mxu0 0.0
  %6249 = vmatpush1.msra.mxu0 %v6231
  %6250 = vmatprep.subr.mxu0 0.0
  %6251 = vmatpush1.msra.mxu0 %v6232
  %6252 = vmatprep.subr.mxu0 0.0
  %6253 = vmatpush1.msra.mxu0 0.0
  %6254 = vmatprep.subr.mxu0 0.0
  %6255 = vmatpush1.msra.mxu0 0.0
  %6256 = vmatprep.subr.mxu0 0.0
  %6257 = vmatpush1.msra.mxu0 0.0
  %6258 = vmatprep.subr.mxu0 0.0
  %6259 = vmatpush1.msra.mxu0 0.0
  %6260 = vmatprep.subr.mxu0 0.0
  %6261 = vmatpush1.msra.mxu0 0.0
  %6262 = vmatprep.subr.mxu0 0.0
  %6263 = vmatpush1.msra.mxu0 0.0
  %6264 = vmatprep.subr.mxu0 0.0
  %6265 = vmatpush1.msra.mxu0 0.0
  %6266 = vmatprep.subr.mxu0 0.0
  %6267 = vmatpush1.msra.mxu0 0.0
  %6268 = vmatprep.subr.mxu0 0.0
  %6269 = vmatpush1.msra.mxu0 0.0
  %6270 = vmatprep.subr.mxu0 0.0
  %6271 = vmatpush1.msra.mxu0 0.0
  %6272 = vmatprep.subr.mxu0 0.0
  %6273 = vmatpush1.msra.mxu0 0.0
  %6274 = vmatprep.subr.mxu0 0.0
  %6275 = vmatpush1.msra.mxu0 0.0
  %6276 = vmatprep.subr.mxu0 0.0
  %6277 = vmatpush1.msra.mxu0 0.0
  %6278 = vmatprep.subr.mxu0 0.0
  %6279 = vmatpush1.msra.mxu0 0.0
  %6280 = vmatprep.subr.mxu0 0.0
  %6281 = vmatpush1.msra.mxu0 0.0
  %6282 = vmatprep.subr.mxu0 0.0
  %6283 = vmatpush1.msra.mxu0 0.0
  %6284 = vmatprep.subr.mxu0 0.0
  %6285 = vmatpush1.msra.mxu0 0.0
  %6286 = vmatprep.subr.mxu0 0.0
  %6287 = vmatpush1.msra.mxu0 0.0
  %6288 = vmatprep.subr.mxu0 0.0
  %6289 = vmatpush1.msra.mxu0 0.0
  %6290 = vmatprep.subr.mxu0 0.0
  %6291 = vmatpush1.msra.mxu0 0.0
  %6292 = vmatprep.subr.mxu0 0.0
  %6293 = vmatpush1.msra.mxu0 0.0
  %6294 = vmatprep.subr.mxu0 0.0
  %6295 = vmatpush1.msra.mxu0 0.0
  %6296 = vmatprep.subr.mxu0 0.0
  %6297 = vmatpush1.msra.mxu0 0.0
  %6298 = vmatprep.subr.mxu0 0.0
  %6299 = vmatpush1.msra.mxu0 0.0
  %6300 = vmatprep.mubr.f32.mxu0 0.0
  %6301 = vmatmul.mubr.f32.gmra.mrb[0].mxu0 %v6234
  %v6302 = vpop.f32.mrb[0].mxu0
  %v6303 = vadd.f32 0.0, %v6302
  %v6304 = vpop.f32.mrb[0].mxu0
  %6305 = vdwg.mxu0
  %6306 = vmatprep.subr.mxu0 0.0
  %6307 = vmatpush1.msra.mxu0 %v6217
  %6308 = vmatprep.subr.mxu0 0.0
  %6309 = vmatpush1.msra.mxu0 %v6218
  %6310 = vmatprep.subr.mxu0 0.0
  %6311 = vmatpush1.msra.mxu0 %v6219
  %6312 = vmatprep.subr.mxu0 0.0
  %6313 = vmatpush1.msra.mxu0 %v6220
  %6314 = vmatprep.subr.mxu0 0.0
  %6315 = vmatpush1.msra.mxu0 %v6221
  %6316 = vmatprep.subr.mxu0 0.0
  %6317 = vmatpush1.msra.mxu0 %v6222
  %6318 = vmatprep.subr.mxu0 0.0
  %6319 = vmatpush1.msra.mxu0 %v6223
  %6320 = vmatprep.subr.mxu0 0.0
  %6321 = vmatpush1.msra.mxu0 %v6224
  %6322 = vmatprep.subr.mxu0 0.0
  %6323 = vmatpush1.msra.mxu0 0.0
  %6324 = vmatprep.subr.mxu0 0.0
  %6325 = vmatpush1.msra.mxu0 0.0
  %6326 = vmatprep.subr.mxu0 0.0
  %6327 = vmatpush1.msra.mxu0 0.0
  %6328 = vmatprep.subr.mxu0 0.0
  %6329 = vmatpush1.msra.mxu0 0.0
  %6330 = vmatprep.subr.mxu0 0.0
  %6331 = vmatpush1.msra.mxu0 0.0
  %6332 = vmatprep.subr.mxu0 0.0
  %6333 = vmatpush1.msra.mxu0 0.0
  %6334 = vmatprep.subr.mxu0 0.0
  %6335 = vmatpush1.msra.mxu0 0.0
  %6336 = vmatprep.subr.mxu0 0.0
  %6337 = vmatpush1.msra.mxu0 0.0
  %6338 = vmatprep.subr.mxu0 0.0
  %6339 = vmatpush1.msra.mxu0 0.0
  %6340 = vmatprep.subr.mxu0 0.0
  %6341 = vmatpush1.msra.mxu0 0.0
  %6342 = vmatprep.subr.mxu0 0.0
  %6343 = vmatpush1.msra.mxu0 0.0
  %6344 = vmatprep.subr.mxu0 0.0
  %6345 = vmatpush1.msra.mxu0 0.0
  %6346 = vmatprep.subr.mxu0 0.0
  %6347 = vmatpush1.msra.mxu0 0.0
  %6348 = vmatprep.subr.mxu0 0.0
  %6349 = vmatpush1.msra.mxu0 0.0
  %6350 = vmatprep.subr.mxu0 0.0
  %6351 = vmatpush1.msra.mxu0 0.0
  %6352 = vmatprep.subr.mxu0 0.0
  %6353 = vmatpush1.msra.mxu0 0.0
  %6354 = vmatprep.subr.mxu0 0.0
  %6355 = vmatpush1.msra.mxu0 0.0
  %6356 = vmatprep.subr.mxu0 0.0
  %6357 = vmatpush1.msra.mxu0 0.0
  %6358 = vmatprep.subr.mxu0 0.0
  %6359 = vmatpush1.msra.mxu0 0.0
  %6360 = vmatprep.subr.mxu0 0.0
  %6361 = vmatpush1.msra.mxu0 0.0
  %6362 = vmatprep.subr.mxu0 0.0
  %6363 = vmatpush1.msra.mxu0 0.0
  %6364 = vmatprep.subr.mxu0 0.0
  %6365 = vmatpush1.msra.mxu0 0.0
  %6366 = vmatprep.subr.mxu0 0.0
  %6367 = vmatpush1.msra.mxu0 0.0
  %6368 = vmatprep.subr.mxu0 0.0
  %6369 = vmatpush1.msra.mxu0 0.0
  %6370 = vmatprep.mubr.f32.mxu0 0.0
  %6371 = vmatmul.mubr.f32.gmra.mrb[0].mxu0 %v4476
  %v6372 = vpop.f32.mrb[0].mxu0
  %v6373 = vadd.f32 %v6303, %v6372
  %v6374 = vpop.f32.mrb[0].mxu0
  %6375 = vdwg.mxu0
  %v6376 = vld [vmem:[%s4] sm:$0x1]
  %v6377 = vlaneseq
  %v6378 = vshrl.u32 %v6377, 7
  %v6379 = vsub.s32 0, %v6378
  %v6380 = vrot.slane %v6376, %v6379
  %v6381 = vadd.f32 %v6373, %v6380
  %v6382 = vtanh.pop %v6381
  %v6383 = vld [vmem:[%s4 + $0x1] sm:$0x1]
  %v6384 = vlaneseq
  %v6385 = vshrl.u32 %v6384, 7
  %v6386 = vsub.s32 0, %v6385
  %v6387 = vrot.slane %v6383, %v6386
  %v6388 = vmul.f32 %v6382, %v6387
  %vm6389 = vcmask 261120
  %v6390 = vsel %vm6389, %v6388, 0.0
  %6391 = vadd.xlane.f32.xlu0 %v6390
  %v6392 = vpop.xlane.xlu0 %6391
  %v6393 = vld [vmem:[%s4 + $0x2] sm:$0x1]
  %v6394 = vlaneseq
  %v6395 = vshrl.u32 %v6394, 7
  %v6396 = vsub.s32 0, %v6395
  %v6397 = vrot.slane %v6393, %v6396
  %v6398 = vadd.f32 %v6392, %v6397
  %v6399 = vxor.u32 %v6398, 2147483648
  %v6400 = vmul.f32 %v6399, 1.442695
  %v6401 = vpow.pop %v6400
  %v6402 = vadd.f32 %v6401, 1.0
  %v6403 = vrcp.pop %v6402
  %v6404 = vmul.f32 1.0, %v6403
  %vm6405 = vcmask 1024
  %6406 = vst.msk [vmem:[%s6] sm:$0x3] %vm6405, %v6404
  // Predicated region
  $region124: #{discriminator_forward.1} parent=0 // pred_check
    _
  $region125: #{discriminator_forward.1} parent=0 // pred_check_branch
    %6408 = sbr.rel (0) target = $region127
  $region126: #{discriminator_forward.1} parent=0 // pred_region
    _
  $region127: #{discriminator_forward.1} parent=0 // pred_fallthru
    _
  // Predicated region
  $region128: #{discriminator_forward.1} parent=0 // pred_check
    _
  $region129: #{discriminator_forward.1} parent=0 // pred_check_branch
    %6410 = sbr.rel (0) target = $region131
  $region130: #{discriminator_forward.1} parent=0 // pred_region
    _
  $region131: #{discriminator_forward.1} parent=0 // pred_fallthru
    _
  %6411 = vsyncmov [#allocation8]
  %s6412 = vpop.sfrf %6411
  %p6413 = scmp.eq.s32.totalorder %s6412, 0
  %p6414 = pneg %p6413
  %6416 = shalt.err (%p6414)
  %s6417 = scalar_lea.sflag [#allocation8], 1
  %6418 = vsyncmov %s6417
  %s6419 = vpop.sfrf %6418
  %p6420 = scmp.eq.s32.totalorder %s6419, 0
  %p6421 = pneg %p6420
  %6423 = shalt.err (%p6421)
  %s6424 = scalar_lea.sflag [#allocation8], 2
  %6425 = vsyncmov %s6424
  %s6426 = vpop.sfrf %6425
  %p6427 = scmp.eq.s32.totalorder %s6426, 0
  %p6428 = pneg %p6427
  %6430 = shalt.err (%p6428)

</llo_original>
